<compile_context>
chip_gen: v7x
topology: tpu7x:2x2x1
jax: 0.10.0
libtpu: 0.0.40
codegen_flags: <defaults>
</compile_context>

<pallas_src>
import jax
import jax.numpy as jnp
from jax.experimental import pallas as pl
from jax.experimental.pallas import tpu as pltpu

# ----------------------------- small config ---------------------------------
B = 2        # batch
T = 8        # num_of_timestamps
V = 8        # num_of_variables
D = 32       # hidden_dim
DS = 4       # d_static
NC = 2       # n_class
Q = 5        # query_vector_dim
NE = 8       # node_emb_dim
PLM = 64     # plm_rep_dim (small synthetic stand-in for 768)
RARITY_ALPHA = 0.5
OUTW = 128   # lane-padded fused output row width


def _sigmoid(x):
    # EUP-friendly: one tanh + cheap VALU instead of exp + divide.
    return 0.5 * (jnp.tanh(0.5 * x) + 1.0)


# ------------------------------ Pallas kernel -------------------------------
def _make_kernel(Tn, Vn, Dn, DSn, NCn, Qn, NEn, PLMn, off):
    """Build the fused KEDGN kernel (generic over the batch-block size)."""
    f32 = jnp.float32
    bf16 = jnp.bfloat16

    def kernel(seq_ref,     # (Bb, T, 4V)  [data | mask | time | avg_interval]
               static_ref,  # (Bb, 1, DS)
               plm_ref,     # (Bb, V, PLM) variable PLM representations
               tab_ref,     # (R, D)       packed constant table (see offsets)
               projw_ref,   # (PLM, Q+NE)  [proj_f_w | proj_g_w]
               bx_ref,      # (Q*D+Q, 3D)  bf16 input-side basis, bias folded
               bhrz_ref,    # (Q*D, 2D)    bf16 hidden-side basis, gates r|z
               bhn_ref,     # (Q*D, D)     bf16 hidden-side basis, candidate n
               out_ref):    # (Bb, 1, OUTW) [logits | agg | static_emb | pad]
        Bb = seq_ref.shape[0]
        rows = Bb * Tn * Vn

        seq = seq_ref[...]
        data = seq[:, :, 0 * Vn:1 * Vn]
        mask = seq[:, :, 1 * Vn:2 * Vn]
        tms = seq[:, :, 2 * Vn:3 * Vn]
        ivs = seq[:, :, 3 * Vn:4 * Vn]

        # --- constant table unpack (static slices of one VMEM load) -------
        tab = tab_ref[...]
        vw = tab[off['val_w']]
        vb = tab[off['val_b']]
        tw = tab[off['tw']]
        tb = tab[off['tb']]
        tmask = tab[off['tmask']]
        emb_b = tab[off['emb_b']]
        c1_b = tab[off['c1_b']]
        c2_b = tab[off['c2_b'], :NCn]
        pf_b = tab[off['projf_b'], :Qn]
        pg_b = tab[off['projg_b'], :NEn]
        type_e = tab[off['type_emb']:off['type_emb'] + Vn]
        rarw = tab[off['rarity_W']:off['rarity_W'] + Vn, :Vn]
        emb_w = tab[off['emb_w']:off['emb_w'] + DSn]
        c1_w = tab[off['c1_w']:off['c1_w'] + Vn + Dn]
        c2_w = tab[off['c2_w']:off['c2_w'] + Dn, :NCn]

        # --- PLM projections: query vectors + density (base) adjacency ----
        plm = plm_ref[...].reshape(Bb * Vn, PLMn)
        qn = jnp.dot(plm, projw_ref[...], preferred_element_type=f32)
        qv_flat = qn[:, :Qn] + pf_b                          # (Bb*V, Q)
        node_e = (qn[:, Qn:] + pg_b).reshape(Bb, Vn, NEn)    # (Bb, V, NE)
        adj_rel = jnp.maximum(
            jnp.einsum('bve,bwe->bvw', node_e, node_e,
                       preferred_element_type=f32), 0.0)     # (Bb, V, V)

        # --- value / time / type encodings, all (b, t) at once ------------
        val = data[..., None] * vw + vb                      # (Bb,T,V,D)
        raw = tms[..., None] * tw + tb
        tem = jnp.where(tmask > 0.5, jnp.sin(raw), raw)
        x_all = (val + tem + type_e[None, None]) * mask[..., None]

        # --- hoisted input-side gate projections, ONE matmul, bias folded --
        x_flat = x_all.reshape(rows, Dn)                     # (rows, D)
        qv_rep = jnp.broadcast_to(
            qv_flat.reshape(Bb, 1, Vn, Qn),
            (Bb, Tn, Vn, Qn)).reshape(rows, Qn)              # (rows, Q)
        lhs_x = jnp.concatenate(
            [x_flat * qv_rep[:, qi:qi + 1] for qi in range(Qn)] + [qv_rep],
            axis=-1).astype(bf16)                            # (rows, Q*D+Q)
        gx = jnp.dot(lhs_x, bx_ref[...],
                     preferred_element_type=f32)             # (rows, 3D)
        gx4 = gx.reshape(Bb, Tn, Vn, 3 * Dn)

        # --- dynamic adjacency for ALL timesteps (off the critical path) ---
        rar = RARITY_ALPHA * jnp.tanh(
            rarw[None, None] * (0.5 * (ivs[..., :, None] + ivs[..., None, :])))
        a = adj_rel[:, None] * (1.0 + rar)                   # (Bb,T,V,V)
        a = a * (mask[..., :, None] * mask[..., None, :])
        a = a * pl.reciprocal(jnp.sum(a, axis=-1, keepdims=True) + 1e-6,
                              approx=True)

        bhrz = bhrz_ref[...]
        bhn = bhn_ref[...]
        upd = mask[..., None]                                # (Bb,T,V,1)

        # --- serial GRU-GCN recurrence over T (h carried in vregs) --------
        h = jnp.zeros((Bb, Vn, Dn), f32)
        for t in range(Tn):
            msg = jnp.einsum('bvw,bwd->bvd', a[:, t], h,
                             preferred_element_type=f32)     # (Bb,V,D)
            msg_f = msg.reshape(Bb * Vn, Dn)

            kron_h = jnp.concatenate(
                [msg_f * qv_flat[:, qi:qi + 1] for qi in range(Qn)],
                axis=-1).astype(bf16)                        # (Bb*V, Q*D)
            gh_rz = jnp.dot(kron_h, bhrz, preferred_element_type=f32)

            gx_t = gx4[:, t].reshape(Bb * Vn, 3 * Dn)
            r = _sigmoid(gx_t[:, :Dn] + gh_rz[:, :Dn])
            z = _sigmoid(gx_t[:, Dn:2 * Dn] + gh_rz[:, Dn:])

            kron_r = jnp.concatenate(
                [(r * msg_f) * qv_flat[:, qi:qi + 1] for qi in range(Qn)],
                axis=-1).astype(bf16)                        # (Bb*V, Q*D)
            gh_n = jnp.dot(kron_r, bhn, preferred_element_type=f32)
            n = jnp.tanh(gx_t[:, 2 * Dn:] + gh_n)

            h_f = h.reshape(Bb * Vn, Dn)
            h_new = ((1.0 - z) * n + z * h_f).reshape(Bb, Vn, Dn)
            m_t = upd[:, t]                                  # (Bb,V,1)
            h = m_t * h_new + (1.0 - m_t) * h

        # --- aggregation, static fusion, classifier ------------------------
        agg = jnp.sum(h, axis=-1)                            # (Bb, V)
        se = jnp.dot(static_ref[:, 0, :], emb_w,
                     preferred_element_type=f32) + emb_b     # (Bb, D)
        fused = jnp.concatenate([agg, se], axis=-1)          # (Bb, V+D)
        h1 = jnp.maximum(
            jnp.dot(fused, c1_w, preferred_element_type=f32) + c1_b, 0.0)
        logits = jnp.dot(h1, c2_w, preferred_element_type=f32) + c2_b

        row = jnp.concatenate([logits, agg, se], axis=-1)    # (Bb, NC+V+D)
        pad = OUTW - (NCn + Vn + Dn)
        if pad:
            row = jnp.concatenate(
                [row, jnp.zeros((Bb, pad), f32)], axis=-1)
        out_ref[...] = row[:, None, :]

    return kernel


# ------------------------------ parameter packing ----------------------------
def pack_params(p):
    """One-time packing of raw parameters into kernel-friendly constants."""
    Vn, Dn = p['type_emb'].shape
    DSn = p['emb_w'].shape[0]
    NCn = p['c2_w'].shape[1]
    Qn = p['basis_x'].shape[1]
    NEn = p['proj_g_w'].shape[1]
    PLMn = p['proj_f_w'].shape[0]

    def pad_lanes(x):
        return jnp.pad(x, ((0, 0), (0, Dn - x.shape[1])))

    rows, off = [], {}

    def add(name, arr):
        off[name] = sum(r.shape[0] for r in rows)
        rows.append(arr.astype(jnp.float32))

    tw = jnp.concatenate([p['tlin_w'], p['tper_w']])[None, :]
    tb = jnp.concatenate([p['tlin_b'], p['tper_b']])[None, :]
    tmask = jnp.concatenate([jnp.zeros((1,), jnp.float32),
                             jnp.ones((Dn - 1,), jnp.float32)])[None, :]

    add('val_w', p['val_w'])
    add('val_b', p['val_b'])
    add('tw', tw)
    add('tb', tb)
    add('tmask', tmask)
    add('emb_b', p['emb_b'])
    add('c1_b', p['c1_b'])
    add('c2_b', pad_lanes(p['c2_b']))
    add('projf_b', pad_lanes(p['proj_f_b'][None, :]))
    add('projg_b', pad_lanes(p['proj_g_b'][None, :]))
    add('type_emb', p['type_emb'])
    add('rarity_W', pad_lanes(p['rarity_W']))
    add('emb_w', p['emb_w'])
    add('c1_w', p['c1_w'])
    add('c2_w', pad_lanes(p['c2_w']))
    tab = jnp.concatenate(rows, axis=0)                      # (R, D)

    projw = jnp.concatenate([p['proj_f_w'], p['proj_g_w']], axis=-1)

    # GRU bases, Kronecker-packed:  row = q*D + d,  col = gate*D + e
    bx = jnp.transpose(p['basis_x'], (1, 2, 0, 3)).reshape(Qn * Dn, 3 * Dn)
    bb = jnp.transpose(p['basis_b'], (1, 0, 2)).reshape(Qn, 3 * Dn)
    bx_aug = jnp.concatenate([bx, bb], axis=0).astype(jnp.bfloat16)
    bh_rz = jnp.transpose(p['basis_h'][:2],
                          (1, 2, 0, 3)).reshape(Qn * Dn, 2 * Dn).astype(jnp.bfloat16)
    bh_n = p['basis_h'][2].reshape(Qn * Dn, Dn).astype(jnp.bfloat16)

    return dict(tab=tab, projw=projw, bx=bx_aug, bh_rz=bh_rz, bh_n=bh_n,
                offsets=off,
                dims=dict(V=Vn, D=Dn, DS=DSn, NC=NCn, Q=Qn, NE=NEn, PLM=PLMn))


def _dual_tensorcore():
    """True on chips with 2 TensorCores per device (v7x); best split the batch."""
    try:
        kind = jax.devices()[0].device_kind.lower()
    except Exception:
        return False
    return ('v7' in kind) or ('7x' in kind)


# ------------------------------ wrapper / glue -------------------------------
def kedgn_forward(packed, P, P_static, P_avg_interval, P_length, P_time,
                  P_var_plm_rep_tensor):
    dims = packed['dims']
    off = packed['offsets']
    Vn, Dn, DSn, NCn = dims['V'], dims['D'], dims['DS'], dims['NC']
    Qn, NEn, PLMn = dims['Q'], dims['NE'], dims['PLM']

    Bn, Tn, V2 = P.shape
    assert V2 == 2 * Vn

    obs = P[:, :, :Vn].astype(jnp.float32)
    msk = P[:, :, Vn:].astype(jnp.float32)
    if P_time.ndim == 2:
        P_time = jnp.broadcast_to(P_time[:, :, None], (Bn, Tn, Vn))
    seq = jnp.concatenate([obs, msk, P_time.astype(jnp.float32),
                           P_avg_interval.astype(jnp.float32)], axis=-1)
    static3 = P_static.astype(jnp.float32).reshape(Bn, 1, DSn)
    plm = P_var_plm_rep_tensor.astype(jnp.float32)

    # TODO(synk): P_length is used by the reference VSDGCRNN to normalize the
    # rarity score; its exact use is not shown in the provided source so it is
    # accepted but unused here.
    del P_length

    # Dual-TC (v7x): one batch element per grid step, split across cores.
    # Single-TC (v5e/v6e): merge the whole batch into one grid step.
    per_batch = _dual_tensorcore() and Bn > 1
    Bblk = 1 if per_batch else Bn
    grid = (Bn // Bblk,)

    def bspec(tail):
        nd = len(tail)
        return pl.BlockSpec((Bblk,) + tail, lambda i, nd=nd: (i,) + (0,) * nd)

    def cspec(shape):
        nd = len(shape)
        return pl.BlockSpec(shape, lambda i, nd=nd: (0,) * nd)

    kernel = _make_kernel(Tn, Vn, Dn, DSn, NCn, Qn, NEn, PLMn, off)

    out = pl.pallas_call(
        kernel,
        grid_spec=pltpu.PrefetchScalarGridSpec(
            num_scalar_prefetch=0,
            grid=grid,
            in_specs=[
                bspec((Tn, 4 * Vn)),                 # packed sequence tensors
                bspec((1, DSn)),                     # static features
                bspec((Vn, PLMn)),                   # PLM variable reps
                cspec(packed['tab'].shape),          # constant table
                cspec(packed['projw'].shape),        # PLM projection weights
                cspec(packed['bx'].shape),           # GRU input basis (+bias)
                cspec(packed['bh_rz'].shape),        # GRU hidden basis r|z
                cspec(packed['bh_n'].shape),         # GRU hidden basis n
            ],
            out_specs=bspec((1, OUTW)),
        ),
        out_shape=jax.ShapeDtypeStruct((Bn, 1, OUTW), jnp.float32),
        compiler_params=pltpu.CompilerParams(
            dimension_semantics=("parallel",)),
    )(seq, static3, plm, packed['tab'], packed['projw'],
      packed['bx'], packed['bh_rz'], packed['bh_n'])

    o = out.reshape(Bn, OUTW)
    logits = o[:, :NCn]
    agg = o[:, NCn:NCn + Vn]
    fused = o[:, NCn:NCn + Vn + Dn]
    return logits, agg, fused


# ------------------------------ parameter init -------------------------------
def init_params(key):
    ks = jax.random.split(key, 16)

    def nrm(k, shape, scale=0.1):
        return scale * jax.random.normal(k, shape, dtype=jnp.float32)

    return {
        'val_w': nrm(ks[0], (1, D)),
        'val_b': nrm(ks[1], (1, D)),
        'tlin_w': nrm(ks[2], (1,)),
        'tlin_b': nrm(ks[3], (1,)),
        'tper_w': nrm(ks[4], (D - 1,)),
        'tper_b': nrm(ks[5], (D - 1,)),
        'type_emb': nrm(ks[6], (V, D)),
        'proj_f_w': nrm(ks[7], (PLM, Q)),
        'proj_f_b': jnp.zeros((Q,), jnp.float32),
        'proj_g_w': nrm(ks[8], (PLM, NE)),
        'proj_g_b': jnp.zeros((NE,), jnp.float32),
        'basis_x': nrm(ks[9], (3, Q, D, D)),
        'basis_h': nrm(ks[10], (3, Q, D, D)),
        'basis_b': nrm(ks[11], (3, Q, D)),
        'rarity_W': nrm(ks[12], (V, V), 1.0),
        'emb_w': nrm(ks[13], (DS, D)),
        'emb_b': jnp.zeros((1, D), jnp.float32),
        'c1_w': nrm(ks[14], (V + D, D)),
        'c1_b': jnp.zeros((1, D), jnp.float32),
        'c2_w': nrm(ks[15], (D, NC)),
        'c2_b': jnp.zeros((1, NC), jnp.float32),
    }


# ----------------------------------- main ------------------------------------
if __name__ == "__main__":
    root = jax.random.PRNGKey(0)
    kp, k1, k2, k3, k4, k5, k6 = jax.random.split(root, 7)

    params = init_params(kp)
    packed = pack_params(params)       # one-time basis / table packing

    values = jax.random.normal(k1, (B, T, V), dtype=jnp.float32)
    mask = (jax.random.uniform(k2, (B, T, V)) > 0.4).astype(jnp.float32)
    P = jnp.concatenate([values * mask, mask], axis=-1)            # [B, T, 2V]
    P_static = jax.random.normal(k3, (B, DS), dtype=jnp.float32)   # [B, d_static]
    P_time = jnp.cumsum(jax.random.uniform(k4, (B, T, V)), axis=1).astype(jnp.float32)
    P_avg_interval = jax.random.uniform(k5, (B, T, V), dtype=jnp.float32)
    P_length = jnp.full((B, 1), float(T), dtype=jnp.float32)
    P_var_plm_rep = jax.random.normal(k6, (B, V, PLM), dtype=jnp.float32)

    out, agg, fused = kedgn_forward(packed, P, P_static, P_avg_interval,
                                    P_length, P_time, P_var_plm_rep)
    jax.block_until_ready((out, agg, fused))

    assert out.shape == (B, NC)
    assert agg.shape == (B, V)
    assert fused.shape == (B, V + D)
    assert bool(jnp.all(jnp.isfinite(out)))
    assert bool(jnp.all(jnp.isfinite(fused)))
    print("KERNEL_OK")
</pallas_src>

<mosaic_0001>
module attributes {stable_mosaic.version = 11 : i64} {
  func.func @kernel(%arg0: i32, %arg1: memref<2x8x32xf32, #tpu.memory_space<vmem>>, %arg2: memref<2x1x4xf32, #tpu.memory_space<vmem>>, %arg3: memref<2x8x64xf32, #tpu.memory_space<vmem>>, %arg4: memref<102x32xf32, #tpu.memory_space<vmem>>, %arg5: memref<64x13xf32, #tpu.memory_space<vmem>>, %arg6: memref<165x96xbf16, #tpu.memory_space<vmem>>, %arg7: memref<160x64xbf16, #tpu.memory_space<vmem>>, %arg8: memref<160x32xbf16, #tpu.memory_space<vmem>>, %arg9: memref<2x1x128xf32, #tpu.memory_space<vmem>>) attributes {dimension_semantics = [#tpu.dimension_semantics<parallel>], iteration_bounds = array<i64: 1>, scalar_prefetch = 0 : i64, scratch_operands = 0 : i64, tpu.core_type = #tpu.core_type<tc>, window_params = [{transform_indices = @transform_0, window_bounds = array<i64: 2, 8, 32>}, {transform_indices = @transform_1, window_bounds = array<i64: 2, 1, 4>}, {transform_indices = @transform_2, window_bounds = array<i64: 2, 8, 64>}, {pipeline_mode = #tpu.pipeline_mode<synchronous>, transform_indices = @transform_3, window_bounds = array<i64: 102, 32>}, {pipeline_mode = #tpu.pipeline_mode<synchronous>, transform_indices = @transform_4, window_bounds = array<i64: 64, 13>}, {pipeline_mode = #tpu.pipeline_mode<synchronous>, transform_indices = @transform_5, window_bounds = array<i64: 165, 96>}, {pipeline_mode = #tpu.pipeline_mode<synchronous>, transform_indices = @transform_6, window_bounds = array<i64: 160, 64>}, {pipeline_mode = #tpu.pipeline_mode<synchronous>, transform_indices = @transform_7, window_bounds = array<i64: 160, 32>}, {transform_indices = @transform_8, window_bounds = array<i64: 2, 1, 128>}]} {
    %c0 = arith.constant 0 : index
    %c0_0 = arith.constant 0 : index
    %c0_1 = arith.constant 0 : index
    %0 = vector.load %arg1[%c0, %c0_0, %c0_1] : memref<2x8x32xf32, #tpu.memory_space<vmem>>, vector<2x8x32xf32>
    %1 = vector.extract_strided_slice %0 {offsets = [0, 0, 0], sizes = [2, 8, 8], strides = [1, 1, 1]} : vector<2x8x32xf32> to vector<2x8x8xf32>
    %2 = vector.extract_strided_slice %0 {offsets = [0, 0, 8], sizes = [2, 8, 8], strides = [1, 1, 1]} : vector<2x8x32xf32> to vector<2x8x8xf32>
    %3 = vector.extract_strided_slice %0 {offsets = [0, 0, 16], sizes = [2, 8, 8], strides = [1, 1, 1]} : vector<2x8x32xf32> to vector<2x8x8xf32>
    %4 = vector.extract_strided_slice %0 {offsets = [0, 0, 24], sizes = [2, 8, 8], strides = [1, 1, 1]} : vector<2x8x32xf32> to vector<2x8x8xf32>
    %c0_2 = arith.constant 0 : index
    %c0_3 = arith.constant 0 : index
    %5 = vector.load %arg4[%c0_2, %c0_3] : memref<102x32xf32, #tpu.memory_space<vmem>>, vector<102x32xf32>
    %6 = vector.extract_strided_slice %5 {offsets = [0, 0], sizes = [1, 32], strides = [1, 1]} : vector<102x32xf32> to vector<1x32xf32>
    %7 = vector.shape_cast %6 : vector<1x32xf32> to vector<32xf32>
    %8 = vector.extract_strided_slice %5 {offsets = [1, 0], sizes = [1, 32], strides = [1, 1]} : vector<102x32xf32> to vector<1x32xf32>
    %9 = vector.shape_cast %8 : vector<1x32xf32> to vector<32xf32>
    %10 = vector.extract_strided_slice %5 {offsets = [2, 0], sizes = [1, 32], strides = [1, 1]} : vector<102x32xf32> to vector<1x32xf32>
    %11 = vector.shape_cast %10 : vector<1x32xf32> to vector<32xf32>
    %12 = vector.extract_strided_slice %5 {offsets = [3, 0], sizes = [1, 32], strides = [1, 1]} : vector<102x32xf32> to vector<1x32xf32>
    %13 = vector.shape_cast %12 : vector<1x32xf32> to vector<32xf32>
    %14 = vector.extract_strided_slice %5 {offsets = [4, 0], sizes = [1, 32], strides = [1, 1]} : vector<102x32xf32> to vector<1x32xf32>
    %15 = vector.shape_cast %14 : vector<1x32xf32> to vector<32xf32>
    %16 = vector.extract_strided_slice %5 {offsets = [5, 0], sizes = [1, 32], strides = [1, 1]} : vector<102x32xf32> to vector<1x32xf32>
    %17 = vector.shape_cast %16 : vector<1x32xf32> to vector<32xf32>
    %18 = vector.extract_strided_slice %5 {offsets = [6, 0], sizes = [1, 32], strides = [1, 1]} : vector<102x32xf32> to vector<1x32xf32>
    %19 = vector.shape_cast %18 : vector<1x32xf32> to vector<32xf32>
    %20 = vector.extract_strided_slice %5 {offsets = [7, 0], sizes = [1, 2], strides = [1, 1]} : vector<102x32xf32> to vector<1x2xf32>
    %21 = vector.shape_cast %20 : vector<1x2xf32> to vector<2xf32>
    %22 = vector.extract_strided_slice %5 {offsets = [8, 0], sizes = [1, 5], strides = [1, 1]} : vector<102x32xf32> to vector<1x5xf32>
    %23 = vector.shape_cast %22 : vector<1x5xf32> to vector<5xf32>
    %24 = vector.extract_strided_slice %5 {offsets = [9, 0], sizes = [1, 8], strides = [1, 1]} : vector<102x32xf32> to vector<1x8xf32>
    %25 = vector.shape_cast %24 : vector<1x8xf32> to vector<8xf32>
    %26 = vector.extract_strided_slice %5 {offsets = [10, 0], sizes = [8, 32], strides = [1, 1]} : vector<102x32xf32> to vector<8x32xf32>
    %27 = vector.extract_strided_slice %5 {offsets = [18, 0], sizes = [8, 8], strides = [1, 1]} : vector<102x32xf32> to vector<8x8xf32>
    %28 = vector.extract_strided_slice %5 {offsets = [26, 0], sizes = [4, 32], strides = [1, 1]} : vector<102x32xf32> to vector<4x32xf32>
    %29 = vector.extract_strided_slice %5 {offsets = [30, 0], sizes = [40, 32], strides = [1, 1]} : vector<102x32xf32> to vector<40x32xf32>
    %30 = vector.extract_strided_slice %5 {offsets = [70, 0], sizes = [32, 2], strides = [1, 1]} : vector<102x32xf32> to vector<32x2xf32>
    %c0_4 = arith.constant 0 : index
    %c0_5 = arith.constant 0 : index
    %c0_6 = arith.constant 0 : index
    %31 = vector.load %arg3[%c0_4, %c0_5, %c0_6] : memref<2x8x64xf32, #tpu.memory_space<vmem>>, vector<2x8x64xf32>
    %32 = vector.shape_cast %31 : vector<2x8x64xf32> to vector<16x64xf32>
    %c0_7 = arith.constant 0 : index
    %c0_8 = arith.constant 0 : index
    %33 = vector.load %arg5[%c0_7, %c0_8] : memref<64x13xf32, #tpu.memory_space<vmem>>, vector<64x13xf32>
    %cst = arith.constant dense<0.000000e+00> : vector<16x13xf32>
    %34 = tpu.matmul %32, %33, %cst {dimension_numbers = #tpu.dot_dimension_numbers<[1], [0], [0], [1], [0, 0, 1, 1], [], []>} : vector<16x64xf32>, vector<64x13xf32>, vector<16x13xf32> -> vector<16x13xf32>
    %35 = vector.extract_strided_slice %34 {offsets = [0, 0], sizes = [16, 5], strides = [1, 1]} : vector<16x13xf32> to vector<16x5xf32>
    %36 = vector.shape_cast %23 : vector<5xf32> to vector<1x5xf32>
    %37 = vector.broadcast %36 : vector<1x5xf32> to vector<16x5xf32>
    %38 = arith.addf %35, %37 : vector<16x5xf32>
    %39 = vector.extract_strided_slice %34 {offsets = [0, 5], sizes = [16, 8], strides = [1, 1]} : vector<16x13xf32> to vector<16x8xf32>
    %40 = vector.shape_cast %25 : vector<8xf32> to vector<1x8xf32>
    %41 = vector.broadcast %40 : vector<1x8xf32> to vector<16x8xf32>
    %42 = arith.addf %39, %41 : vector<16x8xf32>
    %43 = vector.shape_cast %42 : vector<16x8xf32> to vector<2x8x8xf32>
    "tpu.trace_start"() <{level = 10 : i32, message = "bve,bwe->bvw"}> : () -> ()
    %cst_9 = arith.constant dense<0.000000e+00> : vector<2x8x8xf32>
    %44 = tpu.matmul %43, %43, %cst_9 {dimension_numbers = #tpu.dot_dimension_numbers<[2], [2], [1], [1], [0, 0, 0, 1, 1, 1], [0], [0]>} : vector<2x8x8xf32>, vector<2x8x8xf32>, vector<2x8x8xf32> -> vector<2x8x8xf32>
    "tpu.trace_stop"() : () -> ()
    %cst_10 = arith.constant 0.000000e+00 : f32
    %45 = vector.broadcast %cst_10 : f32 to vector<2x8x8xf32>
    %46 = arith.maximumf %44, %45 : vector<2x8x8xf32>
    %47 = vector.shape_cast %1 : vector<2x8x8xf32> to vector<2x8x8x1xf32>
    %48 = vector.shape_cast %7 : vector<32xf32> to vector<1x1x1x32xf32>
    %49 = vector.broadcast %47 : vector<2x8x8x1xf32> to vector<2x8x8x32xf32>
    %50 = vector.broadcast %48 : vector<1x1x1x32xf32> to vector<2x8x8x32xf32>
    %51 = arith.mulf %49, %50 : vector<2x8x8x32xf32>
    %52 = vector.shape_cast %9 : vector<32xf32> to vector<1x1x1x32xf32>
    %53 = vector.broadcast %52 : vector<1x1x1x32xf32> to vector<2x8x8x32xf32>
    %54 = arith.addf %51, %53 : vector<2x8x8x32xf32>
    %55 = vector.shape_cast %3 : vector<2x8x8xf32> to vector<2x8x8x1xf32>
    %56 = vector.shape_cast %11 : vector<32xf32> to vector<1x1x1x32xf32>
    %57 = vector.broadcast %55 : vector<2x8x8x1xf32> to vector<2x8x8x32xf32>
    %58 = vector.broadcast %56 : vector<1x1x1x32xf32> to vector<2x8x8x32xf32>
    %59 = arith.mulf %57, %58 : vector<2x8x8x32xf32>
    %60 = vector.shape_cast %13 : vector<32xf32> to vector<1x1x1x32xf32>
    %61 = vector.broadcast %60 : vector<1x1x1x32xf32> to vector<2x8x8x32xf32>
    %62 = arith.addf %59, %61 : vector<2x8x8x32xf32>
    %cst_11 = arith.constant 5.000000e-01 : f32
    %63 = vector.broadcast %cst_11 : f32 to vector<32xf32>
    %64 = arith.cmpf ogt, %15, %63 : vector<32xf32>
    %65 = math.sin %62 : vector<2x8x8x32xf32>
    %66 = vector.shape_cast %64 : vector<32xi1> to vector<1x1x1x32xi1>
    %67 = vector.broadcast %66 : vector<1x1x1x32xi1> to vector<2x8x8x32xi1>
    %68 = arith.select %67, %65, %62 : vector<2x8x8x32xi1>, vector<2x8x8x32xf32>
    %69 = arith.addf %54, %68 : vector<2x8x8x32xf32>
    %70 = vector.shape_cast %26 : vector<8x32xf32> to vector<1x1x8x32xf32>
    %71 = vector.broadcast %70 : vector<1x1x8x32xf32> to vector<2x8x8x32xf32>
    %72 = arith.addf %69, %71 : vector<2x8x8x32xf32>
    %73 = vector.shape_cast %2 : vector<2x8x8xf32> to vector<2x8x8x1xf32>
    %74 = vector.broadcast %73 : vector<2x8x8x1xf32> to vector<2x8x8x32xf32>
    %75 = arith.mulf %72, %74 : vector<2x8x8x32xf32>
    %76 = vector.shape_cast %75 : vector<2x8x8x32xf32> to vector<128x32xf32>
    %77 = vector.shape_cast %38 : vector<16x5xf32> to vector<2x1x8x5xf32>
    %78 = vector.shape_cast %77 : vector<2x1x8x5xf32> to vector<2x1x8x5xf32>
    %79 = vector.broadcast %78 : vector<2x1x8x5xf32> to vector<2x8x8x5xf32>
    %80 = vector.shape_cast %79 : vector<2x8x8x5xf32> to vector<128x5xf32>
    %81 = vector.extract_strided_slice %80 {offsets = [0, 0], sizes = [128, 1], strides = [1, 1]} : vector<128x5xf32> to vector<128x1xf32>
    %82 = vector.broadcast %81 : vector<128x1xf32> to vector<128x32xf32>
    %83 = arith.mulf %76, %82 : vector<128x32xf32>
    %84 = vector.extract_strided_slice %80 {offsets = [0, 1], sizes = [128, 1], strides = [1, 1]} : vector<128x5xf32> to vector<128x1xf32>
    %85 = vector.broadcast %84 : vector<128x1xf32> to vector<128x32xf32>
    %86 = arith.mulf %76, %85 : vector<128x32xf32>
    %87 = vector.extract_strided_slice %80 {offsets = [0, 2], sizes = [128, 1], strides = [1, 1]} : vector<128x5xf32> to vector<128x1xf32>
    %88 = vector.broadcast %87 : vector<128x1xf32> to vector<128x32xf32>
    %89 = arith.mulf %76, %88 : vector<128x32xf32>
    %90 = vector.extract_strided_slice %80 {offsets = [0, 3], sizes = [128, 1], strides = [1, 1]} : vector<128x5xf32> to vector<128x1xf32>
    %91 = vector.broadcast %90 : vector<128x1xf32> to vector<128x32xf32>
    %92 = arith.mulf %76, %91 : vector<128x32xf32>
    %93 = vector.extract_strided_slice %80 {offsets = [0, 4], sizes = [128, 1], strides = [1, 1]} : vector<128x5xf32> to vector<128x1xf32>
    %94 = vector.broadcast %93 : vector<128x1xf32> to vector<128x32xf32>
    %95 = arith.mulf %76, %94 : vector<128x32xf32>
    %96 = tpu.concatenate %83, %86, %89, %92, %95, %80 in 1 : vector<128x32xf32>, vector<128x32xf32>, vector<128x32xf32>, vector<128x32xf32>, vector<128x32xf32>, vector<128x5xf32> -> vector<128x165xf32>
    %97 = arith.truncf %96 : vector<128x165xf32> to vector<128x165xbf16>
    %c0_12 = arith.constant 0 : index
    %c0_13 = arith.constant 0 : index
    %98 = vector.load %arg6[%c0_12, %c0_13] : memref<165x96xbf16, #tpu.memory_space<vmem>>, vector<165x96xbf16>
    %cst_14 = arith.constant dense<0.000000e+00> : vector<128x96xf32>
    %99 = tpu.matmul %97, %98, %cst_14 {dimension_numbers = #tpu.dot_dimension_numbers<[1], [0], [0], [1], [0, 0, 1, 1], [], []>} : vector<128x165xbf16>, vector<165x96xbf16>, vector<128x96xf32> -> vector<128x96xf32>
    %100 = vector.shape_cast %99 : vector<128x96xf32> to vector<2x8x8x96xf32>
    %101 = vector.shape_cast %27 : vector<8x8xf32> to vector<1x1x8x8xf32>
    %102 = vector.shape_cast %4 : vector<2x8x8xf32> to vector<2x8x8x1xf32>
    %103 = vector.shape_cast %4 : vector<2x8x8xf32> to vector<2x8x1x8xf32>
    %104 = vector.broadcast %102 : vector<2x8x8x1xf32> to vector<2x8x8x8xf32>
    %105 = vector.broadcast %103 : vector<2x8x1x8xf32> to vector<2x8x8x8xf32>
    %106 = arith.addf %104, %105 : vector<2x8x8x8xf32>
    %cst_15 = arith.constant 5.000000e-01 : f32
    %107 = vector.broadcast %cst_15 : f32 to vector<2x8x8x8xf32>
    %108 = arith.mulf %107, %106 : vector<2x8x8x8xf32>
    %109 = vector.broadcast %101 : vector<1x1x8x8xf32> to vector<2x8x8x8xf32>
    %110 = arith.mulf %109, %108 : vector<2x8x8x8xf32>
    %111 = math.tanh %110 : vector<2x8x8x8xf32>
    %cst_16 = arith.constant 5.000000e-01 : f32
    %112 = vector.broadcast %cst_16 : f32 to vector<2x8x8x8xf32>
    %113 = arith.mulf %112, %111 : vector<2x8x8x8xf32>
    %114 = vector.shape_cast %46 : vector<2x8x8xf32> to vector<2x1x8x8xf32>
    %cst_17 = arith.constant 1.000000e+00 : f32
    %115 = vector.broadcast %cst_17 : f32 to vector<2x8x8x8xf32>
    %116 = arith.addf %115, %113 : vector<2x8x8x8xf32>
    %117 = vector.broadcast %114 : vector<2x1x8x8xf32> to vector<2x8x8x8xf32>
    %118 = arith.mulf %117, %116 : vector<2x8x8x8xf32>
    %119 = vector.shape_cast %2 : vector<2x8x8xf32> to vector<2x8x8x1xf32>
    %120 = vector.shape_cast %2 : vector<2x8x8xf32> to vector<2x8x1x8xf32>
    %121 = vector.broadcast %119 : vector<2x8x8x1xf32> to vector<2x8x8x8xf32>
    %122 = vector.broadcast %120 : vector<2x8x1x8xf32> to vector<2x8x8x8xf32>
    %123 = arith.mulf %121, %122 : vector<2x8x8x8xf32>
    %124 = arith.mulf %118, %123 : vector<2x8x8x8xf32>
    %cst_18 = arith.constant dense<0.000000e+00> : vector<2x8x8xf32>
    %125 = vector.multi_reduction <add>, %124, %cst_18 [3] : vector<2x8x8x8xf32> to vector<2x8x8xf32>
    %126 = vector.shape_cast %125 : vector<2x8x8xf32> to vector<2x8x8x1xf32>
    %cst_19 = arith.constant 9.99999997E-7 : f32
    %127 = vector.broadcast %cst_19 : f32 to vector<2x8x8x1xf32>
    %128 = arith.addf %126, %127 : vector<2x8x8x1xf32>
    %129 = tpu.reciprocal %128 {approx = true} : vector<2x8x8x1xf32> -> vector<2x8x8x1xf32>
    %130 = vector.broadcast %129 : vector<2x8x8x1xf32> to vector<2x8x8x8xf32>
    %131 = arith.mulf %124, %130 : vector<2x8x8x8xf32>
    %c0_20 = arith.constant 0 : index
    %c0_21 = arith.constant 0 : index
    %132 = vector.load %arg7[%c0_20, %c0_21] : memref<160x64xbf16, #tpu.memory_space<vmem>>, vector<160x64xbf16>
    %c0_22 = arith.constant 0 : index
    %c0_23 = arith.constant 0 : index
    %133 = vector.load %arg8[%c0_22, %c0_23] : memref<160x32xbf16, #tpu.memory_space<vmem>>, vector<160x32xbf16>
    %134 = vector.shape_cast %2 : vector<2x8x8xf32> to vector<2x8x8x1xf32>
    %cst_24 = arith.constant 0.000000e+00 : f32
    %135 = vector.broadcast %cst_24 : f32 to vector<2x8x32xf32>
    %136 = vector.extract_strided_slice %131 {offsets = [0, 0, 0, 0], sizes = [2, 1, 8, 8], strides = [1, 1, 1, 1]} : vector<2x8x8x8xf32> to vector<2x1x8x8xf32>
    %137 = vector.shape_cast %136 : vector<2x1x8x8xf32> to vector<2x8x8xf32>
    "tpu.trace_start"() <{level = 10 : i32, message = "bvw,bwd->bvd"}> : () -> ()
    %cst_25 = arith.constant dense<0.000000e+00> : vector<2x8x32xf32>
    %138 = tpu.matmul %137, %135, %cst_25 {dimension_numbers = #tpu.dot_dimension_numbers<[2], [1], [1], [2], [0, 0, 0, 1, 1, 2], [0], [0]>} : vector<2x8x8xf32>, vector<2x8x32xf32>, vector<2x8x32xf32> -> vector<2x8x32xf32>
    "tpu.trace_stop"() : () -> ()
    %139 = vector.shape_cast %138 : vector<2x8x32xf32> to vector<16x32xf32>
    %140 = vector.extract_strided_slice %38 {offsets = [0, 0], sizes = [16, 1], strides = [1, 1]} : vector<16x5xf32> to vector<16x1xf32>
    %141 = vector.broadcast %140 : vector<16x1xf32> to vector<16x32xf32>
    %142 = arith.mulf %139, %141 : vector<16x32xf32>
    %143 = vector.extract_strided_slice %38 {offsets = [0, 1], sizes = [16, 1], strides = [1, 1]} : vector<16x5xf32> to vector<16x1xf32>
    %144 = vector.broadcast %143 : vector<16x1xf32> to vector<16x32xf32>
    %145 = arith.mulf %139, %144 : vector<16x32xf32>
    %146 = vector.extract_strided_slice %38 {offsets = [0, 2], sizes = [16, 1], strides = [1, 1]} : vector<16x5xf32> to vector<16x1xf32>
    %147 = vector.broadcast %146 : vector<16x1xf32> to vector<16x32xf32>
    %148 = arith.mulf %139, %147 : vector<16x32xf32>
    %149 = vector.extract_strided_slice %38 {offsets = [0, 3], sizes = [16, 1], strides = [1, 1]} : vector<16x5xf32> to vector<16x1xf32>
    %150 = vector.broadcast %149 : vector<16x1xf32> to vector<16x32xf32>
    %151 = arith.mulf %139, %150 : vector<16x32xf32>
    %152 = vector.extract_strided_slice %38 {offsets = [0, 4], sizes = [16, 1], strides = [1, 1]} : vector<16x5xf32> to vector<16x1xf32>
    %153 = vector.broadcast %152 : vector<16x1xf32> to vector<16x32xf32>
    %154 = arith.mulf %139, %153 : vector<16x32xf32>
    %155 = tpu.concatenate %142, %145, %148, %151, %154 in 1 : vector<16x32xf32>, vector<16x32xf32>, vector<16x32xf32>, vector<16x32xf32>, vector<16x32xf32> -> vector<16x160xf32>
    %156 = arith.truncf %155 : vector<16x160xf32> to vector<16x160xbf16>
    %cst_26 = arith.constant dense<0.000000e+00> : vector<16x64xf32>
    %157 = tpu.matmul %156, %132, %cst_26 {dimension_numbers = #tpu.dot_dimension_numbers<[1], [0], [0], [1], [0, 0, 1, 1], [], []>} : vector<16x160xbf16>, vector<160x64xbf16>, vector<16x64xf32> -> vector<16x64xf32>
    %158 = vector.extract_strided_slice %100 {offsets = [0, 0, 0, 0], sizes = [2, 1, 8, 96], strides = [1, 1, 1, 1]} : vector<2x8x8x96xf32> to vector<2x1x8x96xf32>
    %159 = vector.shape_cast %158 : vector<2x1x8x96xf32> to vector<2x8x96xf32>
    %160 = vector.shape_cast %159 : vector<2x8x96xf32> to vector<16x96xf32>
    %161 = vector.extract_strided_slice %160 {offsets = [0, 0], sizes = [16, 32], strides = [1, 1]} : vector<16x96xf32> to vector<16x32xf32>
    %162 = vector.extract_strided_slice %157 {offsets = [0, 0], sizes = [16, 32], strides = [1, 1]} : vector<16x64xf32> to vector<16x32xf32>
    %163 = arith.addf %161, %162 : vector<16x32xf32>
    %cst_27 = arith.constant 5.000000e-01 : f32
    %164 = vector.broadcast %cst_27 : f32 to vector<16x32xf32>
    %165 = arith.mulf %164, %163 : vector<16x32xf32>
    %166 = math.tanh %165 : vector<16x32xf32>
    %cst_28 = arith.constant 1.000000e+00 : f32
    %167 = vector.broadcast %cst_28 : f32 to vector<16x32xf32>
    %168 = arith.addf %166, %167 : vector<16x32xf32>
    %cst_29 = arith.constant 5.000000e-01 : f32
    %169 = vector.broadcast %cst_29 : f32 to vector<16x32xf32>
    %170 = arith.mulf %169, %168 : vector<16x32xf32>
    %171 = vector.extract_strided_slice %160 {offsets = [0, 32], sizes = [16, 32], strides = [1, 1]} : vector<16x96xf32> to vector<16x32xf32>
    %172 = vector.extract_strided_slice %157 {offsets = [0, 32], sizes = [16, 32], strides = [1, 1]} : vector<16x64xf32> to vector<16x32xf32>
    %173 = arith.addf %171, %172 : vector<16x32xf32>
    %cst_30 = arith.constant 5.000000e-01 : f32
    %174 = vector.broadcast %cst_30 : f32 to vector<16x32xf32>
    %175 = arith.mulf %174, %173 : vector<16x32xf32>
    %176 = math.tanh %175 : vector<16x32xf32>
    %cst_31 = arith.constant 1.000000e+00 : f32
    %177 = vector.broadcast %cst_31 : f32 to vector<16x32xf32>
    %178 = arith.addf %176, %177 : vector<16x32xf32>
    %cst_32 = arith.constant 5.000000e-01 : f32
    %179 = vector.broadcast %cst_32 : f32 to vector<16x32xf32>
    %180 = arith.mulf %179, %178 : vector<16x32xf32>
    %181 = arith.mulf %170, %139 : vector<16x32xf32>
    %182 = vector.extract_strided_slice %38 {offsets = [0, 0], sizes = [16, 1], strides = [1, 1]} : vector<16x5xf32> to vector<16x1xf32>
    %183 = vector.broadcast %182 : vector<16x1xf32> to vector<16x32xf32>
    %184 = arith.mulf %181, %183 : vector<16x32xf32>
    %185 = arith.mulf %170, %139 : vector<16x32xf32>
    %186 = vector.extract_strided_slice %38 {offsets = [0, 1], sizes = [16, 1], strides = [1, 1]} : vector<16x5xf32> to vector<16x1xf32>
    %187 = vector.broadcast %186 : vector<16x1xf32> to vector<16x32xf32>
    %188 = arith.mulf %185, %187 : vector<16x32xf32>
    %189 = arith.mulf %170, %139 : vector<16x32xf32>
    %190 = vector.extract_strided_slice %38 {offsets = [0, 2], sizes = [16, 1], strides = [1, 1]} : vector<16x5xf32> to vector<16x1xf32>
    %191 = vector.broadcast %190 : vector<16x1xf32> to vector<16x32xf32>
    %192 = arith.mulf %189, %191 : vector<16x32xf32>
    %193 = arith.mulf %170, %139 : vector<16x32xf32>
    %194 = vector.extract_strided_slice %38 {offsets = [0, 3], sizes = [16, 1], strides = [1, 1]} : vector<16x5xf32> to vector<16x1xf32>
    %195 = vector.broadcast %194 : vector<16x1xf32> to vector<16x32xf32>
    %196 = arith.mulf %193, %195 : vector<16x32xf32>
    %197 = arith.mulf %170, %139 : vector<16x32xf32>
    %198 = vector.extract_strided_slice %38 {offsets = [0, 4], sizes = [16, 1], strides = [1, 1]} : vector<16x5xf32> to vector<16x1xf32>
    %199 = vector.broadcast %198 : vector<16x1xf32> to vector<16x32xf32>
    %200 = arith.mulf %197, %199 : vector<16x32xf32>
    %201 = tpu.concatenate %184, %188, %192, %196, %200 in 1 : vector<16x32xf32>, vector<16x32xf32>, vector<16x32xf32>, vector<16x32xf32>, vector<16x32xf32> -> vector<16x160xf32>
    %202 = arith.truncf %201 : vector<16x160xf32> to vector<16x160xbf16>
    %cst_33 = arith.constant dense<0.000000e+00> : vector<16x32xf32>
    %203 = tpu.matmul %202, %133, %cst_33 {dimension_numbers = #tpu.dot_dimension_numbers<[1], [0], [0], [1], [0, 0, 1, 1], [], []>} : vector<16x160xbf16>, vector<160x32xbf16>, vector<16x32xf32> -> vector<16x32xf32>
    %204 = vector.extract_strided_slice %160 {offsets = [0, 64], sizes = [16, 32], strides = [1, 1]} : vector<16x96xf32> to vector<16x32xf32>
    %205 = arith.addf %204, %203 : vector<16x32xf32>
    %206 = math.tanh %205 : vector<16x32xf32>
    %207 = vector.shape_cast %135 : vector<2x8x32xf32> to vector<16x32xf32>
    %cst_34 = arith.constant 1.000000e+00 : f32
    %208 = vector.broadcast %cst_34 : f32 to vector<16x32xf32>
    %209 = arith.subf %208, %180 : vector<16x32xf32>
    %210 = arith.mulf %209, %206 : vector<16x32xf32>
    %211 = arith.mulf %180, %207 : vector<16x32xf32>
    %212 = arith.addf %210, %211 : vector<16x32xf32>
    %213 = vector.shape_cast %212 : vector<16x32xf32> to vector<2x8x32xf32>
    %214 = vector.extract_strided_slice %134 {offsets = [0, 0, 0, 0], sizes = [2, 1, 8, 1], strides = [1, 1, 1, 1]} : vector<2x8x8x1xf32> to vector<2x1x8x1xf32>
    %215 = vector.shape_cast %214 : vector<2x1x8x1xf32> to vector<2x8x1xf32>
    %216 = vector.broadcast %215 : vector<2x8x1xf32> to vector<2x8x32xf32>
    %217 = arith.mulf %216, %213 : vector<2x8x32xf32>
    %cst_35 = arith.constant 1.000000e+00 : f32
    %218 = vector.broadcast %cst_35 : f32 to vector<2x8x1xf32>
    %219 = arith.subf %218, %215 : vector<2x8x1xf32>
    %220 = vector.broadcast %219 : vector<2x8x1xf32> to vector<2x8x32xf32>
    %221 = arith.mulf %220, %135 : vector<2x8x32xf32>
    %222 = arith.addf %217, %221 : vector<2x8x32xf32>
    %223 = vector.extract_strided_slice %131 {offsets = [0, 1, 0, 0], sizes = [2, 1, 8, 8], strides = [1, 1, 1, 1]} : vector<2x8x8x8xf32> to vector<2x1x8x8xf32>
    %224 = vector.shape_cast %223 : vector<2x1x8x8xf32> to vector<2x8x8xf32>
    "tpu.trace_start"() <{level = 10 : i32, message = "bvw,bwd->bvd"}> : () -> ()
    %cst_36 = arith.constant dense<0.000000e+00> : vector<2x8x32xf32>
    %225 = tpu.matmul %224, %222, %cst_36 {dimension_numbers = #tpu.dot_dimension_numbers<[2], [1], [1], [2], [0, 0, 0, 1, 1, 2], [0], [0]>} : vector<2x8x8xf32>, vector<2x8x32xf32>, vector<2x8x32xf32> -> vector<2x8x32xf32>
    "tpu.trace_stop"() : () -> ()
    %226 = vector.shape_cast %225 : vector<2x8x32xf32> to vector<16x32xf32>
    %227 = vector.extract_strided_slice %38 {offsets = [0, 0], sizes = [16, 1], strides = [1, 1]} : vector<16x5xf32> to vector<16x1xf32>
    %228 = vector.broadcast %227 : vector<16x1xf32> to vector<16x32xf32>
    %229 = arith.mulf %226, %228 : vector<16x32xf32>
    %230 = vector.extract_strided_slice %38 {offsets = [0, 1], sizes = [16, 1], strides = [1, 1]} : vector<16x5xf32> to vector<16x1xf32>
    %231 = vector.broadcast %230 : vector<16x1xf32> to vector<16x32xf32>
    %232 = arith.mulf %226, %231 : vector<16x32xf32>
    %233 = vector.extract_strided_slice %38 {offsets = [0, 2], sizes = [16, 1], strides = [1, 1]} : vector<16x5xf32> to vector<16x1xf32>
    %234 = vector.broadcast %233 : vector<16x1xf32> to vector<16x32xf32>
    %235 = arith.mulf %226, %234 : vector<16x32xf32>
    %236 = vector.extract_strided_slice %38 {offsets = [0, 3], sizes = [16, 1], strides = [1, 1]} : vector<16x5xf32> to vector<16x1xf32>
    %237 = vector.broadcast %236 : vector<16x1xf32> to vector<16x32xf32>
    %238 = arith.mulf %226, %237 : vector<16x32xf32>
    %239 = vector.extract_strided_slice %38 {offsets = [0, 4], sizes = [16, 1], strides = [1, 1]} : vector<16x5xf32> to vector<16x1xf32>
    %240 = vector.broadcast %239 : vector<16x1xf32> to vector<16x32xf32>
    %241 = arith.mulf %226, %240 : vector<16x32xf32>
    %242 = tpu.concatenate %229, %232, %235, %238, %241 in 1 : vector<16x32xf32>, vector<16x32xf32>, vector<16x32xf32>, vector<16x32xf32>, vector<16x32xf32> -> vector<16x160xf32>
    %243 = arith.truncf %242 : vector<16x160xf32> to vector<16x160xbf16>
    %cst_37 = arith.constant dense<0.000000e+00> : vector<16x64xf32>
    %244 = tpu.matmul %243, %132, %cst_37 {dimension_numbers = #tpu.dot_dimension_numbers<[1], [0], [0], [1], [0, 0, 1, 1], [], []>} : vector<16x160xbf16>, vector<160x64xbf16>, vector<16x64xf32> -> vector<16x64xf32>
    %245 = vector.extract_strided_slice %100 {offsets = [0, 1, 0, 0], sizes = [2, 1, 8, 96], strides = [1, 1, 1, 1]} : vector<2x8x8x96xf32> to vector<2x1x8x96xf32>
    %246 = vector.shape_cast %245 : vector<2x1x8x96xf32> to vector<2x8x96xf32>
    %247 = vector.shape_cast %246 : vector<2x8x96xf32> to vector<16x96xf32>
    %248 = vector.extract_strided_slice %247 {offsets = [0, 0], sizes = [16, 32], strides = [1, 1]} : vector<16x96xf32> to vector<16x32xf32>
    %249 = vector.extract_strided_slice %244 {offsets = [0, 0], sizes = [16, 32], strides = [1, 1]} : vector<16x64xf32> to vector<16x32xf32>
    %250 = arith.addf %248, %249 : vector<16x32xf32>
    %cst_38 = arith.constant 5.000000e-01 : f32
    %251 = vector.broadcast %cst_38 : f32 to vector<16x32xf32>
    %252 = arith.mulf %251, %250 : vector<16x32xf32>
    %253 = math.tanh %252 : vector<16x32xf32>
    %cst_39 = arith.constant 1.000000e+00 : f32
    %254 = vector.broadcast %cst_39 : f32 to vector<16x32xf32>
    %255 = arith.addf %253, %254 : vector<16x32xf32>
    %cst_40 = arith.constant 5.000000e-01 : f32
    %256 = vector.broadcast %cst_40 : f32 to vector<16x32xf32>
    %257 = arith.mulf %256, %255 : vector<16x32xf32>
    %258 = vector.extract_strided_slice %247 {offsets = [0, 32], sizes = [16, 32], strides = [1, 1]} : vector<16x96xf32> to vector<16x32xf32>
    %259 = vector.extract_strided_slice %244 {offsets = [0, 32], sizes = [16, 32], strides = [1, 1]} : vector<16x64xf32> to vector<16x32xf32>
    %260 = arith.addf %258, %259 : vector<16x32xf32>
    %cst_41 = arith.constant 5.000000e-01 : f32
    %261 = vector.broadcast %cst_41 : f32 to vector<16x32xf32>
    %262 = arith.mulf %261, %260 : vector<16x32xf32>
    %263 = math.tanh %262 : vector<16x32xf32>
    %cst_42 = arith.constant 1.000000e+00 : f32
    %264 = vector.broadcast %cst_42 : f32 to vector<16x32xf32>
    %265 = arith.addf %263, %264 : vector<16x32xf32>
    %cst_43 = arith.constant 5.000000e-01 : f32
    %266 = vector.broadcast %cst_43 : f32 to vector<16x32xf32>
    %267 = arith.mulf %266, %265 : vector<16x32xf32>
    %268 = arith.mulf %257, %226 : vector<16x32xf32>
    %269 = vector.extract_strided_slice %38 {offsets = [0, 0], sizes = [16, 1], strides = [1, 1]} : vector<16x5xf32> to vector<16x1xf32>
    %270 = vector.broadcast %269 : vector<16x1xf32> to vector<16x32xf32>
    %271 = arith.mulf %268, %270 : vector<16x32xf32>
    %272 = arith.mulf %257, %226 : vector<16x32xf32>
    %273 = vector.extract_strided_slice %38 {offsets = [0, 1], sizes = [16, 1], strides = [1, 1]} : vector<16x5xf32> to vector<16x1xf32>
    %274 = vector.broadcast %273 : vector<16x1xf32> to vector<16x32xf32>
    %275 = arith.mulf %272, %274 : vector<16x32xf32>
    %276 = arith.mulf %257, %226 : vector<16x32xf32>
    %277 = vector.extract_strided_slice %38 {offsets = [0, 2], sizes = [16, 1], strides = [1, 1]} : vector<16x5xf32> to vector<16x1xf32>
    %278 = vector.broadcast %277 : vector<16x1xf32> to vector<16x32xf32>
    %279 = arith.mulf %276, %278 : vector<16x32xf32>
    %280 = arith.mulf %257, %226 : vector<16x32xf32>
    %281 = vector.extract_strided_slice %38 {offsets = [0, 3], sizes = [16, 1], strides = [1, 1]} : vector<16x5xf32> to vector<16x1xf32>
    %282 = vector.broadcast %281 : vector<16x1xf32> to vector<16x32xf32>
    %283 = arith.mulf %280, %282 : vector<16x32xf32>
    %284 = arith.mulf %257, %226 : vector<16x32xf32>
    %285 = vector.extract_strided_slice %38 {offsets = [0, 4], sizes = [16, 1], strides = [1, 1]} : vector<16x5xf32> to vector<16x1xf32>
    %286 = vector.broadcast %285 : vector<16x1xf32> to vector<16x32xf32>
    %287 = arith.mulf %284, %286 : vector<16x32xf32>
    %288 = tpu.concatenate %271, %275, %279, %283, %287 in 1 : vector<16x32xf32>, vector<16x32xf32>, vector<16x32xf32>, vector<16x32xf32>, vector<16x32xf32> -> vector<16x160xf32>
    %289 = arith.truncf %288 : vector<16x160xf32> to vector<16x160xbf16>
    %cst_44 = arith.constant dense<0.000000e+00> : vector<16x32xf32>
    %290 = tpu.matmul %289, %133, %cst_44 {dimension_numbers = #tpu.dot_dimension_numbers<[1], [0], [0], [1], [0, 0, 1, 1], [], []>} : vector<16x160xbf16>, vector<160x32xbf16>, vector<16x32xf32> -> vector<16x32xf32>
    %291 = vector.extract_strided_slice %247 {offsets = [0, 64], sizes = [16, 32], strides = [1, 1]} : vector<16x96xf32> to vector<16x32xf32>
    %292 = arith.addf %291, %290 : vector<16x32xf32>
    %293 = math.tanh %292 : vector<16x32xf32>
    %294 = vector.shape_cast %222 : vector<2x8x32xf32> to vector<16x32xf32>
    %cst_45 = arith.constant 1.000000e+00 : f32
    %295 = vector.broadcast %cst_45 : f32 to vector<16x32xf32>
    %296 = arith.subf %295, %267 : vector<16x32xf32>
    %297 = arith.mulf %296, %293 : vector<16x32xf32>
    %298 = arith.mulf %267, %294 : vector<16x32xf32>
    %299 = arith.addf %297, %298 : vector<16x32xf32>
    %300 = vector.shape_cast %299 : vector<16x32xf32> to vector<2x8x32xf32>
    %301 = vector.extract_strided_slice %134 {offsets = [0, 1, 0, 0], sizes = [2, 1, 8, 1], strides = [1, 1, 1, 1]} : vector<2x8x8x1xf32> to vector<2x1x8x1xf32>
    %302 = vector.shape_cast %301 : vector<2x1x8x1xf32> to vector<2x8x1xf32>
    %303 = vector.broadcast %302 : vector<2x8x1xf32> to vector<2x8x32xf32>
    %304 = arith.mulf %303, %300 : vector<2x8x32xf32>
    %cst_46 = arith.constant 1.000000e+00 : f32
    %305 = vector.broadcast %cst_46 : f32 to vector<2x8x1xf32>
    %306 = arith.subf %305, %302 : vector<2x8x1xf32>
    %307 = vector.broadcast %306 : vector<2x8x1xf32> to vector<2x8x32xf32>
    %308 = arith.mulf %307, %222 : vector<2x8x32xf32>
    %309 = arith.addf %304, %308 : vector<2x8x32xf32>
    %310 = vector.extract_strided_slice %131 {offsets = [0, 2, 0, 0], sizes = [2, 1, 8, 8], strides = [1, 1, 1, 1]} : vector<2x8x8x8xf32> to vector<2x1x8x8xf32>
    %311 = vector.shape_cast %310 : vector<2x1x8x8xf32> to vector<2x8x8xf32>
    "tpu.trace_start"() <{level = 10 : i32, message = "bvw,bwd->bvd"}> : () -> ()
    %cst_47 = arith.constant dense<0.000000e+00> : vector<2x8x32xf32>
    %312 = tpu.matmul %311, %309, %cst_47 {dimension_numbers = #tpu.dot_dimension_numbers<[2], [1], [1], [2], [0, 0, 0, 1, 1, 2], [0], [0]>} : vector<2x8x8xf32>, vector<2x8x32xf32>, vector<2x8x32xf32> -> vector<2x8x32xf32>
    "tpu.trace_stop"() : () -> ()
    %313 = vector.shape_cast %312 : vector<2x8x32xf32> to vector<16x32xf32>
    %314 = vector.extract_strided_slice %38 {offsets = [0, 0], sizes = [16, 1], strides = [1, 1]} : vector<16x5xf32> to vector<16x1xf32>
    %315 = vector.broadcast %314 : vector<16x1xf32> to vector<16x32xf32>
    %316 = arith.mulf %313, %315 : vector<16x32xf32>
    %317 = vector.extract_strided_slice %38 {offsets = [0, 1], sizes = [16, 1], strides = [1, 1]} : vector<16x5xf32> to vector<16x1xf32>
    %318 = vector.broadcast %317 : vector<16x1xf32> to vector<16x32xf32>
    %319 = arith.mulf %313, %318 : vector<16x32xf32>
    %320 = vector.extract_strided_slice %38 {offsets = [0, 2], sizes = [16, 1], strides = [1, 1]} : vector<16x5xf32> to vector<16x1xf32>
    %321 = vector.broadcast %320 : vector<16x1xf32> to vector<16x32xf32>
    %322 = arith.mulf %313, %321 : vector<16x32xf32>
    %323 = vector.extract_strided_slice %38 {offsets = [0, 3], sizes = [16, 1], strides = [1, 1]} : vector<16x5xf32> to vector<16x1xf32>
    %324 = vector.broadcast %323 : vector<16x1xf32> to vector<16x32xf32>
    %325 = arith.mulf %313, %324 : vector<16x32xf32>
    %326 = vector.extract_strided_slice %38 {offsets = [0, 4], sizes = [16, 1], strides = [1, 1]} : vector<16x5xf32> to vector<16x1xf32>
    %327 = vector.broadcast %326 : vector<16x1xf32> to vector<16x32xf32>
    %328 = arith.mulf %313, %327 : vector<16x32xf32>
    %329 = tpu.concatenate %316, %319, %322, %325, %328 in 1 : vector<16x32xf32>, vector<16x32xf32>, vector<16x32xf32>, vector<16x32xf32>, vector<16x32xf32> -> vector<16x160xf32>
    %330 = arith.truncf %329 : vector<16x160xf32> to vector<16x160xbf16>
    %cst_48 = arith.constant dense<0.000000e+00> : vector<16x64xf32>
    %331 = tpu.matmul %330, %132, %cst_48 {dimension_numbers = #tpu.dot_dimension_numbers<[1], [0], [0], [1], [0, 0, 1, 1], [], []>} : vector<16x160xbf16>, vector<160x64xbf16>, vector<16x64xf32> -> vector<16x64xf32>
    %332 = vector.extract_strided_slice %100 {offsets = [0, 2, 0, 0], sizes = [2, 1, 8, 96], strides = [1, 1, 1, 1]} : vector<2x8x8x96xf32> to vector<2x1x8x96xf32>
    %333 = vector.shape_cast %332 : vector<2x1x8x96xf32> to vector<2x8x96xf32>
    %334 = vector.shape_cast %333 : vector<2x8x96xf32> to vector<16x96xf32>
    %335 = vector.extract_strided_slice %334 {offsets = [0, 0], sizes = [16, 32], strides = [1, 1]} : vector<16x96xf32> to vector<16x32xf32>
    %336 = vector.extract_strided_slice %331 {offsets = [0, 0], sizes = [16, 32], strides = [1, 1]} : vector<16x64xf32> to vector<16x32xf32>
    %337 = arith.addf %335, %336 : vector<16x32xf32>
    %cst_49 = arith.constant 5.000000e-01 : f32
    %338 = vector.broadcast %cst_49 : f32 to vector<16x32xf32>
    %339 = arith.mulf %338, %337 : vector<16x32xf32>
    %340 = math.tanh %339 : vector<16x32xf32>
    %cst_50 = arith.constant 1.000000e+00 : f32
    %341 = vector.broadcast %cst_50 : f32 to vector<16x32xf32>
    %342 = arith.addf %340, %341 : vector<16x32xf32>
    %cst_51 = arith.constant 5.000000e-01 : f32
    %343 = vector.broadcast %cst_51 : f32 to vector<16x32xf32>
    %344 = arith.mulf %343, %342 : vector<16x32xf32>
    %345 = vector.extract_strided_slice %334 {offsets = [0, 32], sizes = [16, 32], strides = [1, 1]} : vector<16x96xf32> to vector<16x32xf32>
    %346 = vector.extract_strided_slice %331 {offsets = [0, 32], sizes = [16, 32], strides = [1, 1]} : vector<16x64xf32> to vector<16x32xf32>
    %347 = arith.addf %345, %346 : vector<16x32xf32>
    %cst_52 = arith.constant 5.000000e-01 : f32
    %348 = vector.broadcast %cst_52 : f32 to vector<16x32xf32>
    %349 = arith.mulf %348, %347 : vector<16x32xf32>
    %350 = math.tanh %349 : vector<16x32xf32>
    %cst_53 = arith.constant 1.000000e+00 : f32
    %351 = vector.broadcast %cst_53 : f32 to vector<16x32xf32>
    %352 = arith.addf %350, %351 : vector<16x32xf32>
    %cst_54 = arith.constant 5.000000e-01 : f32
    %353 = vector.broadcast %cst_54 : f32 to vector<16x32xf32>
    %354 = arith.mulf %353, %352 : vector<16x32xf32>
    %355 = arith.mulf %344, %313 : vector<16x32xf32>
    %356 = vector.extract_strided_slice %38 {offsets = [0, 0], sizes = [16, 1], strides = [1, 1]} : vector<16x5xf32> to vector<16x1xf32>
    %357 = vector.broadcast %356 : vector<16x1xf32> to vector<16x32xf32>
    %358 = arith.mulf %355, %357 : vector<16x32xf32>
    %359 = arith.mulf %344, %313 : vector<16x32xf32>
    %360 = vector.extract_strided_slice %38 {offsets = [0, 1], sizes = [16, 1], strides = [1, 1]} : vector<16x5xf32> to vector<16x1xf32>
    %361 = vector.broadcast %360 : vector<16x1xf32> to vector<16x32xf32>
    %362 = arith.mulf %359, %361 : vector<16x32xf32>
    %363 = arith.mulf %344, %313 : vector<16x32xf32>
    %364 = vector.extract_strided_slice %38 {offsets = [0, 2], sizes = [16, 1], strides = [1, 1]} : vector<16x5xf32> to vector<16x1xf32>
    %365 = vector.broadcast %364 : vector<16x1xf32> to vector<16x32xf32>
    %366 = arith.mulf %363, %365 : vector<16x32xf32>
    %367 = arith.mulf %344, %313 : vector<16x32xf32>
    %368 = vector.extract_strided_slice %38 {offsets = [0, 3], sizes = [16, 1], strides = [1, 1]} : vector<16x5xf32> to vector<16x1xf32>
    %369 = vector.broadcast %368 : vector<16x1xf32> to vector<16x32xf32>
    %370 = arith.mulf %367, %369 : vector<16x32xf32>
    %371 = arith.mulf %344, %313 : vector<16x32xf32>
    %372 = vector.extract_strided_slice %38 {offsets = [0, 4], sizes = [16, 1], strides = [1, 1]} : vector<16x5xf32> to vector<16x1xf32>
    %373 = vector.broadcast %372 : vector<16x1xf32> to vector<16x32xf32>
    %374 = arith.mulf %371, %373 : vector<16x32xf32>
    %375 = tpu.concatenate %358, %362, %366, %370, %374 in 1 : vector<16x32xf32>, vector<16x32xf32>, vector<16x32xf32>, vector<16x32xf32>, vector<16x32xf32> -> vector<16x160xf32>
    %376 = arith.truncf %375 : vector<16x160xf32> to vector<16x160xbf16>
    %cst_55 = arith.constant dense<0.000000e+00> : vector<16x32xf32>
    %377 = tpu.matmul %376, %133, %cst_55 {dimension_numbers = #tpu.dot_dimension_numbers<[1], [0], [0], [1], [0, 0, 1, 1], [], []>} : vector<16x160xbf16>, vector<160x32xbf16>, vector<16x32xf32> -> vector<16x32xf32>
    %378 = vector.extract_strided_slice %334 {offsets = [0, 64], sizes = [16, 32], strides = [1, 1]} : vector<16x96xf32> to vector<16x32xf32>
    %379 = arith.addf %378, %377 : vector<16x32xf32>
    %380 = math.tanh %379 : vector<16x32xf32>
    %381 = vector.shape_cast %309 : vector<2x8x32xf32> to vector<16x32xf32>
    %cst_56 = arith.constant 1.000000e+00 : f32
    %382 = vector.broadcast %cst_56 : f32 to vector<16x32xf32>
    %383 = arith.subf %382, %354 : vector<16x32xf32>
    %384 = arith.mulf %383, %380 : vector<16x32xf32>
    %385 = arith.mulf %354, %381 : vector<16x32xf32>
    %386 = arith.addf %384, %385 : vector<16x32xf32>
    %387 = vector.shape_cast %386 : vector<16x32xf32> to vector<2x8x32xf32>
    %388 = vector.extract_strided_slice %134 {offsets = [0, 2, 0, 0], sizes = [2, 1, 8, 1], strides = [1, 1, 1, 1]} : vector<2x8x8x1xf32> to vector<2x1x8x1xf32>
    %389 = vector.shape_cast %388 : vector<2x1x8x1xf32> to vector<2x8x1xf32>
    %390 = vector.broadcast %389 : vector<2x8x1xf32> to vector<2x8x32xf32>
    %391 = arith.mulf %390, %387 : vector<2x8x32xf32>
    %cst_57 = arith.constant 1.000000e+00 : f32
    %392 = vector.broadcast %cst_57 : f32 to vector<2x8x1xf32>
    %393 = arith.subf %392, %389 : vector<2x8x1xf32>
    %394 = vector.broadcast %393 : vector<2x8x1xf32> to vector<2x8x32xf32>
    %395 = arith.mulf %394, %309 : vector<2x8x32xf32>
    %396 = arith.addf %391, %395 : vector<2x8x32xf32>
    %397 = vector.extract_strided_slice %131 {offsets = [0, 3, 0, 0], sizes = [2, 1, 8, 8], strides = [1, 1, 1, 1]} : vector<2x8x8x8xf32> to vector<2x1x8x8xf32>
    %398 = vector.shape_cast %397 : vector<2x1x8x8xf32> to vector<2x8x8xf32>
    "tpu.trace_start"() <{level = 10 : i32, message = "bvw,bwd->bvd"}> : () -> ()
    %cst_58 = arith.constant dense<0.000000e+00> : vector<2x8x32xf32>
    %399 = tpu.matmul %398, %396, %cst_58 {dimension_numbers = #tpu.dot_dimension_numbers<[2], [1], [1], [2], [0, 0, 0, 1, 1, 2], [0], [0]>} : vector<2x8x8xf32>, vector<2x8x32xf32>, vector<2x8x32xf32> -> vector<2x8x32xf32>
    "tpu.trace_stop"() : () -> ()
    %400 = vector.shape_cast %399 : vector<2x8x32xf32> to vector<16x32xf32>
    %401 = vector.extract_strided_slice %38 {offsets = [0, 0], sizes = [16, 1], strides = [1, 1]} : vector<16x5xf32> to vector<16x1xf32>
    %402 = vector.broadcast %401 : vector<16x1xf32> to vector<16x32xf32>
    %403 = arith.mulf %400, %402 : vector<16x32xf32>
    %404 = vector.extract_strided_slice %38 {offsets = [0, 1], sizes = [16, 1], strides = [1, 1]} : vector<16x5xf32> to vector<16x1xf32>
    %405 = vector.broadcast %404 : vector<16x1xf32> to vector<16x32xf32>
    %406 = arith.mulf %400, %405 : vector<16x32xf32>
    %407 = vector.extract_strided_slice %38 {offsets = [0, 2], sizes = [16, 1], strides = [1, 1]} : vector<16x5xf32> to vector<16x1xf32>
    %408 = vector.broadcast %407 : vector<16x1xf32> to vector<16x32xf32>
    %409 = arith.mulf %400, %408 : vector<16x32xf32>
    %410 = vector.extract_strided_slice %38 {offsets = [0, 3], sizes = [16, 1], strides = [1, 1]} : vector<16x5xf32> to vector<16x1xf32>
    %411 = vector.broadcast %410 : vector<16x1xf32> to vector<16x32xf32>
    %412 = arith.mulf %400, %411 : vector<16x32xf32>
    %413 = vector.extract_strided_slice %38 {offsets = [0, 4], sizes = [16, 1], strides = [1, 1]} : vector<16x5xf32> to vector<16x1xf32>
    %414 = vector.broadcast %413 : vector<16x1xf32> to vector<16x32xf32>
    %415 = arith.mulf %400, %414 : vector<16x32xf32>
    %416 = tpu.concatenate %403, %406, %409, %412, %415 in 1 : vector<16x32xf32>, vector<16x32xf32>, vector<16x32xf32>, vector<16x32xf32>, vector<16x32xf32> -> vector<16x160xf32>
    %417 = arith.truncf %416 : vector<16x160xf32> to vector<16x160xbf16>
    %cst_59 = arith.constant dense<0.000000e+00> : vector<16x64xf32>
    %418 = tpu.matmul %417, %132, %cst_59 {dimension_numbers = #tpu.dot_dimension_numbers<[1], [0], [0], [1], [0, 0, 1, 1], [], []>} : vector<16x160xbf16>, vector<160x64xbf16>, vector<16x64xf32> -> vector<16x64xf32>
    %419 = vector.extract_strided_slice %100 {offsets = [0, 3, 0, 0], sizes = [2, 1, 8, 96], strides = [1, 1, 1, 1]} : vector<2x8x8x96xf32> to vector<2x1x8x96xf32>
    %420 = vector.shape_cast %419 : vector<2x1x8x96xf32> to vector<2x8x96xf32>
    %421 = vector.shape_cast %420 : vector<2x8x96xf32> to vector<16x96xf32>
    %422 = vector.extract_strided_slice %421 {offsets = [0, 0], sizes = [16, 32], strides = [1, 1]} : vector<16x96xf32> to vector<16x32xf32>
    %423 = vector.extract_strided_slice %418 {offsets = [0, 0], sizes = [16, 32], strides = [1, 1]} : vector<16x64xf32> to vector<16x32xf32>
    %424 = arith.addf %422, %423 : vector<16x32xf32>
    %cst_60 = arith.constant 5.000000e-01 : f32
    %425 = vector.broadcast %cst_60 : f32 to vector<16x32xf32>
    %426 = arith.mulf %425, %424 : vector<16x32xf32>
    %427 = math.tanh %426 : vector<16x32xf32>
    %cst_61 = arith.constant 1.000000e+00 : f32
    %428 = vector.broadcast %cst_61 : f32 to vector<16x32xf32>
    %429 = arith.addf %427, %428 : vector<16x32xf32>
    %cst_62 = arith.constant 5.000000e-01 : f32
    %430 = vector.broadcast %cst_62 : f32 to vector<16x32xf32>
    %431 = arith.mulf %430, %429 : vector<16x32xf32>
    %432 = vector.extract_strided_slice %421 {offsets = [0, 32], sizes = [16, 32], strides = [1, 1]} : vector<16x96xf32> to vector<16x32xf32>
    %433 = vector.extract_strided_slice %418 {offsets = [0, 32], sizes = [16, 32], strides = [1, 1]} : vector<16x64xf32> to vector<16x32xf32>
    %434 = arith.addf %432, %433 : vector<16x32xf32>
    %cst_63 = arith.constant 5.000000e-01 : f32
    %435 = vector.broadcast %cst_63 : f32 to vector<16x32xf32>
    %436 = arith.mulf %435, %434 : vector<16x32xf32>
    %437 = math.tanh %436 : vector<16x32xf32>
    %cst_64 = arith.constant 1.000000e+00 : f32
    %438 = vector.broadcast %cst_64 : f32 to vector<16x32xf32>
    %439 = arith.addf %437, %438 : vector<16x32xf32>
    %cst_65 = arith.constant 5.000000e-01 : f32
    %440 = vector.broadcast %cst_65 : f32 to vector<16x32xf32>
    %441 = arith.mulf %440, %439 : vector<16x32xf32>
    %442 = arith.mulf %431, %400 : vector<16x32xf32>
    %443 = vector.extract_strided_slice %38 {offsets = [0, 0], sizes = [16, 1], strides = [1, 1]} : vector<16x5xf32> to vector<16x1xf32>
    %444 = vector.broadcast %443 : vector<16x1xf32> to vector<16x32xf32>
    %445 = arith.mulf %442, %444 : vector<16x32xf32>
    %446 = arith.mulf %431, %400 : vector<16x32xf32>
    %447 = vector.extract_strided_slice %38 {offsets = [0, 1], sizes = [16, 1], strides = [1, 1]} : vector<16x5xf32> to vector<16x1xf32>
    %448 = vector.broadcast %447 : vector<16x1xf32> to vector<16x32xf32>
    %449 = arith.mulf %446, %448 : vector<16x32xf32>
    %450 = arith.mulf %431, %400 : vector<16x32xf32>
    %451 = vector.extract_strided_slice %38 {offsets = [0, 2], sizes = [16, 1], strides = [1, 1]} : vector<16x5xf32> to vector<16x1xf32>
    %452 = vector.broadcast %451 : vector<16x1xf32> to vector<16x32xf32>
    %453 = arith.mulf %450, %452 : vector<16x32xf32>
    %454 = arith.mulf %431, %400 : vector<16x32xf32>
    %455 = vector.extract_strided_slice %38 {offsets = [0, 3], sizes = [16, 1], strides = [1, 1]} : vector<16x5xf32> to vector<16x1xf32>
    %456 = vector.broadcast %455 : vector<16x1xf32> to vector<16x32xf32>
    %457 = arith.mulf %454, %456 : vector<16x32xf32>
    %458 = arith.mulf %431, %400 : vector<16x32xf32>
    %459 = vector.extract_strided_slice %38 {offsets = [0, 4], sizes = [16, 1], strides = [1, 1]} : vector<16x5xf32> to vector<16x1xf32>
    %460 = vector.broadcast %459 : vector<16x1xf32> to vector<16x32xf32>
    %461 = arith.mulf %458, %460 : vector<16x32xf32>
    %462 = tpu.concatenate %445, %449, %453, %457, %461 in 1 : vector<16x32xf32>, vector<16x32xf32>, vector<16x32xf32>, vector<16x32xf32>, vector<16x32xf32> -> vector<16x160xf32>
    %463 = arith.truncf %462 : vector<16x160xf32> to vector<16x160xbf16>
    %cst_66 = arith.constant dense<0.000000e+00> : vector<16x32xf32>
    %464 = tpu.matmul %463, %133, %cst_66 {dimension_numbers = #tpu.dot_dimension_numbers<[1], [0], [0], [1], [0, 0, 1, 1], [], []>} : vector<16x160xbf16>, vector<160x32xbf16>, vector<16x32xf32> -> vector<16x32xf32>
    %465 = vector.extract_strided_slice %421 {offsets = [0, 64], sizes = [16, 32], strides = [1, 1]} : vector<16x96xf32> to vector<16x32xf32>
    %466 = arith.addf %465, %464 : vector<16x32xf32>
    %467 = math.tanh %466 : vector<16x32xf32>
    %468 = vector.shape_cast %396 : vector<2x8x32xf32> to vector<16x32xf32>
    %cst_67 = arith.constant 1.000000e+00 : f32
    %469 = vector.broadcast %cst_67 : f32 to vector<16x32xf32>
    %470 = arith.subf %469, %441 : vector<16x32xf32>
    %471 = arith.mulf %470, %467 : vector<16x32xf32>
    %472 = arith.mulf %441, %468 : vector<16x32xf32>
    %473 = arith.addf %471, %472 : vector<16x32xf32>
    %474 = vector.shape_cast %473 : vector<16x32xf32> to vector<2x8x32xf32>
    %475 = vector.extract_strided_slice %134 {offsets = [0, 3, 0, 0], sizes = [2, 1, 8, 1], strides = [1, 1, 1, 1]} : vector<2x8x8x1xf32> to vector<2x1x8x1xf32>
    %476 = vector.shape_cast %475 : vector<2x1x8x1xf32> to vector<2x8x1xf32>
    %477 = vector.broadcast %476 : vector<2x8x1xf32> to vector<2x8x32xf32>
    %478 = arith.mulf %477, %474 : vector<2x8x32xf32>
    %cst_68 = arith.constant 1.000000e+00 : f32
    %479 = vector.broadcast %cst_68 : f32 to vector<2x8x1xf32>
    %480 = arith.subf %479, %476 : vector<2x8x1xf32>
    %481 = vector.broadcast %480 : vector<2x8x1xf32> to vector<2x8x32xf32>
    %482 = arith.mulf %481, %396 : vector<2x8x32xf32>
    %483 = arith.addf %478, %482 : vector<2x8x32xf32>
    %484 = vector.extract_strided_slice %131 {offsets = [0, 4, 0, 0], sizes = [2, 1, 8, 8], strides = [1, 1, 1, 1]} : vector<2x8x8x8xf32> to vector<2x1x8x8xf32>
    %485 = vector.shape_cast %484 : vector<2x1x8x8xf32> to vector<2x8x8xf32>
    "tpu.trace_start"() <{level = 10 : i32, message = "bvw,bwd->bvd"}> : () -> ()
    %cst_69 = arith.constant dense<0.000000e+00> : vector<2x8x32xf32>
    %486 = tpu.matmul %485, %483, %cst_69 {dimension_numbers = #tpu.dot_dimension_numbers<[2], [1], [1], [2], [0, 0, 0, 1, 1, 2], [0], [0]>} : vector<2x8x8xf32>, vector<2x8x32xf32>, vector<2x8x32xf32> -> vector<2x8x32xf32>
    "tpu.trace_stop"() : () -> ()
    %487 = vector.shape_cast %486 : vector<2x8x32xf32> to vector<16x32xf32>
    %488 = vector.extract_strided_slice %38 {offsets = [0, 0], sizes = [16, 1], strides = [1, 1]} : vector<16x5xf32> to vector<16x1xf32>
    %489 = vector.broadcast %488 : vector<16x1xf32> to vector<16x32xf32>
    %490 = arith.mulf %487, %489 : vector<16x32xf32>
    %491 = vector.extract_strided_slice %38 {offsets = [0, 1], sizes = [16, 1], strides = [1, 1]} : vector<16x5xf32> to vector<16x1xf32>
    %492 = vector.broadcast %491 : vector<16x1xf32> to vector<16x32xf32>
    %493 = arith.mulf %487, %492 : vector<16x32xf32>
    %494 = vector.extract_strided_slice %38 {offsets = [0, 2], sizes = [16, 1], strides = [1, 1]} : vector<16x5xf32> to vector<16x1xf32>
    %495 = vector.broadcast %494 : vector<16x1xf32> to vector<16x32xf32>
    %496 = arith.mulf %487, %495 : vector<16x32xf32>
    %497 = vector.extract_strided_slice %38 {offsets = [0, 3], sizes = [16, 1], strides = [1, 1]} : vector<16x5xf32> to vector<16x1xf32>
    %498 = vector.broadcast %497 : vector<16x1xf32> to vector<16x32xf32>
    %499 = arith.mulf %487, %498 : vector<16x32xf32>
    %500 = vector.extract_strided_slice %38 {offsets = [0, 4], sizes = [16, 1], strides = [1, 1]} : vector<16x5xf32> to vector<16x1xf32>
    %501 = vector.broadcast %500 : vector<16x1xf32> to vector<16x32xf32>
    %502 = arith.mulf %487, %501 : vector<16x32xf32>
    %503 = tpu.concatenate %490, %493, %496, %499, %502 in 1 : vector<16x32xf32>, vector<16x32xf32>, vector<16x32xf32>, vector<16x32xf32>, vector<16x32xf32> -> vector<16x160xf32>
    %504 = arith.truncf %503 : vector<16x160xf32> to vector<16x160xbf16>
    %cst_70 = arith.constant dense<0.000000e+00> : vector<16x64xf32>
    %505 = tpu.matmul %504, %132, %cst_70 {dimension_numbers = #tpu.dot_dimension_numbers<[1], [0], [0], [1], [0, 0, 1, 1], [], []>} : vector<16x160xbf16>, vector<160x64xbf16>, vector<16x64xf32> -> vector<16x64xf32>
    %506 = vector.extract_strided_slice %100 {offsets = [0, 4, 0, 0], sizes = [2, 1, 8, 96], strides = [1, 1, 1, 1]} : vector<2x8x8x96xf32> to vector<2x1x8x96xf32>
    %507 = vector.shape_cast %506 : vector<2x1x8x96xf32> to vector<2x8x96xf32>
    %508 = vector.shape_cast %507 : vector<2x8x96xf32> to vector<16x96xf32>
    %509 = vector.extract_strided_slice %508 {offsets = [0, 0], sizes = [16, 32], strides = [1, 1]} : vector<16x96xf32> to vector<16x32xf32>
    %510 = vector.extract_strided_slice %505 {offsets = [0, 0], sizes = [16, 32], strides = [1, 1]} : vector<16x64xf32> to vector<16x32xf32>
    %511 = arith.addf %509, %510 : vector<16x32xf32>
    %cst_71 = arith.constant 5.000000e-01 : f32
    %512 = vector.broadcast %cst_71 : f32 to vector<16x32xf32>
    %513 = arith.mulf %512, %511 : vector<16x32xf32>
    %514 = math.tanh %513 : vector<16x32xf32>
    %cst_72 = arith.constant 1.000000e+00 : f32
    %515 = vector.broadcast %cst_72 : f32 to vector<16x32xf32>
    %516 = arith.addf %514, %515 : vector<16x32xf32>
    %cst_73 = arith.constant 5.000000e-01 : f32
    %517 = vector.broadcast %cst_73 : f32 to vector<16x32xf32>
    %518 = arith.mulf %517, %516 : vector<16x32xf32>
    %519 = vector.extract_strided_slice %508 {offsets = [0, 32], sizes = [16, 32], strides = [1, 1]} : vector<16x96xf32> to vector<16x32xf32>
    %520 = vector.extract_strided_slice %505 {offsets = [0, 32], sizes = [16, 32], strides = [1, 1]} : vector<16x64xf32> to vector<16x32xf32>
    %521 = arith.addf %519, %520 : vector<16x32xf32>
    %cst_74 = arith.constant 5.000000e-01 : f32
    %522 = vector.broadcast %cst_74 : f32 to vector<16x32xf32>
    %523 = arith.mulf %522, %521 : vector<16x32xf32>
    %524 = math.tanh %523 : vector<16x32xf32>
    %cst_75 = arith.constant 1.000000e+00 : f32
    %525 = vector.broadcast %cst_75 : f32 to vector<16x32xf32>
    %526 = arith.addf %524, %525 : vector<16x32xf32>
    %cst_76 = arith.constant 5.000000e-01 : f32
    %527 = vector.broadcast %cst_76 : f32 to vector<16x32xf32>
    %528 = arith.mulf %527, %526 : vector<16x32xf32>
    %529 = arith.mulf %518, %487 : vector<16x32xf32>
    %530 = vector.extract_strided_slice %38 {offsets = [0, 0], sizes = [16, 1], strides = [1, 1]} : vector<16x5xf32> to vector<16x1xf32>
    %531 = vector.broadcast %530 : vector<16x1xf32> to vector<16x32xf32>
    %532 = arith.mulf %529, %531 : vector<16x32xf32>
    %533 = arith.mulf %518, %487 : vector<16x32xf32>
    %534 = vector.extract_strided_slice %38 {offsets = [0, 1], sizes = [16, 1], strides = [1, 1]} : vector<16x5xf32> to vector<16x1xf32>
    %535 = vector.broadcast %534 : vector<16x1xf32> to vector<16x32xf32>
    %536 = arith.mulf %533, %535 : vector<16x32xf32>
    %537 = arith.mulf %518, %487 : vector<16x32xf32>
    %538 = vector.extract_strided_slice %38 {offsets = [0, 2], sizes = [16, 1], strides = [1, 1]} : vector<16x5xf32> to vector<16x1xf32>
    %539 = vector.broadcast %538 : vector<16x1xf32> to vector<16x32xf32>
    %540 = arith.mulf %537, %539 : vector<16x32xf32>
    %541 = arith.mulf %518, %487 : vector<16x32xf32>
    %542 = vector.extract_strided_slice %38 {offsets = [0, 3], sizes = [16, 1], strides = [1, 1]} : vector<16x5xf32> to vector<16x1xf32>
    %543 = vector.broadcast %542 : vector<16x1xf32> to vector<16x32xf32>
    %544 = arith.mulf %541, %543 : vector<16x32xf32>
    %545 = arith.mulf %518, %487 : vector<16x32xf32>
    %546 = vector.extract_strided_slice %38 {offsets = [0, 4], sizes = [16, 1], strides = [1, 1]} : vector<16x5xf32> to vector<16x1xf32>
    %547 = vector.broadcast %546 : vector<16x1xf32> to vector<16x32xf32>
    %548 = arith.mulf %545, %547 : vector<16x32xf32>
    %549 = tpu.concatenate %532, %536, %540, %544, %548 in 1 : vector<16x32xf32>, vector<16x32xf32>, vector<16x32xf32>, vector<16x32xf32>, vector<16x32xf32> -> vector<16x160xf32>
    %550 = arith.truncf %549 : vector<16x160xf32> to vector<16x160xbf16>
    %cst_77 = arith.constant dense<0.000000e+00> : vector<16x32xf32>
    %551 = tpu.matmul %550, %133, %cst_77 {dimension_numbers = #tpu.dot_dimension_numbers<[1], [0], [0], [1], [0, 0, 1, 1], [], []>} : vector<16x160xbf16>, vector<160x32xbf16>, vector<16x32xf32> -> vector<16x32xf32>
    %552 = vector.extract_strided_slice %508 {offsets = [0, 64], sizes = [16, 32], strides = [1, 1]} : vector<16x96xf32> to vector<16x32xf32>
    %553 = arith.addf %552, %551 : vector<16x32xf32>
    %554 = math.tanh %553 : vector<16x32xf32>
    %555 = vector.shape_cast %483 : vector<2x8x32xf32> to vector<16x32xf32>
    %cst_78 = arith.constant 1.000000e+00 : f32
    %556 = vector.broadcast %cst_78 : f32 to vector<16x32xf32>
    %557 = arith.subf %556, %528 : vector<16x32xf32>
    %558 = arith.mulf %557, %554 : vector<16x32xf32>
    %559 = arith.mulf %528, %555 : vector<16x32xf32>
    %560 = arith.addf %558, %559 : vector<16x32xf32>
    %561 = vector.shape_cast %560 : vector<16x32xf32> to vector<2x8x32xf32>
    %562 = vector.extract_strided_slice %134 {offsets = [0, 4, 0, 0], sizes = [2, 1, 8, 1], strides = [1, 1, 1, 1]} : vector<2x8x8x1xf32> to vector<2x1x8x1xf32>
    %563 = vector.shape_cast %562 : vector<2x1x8x1xf32> to vector<2x8x1xf32>
    %564 = vector.broadcast %563 : vector<2x8x1xf32> to vector<2x8x32xf32>
    %565 = arith.mulf %564, %561 : vector<2x8x32xf32>
    %cst_79 = arith.constant 1.000000e+00 : f32
    %566 = vector.broadcast %cst_79 : f32 to vector<2x8x1xf32>
    %567 = arith.subf %566, %563 : vector<2x8x1xf32>
    %568 = vector.broadcast %567 : vector<2x8x1xf32> to vector<2x8x32xf32>
    %569 = arith.mulf %568, %483 : vector<2x8x32xf32>
    %570 = arith.addf %565, %569 : vector<2x8x32xf32>
    %571 = vector.extract_strided_slice %131 {offsets = [0, 5, 0, 0], sizes = [2, 1, 8, 8], strides = [1, 1, 1, 1]} : vector<2x8x8x8xf32> to vector<2x1x8x8xf32>
    %572 = vector.shape_cast %571 : vector<2x1x8x8xf32> to vector<2x8x8xf32>
    "tpu.trace_start"() <{level = 10 : i32, message = "bvw,bwd->bvd"}> : () -> ()
    %cst_80 = arith.constant dense<0.000000e+00> : vector<2x8x32xf32>
    %573 = tpu.matmul %572, %570, %cst_80 {dimension_numbers = #tpu.dot_dimension_numbers<[2], [1], [1], [2], [0, 0, 0, 1, 1, 2], [0], [0]>} : vector<2x8x8xf32>, vector<2x8x32xf32>, vector<2x8x32xf32> -> vector<2x8x32xf32>
    "tpu.trace_stop"() : () -> ()
    %574 = vector.shape_cast %573 : vector<2x8x32xf32> to vector<16x32xf32>
    %575 = vector.extract_strided_slice %38 {offsets = [0, 0], sizes = [16, 1], strides = [1, 1]} : vector<16x5xf32> to vector<16x1xf32>
    %576 = vector.broadcast %575 : vector<16x1xf32> to vector<16x32xf32>
    %577 = arith.mulf %574, %576 : vector<16x32xf32>
    %578 = vector.extract_strided_slice %38 {offsets = [0, 1], sizes = [16, 1], strides = [1, 1]} : vector<16x5xf32> to vector<16x1xf32>
    %579 = vector.broadcast %578 : vector<16x1xf32> to vector<16x32xf32>
    %580 = arith.mulf %574, %579 : vector<16x32xf32>
    %581 = vector.extract_strided_slice %38 {offsets = [0, 2], sizes = [16, 1], strides = [1, 1]} : vector<16x5xf32> to vector<16x1xf32>
    %582 = vector.broadcast %581 : vector<16x1xf32> to vector<16x32xf32>
    %583 = arith.mulf %574, %582 : vector<16x32xf32>
    %584 = vector.extract_strided_slice %38 {offsets = [0, 3], sizes = [16, 1], strides = [1, 1]} : vector<16x5xf32> to vector<16x1xf32>
    %585 = vector.broadcast %584 : vector<16x1xf32> to vector<16x32xf32>
    %586 = arith.mulf %574, %585 : vector<16x32xf32>
    %587 = vector.extract_strided_slice %38 {offsets = [0, 4], sizes = [16, 1], strides = [1, 1]} : vector<16x5xf32> to vector<16x1xf32>
    %588 = vector.broadcast %587 : vector<16x1xf32> to vector<16x32xf32>
    %589 = arith.mulf %574, %588 : vector<16x32xf32>
    %590 = tpu.concatenate %577, %580, %583, %586, %589 in 1 : vector<16x32xf32>, vector<16x32xf32>, vector<16x32xf32>, vector<16x32xf32>, vector<16x32xf32> -> vector<16x160xf32>
    %591 = arith.truncf %590 : vector<16x160xf32> to vector<16x160xbf16>
    %cst_81 = arith.constant dense<0.000000e+00> : vector<16x64xf32>
    %592 = tpu.matmul %591, %132, %cst_81 {dimension_numbers = #tpu.dot_dimension_numbers<[1], [0], [0], [1], [0, 0, 1, 1], [], []>} : vector<16x160xbf16>, vector<160x64xbf16>, vector<16x64xf32> -> vector<16x64xf32>
    %593 = vector.extract_strided_slice %100 {offsets = [0, 5, 0, 0], sizes = [2, 1, 8, 96], strides = [1, 1, 1, 1]} : vector<2x8x8x96xf32> to vector<2x1x8x96xf32>
    %594 = vector.shape_cast %593 : vector<2x1x8x96xf32> to vector<2x8x96xf32>
    %595 = vector.shape_cast %594 : vector<2x8x96xf32> to vector<16x96xf32>
    %596 = vector.extract_strided_slice %595 {offsets = [0, 0], sizes = [16, 32], strides = [1, 1]} : vector<16x96xf32> to vector<16x32xf32>
    %597 = vector.extract_strided_slice %592 {offsets = [0, 0], sizes = [16, 32], strides = [1, 1]} : vector<16x64xf32> to vector<16x32xf32>
    %598 = arith.addf %596, %597 : vector<16x32xf32>
    %cst_82 = arith.constant 5.000000e-01 : f32
    %599 = vector.broadcast %cst_82 : f32 to vector<16x32xf32>
    %600 = arith.mulf %599, %598 : vector<16x32xf32>
    %601 = math.tanh %600 : vector<16x32xf32>
    %cst_83 = arith.constant 1.000000e+00 : f32
    %602 = vector.broadcast %cst_83 : f32 to vector<16x32xf32>
    %603 = arith.addf %601, %602 : vector<16x32xf32>
    %cst_84 = arith.constant 5.000000e-01 : f32
    %604 = vector.broadcast %cst_84 : f32 to vector<16x32xf32>
    %605 = arith.mulf %604, %603 : vector<16x32xf32>
    %606 = vector.extract_strided_slice %595 {offsets = [0, 32], sizes = [16, 32], strides = [1, 1]} : vector<16x96xf32> to vector<16x32xf32>
    %607 = vector.extract_strided_slice %592 {offsets = [0, 32], sizes = [16, 32], strides = [1, 1]} : vector<16x64xf32> to vector<16x32xf32>
    %608 = arith.addf %606, %607 : vector<16x32xf32>
    %cst_85 = arith.constant 5.000000e-01 : f32
    %609 = vector.broadcast %cst_85 : f32 to vector<16x32xf32>
    %610 = arith.mulf %609, %608 : vector<16x32xf32>
    %611 = math.tanh %610 : vector<16x32xf32>
    %cst_86 = arith.constant 1.000000e+00 : f32
    %612 = vector.broadcast %cst_86 : f32 to vector<16x32xf32>
    %613 = arith.addf %611, %612 : vector<16x32xf32>
    %cst_87 = arith.constant 5.000000e-01 : f32
    %614 = vector.broadcast %cst_87 : f32 to vector<16x32xf32>
    %615 = arith.mulf %614, %613 : vector<16x32xf32>
    %616 = arith.mulf %605, %574 : vector<16x32xf32>
    %617 = vector.extract_strided_slice %38 {offsets = [0, 0], sizes = [16, 1], strides = [1, 1]} : vector<16x5xf32> to vector<16x1xf32>
    %618 = vector.broadcast %617 : vector<16x1xf32> to vector<16x32xf32>
    %619 = arith.mulf %616, %618 : vector<16x32xf32>
    %620 = arith.mulf %605, %574 : vector<16x32xf32>
    %621 = vector.extract_strided_slice %38 {offsets = [0, 1], sizes = [16, 1], strides = [1, 1]} : vector<16x5xf32> to vector<16x1xf32>
    %622 = vector.broadcast %621 : vector<16x1xf32> to vector<16x32xf32>
    %623 = arith.mulf %620, %622 : vector<16x32xf32>
    %624 = arith.mulf %605, %574 : vector<16x32xf32>
    %625 = vector.extract_strided_slice %38 {offsets = [0, 2], sizes = [16, 1], strides = [1, 1]} : vector<16x5xf32> to vector<16x1xf32>
    %626 = vector.broadcast %625 : vector<16x1xf32> to vector<16x32xf32>
    %627 = arith.mulf %624, %626 : vector<16x32xf32>
    %628 = arith.mulf %605, %574 : vector<16x32xf32>
    %629 = vector.extract_strided_slice %38 {offsets = [0, 3], sizes = [16, 1], strides = [1, 1]} : vector<16x5xf32> to vector<16x1xf32>
    %630 = vector.broadcast %629 : vector<16x1xf32> to vector<16x32xf32>
    %631 = arith.mulf %628, %630 : vector<16x32xf32>
    %632 = arith.mulf %605, %574 : vector<16x32xf32>
    %633 = vector.extract_strided_slice %38 {offsets = [0, 4], sizes = [16, 1], strides = [1, 1]} : vector<16x5xf32> to vector<16x1xf32>
    %634 = vector.broadcast %633 : vector<16x1xf32> to vector<16x32xf32>
    %635 = arith.mulf %632, %634 : vector<16x32xf32>
    %636 = tpu.concatenate %619, %623, %627, %631, %635 in 1 : vector<16x32xf32>, vector<16x32xf32>, vector<16x32xf32>, vector<16x32xf32>, vector<16x32xf32> -> vector<16x160xf32>
    %637 = arith.truncf %636 : vector<16x160xf32> to vector<16x160xbf16>
    %cst_88 = arith.constant dense<0.000000e+00> : vector<16x32xf32>
    %638 = tpu.matmul %637, %133, %cst_88 {dimension_numbers = #tpu.dot_dimension_numbers<[1], [0], [0], [1], [0, 0, 1, 1], [], []>} : vector<16x160xbf16>, vector<160x32xbf16>, vector<16x32xf32> -> vector<16x32xf32>
    %639 = vector.extract_strided_slice %595 {offsets = [0, 64], sizes = [16, 32], strides = [1, 1]} : vector<16x96xf32> to vector<16x32xf32>
    %640 = arith.addf %639, %638 : vector<16x32xf32>
    %641 = math.tanh %640 : vector<16x32xf32>
    %642 = vector.shape_cast %570 : vector<2x8x32xf32> to vector<16x32xf32>
    %cst_89 = arith.constant 1.000000e+00 : f32
    %643 = vector.broadcast %cst_89 : f32 to vector<16x32xf32>
    %644 = arith.subf %643, %615 : vector<16x32xf32>
    %645 = arith.mulf %644, %641 : vector<16x32xf32>
    %646 = arith.mulf %615, %642 : vector<16x32xf32>
    %647 = arith.addf %645, %646 : vector<16x32xf32>
    %648 = vector.shape_cast %647 : vector<16x32xf32> to vector<2x8x32xf32>
    %649 = vector.extract_strided_slice %134 {offsets = [0, 5, 0, 0], sizes = [2, 1, 8, 1], strides = [1, 1, 1, 1]} : vector<2x8x8x1xf32> to vector<2x1x8x1xf32>
    %650 = vector.shape_cast %649 : vector<2x1x8x1xf32> to vector<2x8x1xf32>
    %651 = vector.broadcast %650 : vector<2x8x1xf32> to vector<2x8x32xf32>
    %652 = arith.mulf %651, %648 : vector<2x8x32xf32>
    %cst_90 = arith.constant 1.000000e+00 : f32
    %653 = vector.broadcast %cst_90 : f32 to vector<2x8x1xf32>
    %654 = arith.subf %653, %650 : vector<2x8x1xf32>
    %655 = vector.broadcast %654 : vector<2x8x1xf32> to vector<2x8x32xf32>
    %656 = arith.mulf %655, %570 : vector<2x8x32xf32>
    %657 = arith.addf %652, %656 : vector<2x8x32xf32>
    %658 = vector.extract_strided_slice %131 {offsets = [0, 6, 0, 0], sizes = [2, 1, 8, 8], strides = [1, 1, 1, 1]} : vector<2x8x8x8xf32> to vector<2x1x8x8xf32>
    %659 = vector.shape_cast %658 : vector<2x1x8x8xf32> to vector<2x8x8xf32>
    "tpu.trace_start"() <{level = 10 : i32, message = "bvw,bwd->bvd"}> : () -> ()
    %cst_91 = arith.constant dense<0.000000e+00> : vector<2x8x32xf32>
    %660 = tpu.matmul %659, %657, %cst_91 {dimension_numbers = #tpu.dot_dimension_numbers<[2], [1], [1], [2], [0, 0, 0, 1, 1, 2], [0], [0]>} : vector<2x8x8xf32>, vector<2x8x32xf32>, vector<2x8x32xf32> -> vector<2x8x32xf32>
    "tpu.trace_stop"() : () -> ()
    %661 = vector.shape_cast %660 : vector<2x8x32xf32> to vector<16x32xf32>
    %662 = vector.extract_strided_slice %38 {offsets = [0, 0], sizes = [16, 1], strides = [1, 1]} : vector<16x5xf32> to vector<16x1xf32>
    %663 = vector.broadcast %662 : vector<16x1xf32> to vector<16x32xf32>
    %664 = arith.mulf %661, %663 : vector<16x32xf32>
    %665 = vector.extract_strided_slice %38 {offsets = [0, 1], sizes = [16, 1], strides = [1, 1]} : vector<16x5xf32> to vector<16x1xf32>
    %666 = vector.broadcast %665 : vector<16x1xf32> to vector<16x32xf32>
    %667 = arith.mulf %661, %666 : vector<16x32xf32>
    %668 = vector.extract_strided_slice %38 {offsets = [0, 2], sizes = [16, 1], strides = [1, 1]} : vector<16x5xf32> to vector<16x1xf32>
    %669 = vector.broadcast %668 : vector<16x1xf32> to vector<16x32xf32>
    %670 = arith.mulf %661, %669 : vector<16x32xf32>
    %671 = vector.extract_strided_slice %38 {offsets = [0, 3], sizes = [16, 1], strides = [1, 1]} : vector<16x5xf32> to vector<16x1xf32>
    %672 = vector.broadcast %671 : vector<16x1xf32> to vector<16x32xf32>
    %673 = arith.mulf %661, %672 : vector<16x32xf32>
    %674 = vector.extract_strided_slice %38 {offsets = [0, 4], sizes = [16, 1], strides = [1, 1]} : vector<16x5xf32> to vector<16x1xf32>
    %675 = vector.broadcast %674 : vector<16x1xf32> to vector<16x32xf32>
    %676 = arith.mulf %661, %675 : vector<16x32xf32>
    %677 = tpu.concatenate %664, %667, %670, %673, %676 in 1 : vector<16x32xf32>, vector<16x32xf32>, vector<16x32xf32>, vector<16x32xf32>, vector<16x32xf32> -> vector<16x160xf32>
    %678 = arith.truncf %677 : vector<16x160xf32> to vector<16x160xbf16>
    %cst_92 = arith.constant dense<0.000000e+00> : vector<16x64xf32>
    %679 = tpu.matmul %678, %132, %cst_92 {dimension_numbers = #tpu.dot_dimension_numbers<[1], [0], [0], [1], [0, 0, 1, 1], [], []>} : vector<16x160xbf16>, vector<160x64xbf16>, vector<16x64xf32> -> vector<16x64xf32>
    %680 = vector.extract_strided_slice %100 {offsets = [0, 6, 0, 0], sizes = [2, 1, 8, 96], strides = [1, 1, 1, 1]} : vector<2x8x8x96xf32> to vector<2x1x8x96xf32>
    %681 = vector.shape_cast %680 : vector<2x1x8x96xf32> to vector<2x8x96xf32>
    %682 = vector.shape_cast %681 : vector<2x8x96xf32> to vector<16x96xf32>
    %683 = vector.extract_strided_slice %682 {offsets = [0, 0], sizes = [16, 32], strides = [1, 1]} : vector<16x96xf32> to vector<16x32xf32>
    %684 = vector.extract_strided_slice %679 {offsets = [0, 0], sizes = [16, 32], strides = [1, 1]} : vector<16x64xf32> to vector<16x32xf32>
    %685 = arith.addf %683, %684 : vector<16x32xf32>
    %cst_93 = arith.constant 5.000000e-01 : f32
    %686 = vector.broadcast %cst_93 : f32 to vector<16x32xf32>
    %687 = arith.mulf %686, %685 : vector<16x32xf32>
    %688 = math.tanh %687 : vector<16x32xf32>
    %cst_94 = arith.constant 1.000000e+00 : f32
    %689 = vector.broadcast %cst_94 : f32 to vector<16x32xf32>
    %690 = arith.addf %688, %689 : vector<16x32xf32>
    %cst_95 = arith.constant 5.000000e-01 : f32
    %691 = vector.broadcast %cst_95 : f32 to vector<16x32xf32>
    %692 = arith.mulf %691, %690 : vector<16x32xf32>
    %693 = vector.extract_strided_slice %682 {offsets = [0, 32], sizes = [16, 32], strides = [1, 1]} : vector<16x96xf32> to vector<16x32xf32>
    %694 = vector.extract_strided_slice %679 {offsets = [0, 32], sizes = [16, 32], strides = [1, 1]} : vector<16x64xf32> to vector<16x32xf32>
    %695 = arith.addf %693, %694 : vector<16x32xf32>
    %cst_96 = arith.constant 5.000000e-01 : f32
    %696 = vector.broadcast %cst_96 : f32 to vector<16x32xf32>
    %697 = arith.mulf %696, %695 : vector<16x32xf32>
    %698 = math.tanh %697 : vector<16x32xf32>
    %cst_97 = arith.constant 1.000000e+00 : f32
    %699 = vector.broadcast %cst_97 : f32 to vector<16x32xf32>
    %700 = arith.addf %698, %699 : vector<16x32xf32>
    %cst_98 = arith.constant 5.000000e-01 : f32
    %701 = vector.broadcast %cst_98 : f32 to vector<16x32xf32>
    %702 = arith.mulf %701, %700 : vector<16x32xf32>
    %703 = arith.mulf %692, %661 : vector<16x32xf32>
    %704 = vector.extract_strided_slice %38 {offsets = [0, 0], sizes = [16, 1], strides = [1, 1]} : vector<16x5xf32> to vector<16x1xf32>
    %705 = vector.broadcast %704 : vector<16x1xf32> to vector<16x32xf32>
    %706 = arith.mulf %703, %705 : vector<16x32xf32>
    %707 = arith.mulf %692, %661 : vector<16x32xf32>
    %708 = vector.extract_strided_slice %38 {offsets = [0, 1], sizes = [16, 1], strides = [1, 1]} : vector<16x5xf32> to vector<16x1xf32>
    %709 = vector.broadcast %708 : vector<16x1xf32> to vector<16x32xf32>
    %710 = arith.mulf %707, %709 : vector<16x32xf32>
    %711 = arith.mulf %692, %661 : vector<16x32xf32>
    %712 = vector.extract_strided_slice %38 {offsets = [0, 2], sizes = [16, 1], strides = [1, 1]} : vector<16x5xf32> to vector<16x1xf32>
    %713 = vector.broadcast %712 : vector<16x1xf32> to vector<16x32xf32>
    %714 = arith.mulf %711, %713 : vector<16x32xf32>
    %715 = arith.mulf %692, %661 : vector<16x32xf32>
    %716 = vector.extract_strided_slice %38 {offsets = [0, 3], sizes = [16, 1], strides = [1, 1]} : vector<16x5xf32> to vector<16x1xf32>
    %717 = vector.broadcast %716 : vector<16x1xf32> to vector<16x32xf32>
    %718 = arith.mulf %715, %717 : vector<16x32xf32>
    %719 = arith.mulf %692, %661 : vector<16x32xf32>
    %720 = vector.extract_strided_slice %38 {offsets = [0, 4], sizes = [16, 1], strides = [1, 1]} : vector<16x5xf32> to vector<16x1xf32>
    %721 = vector.broadcast %720 : vector<16x1xf32> to vector<16x32xf32>
    %722 = arith.mulf %719, %721 : vector<16x32xf32>
    %723 = tpu.concatenate %706, %710, %714, %718, %722 in 1 : vector<16x32xf32>, vector<16x32xf32>, vector<16x32xf32>, vector<16x32xf32>, vector<16x32xf32> -> vector<16x160xf32>
    %724 = arith.truncf %723 : vector<16x160xf32> to vector<16x160xbf16>
    %cst_99 = arith.constant dense<0.000000e+00> : vector<16x32xf32>
    %725 = tpu.matmul %724, %133, %cst_99 {dimension_numbers = #tpu.dot_dimension_numbers<[1], [0], [0], [1], [0, 0, 1, 1], [], []>} : vector<16x160xbf16>, vector<160x32xbf16>, vector<16x32xf32> -> vector<16x32xf32>
    %726 = vector.extract_strided_slice %682 {offsets = [0, 64], sizes = [16, 32], strides = [1, 1]} : vector<16x96xf32> to vector<16x32xf32>
    %727 = arith.addf %726, %725 : vector<16x32xf32>
    %728 = math.tanh %727 : vector<16x32xf32>
    %729 = vector.shape_cast %657 : vector<2x8x32xf32> to vector<16x32xf32>
    %cst_100 = arith.constant 1.000000e+00 : f32
    %730 = vector.broadcast %cst_100 : f32 to vector<16x32xf32>
    %731 = arith.subf %730, %702 : vector<16x32xf32>
    %732 = arith.mulf %731, %728 : vector<16x32xf32>
    %733 = arith.mulf %702, %729 : vector<16x32xf32>
    %734 = arith.addf %732, %733 : vector<16x32xf32>
    %735 = vector.shape_cast %734 : vector<16x32xf32> to vector<2x8x32xf32>
    %736 = vector.extract_strided_slice %134 {offsets = [0, 6, 0, 0], sizes = [2, 1, 8, 1], strides = [1, 1, 1, 1]} : vector<2x8x8x1xf32> to vector<2x1x8x1xf32>
    %737 = vector.shape_cast %736 : vector<2x1x8x1xf32> to vector<2x8x1xf32>
    %738 = vector.broadcast %737 : vector<2x8x1xf32> to vector<2x8x32xf32>
    %739 = arith.mulf %738, %735 : vector<2x8x32xf32>
    %cst_101 = arith.constant 1.000000e+00 : f32
    %740 = vector.broadcast %cst_101 : f32 to vector<2x8x1xf32>
    %741 = arith.subf %740, %737 : vector<2x8x1xf32>
    %742 = vector.broadcast %741 : vector<2x8x1xf32> to vector<2x8x32xf32>
    %743 = arith.mulf %742, %657 : vector<2x8x32xf32>
    %744 = arith.addf %739, %743 : vector<2x8x32xf32>
    %745 = vector.extract_strided_slice %131 {offsets = [0, 7, 0, 0], sizes = [2, 1, 8, 8], strides = [1, 1, 1, 1]} : vector<2x8x8x8xf32> to vector<2x1x8x8xf32>
    %746 = vector.shape_cast %745 : vector<2x1x8x8xf32> to vector<2x8x8xf32>
    "tpu.trace_start"() <{level = 10 : i32, message = "bvw,bwd->bvd"}> : () -> ()
    %cst_102 = arith.constant dense<0.000000e+00> : vector<2x8x32xf32>
    %747 = tpu.matmul %746, %744, %cst_102 {dimension_numbers = #tpu.dot_dimension_numbers<[2], [1], [1], [2], [0, 0, 0, 1, 1, 2], [0], [0]>} : vector<2x8x8xf32>, vector<2x8x32xf32>, vector<2x8x32xf32> -> vector<2x8x32xf32>
    "tpu.trace_stop"() : () -> ()
    %748 = vector.shape_cast %747 : vector<2x8x32xf32> to vector<16x32xf32>
    %749 = vector.extract_strided_slice %38 {offsets = [0, 0], sizes = [16, 1], strides = [1, 1]} : vector<16x5xf32> to vector<16x1xf32>
    %750 = vector.broadcast %749 : vector<16x1xf32> to vector<16x32xf32>
    %751 = arith.mulf %748, %750 : vector<16x32xf32>
    %752 = vector.extract_strided_slice %38 {offsets = [0, 1], sizes = [16, 1], strides = [1, 1]} : vector<16x5xf32> to vector<16x1xf32>
    %753 = vector.broadcast %752 : vector<16x1xf32> to vector<16x32xf32>
    %754 = arith.mulf %748, %753 : vector<16x32xf32>
    %755 = vector.extract_strided_slice %38 {offsets = [0, 2], sizes = [16, 1], strides = [1, 1]} : vector<16x5xf32> to vector<16x1xf32>
    %756 = vector.broadcast %755 : vector<16x1xf32> to vector<16x32xf32>
    %757 = arith.mulf %748, %756 : vector<16x32xf32>
    %758 = vector.extract_strided_slice %38 {offsets = [0, 3], sizes = [16, 1], strides = [1, 1]} : vector<16x5xf32> to vector<16x1xf32>
    %759 = vector.broadcast %758 : vector<16x1xf32> to vector<16x32xf32>
    %760 = arith.mulf %748, %759 : vector<16x32xf32>
    %761 = vector.extract_strided_slice %38 {offsets = [0, 4], sizes = [16, 1], strides = [1, 1]} : vector<16x5xf32> to vector<16x1xf32>
    %762 = vector.broadcast %761 : vector<16x1xf32> to vector<16x32xf32>
    %763 = arith.mulf %748, %762 : vector<16x32xf32>
    %764 = tpu.concatenate %751, %754, %757, %760, %763 in 1 : vector<16x32xf32>, vector<16x32xf32>, vector<16x32xf32>, vector<16x32xf32>, vector<16x32xf32> -> vector<16x160xf32>
    %765 = arith.truncf %764 : vector<16x160xf32> to vector<16x160xbf16>
    %cst_103 = arith.constant dense<0.000000e+00> : vector<16x64xf32>
    %766 = tpu.matmul %765, %132, %cst_103 {dimension_numbers = #tpu.dot_dimension_numbers<[1], [0], [0], [1], [0, 0, 1, 1], [], []>} : vector<16x160xbf16>, vector<160x64xbf16>, vector<16x64xf32> -> vector<16x64xf32>
    %767 = vector.extract_strided_slice %100 {offsets = [0, 7, 0, 0], sizes = [2, 1, 8, 96], strides = [1, 1, 1, 1]} : vector<2x8x8x96xf32> to vector<2x1x8x96xf32>
    %768 = vector.shape_cast %767 : vector<2x1x8x96xf32> to vector<2x8x96xf32>
    %769 = vector.shape_cast %768 : vector<2x8x96xf32> to vector<16x96xf32>
    %770 = vector.extract_strided_slice %769 {offsets = [0, 0], sizes = [16, 32], strides = [1, 1]} : vector<16x96xf32> to vector<16x32xf32>
    %771 = vector.extract_strided_slice %766 {offsets = [0, 0], sizes = [16, 32], strides = [1, 1]} : vector<16x64xf32> to vector<16x32xf32>
    %772 = arith.addf %770, %771 : vector<16x32xf32>
    %cst_104 = arith.constant 5.000000e-01 : f32
    %773 = vector.broadcast %cst_104 : f32 to vector<16x32xf32>
    %774 = arith.mulf %773, %772 : vector<16x32xf32>
    %775 = math.tanh %774 : vector<16x32xf32>
    %cst_105 = arith.constant 1.000000e+00 : f32
    %776 = vector.broadcast %cst_105 : f32 to vector<16x32xf32>
    %777 = arith.addf %775, %776 : vector<16x32xf32>
    %cst_106 = arith.constant 5.000000e-01 : f32
    %778 = vector.broadcast %cst_106 : f32 to vector<16x32xf32>
    %779 = arith.mulf %778, %777 : vector<16x32xf32>
    %780 = vector.extract_strided_slice %769 {offsets = [0, 32], sizes = [16, 32], strides = [1, 1]} : vector<16x96xf32> to vector<16x32xf32>
    %781 = vector.extract_strided_slice %766 {offsets = [0, 32], sizes = [16, 32], strides = [1, 1]} : vector<16x64xf32> to vector<16x32xf32>
    %782 = arith.addf %780, %781 : vector<16x32xf32>
    %cst_107 = arith.constant 5.000000e-01 : f32
    %783 = vector.broadcast %cst_107 : f32 to vector<16x32xf32>
    %784 = arith.mulf %783, %782 : vector<16x32xf32>
    %785 = math.tanh %784 : vector<16x32xf32>
    %cst_108 = arith.constant 1.000000e+00 : f32
    %786 = vector.broadcast %cst_108 : f32 to vector<16x32xf32>
    %787 = arith.addf %785, %786 : vector<16x32xf32>
    %cst_109 = arith.constant 5.000000e-01 : f32
    %788 = vector.broadcast %cst_109 : f32 to vector<16x32xf32>
    %789 = arith.mulf %788, %787 : vector<16x32xf32>
    %790 = arith.mulf %779, %748 : vector<16x32xf32>
    %791 = vector.extract_strided_slice %38 {offsets = [0, 0], sizes = [16, 1], strides = [1, 1]} : vector<16x5xf32> to vector<16x1xf32>
    %792 = vector.broadcast %791 : vector<16x1xf32> to vector<16x32xf32>
    %793 = arith.mulf %790, %792 : vector<16x32xf32>
    %794 = arith.mulf %779, %748 : vector<16x32xf32>
    %795 = vector.extract_strided_slice %38 {offsets = [0, 1], sizes = [16, 1], strides = [1, 1]} : vector<16x5xf32> to vector<16x1xf32>
    %796 = vector.broadcast %795 : vector<16x1xf32> to vector<16x32xf32>
    %797 = arith.mulf %794, %796 : vector<16x32xf32>
    %798 = arith.mulf %779, %748 : vector<16x32xf32>
    %799 = vector.extract_strided_slice %38 {offsets = [0, 2], sizes = [16, 1], strides = [1, 1]} : vector<16x5xf32> to vector<16x1xf32>
    %800 = vector.broadcast %799 : vector<16x1xf32> to vector<16x32xf32>
    %801 = arith.mulf %798, %800 : vector<16x32xf32>
    %802 = arith.mulf %779, %748 : vector<16x32xf32>
    %803 = vector.extract_strided_slice %38 {offsets = [0, 3], sizes = [16, 1], strides = [1, 1]} : vector<16x5xf32> to vector<16x1xf32>
    %804 = vector.broadcast %803 : vector<16x1xf32> to vector<16x32xf32>
    %805 = arith.mulf %802, %804 : vector<16x32xf32>
    %806 = arith.mulf %779, %748 : vector<16x32xf32>
    %807 = vector.extract_strided_slice %38 {offsets = [0, 4], sizes = [16, 1], strides = [1, 1]} : vector<16x5xf32> to vector<16x1xf32>
    %808 = vector.broadcast %807 : vector<16x1xf32> to vector<16x32xf32>
    %809 = arith.mulf %806, %808 : vector<16x32xf32>
    %810 = tpu.concatenate %793, %797, %801, %805, %809 in 1 : vector<16x32xf32>, vector<16x32xf32>, vector<16x32xf32>, vector<16x32xf32>, vector<16x32xf32> -> vector<16x160xf32>
    %811 = arith.truncf %810 : vector<16x160xf32> to vector<16x160xbf16>
    %cst_110 = arith.constant dense<0.000000e+00> : vector<16x32xf32>
    %812 = tpu.matmul %811, %133, %cst_110 {dimension_numbers = #tpu.dot_dimension_numbers<[1], [0], [0], [1], [0, 0, 1, 1], [], []>} : vector<16x160xbf16>, vector<160x32xbf16>, vector<16x32xf32> -> vector<16x32xf32>
    %813 = vector.extract_strided_slice %769 {offsets = [0, 64], sizes = [16, 32], strides = [1, 1]} : vector<16x96xf32> to vector<16x32xf32>
    %814 = arith.addf %813, %812 : vector<16x32xf32>
    %815 = math.tanh %814 : vector<16x32xf32>
    %816 = vector.shape_cast %744 : vector<2x8x32xf32> to vector<16x32xf32>
    %cst_111 = arith.constant 1.000000e+00 : f32
    %817 = vector.broadcast %cst_111 : f32 to vector<16x32xf32>
    %818 = arith.subf %817, %789 : vector<16x32xf32>
    %819 = arith.mulf %818, %815 : vector<16x32xf32>
    %820 = arith.mulf %789, %816 : vector<16x32xf32>
    %821 = arith.addf %819, %820 : vector<16x32xf32>
    %822 = vector.shape_cast %821 : vector<16x32xf32> to vector<2x8x32xf32>
    %823 = vector.extract_strided_slice %134 {offsets = [0, 7, 0, 0], sizes = [2, 1, 8, 1], strides = [1, 1, 1, 1]} : vector<2x8x8x1xf32> to vector<2x1x8x1xf32>
    %824 = vector.shape_cast %823 : vector<2x1x8x1xf32> to vector<2x8x1xf32>
    %825 = vector.broadcast %824 : vector<2x8x1xf32> to vector<2x8x32xf32>
    %826 = arith.mulf %825, %822 : vector<2x8x32xf32>
    %cst_112 = arith.constant 1.000000e+00 : f32
    %827 = vector.broadcast %cst_112 : f32 to vector<2x8x1xf32>
    %828 = arith.subf %827, %824 : vector<2x8x1xf32>
    %829 = vector.broadcast %828 : vector<2x8x1xf32> to vector<2x8x32xf32>
    %830 = arith.mulf %829, %744 : vector<2x8x32xf32>
    %831 = arith.addf %826, %830 : vector<2x8x32xf32>
    %cst_113 = arith.constant dense<0.000000e+00> : vector<2x8xf32>
    %832 = vector.multi_reduction <add>, %831, %cst_113 [2] : vector<2x8x32xf32> to vector<2x8xf32>
    %c0_114 = arith.constant 0 : index
    %c0_115 = arith.constant 0 : index
    %c0_116 = arith.constant 0 : index
    %833 = vector.load %arg2[%c0_114, %c0_115, %c0_116] : memref<2x1x4xf32, #tpu.memory_space<vmem>>, vector<2x1x4xf32>
    %834 = vector.shape_cast %833 : vector<2x1x4xf32> to vector<2x4xf32>
    %cst_117 = arith.constant dense<0.000000e+00> : vector<2x32xf32>
    %835 = tpu.matmul %834, %28, %cst_117 {dimension_numbers = #tpu.dot_dimension_numbers<[1], [0], [0], [1], [0, 0, 1, 1], [], []>} : vector<2x4xf32>, vector<4x32xf32>, vector<2x32xf32> -> vector<2x32xf32>
    %836 = vector.shape_cast %17 : vector<32xf32> to vector<1x32xf32>
    %837 = vector.broadcast %836 : vector<1x32xf32> to vector<2x32xf32>
    %838 = arith.addf %835, %837 : vector<2x32xf32>
    %839 = tpu.concatenate %832, %838 in 1 : vector<2x8xf32>, vector<2x32xf32> -> vector<2x40xf32>
    %cst_118 = arith.constant dense<0.000000e+00> : vector<2x32xf32>
    %840 = tpu.matmul %839, %29, %cst_118 {dimension_numbers = #tpu.dot_dimension_numbers<[1], [0], [0], [1], [0, 0, 1, 1], [], []>} : vector<2x40xf32>, vector<40x32xf32>, vector<2x32xf32> -> vector<2x32xf32>
    %841 = vector.shape_cast %19 : vector<32xf32> to vector<1x32xf32>
    %842 = vector.broadcast %841 : vector<1x32xf32> to vector<2x32xf32>
    %843 = arith.addf %840, %842 : vector<2x32xf32>
    %cst_119 = arith.constant 0.000000e+00 : f32
    %844 = vector.broadcast %cst_119 : f32 to vector<2x32xf32>
    %845 = arith.maximumf %843, %844 : vector<2x32xf32>
    %cst_120 = arith.constant dense<0.000000e+00> : vector<2x2xf32>
    %846 = tpu.matmul %845, %30, %cst_120 {dimension_numbers = #tpu.dot_dimension_numbers<[1], [0], [0], [1], [0, 0, 1, 1], [], []>} : vector<2x32xf32>, vector<32x2xf32>, vector<2x2xf32> -> vector<2x2xf32>
    %847 = vector.shape_cast %21 : vector<2xf32> to vector<1x2xf32>
    %848 = vector.broadcast %847 : vector<1x2xf32> to vector<2x2xf32>
    %849 = arith.addf %846, %848 : vector<2x2xf32>
    %850 = tpu.concatenate %849, %832, %838 in 1 : vector<2x2xf32>, vector<2x8xf32>, vector<2x32xf32> -> vector<2x42xf32>
    %cst_121 = arith.constant 0.000000e+00 : f32
    %851 = vector.broadcast %cst_121 : f32 to vector<2x86xf32>
    %852 = tpu.concatenate %850, %851 in 1 : vector<2x42xf32>, vector<2x86xf32> -> vector<2x128xf32>
    %853 = vector.shape_cast %852 : vector<2x128xf32> to vector<2x1x128xf32>
    %c0_122 = arith.constant 0 : index
    %c0_123 = arith.constant 0 : index
    %c0_124 = arith.constant 0 : index
    %854 = vector.load %arg9[%c0_122, %c0_123, %c0_124] : memref<2x1x128xf32, #tpu.memory_space<vmem>>, vector<2x1x128xf32>
    tpu.vector_store %arg9[%c0_122, %c0_123, %c0_124], %853 {strides = array<i32>} : memref<2x1x128xf32, #tpu.memory_space<vmem>>, vector<2x1x128xf32>,
    return
  }
  func.func @transform_0(%arg0: i32) -> (i32, i32, i32) {
    %c0_i32 = arith.constant 0 : i32
    %c0_i32_0 = arith.constant 0 : i32
    %c0_i32_1 = arith.constant 0 : i32
    return %arg0, %c0_i32, %c0_i32_0 : i32, i32, i32
  }
  func.func @transform_1(%arg0: i32) -> (i32, i32, i32) {
    %c0_i32 = arith.constant 0 : i32
    %c0_i32_0 = arith.constant 0 : i32
    %c0_i32_1 = arith.constant 0 : i32
    return %arg0, %c0_i32, %c0_i32_0 : i32, i32, i32
  }
  func.func @transform_2(%arg0: i32) -> (i32, i32, i32) {
    %c0_i32 = arith.constant 0 : i32
    %c0_i32_0 = arith.constant 0 : i32
    %c0_i32_1 = arith.constant 0 : i32
    return %arg0, %c0_i32, %c0_i32_0 : i32, i32, i32
  }
  func.func @transform_3(%arg0: i32) -> (i32, i32) {
    %c0_i32 = arith.constant 0 : i32
    %c0_i32_0 = arith.constant 0 : i32
    %c0_i32_1 = arith.constant 0 : i32
    return %c0_i32, %c0_i32_0 : i32, i32
  }
  func.func @transform_4(%arg0: i32) -> (i32, i32) {
    %c0_i32 = arith.constant 0 : i32
    %c0_i32_0 = arith.constant 0 : i32
    %c0_i32_1 = arith.constant 0 : i32
    return %c0_i32, %c0_i32_0 : i32, i32
  }
  func.func @transform_5(%arg0: i32) -> (i32, i32) {
    %c0_i32 = arith.constant 0 : i32
    %c0_i32_0 = arith.constant 0 : i32
    %c0_i32_1 = arith.constant 0 : i32
    return %c0_i32, %c0_i32_0 : i32, i32
  }
  func.func @transform_6(%arg0: i32) -> (i32, i32) {
    %c0_i32 = arith.constant 0 : i32
    %c0_i32_0 = arith.constant 0 : i32
    %c0_i32_1 = arith.constant 0 : i32
    return %c0_i32, %c0_i32_0 : i32, i32
  }
  func.func @transform_7(%arg0: i32) -> (i32, i32) {
    %c0_i32 = arith.constant 0 : i32
    %c0_i32_0 = arith.constant 0 : i32
    %c0_i32_1 = arith.constant 0 : i32
    return %c0_i32, %c0_i32_0 : i32, i32
  }
  func.func @transform_8(%arg0: i32) -> (i32, i32, i32) {
    %c0_i32 = arith.constant 0 : i32
    %c0_i32_0 = arith.constant 0 : i32
    %c0_i32_1 = arith.constant 0 : i32
    return %arg0, %c0_i32, %c0_i32_0 : i32, i32, i32
  }
}

</mosaic_0001>

<llo_original>
// kernel: tpu_custom_call.1
$region0: #{tpu_custom_call.1}
  #allocation0 [shape = 'u32[]', space=smem, size = 0x4, offset = 0x4, fixed_abs, tag = 'smem constant byte address 0x4 - core index']
  #allocation1 [shape = 'u32[144,128]{1,0:T(1,128)}', space=vmem, size = 0x12000, scoped, tag = 'internal scratch']
  %s0 = inlined_call_operand.vmem [shape: f32[2,8,32], index: 0, kind: input, shape index: {}]
  %s1 = inlined_call_operand.vmem [shape: f32[2,1,4], index: 1, kind: input, shape index: {}]
  %s2 = inlined_call_operand.vmem [shape: f32[2,8,64], index: 2, kind: input, shape index: {}]
  %s3 = inlined_call_operand.vmem [shape: f32[102,32], index: 3, kind: input, shape index: {}]
  %s4 = inlined_call_operand.vmem [shape: f32[64,13], index: 4, kind: input, shape index: {}]
  %s5 = inlined_call_operand.vmem [shape: bf16[165,96], index: 5, kind: input, shape index: {}]
  %s6 = inlined_call_operand.vmem [shape: bf16[160,64], index: 6, kind: input, shape index: {}]
  %s7 = inlined_call_operand.vmem [shape: bf16[160,32], index: 7, kind: input, shape index: {}]
  %s8 = inlined_call_operand.hbm [shape: f32[2,1,128], index: 8, kind: output, shape index: {}]
  %s9 = sld [smem:[#allocation0]]
  $region42: #{tpu_custom_call.1} parent=0
    _
  %s11 = ssub.s32 1, %s9
  %s12 = scalar_select 0, %s11, %s9
  $region1: #{tpu_custom_call.1} parent=0
    #allocation2 [shape = 'u8[1024]{0}', space=vmem, size = 0x400, scoped, tag = 'output window, operand 0, single buffered']
    #allocation3 [shape = 's32[1]{0}', space=sflag, size = 0x4, scoped, tag = 'scoped memory for tpu_custom_call.1']
    %13 = vsyncpa [#allocation3], 0
    // Predicated region
    $region2: #{tpu_custom_call.1} parent=1 // pred_check
      _
    $region3: #{tpu_custom_call.1} parent=1 // pred_check_branch
      %15 = sbr.rel (0) target = $region5
    $region4: #{tpu_custom_call.1} parent=1 // pred_region
      _
    $region5: #{tpu_custom_call.1} parent=1 // pred_fallthru
      _
    // Predicated region
    $region6: #{tpu_custom_call.1} parent=1 // pred_check
      _
    $region7: #{tpu_custom_call.1} parent=1 // pred_check_branch
      %17 = sbr.rel (0) target = $region9
    $region8: #{tpu_custom_call.1} parent=1 // pred_region
      _
    $region9: #{tpu_custom_call.1} parent=1 // pred_fallthru
      _
    // Predicated region
    $region10: #{tpu_custom_call.1} parent=1 // pred_check
      _
    $region11: #{tpu_custom_call.1} parent=1 // pred_check_branch
      %19 = sbr.rel (0) target = $region13
    $region12: #{tpu_custom_call.1} parent=1 // pred_region
      _
    $region13: #{tpu_custom_call.1} parent=1 // pred_fallthru
      _
    // Predicated region
    $region14: #{tpu_custom_call.1} parent=1 // pred_check
      _
    $region15: #{tpu_custom_call.1} parent=1 // pred_check_branch
      %21 = sbr.rel (0) target = $region17
    $region16: #{tpu_custom_call.1} parent=1 // pred_region
      _
    $region17: #{tpu_custom_call.1} parent=1 // pred_fallthru
      _
    // Predicated region
    $region18: #{tpu_custom_call.1} parent=1 // pred_check
      _
    $region19: #{tpu_custom_call.1} parent=1 // pred_check_branch
      %23 = sbr.rel (0) target = $region21
    $region20: #{tpu_custom_call.1} parent=1 // pred_region
      _
    $region21: #{tpu_custom_call.1} parent=1 // pred_fallthru
      _
    // Predicated region
    $region22: #{tpu_custom_call.1} parent=1 // pred_check
      _
    $region23: #{tpu_custom_call.1} parent=1 // pred_check_branch
      %25 = sbr.rel (0) target = $region25
    $region24: #{tpu_custom_call.1} parent=1 // pred_region
      _
    $region25: #{tpu_custom_call.1} parent=1 // pred_fallthru
      _
    // Predicated region
    $region26: #{tpu_custom_call.1} parent=1 // pred_check
      _
    $region27: #{tpu_custom_call.1} parent=1 // pred_check_branch
      %27 = sbr.rel (0) target = $region29
    $region28: #{tpu_custom_call.1} parent=1 // pred_region
      _
    $region29: #{tpu_custom_call.1} parent=1 // pred_fallthru
      _
    // Predicated region
    $region30: #{tpu_custom_call.1} parent=1 // pred_check
      _
    $region31: #{tpu_custom_call.1} parent=1 // pred_check_branch
      %29 = sbr.rel (0) target = $region33
    $region32: #{tpu_custom_call.1} parent=1 // pred_region
      _
    $region33: #{tpu_custom_call.1} parent=1 // pred_fallthru
      _
    %v31 = vld [vmem:[%s0] sm:$0xff]
    %v32 = vld [vmem:[%s0 + $0x8] sm:$0xff]
    %v33 = vld [vmem:[%s3] sm:$0xff]
    %v34 = vld [vmem:[%s3 + $0x8] sm:$0xff]
    %v35 = vld [vmem:[%s3 + $0x10] sm:$0xff]
    %v36 = vld [vmem:[%s3 + $0x18] sm:$0xff]
    %v37 = vld [vmem:[%s3 + $0x20] sm:$0xff]
    %v38 = vld [vmem:[%s3 + $0x28] sm:$0xff]
    %v39 = vld [vmem:[%s3 + $0x30] sm:$0xff]
    %v40 = vld [vmem:[%s3 + $0x38] sm:$0xff]
    %v41 = vld [vmem:[%s3 + $0x40] sm:$0xff]
    %v42 = vld [vmem:[%s3 + $0x48] sm:$0xff]
    %v43 = vld [vmem:[%s3 + $0x50] sm:$0xff]
    %v44 = vld [vmem:[%s3 + $0x58] sm:$0xff]
    %v45 = vld [vmem:[%s3 + $0x60] sm:$0x3f]
    %v46 = vld [vmem:[%s2] sm:$0xff]
    %v47 = vld [vmem:[%s2 + $0x8] sm:$0xff]
    %v48 = vld [vmem:[%s4] sm:$0xff]
    %v49 = vld [vmem:[%s4 + $0x8] sm:$0xff]
    %v50 = vld [vmem:[%s4 + $0x10] sm:$0xff]
    %v51 = vld [vmem:[%s4 + $0x18] sm:$0xff]
    %v52 = vld [vmem:[%s4 + $0x20] sm:$0xff]
    %v53 = vld [vmem:[%s4 + $0x28] sm:$0xff]
    %v54 = vld [vmem:[%s4 + $0x30] sm:$0xff]
    %v55 = vld [vmem:[%s4 + $0x38] sm:$0xff]
    %vm56 = vcmask 523264
    %v58 = vsel %vm56, %v46, 0
    %v61 = vsel %vm56, %v47, 0
    %63 = vmatprep.subr.mxu0 0.0
    %64 = vmatpush1.msra.mxu0 %v48
    %65 = vmatprep.subr.mxu0 0.0
    %66 = vmatpush1.msra.mxu0 %v49
    %67 = vmatprep.subr.mxu0 0.0
    %68 = vmatpush1.msra.mxu0 %v50
    %69 = vmatprep.subr.mxu0 0.0
    %70 = vmatpush1.msra.mxu0 %v51
    %71 = vmatprep.subr.mxu0 0.0
    %72 = vmatpush1.msra.mxu0 %v52
    %73 = vmatprep.subr.mxu0 0.0
    %74 = vmatpush1.msra.mxu0 %v53
    %75 = vmatprep.subr.mxu0 0.0
    %76 = vmatpush1.msra.mxu0 %v54
    %77 = vmatprep.subr.mxu0 0.0
    %78 = vmatpush1.msra.mxu0 %v55
    %79 = vmatprep.subr.mxu0 0.0
    %80 = vmatpush1.msra.mxu0 0.0
    %81 = vmatprep.subr.mxu0 0.0
    %82 = vmatpush1.msra.mxu0 0.0
    %83 = vmatprep.subr.mxu0 0.0
    %84 = vmatpush1.msra.mxu0 0.0
    %85 = vmatprep.subr.mxu0 0.0
    %86 = vmatpush1.msra.mxu0 0.0
    %87 = vmatprep.subr.mxu0 0.0
    %88 = vmatpush1.msra.mxu0 0.0
    %89 = vmatprep.subr.mxu0 0.0
    %90 = vmatpush1.msra.mxu0 0.0
    %91 = vmatprep.subr.mxu0 0.0
    %92 = vmatpush1.msra.mxu0 0.0
    %93 = vmatprep.subr.mxu0 0.0
    %94 = vmatpush1.msra.mxu0 0.0
    %95 = vmatprep.subr.mxu0 0.0
    %96 = vmatpush1.msra.mxu0 0.0
    %97 = vmatprep.subr.mxu0 0.0
    %98 = vmatpush1.msra.mxu0 0.0
    %99 = vmatprep.subr.mxu0 0.0
    %100 = vmatpush1.msra.mxu0 0.0
    %101 = vmatprep.subr.mxu0 0.0
    %102 = vmatpush1.msra.mxu0 0.0
    %103 = vmatprep.subr.mxu0 0.0
    %104 = vmatpush1.msra.mxu0 0.0
    %105 = vmatprep.subr.mxu0 0.0
    %106 = vmatpush1.msra.mxu0 0.0
    %107 = vmatprep.subr.mxu0 0.0
    %108 = vmatpush1.msra.mxu0 0.0
    %109 = vmatprep.subr.mxu0 0.0
    %110 = vmatpush1.msra.mxu0 0.0
    %111 = vmatprep.subr.mxu0 0.0
    %112 = vmatpush1.msra.mxu0 0.0
    %113 = vmatprep.subr.mxu0 0.0
    %114 = vmatpush1.msra.mxu0 0.0
    %115 = vmatprep.subr.mxu0 0.0
    %116 = vmatpush1.msra.mxu0 0.0
    %117 = vmatprep.subr.mxu0 0.0
    %118 = vmatpush1.msra.mxu0 0.0
    %119 = vmatprep.subr.mxu0 0.0
    %120 = vmatpush1.msra.mxu0 0.0
    %121 = vmatprep.subr.mxu0 0.0
    %122 = vmatpush1.msra.mxu0 0.0
    %123 = vmatprep.subr.mxu0 0.0
    %124 = vmatpush1.msra.mxu0 0.0
    %125 = vmatprep.subr.mxu0 0.0
    %126 = vmatpush1.msra.mxu0 0.0
    %127 = vmatprep.mubr.f32.mxu0 0.0
    %128 = vmatmul.mubr.f32.gmra.mrb[0].mxu0 %v58
    %v129 = vpop.f32.mrb[0].mxu0
    %v130 = vadd.f32 0.0, %v129
    %v131 = vpop.f32.mrb[0].mxu0
    %132 = vmatprep.mubr.f32.mxu0 0.0
    %133 = vmatmul.mubr.f32.gmra.mrb[0].mxu0 %v61
    %v134 = vpop.f32.mrb[0].mxu0
    %v135 = vadd.f32 0.0, %v134
    %v136 = vpop.f32.mrb[0].mxu0
    %137 = vdwg.mxu0
    %v138 = vlaneseq
    %v139 = vshrl.u32 %v138, 7
    %v140 = vsub.s32 0, %v139
    %v141 = vrot.slane %v34, %v140
    %v142 = vadd.f32 %v130, %v141
    %v143 = vadd.f32 %v135, %v141
    %v144 = vlaneseq
    %v145 = vshrl.u32 %v144, 7
    %v146 = vsub.s32 1, %v145
    %v147 = vrot.slane %v34, %v146
    %149 = vrot.lane.b32.xlu0 %v147, 5
    %v150 = vpop.permute.xlu0 %149
    %v152 = vadd.f32 %v130, %v150
    %v153 = vadd.f32 %v135, %v150
    %155 = vrot.lane.b32.xlu0 %v152, 123
    %v156 = vpop.permute.xlu0 %155
    %vm157 = vcmask 64512
    %v158 = vsel %vm157, %v156, 0
    %160 = vmatprep.subr.mxu0 0.0
    %161 = vmatpush1.xpose.msra.mxu0 %v158
    %162 = vmatprep.subr.mxu0 0.0
    %163 = vmatpush1.xpose.msra.mxu0 0.0
    %164 = vmatprep.subr.mxu0 0.0
    %165 = vmatpush1.xpose.msra.mxu0 0.0
    %166 = vmatprep.subr.mxu0 0.0
    %167 = vmatpush1.xpose.msra.mxu0 0.0
    %168 = vmatprep.subr.mxu0 0.0
    %169 = vmatpush1.xpose.msra.mxu0 0.0
    %170 = vmatprep.subr.mxu0 0.0
    %171 = vmatpush1.xpose.msra.mxu0 0.0
    %172 = vmatprep.subr.mxu0 0.0
    %173 = vmatpush1.xpose.msra.mxu0 0.0
    %174 = vmatprep.subr.mxu0 0.0
    %175 = vmatpush1.xpose.msra.mxu0 0.0
    %176 = vmatprep.subr.mxu0 0.0
    %177 = vmatpush1.xpose.msra.mxu0 0.0
    %178 = vmatprep.subr.mxu0 0.0
    %179 = vmatpush1.xpose.msra.mxu0 0.0
    %180 = vmatprep.subr.mxu0 0.0
    %181 = vmatpush1.xpose.msra.mxu0 0.0
    %182 = vmatprep.subr.mxu0 0.0
    %183 = vmatpush1.xpose.msra.mxu0 0.0
    %184 = vmatprep.subr.mxu0 0.0
    %185 = vmatpush1.xpose.msra.mxu0 0.0
    %186 = vmatprep.subr.mxu0 0.0
    %187 = vmatpush1.xpose.msra.mxu0 0.0
    %188 = vmatprep.subr.mxu0 0.0
    %189 = vmatpush1.xpose.msra.mxu0 0.0
    %190 = vmatprep.subr.mxu0 0.0
    %191 = vmatpush1.xpose.msra.mxu0 0.0
    %192 = vmatprep.subr.mxu0 0.0
    %193 = vmatpush1.xpose.msra.mxu0 0.0
    %194 = vmatprep.subr.mxu0 0.0
    %195 = vmatpush1.xpose.msra.mxu0 0.0
    %196 = vmatprep.subr.mxu0 0.0
    %197 = vmatpush1.xpose.msra.mxu0 0.0
    %198 = vmatprep.subr.mxu0 0.0
    %199 = vmatpush1.xpose.msra.mxu0 0.0
    %200 = vmatprep.subr.mxu0 0.0
    %201 = vmatpush1.xpose.msra.mxu0 0.0
    %202 = vmatprep.subr.mxu0 0.0
    %203 = vmatpush1.xpose.msra.mxu0 0.0
    %204 = vmatprep.subr.mxu0 0.0
    %205 = vmatpush1.xpose.msra.mxu0 0.0
    %206 = vmatprep.subr.mxu0 0.0
    %207 = vmatpush1.xpose.msra.mxu0 0.0
    %208 = vmatprep.subr.mxu0 0.0
    %209 = vmatpush1.xpose.msra.mxu0 0.0
    %210 = vmatprep.subr.mxu0 0.0
    %211 = vmatpush1.xpose.msra.mxu0 0.0
    %212 = vmatprep.subr.mxu0 0.0
    %213 = vmatpush1.xpose.msra.mxu0 0.0
    %214 = vmatprep.subr.mxu0 0.0
    %215 = vmatpush1.xpose.msra.mxu0 0.0
    %216 = vmatprep.subr.mxu0 0.0
    %217 = vmatpush1.xpose.msra.mxu0 0.0
    %218 = vmatprep.subr.mxu0 0.0
    %219 = vmatpush1.xpose.msra.mxu0 0.0
    %220 = vmatprep.subr.mxu0 0.0
    %221 = vmatpush1.xpose.msra.mxu0 0.0
    %222 = vmatprep.subr.mxu0 0.0
    %223 = vmatpush1.xpose.msra.mxu0 0.0
    %224 = vmatprep.mubr.f32.mxu0 0.0
    %225 = vmatmul.mubr.f32.gmra.mrb[0].mxu0 %v158
    %v226 = vpop.f32.mrb[0].mxu0
    %v227 = vadd.f32 0.0, %v226
    %v228 = vpop.f32.mrb[0].mxu0
    %229 = vdwg.mxu0
    %231 = vrot.lane.b32.xlu0 %v153, 123
    %v232 = vpop.permute.xlu0 %231
    %v233 = vsel %vm157, %v232, 0
    %235 = vmatprep.subr.mxu0 0.0
    %236 = vmatpush1.xpose.msra.mxu0 %v233
    %237 = vmatprep.subr.mxu0 0.0
    %238 = vmatpush1.xpose.msra.mxu0 0.0
    %239 = vmatprep.subr.mxu0 0.0
    %240 = vmatpush1.xpose.msra.mxu0 0.0
    %241 = vmatprep.subr.mxu0 0.0
    %242 = vmatpush1.xpose.msra.mxu0 0.0
    %243 = vmatprep.subr.mxu0 0.0
    %244 = vmatpush1.xpose.msra.mxu0 0.0
    %245 = vmatprep.subr.mxu0 0.0
    %246 = vmatpush1.xpose.msra.mxu0 0.0
    %247 = vmatprep.subr.mxu0 0.0
    %248 = vmatpush1.xpose.msra.mxu0 0.0
    %249 = vmatprep.subr.mxu0 0.0
    %250 = vmatpush1.xpose.msra.mxu0 0.0
    %251 = vmatprep.subr.mxu0 0.0
    %252 = vmatpush1.xpose.msra.mxu0 0.0
    %253 = vmatprep.subr.mxu0 0.0
    %254 = vmatpush1.xpose.msra.mxu0 0.0
    %255 = vmatprep.subr.mxu0 0.0
    %256 = vmatpush1.xpose.msra.mxu0 0.0
    %257 = vmatprep.subr.mxu0 0.0
    %258 = vmatpush1.xpose.msra.mxu0 0.0
    %259 = vmatprep.subr.mxu0 0.0
    %260 = vmatpush1.xpose.msra.mxu0 0.0
    %261 = vmatprep.subr.mxu0 0.0
    %262 = vmatpush1.xpose.msra.mxu0 0.0
    %263 = vmatprep.subr.mxu0 0.0
    %264 = vmatpush1.xpose.msra.mxu0 0.0
    %265 = vmatprep.subr.mxu0 0.0
    %266 = vmatpush1.xpose.msra.mxu0 0.0
    %267 = vmatprep.subr.mxu0 0.0
    %268 = vmatpush1.xpose.msra.mxu0 0.0
    %269 = vmatprep.subr.mxu0 0.0
    %270 = vmatpush1.xpose.msra.mxu0 0.0
    %271 = vmatprep.subr.mxu0 0.0
    %272 = vmatpush1.xpose.msra.mxu0 0.0
    %273 = vmatprep.subr.mxu0 0.0
    %274 = vmatpush1.xpose.msra.mxu0 0.0
    %275 = vmatprep.subr.mxu0 0.0
    %276 = vmatpush1.xpose.msra.mxu0 0.0
    %277 = vmatprep.subr.mxu0 0.0
    %278 = vmatpush1.xpose.msra.mxu0 0.0
    %279 = vmatprep.subr.mxu0 0.0
    %280 = vmatpush1.xpose.msra.mxu0 0.0
    %281 = vmatprep.subr.mxu0 0.0
    %282 = vmatpush1.xpose.msra.mxu0 0.0
    %283 = vmatprep.subr.mxu0 0.0
    %284 = vmatpush1.xpose.msra.mxu0 0.0
    %285 = vmatprep.subr.mxu0 0.0
    %286 = vmatpush1.xpose.msra.mxu0 0.0
    %287 = vmatprep.subr.mxu0 0.0
    %288 = vmatpush1.xpose.msra.mxu0 0.0
    %289 = vmatprep.subr.mxu0 0.0
    %290 = vmatpush1.xpose.msra.mxu0 0.0
    %291 = vmatprep.subr.mxu0 0.0
    %292 = vmatpush1.xpose.msra.mxu0 0.0
    %293 = vmatprep.subr.mxu0 0.0
    %294 = vmatpush1.xpose.msra.mxu0 0.0
    %295 = vmatprep.subr.mxu0 0.0
    %296 = vmatpush1.xpose.msra.mxu0 0.0
    %297 = vmatprep.subr.mxu0 0.0
    %298 = vmatpush1.xpose.msra.mxu0 0.0
    %299 = vmatprep.mubr.f32.mxu0 0.0
    %300 = vmatmul.mubr.f32.gmra.mrb[0].mxu0 %v233
    %v301 = vpop.f32.mrb[0].mxu0
    %v302 = vadd.f32 0.0, %v301
    %v303 = vpop.f32.mrb[0].mxu0
    %304 = vdwg.mxu0
    %v305 = vmax.f32 %v227, 0.0
    %v306 = vmax.f32 %v302, 0.0
    %v307 = vlaneseq
    %v308 = vshrl.u32 %v307, 7
    %v309 = vsub.s32 0, %v308
    %v310 = vrot.slane %v31, %v309
    %312 = vbcast.lane.b32.xlu0 %v310, 256
    %v313 = vpop.permute.xlu0 %312
    %v314 = vlaneseq
    %v315 = vshrl.u32 %v314, 7
    %v316 = vsub.s32 1, %v315
    %v317 = vrot.slane %v31, %v316
    %319 = vbcast.lane.b32.xlu0 %v317, 256
    %v320 = vpop.permute.xlu0 %319
    %v321 = vlaneseq
    %v322 = vshrl.u32 %v321, 7
    %v323 = vsub.s32 2, %v322
    %v324 = vrot.slane %v31, %v323
    %326 = vbcast.lane.b32.xlu0 %v324, 256
    %v327 = vpop.permute.xlu0 %326
    %v328 = vlaneseq
    %v329 = vshrl.u32 %v328, 7
    %v330 = vsub.s32 3, %v329
    %v331 = vrot.slane %v31, %v330
    %333 = vbcast.lane.b32.xlu0 %v331, 256
    %v334 = vpop.permute.xlu0 %333
    %v335 = vlaneseq
    %v336 = vshrl.u32 %v335, 7
    %v337 = vsub.s32 4, %v336
    %v338 = vrot.slane %v31, %v337
    %340 = vbcast.lane.b32.xlu0 %v338, 256
    %v341 = vpop.permute.xlu0 %340
    %v342 = vlaneseq
    %v343 = vshrl.u32 %v342, 7
    %v344 = vsub.s32 5, %v343
    %v345 = vrot.slane %v31, %v344
    %347 = vbcast.lane.b32.xlu0 %v345, 256
    %v348 = vpop.permute.xlu0 %347
    %v349 = vlaneseq
    %v350 = vshrl.u32 %v349, 7
    %v351 = vsub.s32 6, %v350
    %v352 = vrot.slane %v31, %v351
    %354 = vbcast.lane.b32.xlu0 %v352, 256
    %v355 = vpop.permute.xlu0 %354
    %v356 = vlaneseq
    %v357 = vshrl.u32 %v356, 7
    %v358 = vsub.s32 7, %v357
    %v359 = vrot.slane %v31, %v358
    %361 = vbcast.lane.b32.xlu0 %v359, 256
    %v362 = vpop.permute.xlu0 %361
    %v363 = vlaneseq
    %v364 = vshrl.u32 %v363, 7
    %v365 = vsub.s32 0, %v364
    %v366 = vrot.slane %v32, %v365
    %368 = vbcast.lane.b32.xlu0 %v366, 256
    %v369 = vpop.permute.xlu0 %368
    %v370 = vlaneseq
    %v371 = vshrl.u32 %v370, 7
    %v372 = vsub.s32 1, %v371
    %v373 = vrot.slane %v32, %v372
    %375 = vbcast.lane.b32.xlu0 %v373, 256
    %v376 = vpop.permute.xlu0 %375
    %v377 = vlaneseq
    %v378 = vshrl.u32 %v377, 7
    %v379 = vsub.s32 2, %v378
    %v380 = vrot.slane %v32, %v379
    %382 = vbcast.lane.b32.xlu0 %v380, 256
    %v383 = vpop.permute.xlu0 %382
    %v384 = vlaneseq
    %v385 = vshrl.u32 %v384, 7
    %v386 = vsub.s32 3, %v385
    %v387 = vrot.slane %v32, %v386
    %389 = vbcast.lane.b32.xlu0 %v387, 256
    %v390 = vpop.permute.xlu0 %389
    %v391 = vlaneseq
    %v392 = vshrl.u32 %v391, 7
    %v393 = vsub.s32 4, %v392
    %v394 = vrot.slane %v32, %v393
    %396 = vbcast.lane.b32.xlu0 %v394, 256
    %v397 = vpop.permute.xlu0 %396
    %v398 = vlaneseq
    %v399 = vshrl.u32 %v398, 7
    %v400 = vsub.s32 5, %v399
    %v401 = vrot.slane %v32, %v400
    %403 = vbcast.lane.b32.xlu0 %v401, 256
    %v404 = vpop.permute.xlu0 %403
    %v405 = vlaneseq
    %v406 = vshrl.u32 %v405, 7
    %v407 = vsub.s32 6, %v406
    %v408 = vrot.slane %v32, %v407
    %410 = vbcast.lane.b32.xlu0 %v408, 256
    %v411 = vpop.permute.xlu0 %410
    %v412 = vlaneseq
    %v413 = vshrl.u32 %v412, 7
    %v414 = vsub.s32 7, %v413
    %v415 = vrot.slane %v32, %v414
    %417 = vbcast.lane.b32.xlu0 %v415, 256
    %v418 = vpop.permute.xlu0 %417
    %v419 = vlaneseq
    %v420 = vshrl.u32 %v419, 7
    %v421 = vsub.s32 0, %v420
    %v422 = vrot.slane %v33, %v421
    %v423 = vmul.f32 %v313, %v422
    %v424 = vmul.f32 %v320, %v422
    %v425 = vmul.f32 %v327, %v422
    %v426 = vmul.f32 %v334, %v422
    %v427 = vmul.f32 %v341, %v422
    %v428 = vmul.f32 %v348, %v422
    %v429 = vmul.f32 %v355, %v422
    %v430 = vmul.f32 %v362, %v422
    %v431 = vmul.f32 %v369, %v422
    %v432 = vmul.f32 %v376, %v422
    %v433 = vmul.f32 %v383, %v422
    %v434 = vmul.f32 %v390, %v422
    %v435 = vmul.f32 %v397, %v422
    %v436 = vmul.f32 %v404, %v422
    %v437 = vmul.f32 %v411, %v422
    %v438 = vmul.f32 %v418, %v422
    %v439 = vlaneseq
    %v440 = vshrl.u32 %v439, 7
    %v441 = vsub.s32 1, %v440
    %v442 = vrot.slane %v33, %v441
    %v443 = vadd.f32 %v423, %v442
    %v444 = vadd.f32 %v424, %v442
    %v445 = vadd.f32 %v425, %v442
    %v446 = vadd.f32 %v426, %v442
    %v447 = vadd.f32 %v427, %v442
    %v448 = vadd.f32 %v428, %v442
    %v449 = vadd.f32 %v429, %v442
    %v450 = vadd.f32 %v430, %v442
    %v451 = vadd.f32 %v431, %v442
    %v452 = vadd.f32 %v432, %v442
    %v453 = vadd.f32 %v433, %v442
    %v454 = vadd.f32 %v434, %v442
    %v455 = vadd.f32 %v435, %v442
    %v456 = vadd.f32 %v436, %v442
    %v457 = vadd.f32 %v437, %v442
    %v458 = vadd.f32 %v438, %v442
    %s460 = sor.u32 256, 16
    %461 = vbcast.lane.b32.xlu0 %v310, %s460
    %v462 = vpop.permute.xlu0 %461
    %s464 = sor.u32 256, 16
    %465 = vbcast.lane.b32.xlu0 %v317, %s464
    %v466 = vpop.permute.xlu0 %465
    %s468 = sor.u32 256, 16
    %469 = vbcast.lane.b32.xlu0 %v324, %s468
    %v470 = vpop.permute.xlu0 %469
    %s472 = sor.u32 256, 16
    %473 = vbcast.lane.b32.xlu0 %v331, %s472
    %v474 = vpop.permute.xlu0 %473
    %s476 = sor.u32 256, 16
    %477 = vbcast.lane.b32.xlu0 %v338, %s476
    %v478 = vpop.permute.xlu0 %477
    %s480 = sor.u32 256, 16
    %481 = vbcast.lane.b32.xlu0 %v345, %s480
    %v482 = vpop.permute.xlu0 %481
    %s484 = sor.u32 256, 16
    %485 = vbcast.lane.b32.xlu0 %v352, %s484
    %v486 = vpop.permute.xlu0 %485
    %s488 = sor.u32 256, 16
    %489 = vbcast.lane.b32.xlu0 %v359, %s488
    %v490 = vpop.permute.xlu0 %489
    %s492 = sor.u32 256, 16
    %493 = vbcast.lane.b32.xlu0 %v366, %s492
    %v494 = vpop.permute.xlu0 %493
    %s496 = sor.u32 256, 16
    %497 = vbcast.lane.b32.xlu0 %v373, %s496
    %v498 = vpop.permute.xlu0 %497
    %s500 = sor.u32 256, 16
    %501 = vbcast.lane.b32.xlu0 %v380, %s500
    %v502 = vpop.permute.xlu0 %501
    %s504 = sor.u32 256, 16
    %505 = vbcast.lane.b32.xlu0 %v387, %s504
    %v506 = vpop.permute.xlu0 %505
    %s508 = sor.u32 256, 16
    %509 = vbcast.lane.b32.xlu0 %v394, %s508
    %v510 = vpop.permute.xlu0 %509
    %s512 = sor.u32 256, 16
    %513 = vbcast.lane.b32.xlu0 %v401, %s512
    %v514 = vpop.permute.xlu0 %513
    %s516 = sor.u32 256, 16
    %517 = vbcast.lane.b32.xlu0 %v408, %s516
    %v518 = vpop.permute.xlu0 %517
    %s520 = sor.u32 256, 16
    %521 = vbcast.lane.b32.xlu0 %v415, %s520
    %v522 = vpop.permute.xlu0 %521
    %v523 = vlaneseq
    %v524 = vshrl.u32 %v523, 7
    %v525 = vsub.s32 2, %v524
    %v526 = vrot.slane %v33, %v525
    %v527 = vmul.f32 %v462, %v526
    %v528 = vmul.f32 %v466, %v526
    %v529 = vmul.f32 %v470, %v526
    %v530 = vmul.f32 %v474, %v526
    %v531 = vmul.f32 %v478, %v526
    %v532 = vmul.f32 %v482, %v526
    %v533 = vmul.f32 %v486, %v526
    %v534 = vmul.f32 %v490, %v526
    %v535 = vmul.f32 %v494, %v526
    %v536 = vmul.f32 %v498, %v526
    %v537 = vmul.f32 %v502, %v526
    %v538 = vmul.f32 %v506, %v526
    %v539 = vmul.f32 %v510, %v526
    %v540 = vmul.f32 %v514, %v526
    %v541 = vmul.f32 %v518, %v526
    %v542 = vmul.f32 %v522, %v526
    %v543 = vlaneseq
    %v544 = vshrl.u32 %v543, 7
    %v545 = vsub.s32 3, %v544
    %v546 = vrot.slane %v33, %v545
    %v547 = vadd.f32 %v527, %v546
    %v548 = vadd.f32 %v528, %v546
    %v549 = vadd.f32 %v529, %v546
    %v550 = vadd.f32 %v530, %v546
    %v551 = vadd.f32 %v531, %v546
    %v552 = vadd.f32 %v532, %v546
    %v553 = vadd.f32 %v533, %v546
    %v554 = vadd.f32 %v534, %v546
    %v555 = vadd.f32 %v535, %v546
    %v556 = vadd.f32 %v536, %v546
    %v557 = vadd.f32 %v537, %v546
    %v558 = vadd.f32 %v538, %v546
    %v559 = vadd.f32 %v539, %v546
    %v560 = vadd.f32 %v540, %v546
    %v561 = vadd.f32 %v541, %v546
    %v562 = vadd.f32 %v542, %v546
    %vm563 = vcmp.gt.f32.partialorder %v33, 0.5
    %v564 = vand.u32 2147483647, %v547
    %vm565 = vcmp.le.f32.partialorder %v564, 0.7853982
    %vm566 = vcmp.lt.s32.totalorder %v547, 0
    %v567 = vand.u32 %v547, 2139095040
    %v568 = vshrl.u32 %v567, 23
    %v569 = vsub.s32 %v568, 127
    %v570 = vand.u32 2147483647, %v547
    %v571 = vand.u32 %v570, 8388607
    %v572 = vor.u32 %v571, 8388608
    %v573 = vsub.s32 0, %v572
    %v574 = vadd.s32 %v569, 1
    %vm575 = vcmp.gt.s32.totalorder %v574, 0
    %v576 = vsel %vm575, %v574, 0
    %v577 = vshrl.u32 %v576, 5
    %v578 = vand.u32 %v576, 31
    %v579 = vsub.s32 32, %v578
    %v580 = vshrl.u32 683565275, %v579
    %v581 = vshll.u32 683565275, %v578
    %v582 = vshrl.u32 2475754826, %v579
    %v583 = vor.u32 %v581, %v582
    %v584 = vshll.u32 2475754826, %v578
    %v585 = vshrl.u32 2131351028, %v579
    %v586 = vor.u32 %v584, %v585
    %v587 = vshll.u32 2131351028, %v578
    %v588 = vshrl.u32 2102212464, %v579
    %v589 = vor.u32 %v587, %v588
    %v590 = vshll.u32 2102212464, %v578
    %v591 = vshrl.u32 920167782, %v579
    %v592 = vor.u32 %v590, %v591
    %v593 = vshll.u32 920167782, %v578
    %v594 = vshrl.u32 1326507024, %v579
    %v595 = vor.u32 %v593, %v594
    %vm596 = vcmp.lt.s32.totalorder %v577, 1
    %vm597 = vcmp.lt.s32.totalorder %v577, 2
    %vm598 = vcmp.lt.s32.totalorder %v577, 3
    %vm599 = vcmp.lt.s32.totalorder %v577, 4
    %v600 = vsel %vm596, %v580, %v583
    %v601 = vsel %vm599, %v589, 2102212464
    %v602 = vsel %vm598, %v586, %v601
    %v603 = vsel %vm597, %v600, %v602
    %v604 = vsel %vm596, %v583, %v586
    %v605 = vsel %vm599, %v592, 920167782
    %v606 = vsel %vm598, %v589, %v605
    %v607 = vsel %vm597, %v604, %v606
    %v608 = vsel %vm596, %v586, %v589
    %v609 = vsel %vm599, %v595, 1326507024
    %v610 = vsel %vm598, %v592, %v609
    %v611 = vsel %vm597, %v608, %v610
    %v612 = vshll.u32 %v572, 8
    %v613 = vmul.u32.u64.compose %v612, %v611
    %v614 = vextract.low.u32 %v613
    %v615 = vextract.high.u32 %v613
    %v616 = vmul.u32.u64.compose %v612, %v607
    %v617 = vextract.low.u32 %v616
    %v618 = vextract.high.u32 %v616
    %v619 = vmul.u32 %v612, %v603
    %v620 = vadd.s32 %v615, %v617
    %vm621 = vc.u32 %v615, %v617
    %v622 = vadd.s32 %v618, 1
    %v623 = vsel %vm621, %v622, %v618
    %v624 = vadd.s32 %v619, %v623
    %v625 = vadd.s32 %v624, 536870912
    %v626 = vshrl.u32 %v625, 30
    %v627 = vshll.u32 %v626, 30
    %v628 = vsub.s32 %v624, %v627
    %vm629 = vcmp.lt.s32.totalorder %v628, 0
    %v630 = vsub.s32 0, %v628
    %v631 = vsel %vm629, %v630, %v628
    %v632 = vclz %v631
    %v633 = vsub.s32 %v632, 2
    %vm634 = vcmp.gt.s32.totalorder 0, %v633
    %v635 = vsel %vm634, 0, %v633
    %v636 = vsub.s32 32, %v635
    %v637 = vshll.u32 %v628, %v635
    %v638 = vshrl.u32 %v620, %v636
    %v639 = vor.u32 %v637, %v638
    %v640 = vsub.s32 4294967266, %v635
    %v641 = vadd.s32 %v640, 127
    %v642 = vshll.u32 %v641, 23
    %v643 = vor.u32 4788187, %v642
    %v644 = vand.u32 2147483647, %v643
    %v646 = vcvt.s32.f32 %v639
    %v647 = vmul.f32 %v646, %v644
    %v648 = vxor.u32 %v647, 2147483648
    %v649 = vsel %vm566, %v648, %v647
    %v650 = vsub.s32 4, %v626
    %v651 = vsel %vm566, %v650, %v626
    %v652 = vsel %vm565, %v547, %v649
    %v653 = vsel %vm565, 0, %v651
    %v654 = vcosq.f32.pop %v652
    %v655 = vsinq.f32.pop %v652
    %vm656 = vweird.f32 %v547
    %v657 = vadd.s32 %v653, 3
    %v658 = vand.u32 %v657, 3
    %vm659 = vcmp.lt.s32.totalorder %v658, 2
    %vm660 = vcmp.eq.s32.totalorder %v658, 0
    %v661 = vxor.u32 %v655, 2147483648
    %v662 = vsel %vm660, %v654, %v661
    %vm663 = vcmp.eq.s32.totalorder %v658, 2
    %v664 = vxor.u32 %v654, 2147483648
    %v665 = vsel %vm663, %v664, %v655
    %v666 = vsel %vm659, %v662, %v665
    %v667 = vsel %vm656, nan, %v666
    %v668 = vand.u32 2147483647, %v548
    %vm669 = vcmp.le.f32.partialorder %v668, 0.7853982
    %vm670 = vcmp.lt.s32.totalorder %v548, 0
    %v671 = vand.u32 %v548, 2139095040
    %v672 = vshrl.u32 %v671, 23
    %v673 = vsub.s32 %v672, 127
    %v674 = vand.u32 2147483647, %v548
    %v675 = vand.u32 %v674, 8388607
    %v676 = vor.u32 %v675, 8388608
    %v677 = vsub.s32 0, %v676
    %v678 = vadd.s32 %v673, 1
    %vm679 = vcmp.gt.s32.totalorder %v678, 0
    %v680 = vsel %vm679, %v678, 0
    %v681 = vshrl.u32 %v680, 5
    %v682 = vand.u32 %v680, 31
    %v683 = vsub.s32 32, %v682
    %v684 = vshrl.u32 683565275, %v683
    %v685 = vshll.u32 683565275, %v682
    %v686 = vshrl.u32 2475754826, %v683
    %v687 = vor.u32 %v685, %v686
    %v688 = vshll.u32 2475754826, %v682
    %v689 = vshrl.u32 2131351028, %v683
    %v690 = vor.u32 %v688, %v689
    %v691 = vshll.u32 2131351028, %v682
    %v692 = vshrl.u32 2102212464, %v683
    %v693 = vor.u32 %v691, %v692
    %v694 = vshll.u32 2102212464, %v682
    %v695 = vshrl.u32 920167782, %v683
    %v696 = vor.u32 %v694, %v695
    %v697 = vshll.u32 920167782, %v682
    %v698 = vshrl.u32 1326507024, %v683
    %v699 = vor.u32 %v697, %v698
    %vm700 = vcmp.lt.s32.totalorder %v681, 1
    %vm701 = vcmp.lt.s32.totalorder %v681, 2
    %vm702 = vcmp.lt.s32.totalorder %v681, 3
    %vm703 = vcmp.lt.s32.totalorder %v681, 4
    %v704 = vsel %vm700, %v684, %v687
    %v705 = vsel %vm703, %v693, 2102212464
    %v706 = vsel %vm702, %v690, %v705
    %v707 = vsel %vm701, %v704, %v706
    %v708 = vsel %vm700, %v687, %v690
    %v709 = vsel %vm703, %v696, 920167782
    %v710 = vsel %vm702, %v693, %v709
    %v711 = vsel %vm701, %v708, %v710
    %v712 = vsel %vm700, %v690, %v693
    %v713 = vsel %vm703, %v699, 1326507024
    %v714 = vsel %vm702, %v696, %v713
    %v715 = vsel %vm701, %v712, %v714
    %v716 = vshll.u32 %v676, 8
    %v717 = vmul.u32.u64.compose %v716, %v715
    %v718 = vextract.low.u32 %v717
    %v719 = vextract.high.u32 %v717
    %v720 = vmul.u32.u64.compose %v716, %v711
    %v721 = vextract.low.u32 %v720
    %v722 = vextract.high.u32 %v720
    %v723 = vmul.u32 %v716, %v707
    %v724 = vadd.s32 %v719, %v721
    %vm725 = vc.u32 %v719, %v721
    %v726 = vadd.s32 %v722, 1
    %v727 = vsel %vm725, %v726, %v722
    %v728 = vadd.s32 %v723, %v727
    %v729 = vadd.s32 %v728, 536870912
    %v730 = vshrl.u32 %v729, 30
    %v731 = vshll.u32 %v730, 30
    %v732 = vsub.s32 %v728, %v731
    %vm733 = vcmp.lt.s32.totalorder %v732, 0
    %v734 = vsub.s32 0, %v732
    %v735 = vsel %vm733, %v734, %v732
    %v736 = vclz %v735
    %v737 = vsub.s32 %v736, 2
    %vm738 = vcmp.gt.s32.totalorder 0, %v737
    %v739 = vsel %vm738, 0, %v737
    %v740 = vsub.s32 32, %v739
    %v741 = vshll.u32 %v732, %v739
    %v742 = vshrl.u32 %v724, %v740
    %v743 = vor.u32 %v741, %v742
    %v744 = vsub.s32 4294967266, %v739
    %v745 = vadd.s32 %v744, 127
    %v746 = vshll.u32 %v745, 23
    %v747 = vor.u32 4788187, %v746
    %v748 = vand.u32 2147483647, %v747
    %v750 = vcvt.s32.f32 %v743
    %v751 = vmul.f32 %v750, %v748
    %v752 = vxor.u32 %v751, 2147483648
    %v753 = vsel %vm670, %v752, %v751
    %v754 = vsub.s32 4, %v730
    %v755 = vsel %vm670, %v754, %v730
    %v756 = vsel %vm669, %v548, %v753
    %v757 = vsel %vm669, 0, %v755
    %v758 = vcosq.f32.pop %v756
    %v759 = vsinq.f32.pop %v756
    %vm760 = vweird.f32 %v548
    %v761 = vadd.s32 %v757, 3
    %v762 = vand.u32 %v761, 3
    %vm763 = vcmp.lt.s32.totalorder %v762, 2
    %vm764 = vcmp.eq.s32.totalorder %v762, 0
    %v765 = vxor.u32 %v759, 2147483648
    %v766 = vsel %vm764, %v758, %v765
    %vm767 = vcmp.eq.s32.totalorder %v762, 2
    %v768 = vxor.u32 %v758, 2147483648
    %v769 = vsel %vm767, %v768, %v759
    %v770 = vsel %vm763, %v766, %v769
    %v771 = vsel %vm760, nan, %v770
    %v772 = vand.u32 2147483647, %v549
    %vm773 = vcmp.le.f32.partialorder %v772, 0.7853982
    %vm774 = vcmp.lt.s32.totalorder %v549, 0
    %v775 = vand.u32 %v549, 2139095040
    %v776 = vshrl.u32 %v775, 23
    %v777 = vsub.s32 %v776, 127
    %v778 = vand.u32 2147483647, %v549
    %v779 = vand.u32 %v778, 8388607
    %v780 = vor.u32 %v779, 8388608
    %v781 = vsub.s32 0, %v780
    %v782 = vadd.s32 %v777, 1
    %vm783 = vcmp.gt.s32.totalorder %v782, 0
    %v784 = vsel %vm783, %v782, 0
    %v785 = vshrl.u32 %v784, 5
    %v786 = vand.u32 %v784, 31
    %v787 = vsub.s32 32, %v786
    %v788 = vshrl.u32 683565275, %v787
    %v789 = vshll.u32 683565275, %v786
    %v790 = vshrl.u32 2475754826, %v787
    %v791 = vor.u32 %v789, %v790
    %v792 = vshll.u32 2475754826, %v786
    %v793 = vshrl.u32 2131351028, %v787
    %v794 = vor.u32 %v792, %v793
    %v795 = vshll.u32 2131351028, %v786
    %v796 = vshrl.u32 2102212464, %v787
    %v797 = vor.u32 %v795, %v796
    %v798 = vshll.u32 2102212464, %v786
    %v799 = vshrl.u32 920167782, %v787
    %v800 = vor.u32 %v798, %v799
    %v801 = vshll.u32 920167782, %v786
    %v802 = vshrl.u32 1326507024, %v787
    %v803 = vor.u32 %v801, %v802
    %vm804 = vcmp.lt.s32.totalorder %v785, 1
    %vm805 = vcmp.lt.s32.totalorder %v785, 2
    %vm806 = vcmp.lt.s32.totalorder %v785, 3
    %vm807 = vcmp.lt.s32.totalorder %v785, 4
    %v808 = vsel %vm804, %v788, %v791
    %v809 = vsel %vm807, %v797, 2102212464
    %v810 = vsel %vm806, %v794, %v809
    %v811 = vsel %vm805, %v808, %v810
    %v812 = vsel %vm804, %v791, %v794
    %v813 = vsel %vm807, %v800, 920167782
    %v814 = vsel %vm806, %v797, %v813
    %v815 = vsel %vm805, %v812, %v814
    %v816 = vsel %vm804, %v794, %v797
    %v817 = vsel %vm807, %v803, 1326507024
    %v818 = vsel %vm806, %v800, %v817
    %v819 = vsel %vm805, %v816, %v818
    %v820 = vshll.u32 %v780, 8
    %v821 = vmul.u32.u64.compose %v820, %v819
    %v822 = vextract.low.u32 %v821
    %v823 = vextract.high.u32 %v821
    %v824 = vmul.u32.u64.compose %v820, %v815
    %v825 = vextract.low.u32 %v824
    %v826 = vextract.high.u32 %v824
    %v827 = vmul.u32 %v820, %v811
    %v828 = vadd.s32 %v823, %v825
    %vm829 = vc.u32 %v823, %v825
    %v830 = vadd.s32 %v826, 1
    %v831 = vsel %vm829, %v830, %v826
    %v832 = vadd.s32 %v827, %v831
    %v833 = vadd.s32 %v832, 536870912
    %v834 = vshrl.u32 %v833, 30
    %v835 = vshll.u32 %v834, 30
    %v836 = vsub.s32 %v832, %v835
    %vm837 = vcmp.lt.s32.totalorder %v836, 0
    %v838 = vsub.s32 0, %v836
    %v839 = vsel %vm837, %v838, %v836
    %v840 = vclz %v839
    %v841 = vsub.s32 %v840, 2
    %vm842 = vcmp.gt.s32.totalorder 0, %v841
    %v843 = vsel %vm842, 0, %v841
    %v844 = vsub.s32 32, %v843
    %v845 = vshll.u32 %v836, %v843
    %v846 = vshrl.u32 %v828, %v844
    %v847 = vor.u32 %v845, %v846
    %v848 = vsub.s32 4294967266, %v843
    %v849 = vadd.s32 %v848, 127
    %v850 = vshll.u32 %v849, 23
    %v851 = vor.u32 4788187, %v850
    %v852 = vand.u32 2147483647, %v851
    %v854 = vcvt.s32.f32 %v847
    %v855 = vmul.f32 %v854, %v852
    %v856 = vxor.u32 %v855, 2147483648
    %v857 = vsel %vm774, %v856, %v855
    %v858 = vsub.s32 4, %v834
    %v859 = vsel %vm774, %v858, %v834
    %v860 = vsel %vm773, %v549, %v857
    %v861 = vsel %vm773, 0, %v859
    %v862 = vcosq.f32.pop %v860
    %v863 = vsinq.f32.pop %v860
    %vm864 = vweird.f32 %v549
    %v865 = vadd.s32 %v861, 3
    %v866 = vand.u32 %v865, 3
    %vm867 = vcmp.lt.s32.totalorder %v866, 2
    %vm868 = vcmp.eq.s32.totalorder %v866, 0
    %v869 = vxor.u32 %v863, 2147483648
    %v870 = vsel %vm868, %v862, %v869
    %vm871 = vcmp.eq.s32.totalorder %v866, 2
    %v872 = vxor.u32 %v862, 2147483648
    %v873 = vsel %vm871, %v872, %v863
    %v874 = vsel %vm867, %v870, %v873
    %v875 = vsel %vm864, nan, %v874
    %v876 = vand.u32 2147483647, %v550
    %vm877 = vcmp.le.f32.partialorder %v876, 0.7853982
    %vm878 = vcmp.lt.s32.totalorder %v550, 0
    %v879 = vand.u32 %v550, 2139095040
    %v880 = vshrl.u32 %v879, 23
    %v881 = vsub.s32 %v880, 127
    %v882 = vand.u32 2147483647, %v550
    %v883 = vand.u32 %v882, 8388607
    %v884 = vor.u32 %v883, 8388608
    %v885 = vsub.s32 0, %v884
    %v886 = vadd.s32 %v881, 1
    %vm887 = vcmp.gt.s32.totalorder %v886, 0
    %v888 = vsel %vm887, %v886, 0
    %v889 = vshrl.u32 %v888, 5
    %v890 = vand.u32 %v888, 31
    %v891 = vsub.s32 32, %v890
    %v892 = vshrl.u32 683565275, %v891
    %v893 = vshll.u32 683565275, %v890
    %v894 = vshrl.u32 2475754826, %v891
    %v895 = vor.u32 %v893, %v894
    %v896 = vshll.u32 2475754826, %v890
    %v897 = vshrl.u32 2131351028, %v891
    %v898 = vor.u32 %v896, %v897
    %v899 = vshll.u32 2131351028, %v890
    %v900 = vshrl.u32 2102212464, %v891
    %v901 = vor.u32 %v899, %v900
    %v902 = vshll.u32 2102212464, %v890
    %v903 = vshrl.u32 920167782, %v891
    %v904 = vor.u32 %v902, %v903
    %v905 = vshll.u32 920167782, %v890
    %v906 = vshrl.u32 1326507024, %v891
    %v907 = vor.u32 %v905, %v906
    %vm908 = vcmp.lt.s32.totalorder %v889, 1
    %vm909 = vcmp.lt.s32.totalorder %v889, 2
    %vm910 = vcmp.lt.s32.totalorder %v889, 3
    %vm911 = vcmp.lt.s32.totalorder %v889, 4
    %v912 = vsel %vm908, %v892, %v895
    %v913 = vsel %vm911, %v901, 2102212464
    %v914 = vsel %vm910, %v898, %v913
    %v915 = vsel %vm909, %v912, %v914
    %v916 = vsel %vm908, %v895, %v898
    %v917 = vsel %vm911, %v904, 920167782
    %v918 = vsel %vm910, %v901, %v917
    %v919 = vsel %vm909, %v916, %v918
    %v920 = vsel %vm908, %v898, %v901
    %v921 = vsel %vm911, %v907, 1326507024
    %v922 = vsel %vm910, %v904, %v921
    %v923 = vsel %vm909, %v920, %v922
    %v924 = vshll.u32 %v884, 8
    %v925 = vmul.u32.u64.compose %v924, %v923
    %v926 = vextract.low.u32 %v925
    %v927 = vextract.high.u32 %v925
    %v928 = vmul.u32.u64.compose %v924, %v919
    %v929 = vextract.low.u32 %v928
    %v930 = vextract.high.u32 %v928
    %v931 = vmul.u32 %v924, %v915
    %v932 = vadd.s32 %v927, %v929
    %vm933 = vc.u32 %v927, %v929
    %v934 = vadd.s32 %v930, 1
    %v935 = vsel %vm933, %v934, %v930
    %v936 = vadd.s32 %v931, %v935
    %v937 = vadd.s32 %v936, 536870912
    %v938 = vshrl.u32 %v937, 30
    %v939 = vshll.u32 %v938, 30
    %v940 = vsub.s32 %v936, %v939
    %vm941 = vcmp.lt.s32.totalorder %v940, 0
    %v942 = vsub.s32 0, %v940
    %v943 = vsel %vm941, %v942, %v940
    %v944 = vclz %v943
    %v945 = vsub.s32 %v944, 2
    %vm946 = vcmp.gt.s32.totalorder 0, %v945
    %v947 = vsel %vm946, 0, %v945
    %v948 = vsub.s32 32, %v947
    %v949 = vshll.u32 %v940, %v947
    %v950 = vshrl.u32 %v932, %v948
    %v951 = vor.u32 %v949, %v950
    %v952 = vsub.s32 4294967266, %v947
    %v953 = vadd.s32 %v952, 127
    %v954 = vshll.u32 %v953, 23
    %v955 = vor.u32 4788187, %v954
    %v956 = vand.u32 2147483647, %v955
    %v958 = vcvt.s32.f32 %v951
    %v959 = vmul.f32 %v958, %v956
    %v960 = vxor.u32 %v959, 2147483648
    %v961 = vsel %vm878, %v960, %v959
    %v962 = vsub.s32 4, %v938
    %v963 = vsel %vm878, %v962, %v938
    %v964 = vsel %vm877, %v550, %v961
    %v965 = vsel %vm877, 0, %v963
    %v966 = vcosq.f32.pop %v964
    %v967 = vsinq.f32.pop %v964
    %vm968 = vweird.f32 %v550
    %v969 = vadd.s32 %v965, 3
    %v970 = vand.u32 %v969, 3
    %vm971 = vcmp.lt.s32.totalorder %v970, 2
    %vm972 = vcmp.eq.s32.totalorder %v970, 0
    %v973 = vxor.u32 %v967, 2147483648
    %v974 = vsel %vm972, %v966, %v973
    %vm975 = vcmp.eq.s32.totalorder %v970, 2
    %v976 = vxor.u32 %v966, 2147483648
    %v977 = vsel %vm975, %v976, %v967
    %v978 = vsel %vm971, %v974, %v977
    %v979 = vsel %vm968, nan, %v978
    %v980 = vand.u32 2147483647, %v551
    %vm981 = vcmp.le.f32.partialorder %v980, 0.7853982
    %vm982 = vcmp.lt.s32.totalorder %v551, 0
    %v983 = vand.u32 %v551, 2139095040
    %v984 = vshrl.u32 %v983, 23
    %v985 = vsub.s32 %v984, 127
    %v986 = vand.u32 2147483647, %v551
    %v987 = vand.u32 %v986, 8388607
    %v988 = vor.u32 %v987, 8388608
    %v989 = vsub.s32 0, %v988
    %v990 = vadd.s32 %v985, 1
    %vm991 = vcmp.gt.s32.totalorder %v990, 0
    %v992 = vsel %vm991, %v990, 0
    %v993 = vshrl.u32 %v992, 5
    %v994 = vand.u32 %v992, 31
    %v995 = vsub.s32 32, %v994
    %v996 = vshrl.u32 683565275, %v995
    %v997 = vshll.u32 683565275, %v994
    %v998 = vshrl.u32 2475754826, %v995
    %v999 = vor.u32 %v997, %v998
    %v1000 = vshll.u32 2475754826, %v994
    %v1001 = vshrl.u32 2131351028, %v995
    %v1002 = vor.u32 %v1000, %v1001
    %v1003 = vshll.u32 2131351028, %v994
    %v1004 = vshrl.u32 2102212464, %v995
    %v1005 = vor.u32 %v1003, %v1004
    %v1006 = vshll.u32 2102212464, %v994
    %v1007 = vshrl.u32 920167782, %v995
    %v1008 = vor.u32 %v1006, %v1007
    %v1009 = vshll.u32 920167782, %v994
    %v1010 = vshrl.u32 1326507024, %v995
    %v1011 = vor.u32 %v1009, %v1010
    %vm1012 = vcmp.lt.s32.totalorder %v993, 1
    %vm1013 = vcmp.lt.s32.totalorder %v993, 2
    %vm1014 = vcmp.lt.s32.totalorder %v993, 3
    %vm1015 = vcmp.lt.s32.totalorder %v993, 4
    %v1016 = vsel %vm1012, %v996, %v999
    %v1017 = vsel %vm1015, %v1005, 2102212464
    %v1018 = vsel %vm1014, %v1002, %v1017
    %v1019 = vsel %vm1013, %v1016, %v1018
    %v1020 = vsel %vm1012, %v999, %v1002
    %v1021 = vsel %vm1015, %v1008, 920167782
    %v1022 = vsel %vm1014, %v1005, %v1021
    %v1023 = vsel %vm1013, %v1020, %v1022
    %v1024 = vsel %vm1012, %v1002, %v1005
    %v1025 = vsel %vm1015, %v1011, 1326507024
    %v1026 = vsel %vm1014, %v1008, %v1025
    %v1027 = vsel %vm1013, %v1024, %v1026
    %v1028 = vshll.u32 %v988, 8
    %v1029 = vmul.u32.u64.compose %v1028, %v1027
    %v1030 = vextract.low.u32 %v1029
    %v1031 = vextract.high.u32 %v1029
    %v1032 = vmul.u32.u64.compose %v1028, %v1023
    %v1033 = vextract.low.u32 %v1032
    %v1034 = vextract.high.u32 %v1032
    %v1035 = vmul.u32 %v1028, %v1019
    %v1036 = vadd.s32 %v1031, %v1033
    %vm1037 = vc.u32 %v1031, %v1033
    %v1038 = vadd.s32 %v1034, 1
    %v1039 = vsel %vm1037, %v1038, %v1034
    %v1040 = vadd.s32 %v1035, %v1039
    %v1041 = vadd.s32 %v1040, 536870912
    %v1042 = vshrl.u32 %v1041, 30
    %v1043 = vshll.u32 %v1042, 30
    %v1044 = vsub.s32 %v1040, %v1043
    %vm1045 = vcmp.lt.s32.totalorder %v1044, 0
    %v1046 = vsub.s32 0, %v1044
    %v1047 = vsel %vm1045, %v1046, %v1044
    %v1048 = vclz %v1047
    %v1049 = vsub.s32 %v1048, 2
    %vm1050 = vcmp.gt.s32.totalorder 0, %v1049
    %v1051 = vsel %vm1050, 0, %v1049
    %v1052 = vsub.s32 32, %v1051
    %v1053 = vshll.u32 %v1044, %v1051
    %v1054 = vshrl.u32 %v1036, %v1052
    %v1055 = vor.u32 %v1053, %v1054
    %v1056 = vsub.s32 4294967266, %v1051
    %v1057 = vadd.s32 %v1056, 127
    %v1058 = vshll.u32 %v1057, 23
    %v1059 = vor.u32 4788187, %v1058
    %v1060 = vand.u32 2147483647, %v1059
    %v1062 = vcvt.s32.f32 %v1055
    %v1063 = vmul.f32 %v1062, %v1060
    %v1064 = vxor.u32 %v1063, 2147483648
    %v1065 = vsel %vm982, %v1064, %v1063
    %v1066 = vsub.s32 4, %v1042
    %v1067 = vsel %vm982, %v1066, %v1042
    %v1068 = vsel %vm981, %v551, %v1065
    %v1069 = vsel %vm981, 0, %v1067
    %v1070 = vcosq.f32.pop %v1068
    %v1071 = vsinq.f32.pop %v1068
    %vm1072 = vweird.f32 %v551
    %v1073 = vadd.s32 %v1069, 3
    %v1074 = vand.u32 %v1073, 3
    %vm1075 = vcmp.lt.s32.totalorder %v1074, 2
    %vm1076 = vcmp.eq.s32.totalorder %v1074, 0
    %v1077 = vxor.u32 %v1071, 2147483648
    %v1078 = vsel %vm1076, %v1070, %v1077
    %vm1079 = vcmp.eq.s32.totalorder %v1074, 2
    %v1080 = vxor.u32 %v1070, 2147483648
    %v1081 = vsel %vm1079, %v1080, %v1071
    %v1082 = vsel %vm1075, %v1078, %v1081
    %v1083 = vsel %vm1072, nan, %v1082
    %v1084 = vand.u32 2147483647, %v552
    %vm1085 = vcmp.le.f32.partialorder %v1084, 0.7853982
    %vm1086 = vcmp.lt.s32.totalorder %v552, 0
    %v1087 = vand.u32 %v552, 2139095040
    %v1088 = vshrl.u32 %v1087, 23
    %v1089 = vsub.s32 %v1088, 127
    %v1090 = vand.u32 2147483647, %v552
    %v1091 = vand.u32 %v1090, 8388607
    %v1092 = vor.u32 %v1091, 8388608
    %v1093 = vsub.s32 0, %v1092
    %v1094 = vadd.s32 %v1089, 1
    %vm1095 = vcmp.gt.s32.totalorder %v1094, 0
    %v1096 = vsel %vm1095, %v1094, 0
    %v1097 = vshrl.u32 %v1096, 5
    %v1098 = vand.u32 %v1096, 31
    %v1099 = vsub.s32 32, %v1098
    %v1100 = vshrl.u32 683565275, %v1099
    %v1101 = vshll.u32 683565275, %v1098
    %v1102 = vshrl.u32 2475754826, %v1099
    %v1103 = vor.u32 %v1101, %v1102
    %v1104 = vshll.u32 2475754826, %v1098
    %v1105 = vshrl.u32 2131351028, %v1099
    %v1106 = vor.u32 %v1104, %v1105
    %v1107 = vshll.u32 2131351028, %v1098
    %v1108 = vshrl.u32 2102212464, %v1099
    %v1109 = vor.u32 %v1107, %v1108
    %v1110 = vshll.u32 2102212464, %v1098
    %v1111 = vshrl.u32 920167782, %v1099
    %v1112 = vor.u32 %v1110, %v1111
    %v1113 = vshll.u32 920167782, %v1098
    %v1114 = vshrl.u32 1326507024, %v1099
    %v1115 = vor.u32 %v1113, %v1114
    %vm1116 = vcmp.lt.s32.totalorder %v1097, 1
    %vm1117 = vcmp.lt.s32.totalorder %v1097, 2
    %vm1118 = vcmp.lt.s32.totalorder %v1097, 3
    %vm1119 = vcmp.lt.s32.totalorder %v1097, 4
    %v1120 = vsel %vm1116, %v1100, %v1103
    %v1121 = vsel %vm1119, %v1109, 2102212464
    %v1122 = vsel %vm1118, %v1106, %v1121
    %v1123 = vsel %vm1117, %v1120, %v1122
    %v1124 = vsel %vm1116, %v1103, %v1106
    %v1125 = vsel %vm1119, %v1112, 920167782
    %v1126 = vsel %vm1118, %v1109, %v1125
    %v1127 = vsel %vm1117, %v1124, %v1126
    %v1128 = vsel %vm1116, %v1106, %v1109
    %v1129 = vsel %vm1119, %v1115, 1326507024
    %v1130 = vsel %vm1118, %v1112, %v1129
    %v1131 = vsel %vm1117, %v1128, %v1130
    %v1132 = vshll.u32 %v1092, 8
    %v1133 = vmul.u32.u64.compose %v1132, %v1131
    %v1134 = vextract.low.u32 %v1133
    %v1135 = vextract.high.u32 %v1133
    %v1136 = vmul.u32.u64.compose %v1132, %v1127
    %v1137 = vextract.low.u32 %v1136
    %v1138 = vextract.high.u32 %v1136
    %v1139 = vmul.u32 %v1132, %v1123
    %v1140 = vadd.s32 %v1135, %v1137
    %vm1141 = vc.u32 %v1135, %v1137
    %v1142 = vadd.s32 %v1138, 1
    %v1143 = vsel %vm1141, %v1142, %v1138
    %v1144 = vadd.s32 %v1139, %v1143
    %v1145 = vadd.s32 %v1144, 536870912
    %v1146 = vshrl.u32 %v1145, 30
    %v1147 = vshll.u32 %v1146, 30
    %v1148 = vsub.s32 %v1144, %v1147
    %vm1149 = vcmp.lt.s32.totalorder %v1148, 0
    %v1150 = vsub.s32 0, %v1148
    %v1151 = vsel %vm1149, %v1150, %v1148
    %v1152 = vclz %v1151
    %v1153 = vsub.s32 %v1152, 2
    %vm1154 = vcmp.gt.s32.totalorder 0, %v1153
    %v1155 = vsel %vm1154, 0, %v1153
    %v1156 = vsub.s32 32, %v1155
    %v1157 = vshll.u32 %v1148, %v1155
    %v1158 = vshrl.u32 %v1140, %v1156
    %v1159 = vor.u32 %v1157, %v1158
    %v1160 = vsub.s32 4294967266, %v1155
    %v1161 = vadd.s32 %v1160, 127
    %v1162 = vshll.u32 %v1161, 23
    %v1163 = vor.u32 4788187, %v1162
    %v1164 = vand.u32 2147483647, %v1163
    %v1166 = vcvt.s32.f32 %v1159
    %v1167 = vmul.f32 %v1166, %v1164
    %v1168 = vxor.u32 %v1167, 2147483648
    %v1169 = vsel %vm1086, %v1168, %v1167
    %v1170 = vsub.s32 4, %v1146
    %v1171 = vsel %vm1086, %v1170, %v1146
    %v1172 = vsel %vm1085, %v552, %v1169
    %v1173 = vsel %vm1085, 0, %v1171
    %v1174 = vcosq.f32.pop %v1172
    %v1175 = vsinq.f32.pop %v1172
    %vm1176 = vweird.f32 %v552
    %v1177 = vadd.s32 %v1173, 3
    %v1178 = vand.u32 %v1177, 3
    %vm1179 = vcmp.lt.s32.totalorder %v1178, 2
    %vm1180 = vcmp.eq.s32.totalorder %v1178, 0
    %v1181 = vxor.u32 %v1175, 2147483648
    %v1182 = vsel %vm1180, %v1174, %v1181
    %vm1183 = vcmp.eq.s32.totalorder %v1178, 2
    %v1184 = vxor.u32 %v1174, 2147483648
    %v1185 = vsel %vm1183, %v1184, %v1175
    %v1186 = vsel %vm1179, %v1182, %v1185
    %v1187 = vsel %vm1176, nan, %v1186
    %v1188 = vand.u32 2147483647, %v553
    %vm1189 = vcmp.le.f32.partialorder %v1188, 0.7853982
    %vm1190 = vcmp.lt.s32.totalorder %v553, 0
    %v1191 = vand.u32 %v553, 2139095040
    %v1192 = vshrl.u32 %v1191, 23
    %v1193 = vsub.s32 %v1192, 127
    %v1194 = vand.u32 2147483647, %v553
    %v1195 = vand.u32 %v1194, 8388607
    %v1196 = vor.u32 %v1195, 8388608
    %v1197 = vsub.s32 0, %v1196
    %v1198 = vadd.s32 %v1193, 1
    %vm1199 = vcmp.gt.s32.totalorder %v1198, 0
    %v1200 = vsel %vm1199, %v1198, 0
    %v1201 = vshrl.u32 %v1200, 5
    %v1202 = vand.u32 %v1200, 31
    %v1203 = vsub.s32 32, %v1202
    %v1204 = vshrl.u32 683565275, %v1203
    %v1205 = vshll.u32 683565275, %v1202
    %v1206 = vshrl.u32 2475754826, %v1203
    %v1207 = vor.u32 %v1205, %v1206
    %v1208 = vshll.u32 2475754826, %v1202
    %v1209 = vshrl.u32 2131351028, %v1203
    %v1210 = vor.u32 %v1208, %v1209
    %v1211 = vshll.u32 2131351028, %v1202
    %v1212 = vshrl.u32 2102212464, %v1203
    %v1213 = vor.u32 %v1211, %v1212
    %v1214 = vshll.u32 2102212464, %v1202
    %v1215 = vshrl.u32 920167782, %v1203
    %v1216 = vor.u32 %v1214, %v1215
    %v1217 = vshll.u32 920167782, %v1202
    %v1218 = vshrl.u32 1326507024, %v1203
    %v1219 = vor.u32 %v1217, %v1218
    %vm1220 = vcmp.lt.s32.totalorder %v1201, 1
    %vm1221 = vcmp.lt.s32.totalorder %v1201, 2
    %vm1222 = vcmp.lt.s32.totalorder %v1201, 3
    %vm1223 = vcmp.lt.s32.totalorder %v1201, 4
    %v1224 = vsel %vm1220, %v1204, %v1207
    %v1225 = vsel %vm1223, %v1213, 2102212464
    %v1226 = vsel %vm1222, %v1210, %v1225
    %v1227 = vsel %vm1221, %v1224, %v1226
    %v1228 = vsel %vm1220, %v1207, %v1210
    %v1229 = vsel %vm1223, %v1216, 920167782
    %v1230 = vsel %vm1222, %v1213, %v1229
    %v1231 = vsel %vm1221, %v1228, %v1230
    %v1232 = vsel %vm1220, %v1210, %v1213
    %v1233 = vsel %vm1223, %v1219, 1326507024
    %v1234 = vsel %vm1222, %v1216, %v1233
    %v1235 = vsel %vm1221, %v1232, %v1234
    %v1236 = vshll.u32 %v1196, 8
    %v1237 = vmul.u32.u64.compose %v1236, %v1235
    %v1238 = vextract.low.u32 %v1237
    %v1239 = vextract.high.u32 %v1237
    %v1240 = vmul.u32.u64.compose %v1236, %v1231
    %v1241 = vextract.low.u32 %v1240
    %v1242 = vextract.high.u32 %v1240
    %v1243 = vmul.u32 %v1236, %v1227
    %v1244 = vadd.s32 %v1239, %v1241
    %vm1245 = vc.u32 %v1239, %v1241
    %v1246 = vadd.s32 %v1242, 1
    %v1247 = vsel %vm1245, %v1246, %v1242
    %v1248 = vadd.s32 %v1243, %v1247
    %v1249 = vadd.s32 %v1248, 536870912
    %v1250 = vshrl.u32 %v1249, 30
    %v1251 = vshll.u32 %v1250, 30
    %v1252 = vsub.s32 %v1248, %v1251
    %vm1253 = vcmp.lt.s32.totalorder %v1252, 0
    %v1254 = vsub.s32 0, %v1252
    %v1255 = vsel %vm1253, %v1254, %v1252
    %v1256 = vclz %v1255
    %v1257 = vsub.s32 %v1256, 2
    %vm1258 = vcmp.gt.s32.totalorder 0, %v1257
    %v1259 = vsel %vm1258, 0, %v1257
    %v1260 = vsub.s32 32, %v1259
    %v1261 = vshll.u32 %v1252, %v1259
    %v1262 = vshrl.u32 %v1244, %v1260
    %v1263 = vor.u32 %v1261, %v1262
    %v1264 = vsub.s32 4294967266, %v1259
    %v1265 = vadd.s32 %v1264, 127
    %v1266 = vshll.u32 %v1265, 23
    %v1267 = vor.u32 4788187, %v1266
    %v1268 = vand.u32 2147483647, %v1267
    %v1270 = vcvt.s32.f32 %v1263
    %v1271 = vmul.f32 %v1270, %v1268
    %v1272 = vxor.u32 %v1271, 2147483648
    %v1273 = vsel %vm1190, %v1272, %v1271
    %v1274 = vsub.s32 4, %v1250
    %v1275 = vsel %vm1190, %v1274, %v1250
    %v1276 = vsel %vm1189, %v553, %v1273
    %v1277 = vsel %vm1189, 0, %v1275
    %v1278 = vcosq.f32.pop %v1276
    %v1279 = vsinq.f32.pop %v1276
    %vm1280 = vweird.f32 %v553
    %v1281 = vadd.s32 %v1277, 3
    %v1282 = vand.u32 %v1281, 3
    %vm1283 = vcmp.lt.s32.totalorder %v1282, 2
    %vm1284 = vcmp.eq.s32.totalorder %v1282, 0
    %v1285 = vxor.u32 %v1279, 2147483648
    %v1286 = vsel %vm1284, %v1278, %v1285
    %vm1287 = vcmp.eq.s32.totalorder %v1282, 2
    %v1288 = vxor.u32 %v1278, 2147483648
    %v1289 = vsel %vm1287, %v1288, %v1279
    %v1290 = vsel %vm1283, %v1286, %v1289
    %v1291 = vsel %vm1280, nan, %v1290
    %v1292 = vand.u32 2147483647, %v554
    %vm1293 = vcmp.le.f32.partialorder %v1292, 0.7853982
    %vm1294 = vcmp.lt.s32.totalorder %v554, 0
    %v1295 = vand.u32 %v554, 2139095040
    %v1296 = vshrl.u32 %v1295, 23
    %v1297 = vsub.s32 %v1296, 127
    %v1298 = vand.u32 2147483647, %v554
    %v1299 = vand.u32 %v1298, 8388607
    %v1300 = vor.u32 %v1299, 8388608
    %v1301 = vsub.s32 0, %v1300
    %v1302 = vadd.s32 %v1297, 1
    %vm1303 = vcmp.gt.s32.totalorder %v1302, 0
    %v1304 = vsel %vm1303, %v1302, 0
    %v1305 = vshrl.u32 %v1304, 5
    %v1306 = vand.u32 %v1304, 31
    %v1307 = vsub.s32 32, %v1306
    %v1308 = vshrl.u32 683565275, %v1307
    %v1309 = vshll.u32 683565275, %v1306
    %v1310 = vshrl.u32 2475754826, %v1307
    %v1311 = vor.u32 %v1309, %v1310
    %v1312 = vshll.u32 2475754826, %v1306
    %v1313 = vshrl.u32 2131351028, %v1307
    %v1314 = vor.u32 %v1312, %v1313
    %v1315 = vshll.u32 2131351028, %v1306
    %v1316 = vshrl.u32 2102212464, %v1307
    %v1317 = vor.u32 %v1315, %v1316
    %v1318 = vshll.u32 2102212464, %v1306
    %v1319 = vshrl.u32 920167782, %v1307
    %v1320 = vor.u32 %v1318, %v1319
    %v1321 = vshll.u32 920167782, %v1306
    %v1322 = vshrl.u32 1326507024, %v1307
    %v1323 = vor.u32 %v1321, %v1322
    %vm1324 = vcmp.lt.s32.totalorder %v1305, 1
    %vm1325 = vcmp.lt.s32.totalorder %v1305, 2
    %vm1326 = vcmp.lt.s32.totalorder %v1305, 3
    %vm1327 = vcmp.lt.s32.totalorder %v1305, 4
    %v1328 = vsel %vm1324, %v1308, %v1311
    %v1329 = vsel %vm1327, %v1317, 2102212464
    %v1330 = vsel %vm1326, %v1314, %v1329
    %v1331 = vsel %vm1325, %v1328, %v1330
    %v1332 = vsel %vm1324, %v1311, %v1314
    %v1333 = vsel %vm1327, %v1320, 920167782
    %v1334 = vsel %vm1326, %v1317, %v1333
    %v1335 = vsel %vm1325, %v1332, %v1334
    %v1336 = vsel %vm1324, %v1314, %v1317
    %v1337 = vsel %vm1327, %v1323, 1326507024
    %v1338 = vsel %vm1326, %v1320, %v1337
    %v1339 = vsel %vm1325, %v1336, %v1338
    %v1340 = vshll.u32 %v1300, 8
    %v1341 = vmul.u32.u64.compose %v1340, %v1339
    %v1342 = vextract.low.u32 %v1341
    %v1343 = vextract.high.u32 %v1341
    %v1344 = vmul.u32.u64.compose %v1340, %v1335
    %v1345 = vextract.low.u32 %v1344
    %v1346 = vextract.high.u32 %v1344
    %v1347 = vmul.u32 %v1340, %v1331
    %v1348 = vadd.s32 %v1343, %v1345
    %vm1349 = vc.u32 %v1343, %v1345
    %v1350 = vadd.s32 %v1346, 1
    %v1351 = vsel %vm1349, %v1350, %v1346
    %v1352 = vadd.s32 %v1347, %v1351
    %v1353 = vadd.s32 %v1352, 536870912
    %v1354 = vshrl.u32 %v1353, 30
    %v1355 = vshll.u32 %v1354, 30
    %v1356 = vsub.s32 %v1352, %v1355
    %vm1357 = vcmp.lt.s32.totalorder %v1356, 0
    %v1358 = vsub.s32 0, %v1356
    %v1359 = vsel %vm1357, %v1358, %v1356
    %v1360 = vclz %v1359
    %v1361 = vsub.s32 %v1360, 2
    %vm1362 = vcmp.gt.s32.totalorder 0, %v1361
    %v1363 = vsel %vm1362, 0, %v1361
    %v1364 = vsub.s32 32, %v1363
    %v1365 = vshll.u32 %v1356, %v1363
    %v1366 = vshrl.u32 %v1348, %v1364
    %v1367 = vor.u32 %v1365, %v1366
    %v1368 = vsub.s32 4294967266, %v1363
    %v1369 = vadd.s32 %v1368, 127
    %v1370 = vshll.u32 %v1369, 23
    %v1371 = vor.u32 4788187, %v1370
    %v1372 = vand.u32 2147483647, %v1371
    %v1374 = vcvt.s32.f32 %v1367
    %v1375 = vmul.f32 %v1374, %v1372
    %v1376 = vxor.u32 %v1375, 2147483648
    %v1377 = vsel %vm1294, %v1376, %v1375
    %v1378 = vsub.s32 4, %v1354
    %v1379 = vsel %vm1294, %v1378, %v1354
    %v1380 = vsel %vm1293, %v554, %v1377
    %v1381 = vsel %vm1293, 0, %v1379
    %v1382 = vcosq.f32.pop %v1380
    %v1383 = vsinq.f32.pop %v1380
    %vm1384 = vweird.f32 %v554
    %v1385 = vadd.s32 %v1381, 3
    %v1386 = vand.u32 %v1385, 3
    %vm1387 = vcmp.lt.s32.totalorder %v1386, 2
    %vm1388 = vcmp.eq.s32.totalorder %v1386, 0
    %v1389 = vxor.u32 %v1383, 2147483648
    %v1390 = vsel %vm1388, %v1382, %v1389
    %vm1391 = vcmp.eq.s32.totalorder %v1386, 2
    %v1392 = vxor.u32 %v1382, 2147483648
    %v1393 = vsel %vm1391, %v1392, %v1383
    %v1394 = vsel %vm1387, %v1390, %v1393
    %v1395 = vsel %vm1384, nan, %v1394
    %v1396 = vand.u32 2147483647, %v555
    %vm1397 = vcmp.le.f32.partialorder %v1396, 0.7853982
    %vm1398 = vcmp.lt.s32.totalorder %v555, 0
    %v1399 = vand.u32 %v555, 2139095040
    %v1400 = vshrl.u32 %v1399, 23
    %v1401 = vsub.s32 %v1400, 127
    %v1402 = vand.u32 2147483647, %v555
    %v1403 = vand.u32 %v1402, 8388607
    %v1404 = vor.u32 %v1403, 8388608
    %v1405 = vsub.s32 0, %v1404
    %v1406 = vadd.s32 %v1401, 1
    %vm1407 = vcmp.gt.s32.totalorder %v1406, 0
    %v1408 = vsel %vm1407, %v1406, 0
    %v1409 = vshrl.u32 %v1408, 5
    %v1410 = vand.u32 %v1408, 31
    %v1411 = vsub.s32 32, %v1410
    %v1412 = vshrl.u32 683565275, %v1411
    %v1413 = vshll.u32 683565275, %v1410
    %v1414 = vshrl.u32 2475754826, %v1411
    %v1415 = vor.u32 %v1413, %v1414
    %v1416 = vshll.u32 2475754826, %v1410
    %v1417 = vshrl.u32 2131351028, %v1411
    %v1418 = vor.u32 %v1416, %v1417
    %v1419 = vshll.u32 2131351028, %v1410
    %v1420 = vshrl.u32 2102212464, %v1411
    %v1421 = vor.u32 %v1419, %v1420
    %v1422 = vshll.u32 2102212464, %v1410
    %v1423 = vshrl.u32 920167782, %v1411
    %v1424 = vor.u32 %v1422, %v1423
    %v1425 = vshll.u32 920167782, %v1410
    %v1426 = vshrl.u32 1326507024, %v1411
    %v1427 = vor.u32 %v1425, %v1426
    %vm1428 = vcmp.lt.s32.totalorder %v1409, 1
    %vm1429 = vcmp.lt.s32.totalorder %v1409, 2
    %vm1430 = vcmp.lt.s32.totalorder %v1409, 3
    %vm1431 = vcmp.lt.s32.totalorder %v1409, 4
    %v1432 = vsel %vm1428, %v1412, %v1415
    %v1433 = vsel %vm1431, %v1421, 2102212464
    %v1434 = vsel %vm1430, %v1418, %v1433
    %v1435 = vsel %vm1429, %v1432, %v1434
    %v1436 = vsel %vm1428, %v1415, %v1418
    %v1437 = vsel %vm1431, %v1424, 920167782
    %v1438 = vsel %vm1430, %v1421, %v1437
    %v1439 = vsel %vm1429, %v1436, %v1438
    %v1440 = vsel %vm1428, %v1418, %v1421
    %v1441 = vsel %vm1431, %v1427, 1326507024
    %v1442 = vsel %vm1430, %v1424, %v1441
    %v1443 = vsel %vm1429, %v1440, %v1442
    %v1444 = vshll.u32 %v1404, 8
    %v1445 = vmul.u32.u64.compose %v1444, %v1443
    %v1446 = vextract.low.u32 %v1445
    %v1447 = vextract.high.u32 %v1445
    %v1448 = vmul.u32.u64.compose %v1444, %v1439
    %v1449 = vextract.low.u32 %v1448
    %v1450 = vextract.high.u32 %v1448
    %v1451 = vmul.u32 %v1444, %v1435
    %v1452 = vadd.s32 %v1447, %v1449
    %vm1453 = vc.u32 %v1447, %v1449
    %v1454 = vadd.s32 %v1450, 1
    %v1455 = vsel %vm1453, %v1454, %v1450
    %v1456 = vadd.s32 %v1451, %v1455
    %v1457 = vadd.s32 %v1456, 536870912
    %v1458 = vshrl.u32 %v1457, 30
    %v1459 = vshll.u32 %v1458, 30
    %v1460 = vsub.s32 %v1456, %v1459
    %vm1461 = vcmp.lt.s32.totalorder %v1460, 0
    %v1462 = vsub.s32 0, %v1460
    %v1463 = vsel %vm1461, %v1462, %v1460
    %v1464 = vclz %v1463
    %v1465 = vsub.s32 %v1464, 2
    %vm1466 = vcmp.gt.s32.totalorder 0, %v1465
    %v1467 = vsel %vm1466, 0, %v1465
    %v1468 = vsub.s32 32, %v1467
    %v1469 = vshll.u32 %v1460, %v1467
    %v1470 = vshrl.u32 %v1452, %v1468
    %v1471 = vor.u32 %v1469, %v1470
    %v1472 = vsub.s32 4294967266, %v1467
    %v1473 = vadd.s32 %v1472, 127
    %v1474 = vshll.u32 %v1473, 23
    %v1475 = vor.u32 4788187, %v1474
    %v1476 = vand.u32 2147483647, %v1475
    %v1478 = vcvt.s32.f32 %v1471
    %v1479 = vmul.f32 %v1478, %v1476
    %v1480 = vxor.u32 %v1479, 2147483648
    %v1481 = vsel %vm1398, %v1480, %v1479
    %v1482 = vsub.s32 4, %v1458
    %v1483 = vsel %vm1398, %v1482, %v1458
    %v1484 = vsel %vm1397, %v555, %v1481
    %v1485 = vsel %vm1397, 0, %v1483
    %v1486 = vcosq.f32.pop %v1484
    %v1487 = vsinq.f32.pop %v1484
    %vm1488 = vweird.f32 %v555
    %v1489 = vadd.s32 %v1485, 3
    %v1490 = vand.u32 %v1489, 3
    %vm1491 = vcmp.lt.s32.totalorder %v1490, 2
    %vm1492 = vcmp.eq.s32.totalorder %v1490, 0
    %v1493 = vxor.u32 %v1487, 2147483648
    %v1494 = vsel %vm1492, %v1486, %v1493
    %vm1495 = vcmp.eq.s32.totalorder %v1490, 2
    %v1496 = vxor.u32 %v1486, 2147483648
    %v1497 = vsel %vm1495, %v1496, %v1487
    %v1498 = vsel %vm1491, %v1494, %v1497
    %v1499 = vsel %vm1488, nan, %v1498
    %v1500 = vand.u32 2147483647, %v556
    %vm1501 = vcmp.le.f32.partialorder %v1500, 0.7853982
    %vm1502 = vcmp.lt.s32.totalorder %v556, 0
    %v1503 = vand.u32 %v556, 2139095040
    %v1504 = vshrl.u32 %v1503, 23
    %v1505 = vsub.s32 %v1504, 127
    %v1506 = vand.u32 2147483647, %v556
    %v1507 = vand.u32 %v1506, 8388607
    %v1508 = vor.u32 %v1507, 8388608
    %v1509 = vsub.s32 0, %v1508
    %v1510 = vadd.s32 %v1505, 1
    %vm1511 = vcmp.gt.s32.totalorder %v1510, 0
    %v1512 = vsel %vm1511, %v1510, 0
    %v1513 = vshrl.u32 %v1512, 5
    %v1514 = vand.u32 %v1512, 31
    %v1515 = vsub.s32 32, %v1514
    %v1516 = vshrl.u32 683565275, %v1515
    %v1517 = vshll.u32 683565275, %v1514
    %v1518 = vshrl.u32 2475754826, %v1515
    %v1519 = vor.u32 %v1517, %v1518
    %v1520 = vshll.u32 2475754826, %v1514
    %v1521 = vshrl.u32 2131351028, %v1515
    %v1522 = vor.u32 %v1520, %v1521
    %v1523 = vshll.u32 2131351028, %v1514
    %v1524 = vshrl.u32 2102212464, %v1515
    %v1525 = vor.u32 %v1523, %v1524
    %v1526 = vshll.u32 2102212464, %v1514
    %v1527 = vshrl.u32 920167782, %v1515
    %v1528 = vor.u32 %v1526, %v1527
    %v1529 = vshll.u32 920167782, %v1514
    %v1530 = vshrl.u32 1326507024, %v1515
    %v1531 = vor.u32 %v1529, %v1530
    %vm1532 = vcmp.lt.s32.totalorder %v1513, 1
    %vm1533 = vcmp.lt.s32.totalorder %v1513, 2
    %vm1534 = vcmp.lt.s32.totalorder %v1513, 3
    %vm1535 = vcmp.lt.s32.totalorder %v1513, 4
    %v1536 = vsel %vm1532, %v1516, %v1519
    %v1537 = vsel %vm1535, %v1525, 2102212464
    %v1538 = vsel %vm1534, %v1522, %v1537
    %v1539 = vsel %vm1533, %v1536, %v1538
    %v1540 = vsel %vm1532, %v1519, %v1522
    %v1541 = vsel %vm1535, %v1528, 920167782
    %v1542 = vsel %vm1534, %v1525, %v1541
    %v1543 = vsel %vm1533, %v1540, %v1542
    %v1544 = vsel %vm1532, %v1522, %v1525
    %v1545 = vsel %vm1535, %v1531, 1326507024
    %v1546 = vsel %vm1534, %v1528, %v1545
    %v1547 = vsel %vm1533, %v1544, %v1546
    %v1548 = vshll.u32 %v1508, 8
    %v1549 = vmul.u32.u64.compose %v1548, %v1547
    %v1550 = vextract.low.u32 %v1549
    %v1551 = vextract.high.u32 %v1549
    %v1552 = vmul.u32.u64.compose %v1548, %v1543
    %v1553 = vextract.low.u32 %v1552
    %v1554 = vextract.high.u32 %v1552
    %v1555 = vmul.u32 %v1548, %v1539
    %v1556 = vadd.s32 %v1551, %v1553
    %vm1557 = vc.u32 %v1551, %v1553
    %v1558 = vadd.s32 %v1554, 1
    %v1559 = vsel %vm1557, %v1558, %v1554
    %v1560 = vadd.s32 %v1555, %v1559
    %v1561 = vadd.s32 %v1560, 536870912
    %v1562 = vshrl.u32 %v1561, 30
    %v1563 = vshll.u32 %v1562, 30
    %v1564 = vsub.s32 %v1560, %v1563
    %vm1565 = vcmp.lt.s32.totalorder %v1564, 0
    %v1566 = vsub.s32 0, %v1564
    %v1567 = vsel %vm1565, %v1566, %v1564
    %v1568 = vclz %v1567
    %v1569 = vsub.s32 %v1568, 2
    %vm1570 = vcmp.gt.s32.totalorder 0, %v1569
    %v1571 = vsel %vm1570, 0, %v1569
    %v1572 = vsub.s32 32, %v1571
    %v1573 = vshll.u32 %v1564, %v1571
    %v1574 = vshrl.u32 %v1556, %v1572
    %v1575 = vor.u32 %v1573, %v1574
    %v1576 = vsub.s32 4294967266, %v1571
    %v1577 = vadd.s32 %v1576, 127
    %v1578 = vshll.u32 %v1577, 23
    %v1579 = vor.u32 4788187, %v1578
    %v1580 = vand.u32 2147483647, %v1579
    %v1582 = vcvt.s32.f32 %v1575
    %v1583 = vmul.f32 %v1582, %v1580
    %v1584 = vxor.u32 %v1583, 2147483648
    %v1585 = vsel %vm1502, %v1584, %v1583
    %v1586 = vsub.s32 4, %v1562
    %v1587 = vsel %vm1502, %v1586, %v1562
    %v1588 = vsel %vm1501, %v556, %v1585
    %v1589 = vsel %vm1501, 0, %v1587
    %v1590 = vcosq.f32.pop %v1588
    %v1591 = vsinq.f32.pop %v1588
    %vm1592 = vweird.f32 %v556
    %v1593 = vadd.s32 %v1589, 3
    %v1594 = vand.u32 %v1593, 3
    %vm1595 = vcmp.lt.s32.totalorder %v1594, 2
    %vm1596 = vcmp.eq.s32.totalorder %v1594, 0
    %v1597 = vxor.u32 %v1591, 2147483648
    %v1598 = vsel %vm1596, %v1590, %v1597
    %vm1599 = vcmp.eq.s32.totalorder %v1594, 2
    %v1600 = vxor.u32 %v1590, 2147483648
    %v1601 = vsel %vm1599, %v1600, %v1591
    %v1602 = vsel %vm1595, %v1598, %v1601
    %v1603 = vsel %vm1592, nan, %v1602
    %v1604 = vand.u32 2147483647, %v557
    %vm1605 = vcmp.le.f32.partialorder %v1604, 0.7853982
    %vm1606 = vcmp.lt.s32.totalorder %v557, 0
    %v1607 = vand.u32 %v557, 2139095040
    %v1608 = vshrl.u32 %v1607, 23
    %v1609 = vsub.s32 %v1608, 127
    %v1610 = vand.u32 2147483647, %v557
    %v1611 = vand.u32 %v1610, 8388607
    %v1612 = vor.u32 %v1611, 8388608
    %v1613 = vsub.s32 0, %v1612
    %v1614 = vadd.s32 %v1609, 1
    %vm1615 = vcmp.gt.s32.totalorder %v1614, 0
    %v1616 = vsel %vm1615, %v1614, 0
    %v1617 = vshrl.u32 %v1616, 5
    %v1618 = vand.u32 %v1616, 31
    %v1619 = vsub.s32 32, %v1618
    %v1620 = vshrl.u32 683565275, %v1619
    %v1621 = vshll.u32 683565275, %v1618
    %v1622 = vshrl.u32 2475754826, %v1619
    %v1623 = vor.u32 %v1621, %v1622
    %v1624 = vshll.u32 2475754826, %v1618
    %v1625 = vshrl.u32 2131351028, %v1619
    %v1626 = vor.u32 %v1624, %v1625
    %v1627 = vshll.u32 2131351028, %v1618
    %v1628 = vshrl.u32 2102212464, %v1619
    %v1629 = vor.u32 %v1627, %v1628
    %v1630 = vshll.u32 2102212464, %v1618
    %v1631 = vshrl.u32 920167782, %v1619
    %v1632 = vor.u32 %v1630, %v1631
    %v1633 = vshll.u32 920167782, %v1618
    %v1634 = vshrl.u32 1326507024, %v1619
    %v1635 = vor.u32 %v1633, %v1634
    %vm1636 = vcmp.lt.s32.totalorder %v1617, 1
    %vm1637 = vcmp.lt.s32.totalorder %v1617, 2
    %vm1638 = vcmp.lt.s32.totalorder %v1617, 3
    %vm1639 = vcmp.lt.s32.totalorder %v1617, 4
    %v1640 = vsel %vm1636, %v1620, %v1623
    %v1641 = vsel %vm1639, %v1629, 2102212464
    %v1642 = vsel %vm1638, %v1626, %v1641
    %v1643 = vsel %vm1637, %v1640, %v1642
    %v1644 = vsel %vm1636, %v1623, %v1626
    %v1645 = vsel %vm1639, %v1632, 920167782
    %v1646 = vsel %vm1638, %v1629, %v1645
    %v1647 = vsel %vm1637, %v1644, %v1646
    %v1648 = vsel %vm1636, %v1626, %v1629
    %v1649 = vsel %vm1639, %v1635, 1326507024
    %v1650 = vsel %vm1638, %v1632, %v1649
    %v1651 = vsel %vm1637, %v1648, %v1650
    %v1652 = vshll.u32 %v1612, 8
    %v1653 = vmul.u32.u64.compose %v1652, %v1651
    %v1654 = vextract.low.u32 %v1653
    %v1655 = vextract.high.u32 %v1653
    %v1656 = vmul.u32.u64.compose %v1652, %v1647
    %v1657 = vextract.low.u32 %v1656
    %v1658 = vextract.high.u32 %v1656
    %v1659 = vmul.u32 %v1652, %v1643
    %v1660 = vadd.s32 %v1655, %v1657
    %vm1661 = vc.u32 %v1655, %v1657
    %v1662 = vadd.s32 %v1658, 1
    %v1663 = vsel %vm1661, %v1662, %v1658
    %v1664 = vadd.s32 %v1659, %v1663
    %v1665 = vadd.s32 %v1664, 536870912
    %v1666 = vshrl.u32 %v1665, 30
    %v1667 = vshll.u32 %v1666, 30
    %v1668 = vsub.s32 %v1664, %v1667
    %vm1669 = vcmp.lt.s32.totalorder %v1668, 0
    %v1670 = vsub.s32 0, %v1668
    %v1671 = vsel %vm1669, %v1670, %v1668
    %v1672 = vclz %v1671
    %v1673 = vsub.s32 %v1672, 2
    %vm1674 = vcmp.gt.s32.totalorder 0, %v1673
    %v1675 = vsel %vm1674, 0, %v1673
    %v1676 = vsub.s32 32, %v1675
    %v1677 = vshll.u32 %v1668, %v1675
    %v1678 = vshrl.u32 %v1660, %v1676
    %v1679 = vor.u32 %v1677, %v1678
    %v1680 = vsub.s32 4294967266, %v1675
    %v1681 = vadd.s32 %v1680, 127
    %v1682 = vshll.u32 %v1681, 23
    %v1683 = vor.u32 4788187, %v1682
    %v1684 = vand.u32 2147483647, %v1683
    %v1686 = vcvt.s32.f32 %v1679
    %v1687 = vmul.f32 %v1686, %v1684
    %v1688 = vxor.u32 %v1687, 2147483648
    %v1689 = vsel %vm1606, %v1688, %v1687
    %v1690 = vsub.s32 4, %v1666
    %v1691 = vsel %vm1606, %v1690, %v1666
    %v1692 = vsel %vm1605, %v557, %v1689
    %v1693 = vsel %vm1605, 0, %v1691
    %v1694 = vcosq.f32.pop %v1692
    %v1695 = vsinq.f32.pop %v1692
    %vm1696 = vweird.f32 %v557
    %v1697 = vadd.s32 %v1693, 3
    %v1698 = vand.u32 %v1697, 3
    %vm1699 = vcmp.lt.s32.totalorder %v1698, 2
    %vm1700 = vcmp.eq.s32.totalorder %v1698, 0
    %v1701 = vxor.u32 %v1695, 2147483648
    %v1702 = vsel %vm1700, %v1694, %v1701
    %vm1703 = vcmp.eq.s32.totalorder %v1698, 2
    %v1704 = vxor.u32 %v1694, 2147483648
    %v1705 = vsel %vm1703, %v1704, %v1695
    %v1706 = vsel %vm1699, %v1702, %v1705
    %v1707 = vsel %vm1696, nan, %v1706
    %v1708 = vand.u32 2147483647, %v558
    %vm1709 = vcmp.le.f32.partialorder %v1708, 0.7853982
    %vm1710 = vcmp.lt.s32.totalorder %v558, 0
    %v1711 = vand.u32 %v558, 2139095040
    %v1712 = vshrl.u32 %v1711, 23
    %v1713 = vsub.s32 %v1712, 127
    %v1714 = vand.u32 2147483647, %v558
    %v1715 = vand.u32 %v1714, 8388607
    %v1716 = vor.u32 %v1715, 8388608
    %v1717 = vsub.s32 0, %v1716
    %v1718 = vadd.s32 %v1713, 1
    %vm1719 = vcmp.gt.s32.totalorder %v1718, 0
    %v1720 = vsel %vm1719, %v1718, 0
    %v1721 = vshrl.u32 %v1720, 5
    %v1722 = vand.u32 %v1720, 31
    %v1723 = vsub.s32 32, %v1722
    %v1724 = vshrl.u32 683565275, %v1723
    %v1725 = vshll.u32 683565275, %v1722
    %v1726 = vshrl.u32 2475754826, %v1723
    %v1727 = vor.u32 %v1725, %v1726
    %v1728 = vshll.u32 2475754826, %v1722
    %v1729 = vshrl.u32 2131351028, %v1723
    %v1730 = vor.u32 %v1728, %v1729
    %v1731 = vshll.u32 2131351028, %v1722
    %v1732 = vshrl.u32 2102212464, %v1723
    %v1733 = vor.u32 %v1731, %v1732
    %v1734 = vshll.u32 2102212464, %v1722
    %v1735 = vshrl.u32 920167782, %v1723
    %v1736 = vor.u32 %v1734, %v1735
    %v1737 = vshll.u32 920167782, %v1722
    %v1738 = vshrl.u32 1326507024, %v1723
    %v1739 = vor.u32 %v1737, %v1738
    %vm1740 = vcmp.lt.s32.totalorder %v1721, 1
    %vm1741 = vcmp.lt.s32.totalorder %v1721, 2
    %vm1742 = vcmp.lt.s32.totalorder %v1721, 3
    %vm1743 = vcmp.lt.s32.totalorder %v1721, 4
    %v1744 = vsel %vm1740, %v1724, %v1727
    %v1745 = vsel %vm1743, %v1733, 2102212464
    %v1746 = vsel %vm1742, %v1730, %v1745
    %v1747 = vsel %vm1741, %v1744, %v1746
    %v1748 = vsel %vm1740, %v1727, %v1730
    %v1749 = vsel %vm1743, %v1736, 920167782
    %v1750 = vsel %vm1742, %v1733, %v1749
    %v1751 = vsel %vm1741, %v1748, %v1750
    %v1752 = vsel %vm1740, %v1730, %v1733
    %v1753 = vsel %vm1743, %v1739, 1326507024
    %v1754 = vsel %vm1742, %v1736, %v1753
    %v1755 = vsel %vm1741, %v1752, %v1754
    %v1756 = vshll.u32 %v1716, 8
    %v1757 = vmul.u32.u64.compose %v1756, %v1755
    %v1758 = vextract.low.u32 %v1757
    %v1759 = vextract.high.u32 %v1757
    %v1760 = vmul.u32.u64.compose %v1756, %v1751
    %v1761 = vextract.low.u32 %v1760
    %v1762 = vextract.high.u32 %v1760
    %v1763 = vmul.u32 %v1756, %v1747
    %v1764 = vadd.s32 %v1759, %v1761
    %vm1765 = vc.u32 %v1759, %v1761
    %v1766 = vadd.s32 %v1762, 1
    %v1767 = vsel %vm1765, %v1766, %v1762
    %v1768 = vadd.s32 %v1763, %v1767
    %v1769 = vadd.s32 %v1768, 536870912
    %v1770 = vshrl.u32 %v1769, 30
    %v1771 = vshll.u32 %v1770, 30
    %v1772 = vsub.s32 %v1768, %v1771
    %vm1773 = vcmp.lt.s32.totalorder %v1772, 0
    %v1774 = vsub.s32 0, %v1772
    %v1775 = vsel %vm1773, %v1774, %v1772
    %v1776 = vclz %v1775
    %v1777 = vsub.s32 %v1776, 2
    %vm1778 = vcmp.gt.s32.totalorder 0, %v1777
    %v1779 = vsel %vm1778, 0, %v1777
    %v1780 = vsub.s32 32, %v1779
    %v1781 = vshll.u32 %v1772, %v1779
    %v1782 = vshrl.u32 %v1764, %v1780
    %v1783 = vor.u32 %v1781, %v1782
    %v1784 = vsub.s32 4294967266, %v1779
    %v1785 = vadd.s32 %v1784, 127
    %v1786 = vshll.u32 %v1785, 23
    %v1787 = vor.u32 4788187, %v1786
    %v1788 = vand.u32 2147483647, %v1787
    %v1790 = vcvt.s32.f32 %v1783
    %v1791 = vmul.f32 %v1790, %v1788
    %v1792 = vxor.u32 %v1791, 2147483648
    %v1793 = vsel %vm1710, %v1792, %v1791
    %v1794 = vsub.s32 4, %v1770
    %v1795 = vsel %vm1710, %v1794, %v1770
    %v1796 = vsel %vm1709, %v558, %v1793
    %v1797 = vsel %vm1709, 0, %v1795
    %v1798 = vcosq.f32.pop %v1796
    %v1799 = vsinq.f32.pop %v1796
    %vm1800 = vweird.f32 %v558
    %v1801 = vadd.s32 %v1797, 3
    %v1802 = vand.u32 %v1801, 3
    %vm1803 = vcmp.lt.s32.totalorder %v1802, 2
    %vm1804 = vcmp.eq.s32.totalorder %v1802, 0
    %v1805 = vxor.u32 %v1799, 2147483648
    %v1806 = vsel %vm1804, %v1798, %v1805
    %vm1807 = vcmp.eq.s32.totalorder %v1802, 2
    %v1808 = vxor.u32 %v1798, 2147483648
    %v1809 = vsel %vm1807, %v1808, %v1799
    %v1810 = vsel %vm1803, %v1806, %v1809
    %v1811 = vsel %vm1800, nan, %v1810
    %v1812 = vand.u32 2147483647, %v559
    %vm1813 = vcmp.le.f32.partialorder %v1812, 0.7853982
    %vm1814 = vcmp.lt.s32.totalorder %v559, 0
    %v1815 = vand.u32 %v559, 2139095040
    %v1816 = vshrl.u32 %v1815, 23
    %v1817 = vsub.s32 %v1816, 127
    %v1818 = vand.u32 2147483647, %v559
    %v1819 = vand.u32 %v1818, 8388607
    %v1820 = vor.u32 %v1819, 8388608
    %v1821 = vsub.s32 0, %v1820
    %v1822 = vadd.s32 %v1817, 1
    %vm1823 = vcmp.gt.s32.totalorder %v1822, 0
    %v1824 = vsel %vm1823, %v1822, 0
    %v1825 = vshrl.u32 %v1824, 5
    %v1826 = vand.u32 %v1824, 31
    %v1827 = vsub.s32 32, %v1826
    %v1828 = vshrl.u32 683565275, %v1827
    %v1829 = vshll.u32 683565275, %v1826
    %v1830 = vshrl.u32 2475754826, %v1827
    %v1831 = vor.u32 %v1829, %v1830
    %v1832 = vshll.u32 2475754826, %v1826
    %v1833 = vshrl.u32 2131351028, %v1827
    %v1834 = vor.u32 %v1832, %v1833
    %v1835 = vshll.u32 2131351028, %v1826
    %v1836 = vshrl.u32 2102212464, %v1827
    %v1837 = vor.u32 %v1835, %v1836
    %v1838 = vshll.u32 2102212464, %v1826
    %v1839 = vshrl.u32 920167782, %v1827
    %v1840 = vor.u32 %v1838, %v1839
    %v1841 = vshll.u32 920167782, %v1826
    %v1842 = vshrl.u32 1326507024, %v1827
    %v1843 = vor.u32 %v1841, %v1842
    %vm1844 = vcmp.lt.s32.totalorder %v1825, 1
    %vm1845 = vcmp.lt.s32.totalorder %v1825, 2
    %vm1846 = vcmp.lt.s32.totalorder %v1825, 3
    %vm1847 = vcmp.lt.s32.totalorder %v1825, 4
    %v1848 = vsel %vm1844, %v1828, %v1831
    %v1849 = vsel %vm1847, %v1837, 2102212464
    %v1850 = vsel %vm1846, %v1834, %v1849
    %v1851 = vsel %vm1845, %v1848, %v1850
    %v1852 = vsel %vm1844, %v1831, %v1834
    %v1853 = vsel %vm1847, %v1840, 920167782
    %v1854 = vsel %vm1846, %v1837, %v1853
    %v1855 = vsel %vm1845, %v1852, %v1854
    %v1856 = vsel %vm1844, %v1834, %v1837
    %v1857 = vsel %vm1847, %v1843, 1326507024
    %v1858 = vsel %vm1846, %v1840, %v1857
    %v1859 = vsel %vm1845, %v1856, %v1858
    %v1860 = vshll.u32 %v1820, 8
    %v1861 = vmul.u32.u64.compose %v1860, %v1859
    %v1862 = vextract.low.u32 %v1861
    %v1863 = vextract.high.u32 %v1861
    %v1864 = vmul.u32.u64.compose %v1860, %v1855
    %v1865 = vextract.low.u32 %v1864
    %v1866 = vextract.high.u32 %v1864
    %v1867 = vmul.u32 %v1860, %v1851
    %v1868 = vadd.s32 %v1863, %v1865
    %vm1869 = vc.u32 %v1863, %v1865
    %v1870 = vadd.s32 %v1866, 1
    %v1871 = vsel %vm1869, %v1870, %v1866
    %v1872 = vadd.s32 %v1867, %v1871
    %v1873 = vadd.s32 %v1872, 536870912
    %v1874 = vshrl.u32 %v1873, 30
    %v1875 = vshll.u32 %v1874, 30
    %v1876 = vsub.s32 %v1872, %v1875
    %vm1877 = vcmp.lt.s32.totalorder %v1876, 0
    %v1878 = vsub.s32 0, %v1876
    %v1879 = vsel %vm1877, %v1878, %v1876
    %v1880 = vclz %v1879
    %v1881 = vsub.s32 %v1880, 2
    %vm1882 = vcmp.gt.s32.totalorder 0, %v1881
    %v1883 = vsel %vm1882, 0, %v1881
    %v1884 = vsub.s32 32, %v1883
    %v1885 = vshll.u32 %v1876, %v1883
    %v1886 = vshrl.u32 %v1868, %v1884
    %v1887 = vor.u32 %v1885, %v1886
    %v1888 = vsub.s32 4294967266, %v1883
    %v1889 = vadd.s32 %v1888, 127
    %v1890 = vshll.u32 %v1889, 23
    %v1891 = vor.u32 4788187, %v1890
    %v1892 = vand.u32 2147483647, %v1891
    %v1894 = vcvt.s32.f32 %v1887
    %v1895 = vmul.f32 %v1894, %v1892
    %v1896 = vxor.u32 %v1895, 2147483648
    %v1897 = vsel %vm1814, %v1896, %v1895
    %v1898 = vsub.s32 4, %v1874
    %v1899 = vsel %vm1814, %v1898, %v1874
    %v1900 = vsel %vm1813, %v559, %v1897
    %v1901 = vsel %vm1813, 0, %v1899
    %v1902 = vcosq.f32.pop %v1900
    %v1903 = vsinq.f32.pop %v1900
    %vm1904 = vweird.f32 %v559
    %v1905 = vadd.s32 %v1901, 3
    %v1906 = vand.u32 %v1905, 3
    %vm1907 = vcmp.lt.s32.totalorder %v1906, 2
    %vm1908 = vcmp.eq.s32.totalorder %v1906, 0
    %v1909 = vxor.u32 %v1903, 2147483648
    %v1910 = vsel %vm1908, %v1902, %v1909
    %vm1911 = vcmp.eq.s32.totalorder %v1906, 2
    %v1912 = vxor.u32 %v1902, 2147483648
    %v1913 = vsel %vm1911, %v1912, %v1903
    %v1914 = vsel %vm1907, %v1910, %v1913
    %v1915 = vsel %vm1904, nan, %v1914
    %v1916 = vand.u32 2147483647, %v560
    %vm1917 = vcmp.le.f32.partialorder %v1916, 0.7853982
    %vm1918 = vcmp.lt.s32.totalorder %v560, 0
    %v1919 = vand.u32 %v560, 2139095040
    %v1920 = vshrl.u32 %v1919, 23
    %v1921 = vsub.s32 %v1920, 127
    %v1922 = vand.u32 2147483647, %v560
    %v1923 = vand.u32 %v1922, 8388607
    %v1924 = vor.u32 %v1923, 8388608
    %v1925 = vsub.s32 0, %v1924
    %v1926 = vadd.s32 %v1921, 1
    %vm1927 = vcmp.gt.s32.totalorder %v1926, 0
    %v1928 = vsel %vm1927, %v1926, 0
    %v1929 = vshrl.u32 %v1928, 5
    %v1930 = vand.u32 %v1928, 31
    %v1931 = vsub.s32 32, %v1930
    %v1932 = vshrl.u32 683565275, %v1931
    %v1933 = vshll.u32 683565275, %v1930
    %v1934 = vshrl.u32 2475754826, %v1931
    %v1935 = vor.u32 %v1933, %v1934
    %v1936 = vshll.u32 2475754826, %v1930
    %v1937 = vshrl.u32 2131351028, %v1931
    %v1938 = vor.u32 %v1936, %v1937
    %v1939 = vshll.u32 2131351028, %v1930
    %v1940 = vshrl.u32 2102212464, %v1931
    %v1941 = vor.u32 %v1939, %v1940
    %v1942 = vshll.u32 2102212464, %v1930
    %v1943 = vshrl.u32 920167782, %v1931
    %v1944 = vor.u32 %v1942, %v1943
    %v1945 = vshll.u32 920167782, %v1930
    %v1946 = vshrl.u32 1326507024, %v1931
    %v1947 = vor.u32 %v1945, %v1946
    %vm1948 = vcmp.lt.s32.totalorder %v1929, 1
    %vm1949 = vcmp.lt.s32.totalorder %v1929, 2
    %vm1950 = vcmp.lt.s32.totalorder %v1929, 3
    %vm1951 = vcmp.lt.s32.totalorder %v1929, 4
    %v1952 = vsel %vm1948, %v1932, %v1935
    %v1953 = vsel %vm1951, %v1941, 2102212464
    %v1954 = vsel %vm1950, %v1938, %v1953
    %v1955 = vsel %vm1949, %v1952, %v1954
    %v1956 = vsel %vm1948, %v1935, %v1938
    %v1957 = vsel %vm1951, %v1944, 920167782
    %v1958 = vsel %vm1950, %v1941, %v1957
    %v1959 = vsel %vm1949, %v1956, %v1958
    %v1960 = vsel %vm1948, %v1938, %v1941
    %v1961 = vsel %vm1951, %v1947, 1326507024
    %v1962 = vsel %vm1950, %v1944, %v1961
    %v1963 = vsel %vm1949, %v1960, %v1962
    %v1964 = vshll.u32 %v1924, 8
    %v1965 = vmul.u32.u64.compose %v1964, %v1963
    %v1966 = vextract.low.u32 %v1965
    %v1967 = vextract.high.u32 %v1965
    %v1968 = vmul.u32.u64.compose %v1964, %v1959
    %v1969 = vextract.low.u32 %v1968
    %v1970 = vextract.high.u32 %v1968
    %v1971 = vmul.u32 %v1964, %v1955
    %v1972 = vadd.s32 %v1967, %v1969
    %vm1973 = vc.u32 %v1967, %v1969
    %v1974 = vadd.s32 %v1970, 1
    %v1975 = vsel %vm1973, %v1974, %v1970
    %v1976 = vadd.s32 %v1971, %v1975
    %v1977 = vadd.s32 %v1976, 536870912
    %v1978 = vshrl.u32 %v1977, 30
    %v1979 = vshll.u32 %v1978, 30
    %v1980 = vsub.s32 %v1976, %v1979
    %vm1981 = vcmp.lt.s32.totalorder %v1980, 0
    %v1982 = vsub.s32 0, %v1980
    %v1983 = vsel %vm1981, %v1982, %v1980
    %v1984 = vclz %v1983
    %v1985 = vsub.s32 %v1984, 2
    %vm1986 = vcmp.gt.s32.totalorder 0, %v1985
    %v1987 = vsel %vm1986, 0, %v1985
    %v1988 = vsub.s32 32, %v1987
    %v1989 = vshll.u32 %v1980, %v1987
    %v1990 = vshrl.u32 %v1972, %v1988
    %v1991 = vor.u32 %v1989, %v1990
    %v1992 = vsub.s32 4294967266, %v1987
    %v1993 = vadd.s32 %v1992, 127
    %v1994 = vshll.u32 %v1993, 23
    %v1995 = vor.u32 4788187, %v1994
    %v1996 = vand.u32 2147483647, %v1995
    %v1998 = vcvt.s32.f32 %v1991
    %v1999 = vmul.f32 %v1998, %v1996
    %v2000 = vxor.u32 %v1999, 2147483648
    %v2001 = vsel %vm1918, %v2000, %v1999
    %v2002 = vsub.s32 4, %v1978
    %v2003 = vsel %vm1918, %v2002, %v1978
    %v2004 = vsel %vm1917, %v560, %v2001
    %v2005 = vsel %vm1917, 0, %v2003
    %v2006 = vcosq.f32.pop %v2004
    %v2007 = vsinq.f32.pop %v2004
    %vm2008 = vweird.f32 %v560
    %v2009 = vadd.s32 %v2005, 3
    %v2010 = vand.u32 %v2009, 3
    %vm2011 = vcmp.lt.s32.totalorder %v2010, 2
    %vm2012 = vcmp.eq.s32.totalorder %v2010, 0
    %v2013 = vxor.u32 %v2007, 2147483648
    %v2014 = vsel %vm2012, %v2006, %v2013
    %vm2015 = vcmp.eq.s32.totalorder %v2010, 2
    %v2016 = vxor.u32 %v2006, 2147483648
    %v2017 = vsel %vm2015, %v2016, %v2007
    %v2018 = vsel %vm2011, %v2014, %v2017
    %v2019 = vsel %vm2008, nan, %v2018
    %v2020 = vand.u32 2147483647, %v561
    %vm2021 = vcmp.le.f32.partialorder %v2020, 0.7853982
    %vm2022 = vcmp.lt.s32.totalorder %v561, 0
    %v2023 = vand.u32 %v561, 2139095040
    %v2024 = vshrl.u32 %v2023, 23
    %v2025 = vsub.s32 %v2024, 127
    %v2026 = vand.u32 2147483647, %v561
    %v2027 = vand.u32 %v2026, 8388607
    %v2028 = vor.u32 %v2027, 8388608
    %v2029 = vsub.s32 0, %v2028
    %v2030 = vadd.s32 %v2025, 1
    %vm2031 = vcmp.gt.s32.totalorder %v2030, 0
    %v2032 = vsel %vm2031, %v2030, 0
    %v2033 = vshrl.u32 %v2032, 5
    %v2034 = vand.u32 %v2032, 31
    %v2035 = vsub.s32 32, %v2034
    %v2036 = vshrl.u32 683565275, %v2035
    %v2037 = vshll.u32 683565275, %v2034
    %v2038 = vshrl.u32 2475754826, %v2035
    %v2039 = vor.u32 %v2037, %v2038
    %v2040 = vshll.u32 2475754826, %v2034
    %v2041 = vshrl.u32 2131351028, %v2035
    %v2042 = vor.u32 %v2040, %v2041
    %v2043 = vshll.u32 2131351028, %v2034
    %v2044 = vshrl.u32 2102212464, %v2035
    %v2045 = vor.u32 %v2043, %v2044
    %v2046 = vshll.u32 2102212464, %v2034
    %v2047 = vshrl.u32 920167782, %v2035
    %v2048 = vor.u32 %v2046, %v2047
    %v2049 = vshll.u32 920167782, %v2034
    %v2050 = vshrl.u32 1326507024, %v2035
    %v2051 = vor.u32 %v2049, %v2050
    %vm2052 = vcmp.lt.s32.totalorder %v2033, 1
    %vm2053 = vcmp.lt.s32.totalorder %v2033, 2
    %vm2054 = vcmp.lt.s32.totalorder %v2033, 3
    %vm2055 = vcmp.lt.s32.totalorder %v2033, 4
    %v2056 = vsel %vm2052, %v2036, %v2039
    %v2057 = vsel %vm2055, %v2045, 2102212464
    %v2058 = vsel %vm2054, %v2042, %v2057
    %v2059 = vsel %vm2053, %v2056, %v2058
    %v2060 = vsel %vm2052, %v2039, %v2042
    %v2061 = vsel %vm2055, %v2048, 920167782
    %v2062 = vsel %vm2054, %v2045, %v2061
    %v2063 = vsel %vm2053, %v2060, %v2062
    %v2064 = vsel %vm2052, %v2042, %v2045
    %v2065 = vsel %vm2055, %v2051, 1326507024
    %v2066 = vsel %vm2054, %v2048, %v2065
    %v2067 = vsel %vm2053, %v2064, %v2066
    %v2068 = vshll.u32 %v2028, 8
    %v2069 = vmul.u32.u64.compose %v2068, %v2067
    %v2070 = vextract.low.u32 %v2069
    %v2071 = vextract.high.u32 %v2069
    %v2072 = vmul.u32.u64.compose %v2068, %v2063
    %v2073 = vextract.low.u32 %v2072
    %v2074 = vextract.high.u32 %v2072
    %v2075 = vmul.u32 %v2068, %v2059
    %v2076 = vadd.s32 %v2071, %v2073
    %vm2077 = vc.u32 %v2071, %v2073
    %v2078 = vadd.s32 %v2074, 1
    %v2079 = vsel %vm2077, %v2078, %v2074
    %v2080 = vadd.s32 %v2075, %v2079
    %v2081 = vadd.s32 %v2080, 536870912
    %v2082 = vshrl.u32 %v2081, 30
    %v2083 = vshll.u32 %v2082, 30
    %v2084 = vsub.s32 %v2080, %v2083
    %vm2085 = vcmp.lt.s32.totalorder %v2084, 0
    %v2086 = vsub.s32 0, %v2084
    %v2087 = vsel %vm2085, %v2086, %v2084
    %v2088 = vclz %v2087
    %v2089 = vsub.s32 %v2088, 2
    %vm2090 = vcmp.gt.s32.totalorder 0, %v2089
    %v2091 = vsel %vm2090, 0, %v2089
    %v2092 = vsub.s32 32, %v2091
    %v2093 = vshll.u32 %v2084, %v2091
    %v2094 = vshrl.u32 %v2076, %v2092
    %v2095 = vor.u32 %v2093, %v2094
    %v2096 = vsub.s32 4294967266, %v2091
    %v2097 = vadd.s32 %v2096, 127
    %v2098 = vshll.u32 %v2097, 23
    %v2099 = vor.u32 4788187, %v2098
    %v2100 = vand.u32 2147483647, %v2099
    %v2102 = vcvt.s32.f32 %v2095
    %v2103 = vmul.f32 %v2102, %v2100
    %v2104 = vxor.u32 %v2103, 2147483648
    %v2105 = vsel %vm2022, %v2104, %v2103
    %v2106 = vsub.s32 4, %v2082
    %v2107 = vsel %vm2022, %v2106, %v2082
    %v2108 = vsel %vm2021, %v561, %v2105
    %v2109 = vsel %vm2021, 0, %v2107
    %v2110 = vcosq.f32.pop %v2108
    %v2111 = vsinq.f32.pop %v2108
    %vm2112 = vweird.f32 %v561
    %v2113 = vadd.s32 %v2109, 3
    %v2114 = vand.u32 %v2113, 3
    %vm2115 = vcmp.lt.s32.totalorder %v2114, 2
    %vm2116 = vcmp.eq.s32.totalorder %v2114, 0
    %v2117 = vxor.u32 %v2111, 2147483648
    %v2118 = vsel %vm2116, %v2110, %v2117
    %vm2119 = vcmp.eq.s32.totalorder %v2114, 2
    %v2120 = vxor.u32 %v2110, 2147483648
    %v2121 = vsel %vm2119, %v2120, %v2111
    %v2122 = vsel %vm2115, %v2118, %v2121
    %v2123 = vsel %vm2112, nan, %v2122
    %v2124 = vand.u32 2147483647, %v562
    %vm2125 = vcmp.le.f32.partialorder %v2124, 0.7853982
    %vm2126 = vcmp.lt.s32.totalorder %v562, 0
    %v2127 = vand.u32 %v562, 2139095040
    %v2128 = vshrl.u32 %v2127, 23
    %v2129 = vsub.s32 %v2128, 127
    %v2130 = vand.u32 2147483647, %v562
    %v2131 = vand.u32 %v2130, 8388607
    %v2132 = vor.u32 %v2131, 8388608
    %v2133 = vsub.s32 0, %v2132
    %v2134 = vadd.s32 %v2129, 1
    %vm2135 = vcmp.gt.s32.totalorder %v2134, 0
    %v2136 = vsel %vm2135, %v2134, 0
    %v2137 = vshrl.u32 %v2136, 5
    %v2138 = vand.u32 %v2136, 31
    %v2139 = vsub.s32 32, %v2138
    %v2140 = vshrl.u32 683565275, %v2139
    %v2141 = vshll.u32 683565275, %v2138
    %v2142 = vshrl.u32 2475754826, %v2139
    %v2143 = vor.u32 %v2141, %v2142
    %v2144 = vshll.u32 2475754826, %v2138
    %v2145 = vshrl.u32 2131351028, %v2139
    %v2146 = vor.u32 %v2144, %v2145
    %v2147 = vshll.u32 2131351028, %v2138
    %v2148 = vshrl.u32 2102212464, %v2139
    %v2149 = vor.u32 %v2147, %v2148
    %v2150 = vshll.u32 2102212464, %v2138
    %v2151 = vshrl.u32 920167782, %v2139
    %v2152 = vor.u32 %v2150, %v2151
    %v2153 = vshll.u32 920167782, %v2138
    %v2154 = vshrl.u32 1326507024, %v2139
    %v2155 = vor.u32 %v2153, %v2154
    %vm2156 = vcmp.lt.s32.totalorder %v2137, 1
    %vm2157 = vcmp.lt.s32.totalorder %v2137, 2
    %vm2158 = vcmp.lt.s32.totalorder %v2137, 3
    %vm2159 = vcmp.lt.s32.totalorder %v2137, 4
    %v2160 = vsel %vm2156, %v2140, %v2143
    %v2161 = vsel %vm2159, %v2149, 2102212464
    %v2162 = vsel %vm2158, %v2146, %v2161
    %v2163 = vsel %vm2157, %v2160, %v2162
    %v2164 = vsel %vm2156, %v2143, %v2146
    %v2165 = vsel %vm2159, %v2152, 920167782
    %v2166 = vsel %vm2158, %v2149, %v2165
    %v2167 = vsel %vm2157, %v2164, %v2166
    %v2168 = vsel %vm2156, %v2146, %v2149
    %v2169 = vsel %vm2159, %v2155, 1326507024
    %v2170 = vsel %vm2158, %v2152, %v2169
    %v2171 = vsel %vm2157, %v2168, %v2170
    %v2172 = vshll.u32 %v2132, 8
    %v2173 = vmul.u32.u64.compose %v2172, %v2171
    %v2174 = vextract.low.u32 %v2173
    %v2175 = vextract.high.u32 %v2173
    %v2176 = vmul.u32.u64.compose %v2172, %v2167
    %v2177 = vextract.low.u32 %v2176
    %v2178 = vextract.high.u32 %v2176
    %v2179 = vmul.u32 %v2172, %v2163
    %v2180 = vadd.s32 %v2175, %v2177
    %vm2181 = vc.u32 %v2175, %v2177
    %v2182 = vadd.s32 %v2178, 1
    %v2183 = vsel %vm2181, %v2182, %v2178
    %v2184 = vadd.s32 %v2179, %v2183
    %v2185 = vadd.s32 %v2184, 536870912
    %v2186 = vshrl.u32 %v2185, 30
    %v2187 = vshll.u32 %v2186, 30
    %v2188 = vsub.s32 %v2184, %v2187
    %vm2189 = vcmp.lt.s32.totalorder %v2188, 0
    %v2190 = vsub.s32 0, %v2188
    %v2191 = vsel %vm2189, %v2190, %v2188
    %v2192 = vclz %v2191
    %v2193 = vsub.s32 %v2192, 2
    %vm2194 = vcmp.gt.s32.totalorder 0, %v2193
    %v2195 = vsel %vm2194, 0, %v2193
    %v2196 = vsub.s32 32, %v2195
    %v2197 = vshll.u32 %v2188, %v2195
    %v2198 = vshrl.u32 %v2180, %v2196
    %v2199 = vor.u32 %v2197, %v2198
    %v2200 = vsub.s32 4294967266, %v2195
    %v2201 = vadd.s32 %v2200, 127
    %v2202 = vshll.u32 %v2201, 23
    %v2203 = vor.u32 4788187, %v2202
    %v2204 = vand.u32 2147483647, %v2203
    %v2206 = vcvt.s32.f32 %v2199
    %v2207 = vmul.f32 %v2206, %v2204
    %v2208 = vxor.u32 %v2207, 2147483648
    %v2209 = vsel %vm2126, %v2208, %v2207
    %v2210 = vsub.s32 4, %v2186
    %v2211 = vsel %vm2126, %v2210, %v2186
    %v2212 = vsel %vm2125, %v562, %v2209
    %v2213 = vsel %vm2125, 0, %v2211
    %v2214 = vcosq.f32.pop %v2212
    %v2215 = vsinq.f32.pop %v2212
    %vm2216 = vweird.f32 %v562
    %v2217 = vadd.s32 %v2213, 3
    %v2218 = vand.u32 %v2217, 3
    %vm2219 = vcmp.lt.s32.totalorder %v2218, 2
    %vm2220 = vcmp.eq.s32.totalorder %v2218, 0
    %v2221 = vxor.u32 %v2215, 2147483648
    %v2222 = vsel %vm2220, %v2214, %v2221
    %vm2223 = vcmp.eq.s32.totalorder %v2218, 2
    %v2224 = vxor.u32 %v2214, 2147483648
    %v2225 = vsel %vm2223, %v2224, %v2215
    %v2226 = vsel %vm2219, %v2222, %v2225
    %v2227 = vsel %vm2216, nan, %v2226
    %v2228 = vsel %vm563, 1, 0
    %vm2229 = vcmp.eq.s32.totalorder %v2228, 1
    %v2246 = vrot.slane %v667, 4
    %v2247 = vrot.slane %v667, 5
    %v2248 = vrot.slane %v667, 6
    %v2249 = vrot.slane %v667, 7
    %v2250 = vrot.slane %v667, 1
    %v2251 = vrot.slane %v667, 2
    %v2252 = vrot.slane %v667, 3
    %v2253 = vrot.slane %v771, 4
    %v2254 = vrot.slane %v771, 5
    %v2255 = vrot.slane %v771, 6
    %v2256 = vrot.slane %v771, 7
    %v2257 = vrot.slane %v771, 1
    %v2258 = vrot.slane %v771, 2
    %v2259 = vrot.slane %v771, 3
    %v2260 = vrot.slane %v875, 4
    %v2261 = vrot.slane %v875, 5
    %v2262 = vrot.slane %v875, 6
    %v2263 = vrot.slane %v875, 7
    %v2264 = vrot.slane %v875, 1
    %v2265 = vrot.slane %v875, 2
    %v2266 = vrot.slane %v875, 3
    %v2267 = vrot.slane %v979, 4
    %v2268 = vrot.slane %v979, 5
    %v2269 = vrot.slane %v979, 6
    %v2270 = vrot.slane %v979, 7
    %v2271 = vrot.slane %v979, 1
    %v2272 = vrot.slane %v979, 2
    %v2273 = vrot.slane %v979, 3
    %v2274 = vrot.slane %v1083, 4
    %v2275 = vrot.slane %v1083, 5
    %v2276 = vrot.slane %v1083, 6
    %v2277 = vrot.slane %v1083, 7
    %v2278 = vrot.slane %v1083, 1
    %v2279 = vrot.slane %v1083, 2
    %v2280 = vrot.slane %v1083, 3
    %v2281 = vrot.slane %v1187, 4
    %v2282 = vrot.slane %v1187, 5
    %v2283 = vrot.slane %v1187, 6
    %v2284 = vrot.slane %v1187, 7
    %v2285 = vrot.slane %v1187, 1
    %v2286 = vrot.slane %v1187, 2
    %v2287 = vrot.slane %v1187, 3
    %v2288 = vrot.slane %v1291, 4
    %v2289 = vrot.slane %v1291, 5
    %v2290 = vrot.slane %v1291, 6
    %v2291 = vrot.slane %v1291, 7
    %v2292 = vrot.slane %v1291, 1
    %v2293 = vrot.slane %v1291, 2
    %v2294 = vrot.slane %v1291, 3
    %v2295 = vrot.slane %v1395, 4
    %v2296 = vrot.slane %v1395, 5
    %v2297 = vrot.slane %v1395, 6
    %v2298 = vrot.slane %v1395, 7
    %v2299 = vrot.slane %v1395, 1
    %v2300 = vrot.slane %v1395, 2
    %v2301 = vrot.slane %v1395, 3
    %v2302 = vrot.slane %v1499, 4
    %v2303 = vrot.slane %v1499, 5
    %v2304 = vrot.slane %v1499, 6
    %v2305 = vrot.slane %v1499, 7
    %v2306 = vrot.slane %v1499, 1
    %v2307 = vrot.slane %v1499, 2
    %v2308 = vrot.slane %v1499, 3
    %v2309 = vrot.slane %v1603, 4
    %v2310 = vrot.slane %v1603, 5
    %v2311 = vrot.slane %v1603, 6
    %v2312 = vrot.slane %v1603, 7
    %v2313 = vrot.slane %v1603, 1
    %v2314 = vrot.slane %v1603, 2
    %v2315 = vrot.slane %v1603, 3
    %v2316 = vrot.slane %v1707, 4
    %v2317 = vrot.slane %v1707, 5
    %v2318 = vrot.slane %v1707, 6
    %v2319 = vrot.slane %v1707, 7
    %v2320 = vrot.slane %v1707, 1
    %v2321 = vrot.slane %v1707, 2
    %v2322 = vrot.slane %v1707, 3
    %v2323 = vrot.slane %v1811, 4
    %v2324 = vrot.slane %v1811, 5
    %v2325 = vrot.slane %v1811, 6
    %v2326 = vrot.slane %v1811, 7
    %v2327 = vrot.slane %v1811, 1
    %v2328 = vrot.slane %v1811, 2
    %v2329 = vrot.slane %v1811, 3
    %v2330 = vrot.slane %v1915, 4
    %v2331 = vrot.slane %v1915, 5
    %v2332 = vrot.slane %v1915, 6
    %v2333 = vrot.slane %v1915, 7
    %v2334 = vrot.slane %v1915, 1
    %v2335 = vrot.slane %v1915, 2
    %v2336 = vrot.slane %v1915, 3
    %v2337 = vrot.slane %v2019, 4
    %v2338 = vrot.slane %v2019, 5
    %v2339 = vrot.slane %v2019, 6
    %v2340 = vrot.slane %v2019, 7
    %v2341 = vrot.slane %v2019, 1
    %v2342 = vrot.slane %v2019, 2
    %v2343 = vrot.slane %v2019, 3
    %v2344 = vrot.slane %v2123, 4
    %v2345 = vrot.slane %v2123, 5
    %v2346 = vrot.slane %v2123, 6
    %v2347 = vrot.slane %v2123, 7
    %v2348 = vrot.slane %v2123, 1
    %v2349 = vrot.slane %v2123, 2
    %v2350 = vrot.slane %v2123, 3
    %v2351 = vrot.slane %v2227, 4
    %v2352 = vrot.slane %v2227, 5
    %v2353 = vrot.slane %v2227, 6
    %v2354 = vrot.slane %v2227, 7
    %v2355 = vrot.slane %v2227, 1
    %v2356 = vrot.slane %v2227, 2
    %v2357 = vrot.slane %v2227, 3
    %v2502 = vrot.slane %v547, 4
    %v2503 = vrot.slane %v547, 5
    %v2504 = vrot.slane %v547, 6
    %v2505 = vrot.slane %v547, 7
    %v2506 = vrot.slane %v547, 1
    %v2507 = vrot.slane %v547, 2
    %v2508 = vrot.slane %v547, 3
    %v2509 = vrot.slane %v548, 4
    %v2510 = vrot.slane %v548, 5
    %v2511 = vrot.slane %v548, 6
    %v2512 = vrot.slane %v548, 7
    %v2513 = vrot.slane %v548, 1
    %v2514 = vrot.slane %v548, 2
    %v2515 = vrot.slane %v548, 3
    %v2516 = vrot.slane %v549, 4
    %v2517 = vrot.slane %v549, 5
    %v2518 = vrot.slane %v549, 6
    %v2519 = vrot.slane %v549, 7
    %v2520 = vrot.slane %v549, 1
    %v2521 = vrot.slane %v549, 2
    %v2522 = vrot.slane %v549, 3
    %v2523 = vrot.slane %v550, 4
    %v2524 = vrot.slane %v550, 5
    %v2525 = vrot.slane %v550, 6
    %v2526 = vrot.slane %v550, 7
    %v2527 = vrot.slane %v550, 1
    %v2528 = vrot.slane %v550, 2
    %v2529 = vrot.slane %v550, 3
    %v2530 = vrot.slane %v551, 4
    %v2531 = vrot.slane %v551, 5
    %v2532 = vrot.slane %v551, 6
    %v2533 = vrot.slane %v551, 7
    %v2534 = vrot.slane %v551, 1
    %v2535 = vrot.slane %v551, 2
    %v2536 = vrot.slane %v551, 3
    %v2537 = vrot.slane %v552, 4
    %v2538 = vrot.slane %v552, 5
    %v2539 = vrot.slane %v552, 6
    %v2540 = vrot.slane %v552, 7
    %v2541 = vrot.slane %v552, 1
    %v2542 = vrot.slane %v552, 2
    %v2543 = vrot.slane %v552, 3
    %v2544 = vrot.slane %v553, 4
    %v2545 = vrot.slane %v553, 5
    %v2546 = vrot.slane %v553, 6
    %v2547 = vrot.slane %v553, 7
    %v2548 = vrot.slane %v553, 1
    %v2549 = vrot.slane %v553, 2
    %v2550 = vrot.slane %v553, 3
    %v2551 = vrot.slane %v554, 4
    %v2552 = vrot.slane %v554, 5
    %v2553 = vrot.slane %v554, 6
    %v2554 = vrot.slane %v554, 7
    %v2555 = vrot.slane %v554, 1
    %v2556 = vrot.slane %v554, 2
    %v2557 = vrot.slane %v554, 3
    %v2558 = vrot.slane %v555, 4
    %v2559 = vrot.slane %v555, 5
    %v2560 = vrot.slane %v555, 6
    %v2561 = vrot.slane %v555, 7
    %v2562 = vrot.slane %v555, 1
    %v2563 = vrot.slane %v555, 2
    %v2564 = vrot.slane %v555, 3
    %v2565 = vrot.slane %v556, 4
    %v2566 = vrot.slane %v556, 5
    %v2567 = vrot.slane %v556, 6
    %v2568 = vrot.slane %v556, 7
    %v2569 = vrot.slane %v556, 1
    %v2570 = vrot.slane %v556, 2
    %v2571 = vrot.slane %v556, 3
    %v2572 = vrot.slane %v557, 4
    %v2573 = vrot.slane %v557, 5
    %v2574 = vrot.slane %v557, 6
    %v2575 = vrot.slane %v557, 7
    %v2576 = vrot.slane %v557, 1
    %v2577 = vrot.slane %v557, 2
    %v2578 = vrot.slane %v557, 3
    %v2579 = vrot.slane %v558, 4
    %v2580 = vrot.slane %v558, 5
    %v2581 = vrot.slane %v558, 6
    %v2582 = vrot.slane %v558, 7
    %v2583 = vrot.slane %v558, 1
    %v2584 = vrot.slane %v558, 2
    %v2585 = vrot.slane %v558, 3
    %v2586 = vrot.slane %v559, 4
    %v2587 = vrot.slane %v559, 5
    %v2588 = vrot.slane %v559, 6
    %v2589 = vrot.slane %v559, 7
    %v2590 = vrot.slane %v559, 1
    %v2591 = vrot.slane %v559, 2
    %v2592 = vrot.slane %v559, 3
    %v2593 = vrot.slane %v560, 4
    %v2594 = vrot.slane %v560, 5
    %v2595 = vrot.slane %v560, 6
    %v2596 = vrot.slane %v560, 7
    %v2597 = vrot.slane %v560, 1
    %v2598 = vrot.slane %v560, 2
    %v2599 = vrot.slane %v560, 3
    %v2600 = vrot.slane %v561, 4
    %v2601 = vrot.slane %v561, 5
    %v2602 = vrot.slane %v561, 6
    %v2603 = vrot.slane %v561, 7
    %v2604 = vrot.slane %v561, 1
    %v2605 = vrot.slane %v561, 2
    %v2606 = vrot.slane %v561, 3
    %v2607 = vrot.slane %v562, 4
    %v2608 = vrot.slane %v562, 5
    %v2609 = vrot.slane %v562, 6
    %v2610 = vrot.slane %v562, 7
    %v2611 = vrot.slane %v562, 1
    %v2612 = vrot.slane %v562, 2
    %v2613 = vrot.slane %v562, 3
    %v2742 = vsel %vm2229, %v2246, %v2502
    %v2743 = vsel %vm2229, %v2247, %v2503
    %v2744 = vsel %vm2229, %v2248, %v2504
    %v2745 = vsel %vm2229, %v2249, %v2505
    %v2746 = vsel %vm2229, %v667, %v547
    %v2747 = vsel %vm2229, %v2250, %v2506
    %v2748 = vsel %vm2229, %v2251, %v2507
    %v2749 = vsel %vm2229, %v2252, %v2508
    %v2750 = vsel %vm2229, %v2253, %v2509
    %v2751 = vsel %vm2229, %v2254, %v2510
    %v2752 = vsel %vm2229, %v2255, %v2511
    %v2753 = vsel %vm2229, %v2256, %v2512
    %v2754 = vsel %vm2229, %v771, %v548
    %v2755 = vsel %vm2229, %v2257, %v2513
    %v2756 = vsel %vm2229, %v2258, %v2514
    %v2757 = vsel %vm2229, %v2259, %v2515
    %v2758 = vsel %vm2229, %v2260, %v2516
    %v2759 = vsel %vm2229, %v2261, %v2517
    %v2760 = vsel %vm2229, %v2262, %v2518
    %v2761 = vsel %vm2229, %v2263, %v2519
    %v2762 = vsel %vm2229, %v875, %v549
    %v2763 = vsel %vm2229, %v2264, %v2520
    %v2764 = vsel %vm2229, %v2265, %v2521
    %v2765 = vsel %vm2229, %v2266, %v2522
    %v2766 = vsel %vm2229, %v2267, %v2523
    %v2767 = vsel %vm2229, %v2268, %v2524
    %v2768 = vsel %vm2229, %v2269, %v2525
    %v2769 = vsel %vm2229, %v2270, %v2526
    %v2770 = vsel %vm2229, %v979, %v550
    %v2771 = vsel %vm2229, %v2271, %v2527
    %v2772 = vsel %vm2229, %v2272, %v2528
    %v2773 = vsel %vm2229, %v2273, %v2529
    %v2774 = vsel %vm2229, %v2274, %v2530
    %v2775 = vsel %vm2229, %v2275, %v2531
    %v2776 = vsel %vm2229, %v2276, %v2532
    %v2777 = vsel %vm2229, %v2277, %v2533
    %v2778 = vsel %vm2229, %v1083, %v551
    %v2779 = vsel %vm2229, %v2278, %v2534
    %v2780 = vsel %vm2229, %v2279, %v2535
    %v2781 = vsel %vm2229, %v2280, %v2536
    %v2782 = vsel %vm2229, %v2281, %v2537
    %v2783 = vsel %vm2229, %v2282, %v2538
    %v2784 = vsel %vm2229, %v2283, %v2539
    %v2785 = vsel %vm2229, %v2284, %v2540
    %v2786 = vsel %vm2229, %v1187, %v552
    %v2787 = vsel %vm2229, %v2285, %v2541
    %v2788 = vsel %vm2229, %v2286, %v2542
    %v2789 = vsel %vm2229, %v2287, %v2543
    %v2790 = vsel %vm2229, %v2288, %v2544
    %v2791 = vsel %vm2229, %v2289, %v2545
    %v2792 = vsel %vm2229, %v2290, %v2546
    %v2793 = vsel %vm2229, %v2291, %v2547
    %v2794 = vsel %vm2229, %v1291, %v553
    %v2795 = vsel %vm2229, %v2292, %v2548
    %v2796 = vsel %vm2229, %v2293, %v2549
    %v2797 = vsel %vm2229, %v2294, %v2550
    %v2798 = vsel %vm2229, %v2295, %v2551
    %v2799 = vsel %vm2229, %v2296, %v2552
    %v2800 = vsel %vm2229, %v2297, %v2553
    %v2801 = vsel %vm2229, %v2298, %v2554
    %v2802 = vsel %vm2229, %v1395, %v554
    %v2803 = vsel %vm2229, %v2299, %v2555
    %v2804 = vsel %vm2229, %v2300, %v2556
    %v2805 = vsel %vm2229, %v2301, %v2557
    %v2806 = vsel %vm2229, %v2302, %v2558
    %v2807 = vsel %vm2229, %v2303, %v2559
    %v2808 = vsel %vm2229, %v2304, %v2560
    %v2809 = vsel %vm2229, %v2305, %v2561
    %v2810 = vsel %vm2229, %v1499, %v555
    %v2811 = vsel %vm2229, %v2306, %v2562
    %v2812 = vsel %vm2229, %v2307, %v2563
    %v2813 = vsel %vm2229, %v2308, %v2564
    %v2814 = vsel %vm2229, %v2309, %v2565
    %v2815 = vsel %vm2229, %v2310, %v2566
    %v2816 = vsel %vm2229, %v2311, %v2567
    %v2817 = vsel %vm2229, %v2312, %v2568
    %v2818 = vsel %vm2229, %v1603, %v556
    %v2819 = vsel %vm2229, %v2313, %v2569
    %v2820 = vsel %vm2229, %v2314, %v2570
    %v2821 = vsel %vm2229, %v2315, %v2571
    %v2822 = vsel %vm2229, %v2316, %v2572
    %v2823 = vsel %vm2229, %v2317, %v2573
    %v2824 = vsel %vm2229, %v2318, %v2574
    %v2825 = vsel %vm2229, %v2319, %v2575
    %v2826 = vsel %vm2229, %v1707, %v557
    %v2827 = vsel %vm2229, %v2320, %v2576
    %v2828 = vsel %vm2229, %v2321, %v2577
    %v2829 = vsel %vm2229, %v2322, %v2578
    %v2830 = vsel %vm2229, %v2323, %v2579
    %v2831 = vsel %vm2229, %v2324, %v2580
    %v2832 = vsel %vm2229, %v2325, %v2581
    %v2833 = vsel %vm2229, %v2326, %v2582
    %v2834 = vsel %vm2229, %v1811, %v558
    %v2835 = vsel %vm2229, %v2327, %v2583
    %v2836 = vsel %vm2229, %v2328, %v2584
    %v2837 = vsel %vm2229, %v2329, %v2585
    %v2838 = vsel %vm2229, %v2330, %v2586
    %v2839 = vsel %vm2229, %v2331, %v2587
    %v2840 = vsel %vm2229, %v2332, %v2588
    %v2841 = vsel %vm2229, %v2333, %v2589
    %v2842 = vsel %vm2229, %v1915, %v559
    %v2843 = vsel %vm2229, %v2334, %v2590
    %v2844 = vsel %vm2229, %v2335, %v2591
    %v2845 = vsel %vm2229, %v2336, %v2592
    %v2846 = vsel %vm2229, %v2337, %v2593
    %v2847 = vsel %vm2229, %v2338, %v2594
    %v2848 = vsel %vm2229, %v2339, %v2595
    %v2849 = vsel %vm2229, %v2340, %v2596
    %v2850 = vsel %vm2229, %v2019, %v560
    %v2851 = vsel %vm2229, %v2341, %v2597
    %v2852 = vsel %vm2229, %v2342, %v2598
    %v2853 = vsel %vm2229, %v2343, %v2599
    %v2854 = vsel %vm2229, %v2344, %v2600
    %v2855 = vsel %vm2229, %v2345, %v2601
    %v2856 = vsel %vm2229, %v2346, %v2602
    %v2857 = vsel %vm2229, %v2347, %v2603
    %v2858 = vsel %vm2229, %v2123, %v561
    %v2859 = vsel %vm2229, %v2348, %v2604
    %v2860 = vsel %vm2229, %v2349, %v2605
    %v2861 = vsel %vm2229, %v2350, %v2606
    %v2862 = vsel %vm2229, %v2351, %v2607
    %v2863 = vsel %vm2229, %v2352, %v2608
    %v2864 = vsel %vm2229, %v2353, %v2609
    %v2865 = vsel %vm2229, %v2354, %v2610
    %v2866 = vsel %vm2229, %v2227, %v562
    %v2867 = vsel %vm2229, %v2355, %v2611
    %v2868 = vsel %vm2229, %v2356, %v2612
    %v2869 = vsel %vm2229, %v2357, %v2613
    %v2998 = vrot.slane %v2742, 4
    %v2999 = vrot.slane %v2743, 3
    %vm3000 = vcmask 1041409
    %v3001 = vsel %vm3000, %v2999, %v2998
    %v3002 = vrot.slane %v2744, 2
    %vm3003 = vcmask 1042434
    %v3004 = vsel %vm3003, %v3002, %v3001
    %v3005 = vrot.slane %v2745, 1
    %vm3006 = vcmask 1043459
    %v3007 = vsel %vm3006, %v3005, %v3004
    %vm3008 = vcmask 1044484
    %v3009 = vsel %vm3008, %v2746, %v3007
    %v3010 = vrot.slane %v2747, 7
    %vm3011 = vcmask 1045509
    %v3012 = vsel %vm3011, %v3010, %v3009
    %v3013 = vrot.slane %v2748, 6
    %vm3014 = vcmask 1046534
    %v3015 = vsel %vm3014, %v3013, %v3012
    %v3016 = vrot.slane %v2749, 5
    %vm3017 = vcmask 1047559
    %v3018 = vsel %vm3017, %v3016, %v3015
    %v3019 = vrot.slane %v2750, 4
    %v3020 = vrot.slane %v2751, 3
    %v3021 = vsel %vm3000, %v3020, %v3019
    %v3022 = vrot.slane %v2752, 2
    %v3023 = vsel %vm3003, %v3022, %v3021
    %v3024 = vrot.slane %v2753, 1
    %v3025 = vsel %vm3006, %v3024, %v3023
    %v3026 = vsel %vm3008, %v2754, %v3025
    %v3027 = vrot.slane %v2755, 7
    %v3028 = vsel %vm3011, %v3027, %v3026
    %v3029 = vrot.slane %v2756, 6
    %v3030 = vsel %vm3014, %v3029, %v3028
    %v3031 = vrot.slane %v2757, 5
    %v3032 = vsel %vm3017, %v3031, %v3030
    %v3033 = vrot.slane %v2758, 4
    %v3034 = vrot.slane %v2759, 3
    %v3035 = vsel %vm3000, %v3034, %v3033
    %v3036 = vrot.slane %v2760, 2
    %v3037 = vsel %vm3003, %v3036, %v3035
    %v3038 = vrot.slane %v2761, 1
    %v3039 = vsel %vm3006, %v3038, %v3037
    %v3040 = vsel %vm3008, %v2762, %v3039
    %v3041 = vrot.slane %v2763, 7
    %v3042 = vsel %vm3011, %v3041, %v3040
    %v3043 = vrot.slane %v2764, 6
    %v3044 = vsel %vm3014, %v3043, %v3042
    %v3045 = vrot.slane %v2765, 5
    %v3046 = vsel %vm3017, %v3045, %v3044
    %v3047 = vrot.slane %v2766, 4
    %v3048 = vrot.slane %v2767, 3
    %v3049 = vsel %vm3000, %v3048, %v3047
    %v3050 = vrot.slane %v2768, 2
    %v3051 = vsel %vm3003, %v3050, %v3049
    %v3052 = vrot.slane %v2769, 1
    %v3053 = vsel %vm3006, %v3052, %v3051
    %v3054 = vsel %vm3008, %v2770, %v3053
    %v3055 = vrot.slane %v2771, 7
    %v3056 = vsel %vm3011, %v3055, %v3054
    %v3057 = vrot.slane %v2772, 6
    %v3058 = vsel %vm3014, %v3057, %v3056
    %v3059 = vrot.slane %v2773, 5
    %v3060 = vsel %vm3017, %v3059, %v3058
    %v3061 = vrot.slane %v2774, 4
    %v3062 = vrot.slane %v2775, 3
    %v3063 = vsel %vm3000, %v3062, %v3061
    %v3064 = vrot.slane %v2776, 2
    %v3065 = vsel %vm3003, %v3064, %v3063
    %v3066 = vrot.slane %v2777, 1
    %v3067 = vsel %vm3006, %v3066, %v3065
    %v3068 = vsel %vm3008, %v2778, %v3067
    %v3069 = vrot.slane %v2779, 7
    %v3070 = vsel %vm3011, %v3069, %v3068
    %v3071 = vrot.slane %v2780, 6
    %v3072 = vsel %vm3014, %v3071, %v3070
    %v3073 = vrot.slane %v2781, 5
    %v3074 = vsel %vm3017, %v3073, %v3072
    %v3075 = vrot.slane %v2782, 4
    %v3076 = vrot.slane %v2783, 3
    %v3077 = vsel %vm3000, %v3076, %v3075
    %v3078 = vrot.slane %v2784, 2
    %v3079 = vsel %vm3003, %v3078, %v3077
    %v3080 = vrot.slane %v2785, 1
    %v3081 = vsel %vm3006, %v3080, %v3079
    %v3082 = vsel %vm3008, %v2786, %v3081
    %v3083 = vrot.slane %v2787, 7
    %v3084 = vsel %vm3011, %v3083, %v3082
    %v3085 = vrot.slane %v2788, 6
    %v3086 = vsel %vm3014, %v3085, %v3084
    %v3087 = vrot.slane %v2789, 5
    %v3088 = vsel %vm3017, %v3087, %v3086
    %v3089 = vrot.slane %v2790, 4
    %v3090 = vrot.slane %v2791, 3
    %v3091 = vsel %vm3000, %v3090, %v3089
    %v3092 = vrot.slane %v2792, 2
    %v3093 = vsel %vm3003, %v3092, %v3091
    %v3094 = vrot.slane %v2793, 1
    %v3095 = vsel %vm3006, %v3094, %v3093
    %v3096 = vsel %vm3008, %v2794, %v3095
    %v3097 = vrot.slane %v2795, 7
    %v3098 = vsel %vm3011, %v3097, %v3096
    %v3099 = vrot.slane %v2796, 6
    %v3100 = vsel %vm3014, %v3099, %v3098
    %v3101 = vrot.slane %v2797, 5
    %v3102 = vsel %vm3017, %v3101, %v3100
    %v3103 = vrot.slane %v2798, 4
    %v3104 = vrot.slane %v2799, 3
    %v3105 = vsel %vm3000, %v3104, %v3103
    %v3106 = vrot.slane %v2800, 2
    %v3107 = vsel %vm3003, %v3106, %v3105
    %v3108 = vrot.slane %v2801, 1
    %v3109 = vsel %vm3006, %v3108, %v3107
    %v3110 = vsel %vm3008, %v2802, %v3109
    %v3111 = vrot.slane %v2803, 7
    %v3112 = vsel %vm3011, %v3111, %v3110
    %v3113 = vrot.slane %v2804, 6
    %v3114 = vsel %vm3014, %v3113, %v3112
    %v3115 = vrot.slane %v2805, 5
    %v3116 = vsel %vm3017, %v3115, %v3114
    %v3117 = vrot.slane %v2806, 4
    %v3118 = vrot.slane %v2807, 3
    %v3119 = vsel %vm3000, %v3118, %v3117
    %v3120 = vrot.slane %v2808, 2
    %v3121 = vsel %vm3003, %v3120, %v3119
    %v3122 = vrot.slane %v2809, 1
    %v3123 = vsel %vm3006, %v3122, %v3121
    %v3124 = vsel %vm3008, %v2810, %v3123
    %v3125 = vrot.slane %v2811, 7
    %v3126 = vsel %vm3011, %v3125, %v3124
    %v3127 = vrot.slane %v2812, 6
    %v3128 = vsel %vm3014, %v3127, %v3126
    %v3129 = vrot.slane %v2813, 5
    %v3130 = vsel %vm3017, %v3129, %v3128
    %v3131 = vrot.slane %v2814, 4
    %v3132 = vrot.slane %v2815, 3
    %v3133 = vsel %vm3000, %v3132, %v3131
    %v3134 = vrot.slane %v2816, 2
    %v3135 = vsel %vm3003, %v3134, %v3133
    %v3136 = vrot.slane %v2817, 1
    %v3137 = vsel %vm3006, %v3136, %v3135
    %v3138 = vsel %vm3008, %v2818, %v3137
    %v3139 = vrot.slane %v2819, 7
    %v3140 = vsel %vm3011, %v3139, %v3138
    %v3141 = vrot.slane %v2820, 6
    %v3142 = vsel %vm3014, %v3141, %v3140
    %v3143 = vrot.slane %v2821, 5
    %v3144 = vsel %vm3017, %v3143, %v3142
    %v3145 = vrot.slane %v2822, 4
    %v3146 = vrot.slane %v2823, 3
    %v3147 = vsel %vm3000, %v3146, %v3145
    %v3148 = vrot.slane %v2824, 2
    %v3149 = vsel %vm3003, %v3148, %v3147
    %v3150 = vrot.slane %v2825, 1
    %v3151 = vsel %vm3006, %v3150, %v3149
    %v3152 = vsel %vm3008, %v2826, %v3151
    %v3153 = vrot.slane %v2827, 7
    %v3154 = vsel %vm3011, %v3153, %v3152
    %v3155 = vrot.slane %v2828, 6
    %v3156 = vsel %vm3014, %v3155, %v3154
    %v3157 = vrot.slane %v2829, 5
    %v3158 = vsel %vm3017, %v3157, %v3156
    %v3159 = vrot.slane %v2830, 4
    %v3160 = vrot.slane %v2831, 3
    %v3161 = vsel %vm3000, %v3160, %v3159
    %v3162 = vrot.slane %v2832, 2
    %v3163 = vsel %vm3003, %v3162, %v3161
    %v3164 = vrot.slane %v2833, 1
    %v3165 = vsel %vm3006, %v3164, %v3163
    %v3166 = vsel %vm3008, %v2834, %v3165
    %v3167 = vrot.slane %v2835, 7
    %v3168 = vsel %vm3011, %v3167, %v3166
    %v3169 = vrot.slane %v2836, 6
    %v3170 = vsel %vm3014, %v3169, %v3168
    %v3171 = vrot.slane %v2837, 5
    %v3172 = vsel %vm3017, %v3171, %v3170
    %v3173 = vrot.slane %v2838, 4
    %v3174 = vrot.slane %v2839, 3
    %v3175 = vsel %vm3000, %v3174, %v3173
    %v3176 = vrot.slane %v2840, 2
    %v3177 = vsel %vm3003, %v3176, %v3175
    %v3178 = vrot.slane %v2841, 1
    %v3179 = vsel %vm3006, %v3178, %v3177
    %v3180 = vsel %vm3008, %v2842, %v3179
    %v3181 = vrot.slane %v2843, 7
    %v3182 = vsel %vm3011, %v3181, %v3180
    %v3183 = vrot.slane %v2844, 6
    %v3184 = vsel %vm3014, %v3183, %v3182
    %v3185 = vrot.slane %v2845, 5
    %v3186 = vsel %vm3017, %v3185, %v3184
    %v3187 = vrot.slane %v2846, 4
    %v3188 = vrot.slane %v2847, 3
    %v3189 = vsel %vm3000, %v3188, %v3187
    %v3190 = vrot.slane %v2848, 2
    %v3191 = vsel %vm3003, %v3190, %v3189
    %v3192 = vrot.slane %v2849, 1
    %v3193 = vsel %vm3006, %v3192, %v3191
    %v3194 = vsel %vm3008, %v2850, %v3193
    %v3195 = vrot.slane %v2851, 7
    %v3196 = vsel %vm3011, %v3195, %v3194
    %v3197 = vrot.slane %v2852, 6
    %v3198 = vsel %vm3014, %v3197, %v3196
    %v3199 = vrot.slane %v2853, 5
    %v3200 = vsel %vm3017, %v3199, %v3198
    %v3201 = vrot.slane %v2854, 4
    %v3202 = vrot.slane %v2855, 3
    %v3203 = vsel %vm3000, %v3202, %v3201
    %v3204 = vrot.slane %v2856, 2
    %v3205 = vsel %vm3003, %v3204, %v3203
    %v3206 = vrot.slane %v2857, 1
    %v3207 = vsel %vm3006, %v3206, %v3205
    %v3208 = vsel %vm3008, %v2858, %v3207
    %v3209 = vrot.slane %v2859, 7
    %v3210 = vsel %vm3011, %v3209, %v3208
    %v3211 = vrot.slane %v2860, 6
    %v3212 = vsel %vm3014, %v3211, %v3210
    %v3213 = vrot.slane %v2861, 5
    %v3214 = vsel %vm3017, %v3213, %v3212
    %v3215 = vrot.slane %v2862, 4
    %v3216 = vrot.slane %v2863, 3
    %v3217 = vsel %vm3000, %v3216, %v3215
    %v3218 = vrot.slane %v2864, 2
    %v3219 = vsel %vm3003, %v3218, %v3217
    %v3220 = vrot.slane %v2865, 1
    %v3221 = vsel %vm3006, %v3220, %v3219
    %v3222 = vsel %vm3008, %v2866, %v3221
    %v3223 = vrot.slane %v2867, 7
    %v3224 = vsel %vm3011, %v3223, %v3222
    %v3225 = vrot.slane %v2868, 6
    %v3226 = vsel %vm3014, %v3225, %v3224
    %v3227 = vrot.slane %v2869, 5
    %v3228 = vsel %vm3017, %v3227, %v3226
    %v3245 = vadd.f32 %v443, %v3018
    %v3246 = vadd.f32 %v444, %v3032
    %v3247 = vadd.f32 %v445, %v3046
    %v3248 = vadd.f32 %v446, %v3060
    %v3249 = vadd.f32 %v447, %v3074
    %v3250 = vadd.f32 %v448, %v3088
    %v3251 = vadd.f32 %v449, %v3102
    %v3252 = vadd.f32 %v450, %v3116
    %v3253 = vadd.f32 %v451, %v3130
    %v3254 = vadd.f32 %v452, %v3144
    %v3255 = vadd.f32 %v453, %v3158
    %v3256 = vadd.f32 %v454, %v3172
    %v3257 = vadd.f32 %v455, %v3186
    %v3258 = vadd.f32 %v456, %v3200
    %v3259 = vadd.f32 %v457, %v3214
    %v3260 = vadd.f32 %v458, %v3228
    %vm3263 = vcmask 1045504
    %v3264 = vrot.slane %v34, 2
    %v3265 = vrot.slane %v35, 2
    %v3266 = vsel %vm3263, %v3264, %v3265
    %v3268 = vadd.f32 %v3245, %v3266
    %v3269 = vadd.f32 %v3246, %v3266
    %v3270 = vadd.f32 %v3247, %v3266
    %v3271 = vadd.f32 %v3248, %v3266
    %v3272 = vadd.f32 %v3249, %v3266
    %v3273 = vadd.f32 %v3250, %v3266
    %v3274 = vadd.f32 %v3251, %v3266
    %v3275 = vadd.f32 %v3252, %v3266
    %v3276 = vadd.f32 %v3253, %v3266
    %v3277 = vadd.f32 %v3254, %v3266
    %v3278 = vadd.f32 %v3255, %v3266
    %v3279 = vadd.f32 %v3256, %v3266
    %v3280 = vadd.f32 %v3257, %v3266
    %v3281 = vadd.f32 %v3258, %v3266
    %v3282 = vadd.f32 %v3259, %v3266
    %v3283 = vadd.f32 %v3260, %v3266
    %s3285 = sor.u32 256, 8
    %3286 = vbcast.lane.b32.xlu0 %v310, %s3285
    %v3287 = vpop.permute.xlu0 %3286
    %s3289 = sor.u32 256, 8
    %3290 = vbcast.lane.b32.xlu0 %v317, %s3289
    %v3291 = vpop.permute.xlu0 %3290
    %s3293 = sor.u32 256, 8
    %3294 = vbcast.lane.b32.xlu0 %v324, %s3293
    %v3295 = vpop.permute.xlu0 %3294
    %s3297 = sor.u32 256, 8
    %3298 = vbcast.lane.b32.xlu0 %v331, %s3297
    %v3299 = vpop.permute.xlu0 %3298
    %s3301 = sor.u32 256, 8
    %3302 = vbcast.lane.b32.xlu0 %v338, %s3301
    %v3303 = vpop.permute.xlu0 %3302
    %s3305 = sor.u32 256, 8
    %3306 = vbcast.lane.b32.xlu0 %v345, %s3305
    %v3307 = vpop.permute.xlu0 %3306
    %s3309 = sor.u32 256, 8
    %3310 = vbcast.lane.b32.xlu0 %v352, %s3309
    %v3311 = vpop.permute.xlu0 %3310
    %s3313 = sor.u32 256, 8
    %3314 = vbcast.lane.b32.xlu0 %v359, %s3313
    %v3315 = vpop.permute.xlu0 %3314
    %s3317 = sor.u32 256, 8
    %3318 = vbcast.lane.b32.xlu0 %v366, %s3317
    %v3319 = vpop.permute.xlu0 %3318
    %s3321 = sor.u32 256, 8
    %3322 = vbcast.lane.b32.xlu0 %v373, %s3321
    %v3323 = vpop.permute.xlu0 %3322
    %s3325 = sor.u32 256, 8
    %3326 = vbcast.lane.b32.xlu0 %v380, %s3325
    %v3327 = vpop.permute.xlu0 %3326
    %s3329 = sor.u32 256, 8
    %3330 = vbcast.lane.b32.xlu0 %v387, %s3329
    %v3331 = vpop.permute.xlu0 %3330
    %s3333 = sor.u32 256, 8
    %3334 = vbcast.lane.b32.xlu0 %v394, %s3333
    %v3335 = vpop.permute.xlu0 %3334
    %s3337 = sor.u32 256, 8
    %3338 = vbcast.lane.b32.xlu0 %v401, %s3337
    %v3339 = vpop.permute.xlu0 %3338
    %s3341 = sor.u32 256, 8
    %3342 = vbcast.lane.b32.xlu0 %v408, %s3341
    %v3343 = vpop.permute.xlu0 %3342
    %s3345 = sor.u32 256, 8
    %3346 = vbcast.lane.b32.xlu0 %v415, %s3345
    %v3347 = vpop.permute.xlu0 %3346
    %v3348 = vmul.f32 %v3268, %v3287
    %v3349 = vmul.f32 %v3269, %v3291
    %v3350 = vmul.f32 %v3270, %v3295
    %v3351 = vmul.f32 %v3271, %v3299
    %v3352 = vmul.f32 %v3272, %v3303
    %v3353 = vmul.f32 %v3273, %v3307
    %v3354 = vmul.f32 %v3274, %v3311
    %v3355 = vmul.f32 %v3275, %v3315
    %v3356 = vmul.f32 %v3276, %v3319
    %v3357 = vmul.f32 %v3277, %v3323
    %v3358 = vmul.f32 %v3278, %v3327
    %v3359 = vmul.f32 %v3279, %v3331
    %v3360 = vmul.f32 %v3280, %v3335
    %v3361 = vmul.f32 %v3281, %v3339
    %v3362 = vmul.f32 %v3282, %v3343
    %v3363 = vmul.f32 %v3283, %v3347
    %3365 = vset.pattern.permute.xlu0 0
    %3366 = vperm.xlu0 %3365, %v142
    %v3367 = vpop.permute.xlu0 %3366
    %3370 = vset.pattern.permute.xlu0 0
    %3371 = vperm.xlu0 %3370, %v143
    %v3372 = vpop.permute.xlu0 %3371
    %v3374 = vmul.f32 %v3348, %v3367
    %v3375 = vmul.f32 %v3349, %v3367
    %v3376 = vmul.f32 %v3350, %v3367
    %v3377 = vmul.f32 %v3351, %v3367
    %v3378 = vmul.f32 %v3352, %v3367
    %v3379 = vmul.f32 %v3353, %v3367
    %v3380 = vmul.f32 %v3354, %v3367
    %v3381 = vmul.f32 %v3355, %v3367
    %v3382 = vmul.f32 %v3356, %v3372
    %v3383 = vmul.f32 %v3357, %v3372
    %v3384 = vmul.f32 %v3358, %v3372
    %v3385 = vmul.f32 %v3359, %v3372
    %v3386 = vmul.f32 %v3360, %v3372
    %v3387 = vmul.f32 %v3361, %v3372
    %v3388 = vmul.f32 %v3362, %v3372
    %v3389 = vmul.f32 %v3363, %v3372
    %3390 = vset.pattern.permute.xlu0 1
    %3391 = vperm.xlu0 %3390, %v142
    %v3392 = vpop.permute.xlu0 %3391
    %3394 = vset.pattern.permute.xlu0 1
    %3395 = vperm.xlu0 %3394, %v143
    %v3396 = vpop.permute.xlu0 %3395
    %v3398 = vmul.f32 %v3348, %v3392
    %v3399 = vmul.f32 %v3349, %v3392
    %v3400 = vmul.f32 %v3350, %v3392
    %v3401 = vmul.f32 %v3351, %v3392
    %v3402 = vmul.f32 %v3352, %v3392
    %v3403 = vmul.f32 %v3353, %v3392
    %v3404 = vmul.f32 %v3354, %v3392
    %v3405 = vmul.f32 %v3355, %v3392
    %v3406 = vmul.f32 %v3356, %v3396
    %v3407 = vmul.f32 %v3357, %v3396
    %v3408 = vmul.f32 %v3358, %v3396
    %v3409 = vmul.f32 %v3359, %v3396
    %v3410 = vmul.f32 %v3360, %v3396
    %v3411 = vmul.f32 %v3361, %v3396
    %v3412 = vmul.f32 %v3362, %v3396
    %v3413 = vmul.f32 %v3363, %v3396
    %3414 = vset.pattern.permute.xlu0 2
    %3415 = vperm.xlu0 %3414, %v142
    %v3416 = vpop.permute.xlu0 %3415
    %3418 = vset.pattern.permute.xlu0 2
    %3419 = vperm.xlu0 %3418, %v143
    %v3420 = vpop.permute.xlu0 %3419
    %v3422 = vmul.f32 %v3348, %v3416
    %v3423 = vmul.f32 %v3349, %v3416
    %v3424 = vmul.f32 %v3350, %v3416
    %v3425 = vmul.f32 %v3351, %v3416
    %v3426 = vmul.f32 %v3352, %v3416
    %v3427 = vmul.f32 %v3353, %v3416
    %v3428 = vmul.f32 %v3354, %v3416
    %v3429 = vmul.f32 %v3355, %v3416
    %v3430 = vmul.f32 %v3356, %v3420
    %v3431 = vmul.f32 %v3357, %v3420
    %v3432 = vmul.f32 %v3358, %v3420
    %v3433 = vmul.f32 %v3359, %v3420
    %v3434 = vmul.f32 %v3360, %v3420
    %v3435 = vmul.f32 %v3361, %v3420
    %v3436 = vmul.f32 %v3362, %v3420
    %v3437 = vmul.f32 %v3363, %v3420
    %3438 = vset.pattern.permute.xlu0 3
    %3439 = vperm.xlu0 %3438, %v142
    %v3440 = vpop.permute.xlu0 %3439
    %3442 = vset.pattern.permute.xlu0 3
    %3443 = vperm.xlu0 %3442, %v143
    %v3444 = vpop.permute.xlu0 %3443
    %v3446 = vmul.f32 %v3348, %v3440
    %v3447 = vmul.f32 %v3349, %v3440
    %v3448 = vmul.f32 %v3350, %v3440
    %v3449 = vmul.f32 %v3351, %v3440
    %v3450 = vmul.f32 %v3352, %v3440
    %v3451 = vmul.f32 %v3353, %v3440
    %v3452 = vmul.f32 %v3354, %v3440
    %v3453 = vmul.f32 %v3355, %v3440
    %v3454 = vmul.f32 %v3356, %v3444
    %v3455 = vmul.f32 %v3357, %v3444
    %v3456 = vmul.f32 %v3358, %v3444
    %v3457 = vmul.f32 %v3359, %v3444
    %v3458 = vmul.f32 %v3360, %v3444
    %v3459 = vmul.f32 %v3361, %v3444
    %v3460 = vmul.f32 %v3362, %v3444
    %v3461 = vmul.f32 %v3363, %v3444
    %3462 = vset.pattern.permute.xlu0 4
    %3463 = vperm.xlu0 %3462, %v142
    %v3464 = vpop.permute.xlu0 %3463
    %3466 = vset.pattern.permute.xlu0 4
    %3467 = vperm.xlu0 %3466, %v143
    %v3468 = vpop.permute.xlu0 %3467
    %v3470 = vmul.f32 %v3348, %v3464
    %v3471 = vmul.f32 %v3349, %v3464
    %v3472 = vmul.f32 %v3350, %v3464
    %v3473 = vmul.f32 %v3351, %v3464
    %v3474 = vmul.f32 %v3352, %v3464
    %v3475 = vmul.f32 %v3353, %v3464
    %v3476 = vmul.f32 %v3354, %v3464
    %v3477 = vmul.f32 %v3355, %v3464
    %v3478 = vmul.f32 %v3356, %v3468
    %v3479 = vmul.f32 %v3357, %v3468
    %v3480 = vmul.f32 %v3358, %v3468
    %v3481 = vmul.f32 %v3359, %v3468
    %v3482 = vmul.f32 %v3360, %v3468
    %v3483 = vmul.f32 %v3361, %v3468
    %v3484 = vmul.f32 %v3362, %v3468
    %v3485 = vmul.f32 %v3363, %v3468
    %3502 = vrot.lane.b32.xlu0 %v3398, 32
    %v3503 = vpop.permute.xlu0 %3502
    %3504 = vrot.lane.b32.xlu0 %v3399, 32
    %v3505 = vpop.permute.xlu0 %3504
    %3506 = vrot.lane.b32.xlu0 %v3400, 32
    %v3507 = vpop.permute.xlu0 %3506
    %3508 = vrot.lane.b32.xlu0 %v3401, 32
    %v3509 = vpop.permute.xlu0 %3508
    %3510 = vrot.lane.b32.xlu0 %v3402, 32
    %v3511 = vpop.permute.xlu0 %3510
    %3512 = vrot.lane.b32.xlu0 %v3403, 32
    %v3513 = vpop.permute.xlu0 %3512
    %3514 = vrot.lane.b32.xlu0 %v3404, 32
    %v3515 = vpop.permute.xlu0 %3514
    %3516 = vrot.lane.b32.xlu0 %v3405, 32
    %v3517 = vpop.permute.xlu0 %3516
    %3518 = vrot.lane.b32.xlu0 %v3406, 32
    %v3519 = vpop.permute.xlu0 %3518
    %3520 = vrot.lane.b32.xlu0 %v3407, 32
    %v3521 = vpop.permute.xlu0 %3520
    %3522 = vrot.lane.b32.xlu0 %v3408, 32
    %v3523 = vpop.permute.xlu0 %3522
    %3524 = vrot.lane.b32.xlu0 %v3409, 32
    %v3525 = vpop.permute.xlu0 %3524
    %3526 = vrot.lane.b32.xlu0 %v3410, 32
    %v3527 = vpop.permute.xlu0 %3526
    %3528 = vrot.lane.b32.xlu0 %v3411, 32
    %v3529 = vpop.permute.xlu0 %3528
    %3530 = vrot.lane.b32.xlu0 %v3412, 32
    %v3531 = vpop.permute.xlu0 %3530
    %3532 = vrot.lane.b32.xlu0 %v3413, 32
    %v3533 = vpop.permute.xlu0 %3532
    %3566 = vrot.lane.b32.xlu0 %v3422, 64
    %v3567 = vpop.permute.xlu0 %3566
    %3568 = vrot.lane.b32.xlu0 %v3423, 64
    %v3569 = vpop.permute.xlu0 %3568
    %3570 = vrot.lane.b32.xlu0 %v3424, 64
    %v3571 = vpop.permute.xlu0 %3570
    %3572 = vrot.lane.b32.xlu0 %v3425, 64
    %v3573 = vpop.permute.xlu0 %3572
    %3574 = vrot.lane.b32.xlu0 %v3426, 64
    %v3575 = vpop.permute.xlu0 %3574
    %3576 = vrot.lane.b32.xlu0 %v3427, 64
    %v3577 = vpop.permute.xlu0 %3576
    %3578 = vrot.lane.b32.xlu0 %v3428, 64
    %v3579 = vpop.permute.xlu0 %3578
    %3580 = vrot.lane.b32.xlu0 %v3429, 64
    %v3581 = vpop.permute.xlu0 %3580
    %3582 = vrot.lane.b32.xlu0 %v3430, 64
    %v3583 = vpop.permute.xlu0 %3582
    %3584 = vrot.lane.b32.xlu0 %v3431, 64
    %v3585 = vpop.permute.xlu0 %3584
    %3586 = vrot.lane.b32.xlu0 %v3432, 64
    %v3587 = vpop.permute.xlu0 %3586
    %3588 = vrot.lane.b32.xlu0 %v3433, 64
    %v3589 = vpop.permute.xlu0 %3588
    %3590 = vrot.lane.b32.xlu0 %v3434, 64
    %v3591 = vpop.permute.xlu0 %3590
    %3592 = vrot.lane.b32.xlu0 %v3435, 64
    %v3593 = vpop.permute.xlu0 %3592
    %3594 = vrot.lane.b32.xlu0 %v3436, 64
    %v3595 = vpop.permute.xlu0 %3594
    %3596 = vrot.lane.b32.xlu0 %v3437, 64
    %v3597 = vpop.permute.xlu0 %3596
    %3630 = vrot.lane.b32.xlu0 %v3446, 96
    %v3631 = vpop.permute.xlu0 %3630
    %3632 = vrot.lane.b32.xlu0 %v3447, 96
    %v3633 = vpop.permute.xlu0 %3632
    %3634 = vrot.lane.b32.xlu0 %v3448, 96
    %v3635 = vpop.permute.xlu0 %3634
    %3636 = vrot.lane.b32.xlu0 %v3449, 96
    %v3637 = vpop.permute.xlu0 %3636
    %3638 = vrot.lane.b32.xlu0 %v3450, 96
    %v3639 = vpop.permute.xlu0 %3638
    %3640 = vrot.lane.b32.xlu0 %v3451, 96
    %v3641 = vpop.permute.xlu0 %3640
    %3642 = vrot.lane.b32.xlu0 %v3452, 96
    %v3643 = vpop.permute.xlu0 %3642
    %3644 = vrot.lane.b32.xlu0 %v3453, 96
    %v3645 = vpop.permute.xlu0 %3644
    %3646 = vrot.lane.b32.xlu0 %v3454, 96
    %v3647 = vpop.permute.xlu0 %3646
    %3648 = vrot.lane.b32.xlu0 %v3455, 96
    %v3649 = vpop.permute.xlu0 %3648
    %3650 = vrot.lane.b32.xlu0 %v3456, 96
    %v3651 = vpop.permute.xlu0 %3650
    %3652 = vrot.lane.b32.xlu0 %v3457, 96
    %v3653 = vpop.permute.xlu0 %3652
    %3654 = vrot.lane.b32.xlu0 %v3458, 96
    %v3655 = vpop.permute.xlu0 %3654
    %3656 = vrot.lane.b32.xlu0 %v3459, 96
    %v3657 = vpop.permute.xlu0 %3656
    %3658 = vrot.lane.b32.xlu0 %v3460, 96
    %v3659 = vpop.permute.xlu0 %3658
    %3660 = vrot.lane.b32.xlu0 %v3461, 96
    %v3661 = vpop.permute.xlu0 %3660
    %3678 = vrot.lane.b32.xlu0 %v142, 32
    %v3679 = vpop.permute.xlu0 %3678
    %3680 = vrot.lane.b32.xlu0 %v143, 32
    %v3681 = vpop.permute.xlu0 %3680
    %vm3684 = vcmask 261120
    %v3685 = vsel %vm3684, %v3374, %v3503
    %v3686 = vsel %vm3684, %v3375, %v3505
    %v3687 = vsel %vm3684, %v3376, %v3507
    %v3688 = vsel %vm3684, %v3377, %v3509
    %v3689 = vsel %vm3684, %v3378, %v3511
    %v3690 = vsel %vm3684, %v3379, %v3513
    %v3691 = vsel %vm3684, %v3380, %v3515
    %v3692 = vsel %vm3684, %v3381, %v3517
    %v3693 = vsel %vm3684, %v3382, %v3519
    %v3694 = vsel %vm3684, %v3383, %v3521
    %v3695 = vsel %vm3684, %v3384, %v3523
    %v3696 = vsel %vm3684, %v3385, %v3525
    %v3697 = vsel %vm3684, %v3386, %v3527
    %v3698 = vsel %vm3684, %v3387, %v3529
    %v3699 = vsel %vm3684, %v3388, %v3531
    %v3700 = vsel %vm3684, %v3389, %v3533
    %v3701 = vsel %vm56, %v3685, %v3567
    %v3702 = vsel %vm56, %v3686, %v3569
    %v3703 = vsel %vm56, %v3687, %v3571
    %v3704 = vsel %vm56, %v3688, %v3573
    %v3705 = vsel %vm56, %v3689, %v3575
    %v3706 = vsel %vm56, %v3690, %v3577
    %v3707 = vsel %vm56, %v3691, %v3579
    %v3708 = vsel %vm56, %v3692, %v3581
    %v3709 = vsel %vm56, %v3693, %v3583
    %v3710 = vsel %vm56, %v3694, %v3585
    %v3711 = vsel %vm56, %v3695, %v3587
    %v3712 = vsel %vm56, %v3696, %v3589
    %v3713 = vsel %vm56, %v3697, %v3591
    %v3714 = vsel %vm56, %v3698, %v3593
    %v3715 = vsel %vm56, %v3699, %v3595
    %v3716 = vsel %vm56, %v3700, %v3597
    %vm3717 = vcmask 785408
    %v3718 = vsel %vm3717, %v3701, %v3631
    %v3719 = vsel %vm3717, %v3702, %v3633
    %v3720 = vsel %vm3717, %v3703, %v3635
    %v3721 = vsel %vm3717, %v3704, %v3637
    %v3722 = vsel %vm3717, %v3705, %v3639
    %v3723 = vsel %vm3717, %v3706, %v3641
    %v3724 = vsel %vm3717, %v3707, %v3643
    %v3725 = vsel %vm3717, %v3708, %v3645
    %v3726 = vsel %vm3717, %v3709, %v3647
    %v3727 = vsel %vm3717, %v3710, %v3649
    %v3728 = vsel %vm3717, %v3711, %v3651
    %v3729 = vsel %vm3717, %v3712, %v3653
    %v3730 = vsel %vm3717, %v3713, %v3655
    %v3731 = vsel %vm3717, %v3714, %v3657
    %v3732 = vsel %vm3717, %v3715, %v3659
    %v3733 = vsel %vm3717, %v3716, %v3661
    %v3734 = vsel %vm3684, %v3470, %v3679
    %v3735 = vsel %vm3684, %v3471, %v3679
    %v3736 = vsel %vm3684, %v3472, %v3679
    %v3737 = vsel %vm3684, %v3473, %v3679
    %v3738 = vsel %vm3684, %v3474, %v3679
    %v3739 = vsel %vm3684, %v3475, %v3679
    %v3740 = vsel %vm3684, %v3476, %v3679
    %v3741 = vsel %vm3684, %v3477, %v3679
    %v3742 = vsel %vm3684, %v3478, %v3681
    %v3743 = vsel %vm3684, %v3479, %v3681
    %v3744 = vsel %vm3684, %v3480, %v3681
    %v3745 = vsel %vm3684, %v3481, %v3681
    %v3746 = vsel %vm3684, %v3482, %v3681
    %v3747 = vsel %vm3684, %v3483, %v3681
    %v3748 = vsel %vm3684, %v3484, %v3681
    %v3749 = vsel %vm3684, %v3485, %v3681
    %v3750 = vpack.c.bf16 %v3719, %v3718
    %v3751 = vpack.c.bf16 %v3735, %v3734
    %v3752 = vpack.c.bf16 %v3721, %v3720
    %v3753 = vpack.c.bf16 %v3737, %v3736
    %v3754 = vpack.c.bf16 %v3723, %v3722
    %v3755 = vpack.c.bf16 %v3739, %v3738
    %v3756 = vpack.c.bf16 %v3725, %v3724
    %v3757 = vpack.c.bf16 %v3741, %v3740
    %v3758 = vpack.c.bf16 %v3727, %v3726
    %v3759 = vpack.c.bf16 %v3743, %v3742
    %v3760 = vpack.c.bf16 %v3729, %v3728
    %v3761 = vpack.c.bf16 %v3745, %v3744
    %v3762 = vpack.c.bf16 %v3731, %v3730
    %v3763 = vpack.c.bf16 %v3747, %v3746
    %v3764 = vpack.c.bf16 %v3733, %v3732
    %v3765 = vpack.c.bf16 %v3749, %v3748
    %v3766 = vld [vmem:[%s5] sm:$0xf]
    %v3767 = vld [vmem:[%s5 + $0x4] sm:$0xf]
    %v3768 = vld [vmem:[%s5 + $0x8] sm:$0xf]
    %v3769 = vld [vmem:[%s5 + $0xc] sm:$0xf]
    %v3770 = vld [vmem:[%s5 + $0x10] sm:$0xf]
    %v3771 = vld [vmem:[%s5 + $0x14] sm:$0xf]
    %v3772 = vld [vmem:[%s5 + $0x18] sm:$0xf]
    %v3773 = vld [vmem:[%s5 + $0x1c] sm:$0xf]
    %v3774 = vld [vmem:[%s5 + $0x20] sm:$0xf]
    %v3775 = vld [vmem:[%s5 + $0x24] sm:$0xf]
    %v3776 = vld [vmem:[%s5 + $0x28] sm:$0xf]
    %v3777 = vld [vmem:[%s5 + $0x2c] sm:$0xf]
    %v3778 = vld [vmem:[%s5 + $0x30] sm:$0xf]
    %v3779 = vld [vmem:[%s5 + $0x34] sm:$0xf]
    %v3780 = vld [vmem:[%s5 + $0x38] sm:$0xf]
    %v3781 = vld [vmem:[%s5 + $0x3c] sm:$0xf]
    %v3782 = vld [vmem:[%s5 + $0x40] sm:$0xf]
    %v3783 = vld [vmem:[%s5 + $0x44] sm:$0xf]
    %v3784 = vld [vmem:[%s5 + $0x48] sm:$0xf]
    %v3785 = vld [vmem:[%s5 + $0x4c] sm:$0xf]
    %v3786 = vld [vmem:[%s5 + $0x50] sm:$0x7]
    %v3808 = vunpack.c.l.b16 %v3766
    %v3809 = vunpack.c.l.b16 %v3767
    %v3810 = vunpack.c.l.b16 %v3768
    %v3811 = vunpack.c.l.b16 %v3769
    %v3812 = vunpack.c.l.b16 %v3770
    %v3813 = vunpack.c.l.b16 %v3771
    %v3814 = vunpack.c.l.b16 %v3772
    %v3815 = vunpack.c.l.b16 %v3773
    %v3816 = vunpack.c.l.b16 %v3774
    %v3817 = vunpack.c.l.b16 %v3775
    %v3818 = vunpack.c.l.b16 %v3776
    %v3819 = vunpack.c.l.b16 %v3777
    %v3820 = vunpack.c.l.b16 %v3778
    %v3821 = vunpack.c.l.b16 %v3779
    %v3822 = vunpack.c.l.b16 %v3780
    %v3823 = vunpack.c.l.b16 %v3781
    %v3824 = vunpack.c.l.b16 %v3782
    %v3825 = vunpack.c.l.b16 %v3783
    %v3826 = vunpack.c.l.b16 %v3784
    %v3827 = vunpack.c.l.b16 %v3785
    %v3828 = vunpack.c.l.b16 %v3786
    %v3829 = vpack.c.b16 %v3809, %v3808
    %v3830 = vpack.c.b16 %v3811, %v3810
    %v3831 = vpack.c.b16 %v3813, %v3812
    %v3832 = vpack.c.b16 %v3815, %v3814
    %v3833 = vpack.c.b16 %v3817, %v3816
    %v3834 = vpack.c.b16 %v3819, %v3818
    %v3835 = vpack.c.b16 %v3821, %v3820
    %v3836 = vpack.c.b16 %v3823, %v3822
    %v3837 = vpack.c.b16 %v3825, %v3824
    %v3838 = vpack.c.b16 %v3827, %v3826
    %v3839 = vpack.c.b16 %v3828, %v3828
    %vm3850 = vcmask 302080
    %v3852 = vsel %vm3850, %v3751, 0
    %v3855 = vsel %vm3850, %v3753, 0
    %v3858 = vsel %vm3850, %v3755, 0
    %v3861 = vsel %vm3850, %v3757, 0
    %v3864 = vsel %vm3850, %v3759, 0
    %v3867 = vsel %vm3850, %v3761, 0
    %v3870 = vsel %vm3850, %v3763, 0
    %v3873 = vsel %vm3850, %v3765, 0
    %vm3875 = vcmask 1041408
    %vm3876 = vcmask 1042432
    %v3877 = vsel %vm3875, 4294967295, 65535
    %v3878 = vsel %vm3876, %v3877, 0
    %v3880 = vand.u32 %v3839, %v3878
    %3882 = vmatprep.subr.bf16.mxu0 0
    %3883 = vmatpush1.bf16.msra.mxu0 %v3829
    %3884 = vmatprep.subr.bf16.mxu0 0
    %3885 = vmatpush1.bf16.msra.mxu0 %v3830
    %3886 = vmatprep.subr.bf16.mxu0 0
    %3887 = vmatpush1.bf16.msra.mxu0 %v3831
    %3888 = vmatprep.subr.bf16.mxu0 0
    %3889 = vmatpush1.bf16.msra.mxu0 %v3832
    %3890 = vmatprep.subr.bf16.mxu0 0
    %3891 = vmatpush1.bf16.msra.mxu0 %v3833
    %3892 = vmatprep.subr.bf16.mxu0 0
    %3893 = vmatpush1.bf16.msra.mxu0 %v3834
    %3894 = vmatprep.subr.bf16.mxu0 0
    %3895 = vmatpush1.bf16.msra.mxu0 %v3835
    %3896 = vmatprep.subr.bf16.mxu0 0
    %3897 = vmatpush1.bf16.msra.mxu0 %v3836
    %3898 = vmatprep.subr.bf16.mxu0 0
    %3899 = vmatpush1.bf16.msra.mxu0 %v3837
    %3900 = vmatprep.subr.bf16.mxu0 0
    %3901 = vmatpush1.bf16.msra.mxu0 %v3838
    %3902 = vmatprep.subr.bf16.mxu0 0
    %3903 = vmatpush1.bf16.msra.mxu0 %v3880
    %3904 = vmatprep.subr.bf16.mxu0 0
    %3905 = vmatpush1.bf16.msra.mxu0 0
    %3906 = vmatprep.subr.bf16.mxu0 0
    %3907 = vmatpush1.bf16.msra.mxu0 0
    %3908 = vmatprep.subr.bf16.mxu0 0
    %3909 = vmatpush1.bf16.msra.mxu0 0
    %3910 = vmatprep.subr.bf16.mxu0 0
    %3911 = vmatpush1.bf16.msra.mxu0 0
    %3912 = vmatprep.subr.bf16.mxu0 0
    %3913 = vmatpush1.bf16.msra.mxu0 0
    %3914 = vmatprep.mubr.bf16.mxu0 %v3852
    %3915 = vmatmul.mubr.bf16.gmra.mrb[0].mxu0 %v3750
    %v3916 = vpop.f32.mrb[0].mxu0
    %v3917 = vadd.f32 0.0, %v3916
    %v3918 = vpop.f32.mrb[0].mxu0
    %v3919 = vpop.f32.mrb[0].mxu0
    %v3920 = vadd.f32 0.0, %v3919
    %v3921 = vpop.f32.mrb[0].mxu0
    %3922 = vmatprep.mubr.bf16.mxu0 %v3855
    %3923 = vmatmul.mubr.bf16.gmra.mrb[0].mxu0 %v3752
    %v3924 = vpop.f32.mrb[0].mxu0
    %v3925 = vadd.f32 0.0, %v3924
    %v3926 = vpop.f32.mrb[0].mxu0
    %v3927 = vpop.f32.mrb[0].mxu0
    %v3928 = vadd.f32 0.0, %v3927
    %v3929 = vpop.f32.mrb[0].mxu0
    %3930 = vmatprep.mubr.bf16.mxu0 %v3858
    %3931 = vmatmul.mubr.bf16.gmra.mrb[0].mxu0 %v3754
    %v3932 = vpop.f32.mrb[0].mxu0
    %v3933 = vadd.f32 0.0, %v3932
    %v3934 = vpop.f32.mrb[0].mxu0
    %v3935 = vpop.f32.mrb[0].mxu0
    %v3936 = vadd.f32 0.0, %v3935
    %v3937 = vpop.f32.mrb[0].mxu0
    %3938 = vmatprep.mubr.bf16.mxu0 %v3861
    %3939 = vmatmul.mubr.bf16.gmra.mrb[0].mxu0 %v3756
    %v3940 = vpop.f32.mrb[0].mxu0
    %v3941 = vadd.f32 0.0, %v3940
    %v3942 = vpop.f32.mrb[0].mxu0
    %v3943 = vpop.f32.mrb[0].mxu0
    %v3944 = vadd.f32 0.0, %v3943
    %v3945 = vpop.f32.mrb[0].mxu0
    %3946 = vmatprep.mubr.bf16.mxu0 %v3864
    %3947 = vmatmul.mubr.bf16.gmra.mrb[0].mxu0 %v3758
    %v3948 = vpop.f32.mrb[0].mxu0
    %v3949 = vadd.f32 0.0, %v3948
    %v3950 = vpop.f32.mrb[0].mxu0
    %v3951 = vpop.f32.mrb[0].mxu0
    %v3952 = vadd.f32 0.0, %v3951
    %v3953 = vpop.f32.mrb[0].mxu0
    %3954 = vmatprep.mubr.bf16.mxu0 %v3867
    %3955 = vmatmul.mubr.bf16.gmra.mrb[0].mxu0 %v3760
    %v3956 = vpop.f32.mrb[0].mxu0
    %v3957 = vadd.f32 0.0, %v3956
    %v3958 = vpop.f32.mrb[0].mxu0
    %v3959 = vpop.f32.mrb[0].mxu0
    %v3960 = vadd.f32 0.0, %v3959
    %v3961 = vpop.f32.mrb[0].mxu0
    %3962 = vmatprep.mubr.bf16.mxu0 %v3870
    %3963 = vmatmul.mubr.bf16.gmra.mrb[0].mxu0 %v3762
    %v3964 = vpop.f32.mrb[0].mxu0
    %v3965 = vadd.f32 0.0, %v3964
    %v3966 = vpop.f32.mrb[0].mxu0
    %v3967 = vpop.f32.mrb[0].mxu0
    %v3968 = vadd.f32 0.0, %v3967
    %v3969 = vpop.f32.mrb[0].mxu0
    %3970 = vmatprep.mubr.bf16.mxu0 %v3873
    %3971 = vmatmul.mubr.bf16.gmra.mrb[0].mxu0 %v3764
    %v3972 = vpop.f32.mrb[0].mxu0
    %v3973 = vadd.f32 0.0, %v3972
    %v3974 = vpop.f32.mrb[0].mxu0
    %v3975 = vpop.f32.mrb[0].mxu0
    %v3976 = vadd.f32 0.0, %v3975
    %v3977 = vpop.f32.mrb[0].mxu0
    %3978 = vdwg.mxu0
    %s3980 = sor.u32 256, 24
    %3981 = vbcast.lane.b32.xlu0 %v310, %s3980
    %v3982 = vpop.permute.xlu0 %3981
    %s3984 = sor.u32 256, 24
    %3985 = vbcast.lane.b32.xlu0 %v317, %s3984
    %v3986 = vpop.permute.xlu0 %3985
    %s3988 = sor.u32 256, 24
    %3989 = vbcast.lane.b32.xlu0 %v324, %s3988
    %v3990 = vpop.permute.xlu0 %3989
    %s3992 = sor.u32 256, 24
    %3993 = vbcast.lane.b32.xlu0 %v331, %s3992
    %v3994 = vpop.permute.xlu0 %3993
    %s3996 = sor.u32 256, 24
    %3997 = vbcast.lane.b32.xlu0 %v338, %s3996
    %v3998 = vpop.permute.xlu0 %3997
    %s4000 = sor.u32 256, 24
    %4001 = vbcast.lane.b32.xlu0 %v345, %s4000
    %v4002 = vpop.permute.xlu0 %4001
    %s4004 = sor.u32 256, 24
    %4005 = vbcast.lane.b32.xlu0 %v352, %s4004
    %v4006 = vpop.permute.xlu0 %4005
    %s4008 = sor.u32 256, 24
    %4009 = vbcast.lane.b32.xlu0 %v359, %s4008
    %v4010 = vpop.permute.xlu0 %4009
    %s4012 = sor.u32 256, 24
    %4013 = vbcast.lane.b32.xlu0 %v366, %s4012
    %v4014 = vpop.permute.xlu0 %4013
    %s4016 = sor.u32 256, 24
    %4017 = vbcast.lane.b32.xlu0 %v373, %s4016
    %v4018 = vpop.permute.xlu0 %4017
    %s4020 = sor.u32 256, 24
    %4021 = vbcast.lane.b32.xlu0 %v380, %s4020
    %v4022 = vpop.permute.xlu0 %4021
    %s4024 = sor.u32 256, 24
    %4025 = vbcast.lane.b32.xlu0 %v387, %s4024
    %v4026 = vpop.permute.xlu0 %4025
    %s4028 = sor.u32 256, 24
    %4029 = vbcast.lane.b32.xlu0 %v394, %s4028
    %v4030 = vpop.permute.xlu0 %4029
    %s4032 = sor.u32 256, 24
    %4033 = vbcast.lane.b32.xlu0 %v401, %s4032
    %v4034 = vpop.permute.xlu0 %4033
    %s4036 = sor.u32 256, 24
    %4037 = vbcast.lane.b32.xlu0 %v408, %s4036
    %v4038 = vpop.permute.xlu0 %4037
    %s4040 = sor.u32 256, 24
    %4041 = vbcast.lane.b32.xlu0 %v415, %s4040
    %v4042 = vpop.permute.xlu0 %4041
    %v4045 = vcombine.high %v31, %v31
    %v4047 = vunpack.c.l.s4 1966171168
    %v4048 = vunpack.c.0.s8 %v4047
    %v4049 = vlaneseq
    %v4050 = vshrl.u32 %v4049, 7
    %v4051 = vsub.s32 %v4048, %v4050
    %v4052 = vrot.slane %v31, %v4051
    %v4054 = vunpack.c.l.s4 1966171168
    %v4055 = vunpack.c.0.s8 %v4054
    %v4056 = vlaneseq
    %v4057 = vshrl.u32 %v4056, 7
    %v4058 = vsub.s32 %v4055, %v4057
    %v4059 = vrot.slane %v4045, %v4058
    %v4060 = vcombine.high %v4052, %v4052
    %v4061 = vcombine.high %v4059, %v4059
    %v4063 = vunpack.c.l.s4 1966171168
    %v4064 = vunpack.c.0.s8 %v4063
    %v4065 = vlaneseq
    %v4066 = vshrl.u32 %v4065, 7
    %v4067 = vsub.s32 %v4064, %v4066
    %v4068 = vrot.slane %v4052, %v4067
    %v4070 = vunpack.c.l.s4 1966171168
    %v4071 = vunpack.c.0.s8 %v4070
    %v4072 = vlaneseq
    %v4073 = vshrl.u32 %v4072, 7
    %v4074 = vsub.s32 %v4071, %v4073
    %v4075 = vrot.slane %v4059, %v4074
    %v4077 = vunpack.c.l.s4 1966171168
    %v4078 = vunpack.c.0.s8 %v4077
    %v4079 = vlaneseq
    %v4080 = vshrl.u32 %v4079, 7
    %v4081 = vsub.s32 %v4078, %v4080
    %v4082 = vrot.slane %v4060, %v4081
    %v4084 = vunpack.c.l.s4 1966171168
    %v4085 = vunpack.c.0.s8 %v4084
    %v4086 = vlaneseq
    %v4087 = vshrl.u32 %v4086, 7
    %v4088 = vsub.s32 %v4085, %v4087
    %v4089 = vrot.slane %v4061, %v4088
    %v4090 = vcombine.high %v4068, %v4068
    %v4091 = vcombine.high %v4075, %v4075
    %v4092 = vcombine.high %v4082, %v4082
    %v4093 = vcombine.high %v4089, %v4089
    %v4094 = vcombine.high %v32, %v32
    %v4096 = vunpack.c.l.s4 1966171168
    %v4097 = vunpack.c.0.s8 %v4096
    %v4098 = vlaneseq
    %v4099 = vshrl.u32 %v4098, 7
    %v4100 = vsub.s32 %v4097, %v4099
    %v4101 = vrot.slane %v32, %v4100
    %v4103 = vunpack.c.l.s4 1966171168
    %v4104 = vunpack.c.0.s8 %v4103
    %v4105 = vlaneseq
    %v4106 = vshrl.u32 %v4105, 7
    %v4107 = vsub.s32 %v4104, %v4106
    %v4108 = vrot.slane %v4094, %v4107
    %v4109 = vcombine.high %v4101, %v4101
    %v4110 = vcombine.high %v4108, %v4108
    %v4112 = vunpack.c.l.s4 1966171168
    %v4113 = vunpack.c.0.s8 %v4112
    %v4114 = vlaneseq
    %v4115 = vshrl.u32 %v4114, 7
    %v4116 = vsub.s32 %v4113, %v4115
    %v4117 = vrot.slane %v4101, %v4116
    %v4119 = vunpack.c.l.s4 1966171168
    %v4120 = vunpack.c.0.s8 %v4119
    %v4121 = vlaneseq
    %v4122 = vshrl.u32 %v4121, 7
    %v4123 = vsub.s32 %v4120, %v4122
    %v4124 = vrot.slane %v4108, %v4123
    %v4126 = vunpack.c.l.s4 1966171168
    %v4127 = vunpack.c.0.s8 %v4126
    %v4128 = vlaneseq
    %v4129 = vshrl.u32 %v4128, 7
    %v4130 = vsub.s32 %v4127, %v4129
    %v4131 = vrot.slane %v4109, %v4130
    %v4133 = vunpack.c.l.s4 1966171168
    %v4134 = vunpack.c.0.s8 %v4133
    %v4135 = vlaneseq
    %v4136 = vshrl.u32 %v4135, 7
    %v4137 = vsub.s32 %v4134, %v4136
    %v4138 = vrot.slane %v4110, %v4137
    %v4139 = vcombine.high %v4117, %v4117
    %v4140 = vcombine.high %v4124, %v4124
    %v4141 = vcombine.high %v4131, %v4131
    %v4142 = vcombine.high %v4138, %v4138
    %v4143 = vlaneseq
    %v4144 = vshrl.u32 %v4143, 7
    %v4145 = vsub.s32 0, %v4144
    %v4146 = vrot.slane %v4068, %v4145
    %v4147 = vlaneseq
    %v4148 = vshrl.u32 %v4147, 7
    %v4149 = vsub.s32 0, %v4148
    %v4150 = vrot.slane %v4082, %v4149
    %v4151 = vlaneseq
    %v4152 = vshrl.u32 %v4151, 7
    %v4153 = vsub.s32 0, %v4152
    %v4154 = vrot.slane %v4090, %v4153
    %v4155 = vlaneseq
    %v4156 = vshrl.u32 %v4155, 7
    %v4157 = vsub.s32 0, %v4156
    %v4158 = vrot.slane %v4092, %v4157
    %v4159 = vlaneseq
    %v4160 = vshrl.u32 %v4159, 7
    %v4161 = vsub.s32 0, %v4160
    %v4162 = vrot.slane %v4075, %v4161
    %v4163 = vlaneseq
    %v4164 = vshrl.u32 %v4163, 7
    %v4165 = vsub.s32 0, %v4164
    %v4166 = vrot.slane %v4089, %v4165
    %v4167 = vlaneseq
    %v4168 = vshrl.u32 %v4167, 7
    %v4169 = vsub.s32 0, %v4168
    %v4170 = vrot.slane %v4091, %v4169
    %v4171 = vlaneseq
    %v4172 = vshrl.u32 %v4171, 7
    %v4173 = vsub.s32 0, %v4172
    %v4174 = vrot.slane %v4093, %v4173
    %v4175 = vlaneseq
    %v4176 = vshrl.u32 %v4175, 7
    %v4177 = vsub.s32 0, %v4176
    %v4178 = vrot.slane %v4117, %v4177
    %v4179 = vlaneseq
    %v4180 = vshrl.u32 %v4179, 7
    %v4181 = vsub.s32 0, %v4180
    %v4182 = vrot.slane %v4131, %v4181
    %v4183 = vlaneseq
    %v4184 = vshrl.u32 %v4183, 7
    %v4185 = vsub.s32 0, %v4184
    %v4186 = vrot.slane %v4139, %v4185
    %v4187 = vlaneseq
    %v4188 = vshrl.u32 %v4187, 7
    %v4189 = vsub.s32 0, %v4188
    %v4190 = vrot.slane %v4141, %v4189
    %v4191 = vlaneseq
    %v4192 = vshrl.u32 %v4191, 7
    %v4193 = vsub.s32 0, %v4192
    %v4194 = vrot.slane %v4124, %v4193
    %v4195 = vlaneseq
    %v4196 = vshrl.u32 %v4195, 7
    %v4197 = vsub.s32 0, %v4196
    %v4198 = vrot.slane %v4138, %v4197
    %v4199 = vlaneseq
    %v4200 = vshrl.u32 %v4199, 7
    %v4201 = vsub.s32 0, %v4200
    %v4202 = vrot.slane %v4140, %v4201
    %v4203 = vlaneseq
    %v4204 = vshrl.u32 %v4203, 7
    %v4205 = vsub.s32 0, %v4204
    %v4206 = vrot.slane %v4142, %v4205
    %v4223 = vadd.f32 %v3982, %v4146
    %v4224 = vadd.f32 %v3986, %v4150
    %v4225 = vadd.f32 %v3990, %v4154
    %v4226 = vadd.f32 %v3994, %v4158
    %v4227 = vadd.f32 %v3998, %v4162
    %v4228 = vadd.f32 %v4002, %v4166
    %v4229 = vadd.f32 %v4006, %v4170
    %v4230 = vadd.f32 %v4010, %v4174
    %v4231 = vadd.f32 %v4014, %v4178
    %v4232 = vadd.f32 %v4018, %v4182
    %v4233 = vadd.f32 %v4022, %v4186
    %v4234 = vadd.f32 %v4026, %v4190
    %v4235 = vadd.f32 %v4030, %v4194
    %v4236 = vadd.f32 %v4034, %v4198
    %v4237 = vadd.f32 %v4038, %v4202
    %v4238 = vadd.f32 %v4042, %v4206
    %v4239 = vmul.f32 %v4223, 0.5
    %v4240 = vmul.f32 %v4224, 0.5
    %v4241 = vmul.f32 %v4225, 0.5
    %v4242 = vmul.f32 %v4226, 0.5
    %v4243 = vmul.f32 %v4227, 0.5
    %v4244 = vmul.f32 %v4228, 0.5
    %v4245 = vmul.f32 %v4229, 0.5
    %v4246 = vmul.f32 %v4230, 0.5
    %v4247 = vmul.f32 %v4231, 0.5
    %v4248 = vmul.f32 %v4232, 0.5
    %v4249 = vmul.f32 %v4233, 0.5
    %v4250 = vmul.f32 %v4234, 0.5
    %v4251 = vmul.f32 %v4235, 0.5
    %v4252 = vmul.f32 %v4236, 0.5
    %v4253 = vmul.f32 %v4237, 0.5
    %v4254 = vmul.f32 %v4238, 0.5
    %v4271 = vrot.slane %v4239, 6
    %v4272 = vrot.slane %v4240, 6
    %v4273 = vrot.slane %v4241, 6
    %v4274 = vrot.slane %v4242, 6
    %v4275 = vrot.slane %v4243, 6
    %v4276 = vrot.slane %v4244, 6
    %v4277 = vrot.slane %v4245, 6
    %v4278 = vrot.slane %v4246, 6
    %v4279 = vrot.slane %v4247, 6
    %v4280 = vrot.slane %v4248, 6
    %v4281 = vrot.slane %v4249, 6
    %v4282 = vrot.slane %v4250, 6
    %v4283 = vrot.slane %v4251, 6
    %v4284 = vrot.slane %v4252, 6
    %v4285 = vrot.slane %v4253, 6
    %v4286 = vrot.slane %v4254, 6
    %4287 = vrot.lane.b32.xlu0 %v4271, 104
    %v4288 = vpop.permute.xlu0 %4287
    %4289 = vrot.lane.b32.xlu0 %v4272, 104
    %v4290 = vpop.permute.xlu0 %4289
    %4291 = vrot.lane.b32.xlu0 %v4273, 104
    %v4292 = vpop.permute.xlu0 %4291
    %4293 = vrot.lane.b32.xlu0 %v4274, 104
    %v4294 = vpop.permute.xlu0 %4293
    %4295 = vrot.lane.b32.xlu0 %v4275, 104
    %v4296 = vpop.permute.xlu0 %4295
    %4297 = vrot.lane.b32.xlu0 %v4276, 104
    %v4298 = vpop.permute.xlu0 %4297
    %4299 = vrot.lane.b32.xlu0 %v4277, 104
    %v4300 = vpop.permute.xlu0 %4299
    %4301 = vrot.lane.b32.xlu0 %v4278, 104
    %v4302 = vpop.permute.xlu0 %4301
    %4303 = vrot.lane.b32.xlu0 %v4279, 104
    %v4304 = vpop.permute.xlu0 %4303
    %4305 = vrot.lane.b32.xlu0 %v4280, 104
    %v4306 = vpop.permute.xlu0 %4305
    %4307 = vrot.lane.b32.xlu0 %v4281, 104
    %v4308 = vpop.permute.xlu0 %4307
    %4309 = vrot.lane.b32.xlu0 %v4282, 104
    %v4310 = vpop.permute.xlu0 %4309
    %4311 = vrot.lane.b32.xlu0 %v4283, 104
    %v4312 = vpop.permute.xlu0 %4311
    %4313 = vrot.lane.b32.xlu0 %v4284, 104
    %v4314 = vpop.permute.xlu0 %4313
    %4315 = vrot.lane.b32.xlu0 %v4285, 104
    %v4316 = vpop.permute.xlu0 %4315
    %4317 = vrot.lane.b32.xlu0 %v4286, 104
    %v4318 = vpop.permute.xlu0 %4317
    %v4335 = vmul.f32 %v35, %v4288
    %v4336 = vmul.f32 %v36, %v4288
    %v4337 = vmul.f32 %v35, %v4290
    %v4338 = vmul.f32 %v36, %v4290
    %v4339 = vmul.f32 %v35, %v4292
    %v4340 = vmul.f32 %v36, %v4292
    %v4341 = vmul.f32 %v35, %v4294
    %v4342 = vmul.f32 %v36, %v4294
    %v4343 = vmul.f32 %v35, %v4296
    %v4344 = vmul.f32 %v36, %v4296
    %v4345 = vmul.f32 %v35, %v4298
    %v4346 = vmul.f32 %v36, %v4298
    %v4347 = vmul.f32 %v35, %v4300
    %v4348 = vmul.f32 %v36, %v4300
    %v4349 = vmul.f32 %v35, %v4302
    %v4350 = vmul.f32 %v36, %v4302
    %v4351 = vmul.f32 %v35, %v4304
    %v4352 = vmul.f32 %v36, %v4304
    %v4353 = vmul.f32 %v35, %v4306
    %v4354 = vmul.f32 %v36, %v4306
    %v4355 = vmul.f32 %v35, %v4308
    %v4356 = vmul.f32 %v36, %v4308
    %v4357 = vmul.f32 %v35, %v4310
    %v4358 = vmul.f32 %v36, %v4310
    %v4359 = vmul.f32 %v35, %v4312
    %v4360 = vmul.f32 %v36, %v4312
    %v4361 = vmul.f32 %v35, %v4314
    %v4362 = vmul.f32 %v36, %v4314
    %v4363 = vmul.f32 %v35, %v4316
    %v4364 = vmul.f32 %v36, %v4316
    %v4365 = vmul.f32 %v35, %v4318
    %v4366 = vmul.f32 %v36, %v4318
    %v4367 = vtanh.pop %v4335
    %v4368 = vtanh.pop %v4336
    %v4369 = vtanh.pop %v4337
    %v4370 = vtanh.pop %v4338
    %v4371 = vtanh.pop %v4339
    %v4372 = vtanh.pop %v4340
    %v4373 = vtanh.pop %v4341
    %v4374 = vtanh.pop %v4342
    %v4375 = vtanh.pop %v4343
    %v4376 = vtanh.pop %v4344
    %v4377 = vtanh.pop %v4345
    %v4378 = vtanh.pop %v4346
    %v4379 = vtanh.pop %v4347
    %v4380 = vtanh.pop %v4348
    %v4381 = vtanh.pop %v4349
    %v4382 = vtanh.pop %v4350
    %v4383 = vtanh.pop %v4351
    %v4384 = vtanh.pop %v4352
    %v4385 = vtanh.pop %v4353
    %v4386 = vtanh.pop %v4354
    %v4387 = vtanh.pop %v4355
    %v4388 = vtanh.pop %v4356
    %v4389 = vtanh.pop %v4357
    %v4390 = vtanh.pop %v4358
    %v4391 = vtanh.pop %v4359
    %v4392 = vtanh.pop %v4360
    %v4393 = vtanh.pop %v4361
    %v4394 = vtanh.pop %v4362
    %v4395 = vtanh.pop %v4363
    %v4396 = vtanh.pop %v4364
    %v4397 = vtanh.pop %v4365
    %v4398 = vtanh.pop %v4366
    %v4399 = vmul.f32 %v4367, 0.5
    %v4400 = vmul.f32 %v4368, 0.5
    %v4401 = vmul.f32 %v4369, 0.5
    %v4402 = vmul.f32 %v4370, 0.5
    %v4403 = vmul.f32 %v4371, 0.5
    %v4404 = vmul.f32 %v4372, 0.5
    %v4405 = vmul.f32 %v4373, 0.5
    %v4406 = vmul.f32 %v4374, 0.5
    %v4407 = vmul.f32 %v4375, 0.5
    %v4408 = vmul.f32 %v4376, 0.5
    %v4409 = vmul.f32 %v4377, 0.5
    %v4410 = vmul.f32 %v4378, 0.5
    %v4411 = vmul.f32 %v4379, 0.5
    %v4412 = vmul.f32 %v4380, 0.5
    %v4413 = vmul.f32 %v4381, 0.5
    %v4414 = vmul.f32 %v4382, 0.5
    %v4415 = vmul.f32 %v4383, 0.5
    %v4416 = vmul.f32 %v4384, 0.5
    %v4417 = vmul.f32 %v4385, 0.5
    %v4418 = vmul.f32 %v4386, 0.5
    %v4419 = vmul.f32 %v4387, 0.5
    %v4420 = vmul.f32 %v4388, 0.5
    %v4421 = vmul.f32 %v4389, 0.5
    %v4422 = vmul.f32 %v4390, 0.5
    %v4423 = vmul.f32 %v4391, 0.5
    %v4424 = vmul.f32 %v4392, 0.5
    %v4425 = vmul.f32 %v4393, 0.5
    %v4426 = vmul.f32 %v4394, 0.5
    %v4427 = vmul.f32 %v4395, 0.5
    %v4428 = vmul.f32 %v4396, 0.5
    %v4429 = vmul.f32 %v4397, 0.5
    %v4430 = vmul.f32 %v4398, 0.5
    %v4431 = vadd.f32 %v4399, 1.0
    %v4432 = vadd.f32 %v4400, 1.0
    %v4433 = vadd.f32 %v4401, 1.0
    %v4434 = vadd.f32 %v4402, 1.0
    %v4435 = vadd.f32 %v4403, 1.0
    %v4436 = vadd.f32 %v4404, 1.0
    %v4437 = vadd.f32 %v4405, 1.0
    %v4438 = vadd.f32 %v4406, 1.0
    %v4439 = vadd.f32 %v4407, 1.0
    %v4440 = vadd.f32 %v4408, 1.0
    %v4441 = vadd.f32 %v4409, 1.0
    %v4442 = vadd.f32 %v4410, 1.0
    %v4443 = vadd.f32 %v4411, 1.0
    %v4444 = vadd.f32 %v4412, 1.0
    %v4445 = vadd.f32 %v4413, 1.0
    %v4446 = vadd.f32 %v4414, 1.0
    %v4447 = vadd.f32 %v4415, 1.0
    %v4448 = vadd.f32 %v4416, 1.0
    %v4449 = vadd.f32 %v4417, 1.0
    %v4450 = vadd.f32 %v4418, 1.0
    %v4451 = vadd.f32 %v4419, 1.0
    %v4452 = vadd.f32 %v4420, 1.0
    %v4453 = vadd.f32 %v4421, 1.0
    %v4454 = vadd.f32 %v4422, 1.0
    %v4455 = vadd.f32 %v4423, 1.0
    %v4456 = vadd.f32 %v4424, 1.0
    %v4457 = vadd.f32 %v4425, 1.0
    %v4458 = vadd.f32 %v4426, 1.0
    %v4459 = vadd.f32 %v4427, 1.0
    %v4460 = vadd.f32 %v4428, 1.0
    %v4461 = vadd.f32 %v4429, 1.0
    %v4462 = vadd.f32 %v4430, 1.0
    %v4495 = vrot.slane %v4431, 2
    %v4496 = vrot.slane %v4432, 2
    %v4497 = vsel %vm3263, %v4495, %v4496
    %v4498 = vrot.slane %v4433, 2
    %v4499 = vrot.slane %v4434, 2
    %v4500 = vsel %vm3263, %v4498, %v4499
    %v4501 = vrot.slane %v4435, 2
    %v4502 = vrot.slane %v4436, 2
    %v4503 = vsel %vm3263, %v4501, %v4502
    %v4504 = vrot.slane %v4437, 2
    %v4505 = vrot.slane %v4438, 2
    %v4506 = vsel %vm3263, %v4504, %v4505
    %v4507 = vrot.slane %v4439, 2
    %v4508 = vrot.slane %v4440, 2
    %v4509 = vsel %vm3263, %v4507, %v4508
    %v4510 = vrot.slane %v4441, 2
    %v4511 = vrot.slane %v4442, 2
    %v4512 = vsel %vm3263, %v4510, %v4511
    %v4513 = vrot.slane %v4443, 2
    %v4514 = vrot.slane %v4444, 2
    %v4515 = vsel %vm3263, %v4513, %v4514
    %v4516 = vrot.slane %v4445, 2
    %v4517 = vrot.slane %v4446, 2
    %v4518 = vsel %vm3263, %v4516, %v4517
    %v4519 = vrot.slane %v4447, 2
    %v4520 = vrot.slane %v4448, 2
    %v4521 = vsel %vm3263, %v4519, %v4520
    %v4522 = vrot.slane %v4449, 2
    %v4523 = vrot.slane %v4450, 2
    %v4524 = vsel %vm3263, %v4522, %v4523
    %v4525 = vrot.slane %v4451, 2
    %v4526 = vrot.slane %v4452, 2
    %v4527 = vsel %vm3263, %v4525, %v4526
    %v4528 = vrot.slane %v4453, 2
    %v4529 = vrot.slane %v4454, 2
    %v4530 = vsel %vm3263, %v4528, %v4529
    %v4531 = vrot.slane %v4455, 2
    %v4532 = vrot.slane %v4456, 2
    %v4533 = vsel %vm3263, %v4531, %v4532
    %v4534 = vrot.slane %v4457, 2
    %v4535 = vrot.slane %v4458, 2
    %v4536 = vsel %vm3263, %v4534, %v4535
    %v4537 = vrot.slane %v4459, 2
    %v4538 = vrot.slane %v4460, 2
    %v4539 = vsel %vm3263, %v4537, %v4538
    %v4540 = vrot.slane %v4461, 2
    %v4541 = vrot.slane %v4462, 2
    %v4542 = vsel %vm3263, %v4540, %v4541
    %v4559 = vmul.f32 %v305, %v4497
    %v4560 = vmul.f32 %v305, %v4500
    %v4561 = vmul.f32 %v305, %v4503
    %v4562 = vmul.f32 %v305, %v4506
    %v4563 = vmul.f32 %v305, %v4509
    %v4564 = vmul.f32 %v305, %v4512
    %v4565 = vmul.f32 %v305, %v4515
    %v4566 = vmul.f32 %v305, %v4518
    %v4567 = vmul.f32 %v306, %v4521
    %v4568 = vmul.f32 %v306, %v4524
    %v4569 = vmul.f32 %v306, %v4527
    %v4570 = vmul.f32 %v306, %v4530
    %v4571 = vmul.f32 %v306, %v4533
    %v4572 = vmul.f32 %v306, %v4536
    %v4573 = vmul.f32 %v306, %v4539
    %v4574 = vmul.f32 %v306, %v4542
    %v4575 = vmul.f32 %v3287, %v4146
    %v4576 = vmul.f32 %v3291, %v4150
    %v4577 = vmul.f32 %v3295, %v4154
    %v4578 = vmul.f32 %v3299, %v4158
    %v4579 = vmul.f32 %v3303, %v4162
    %v4580 = vmul.f32 %v3307, %v4166
    %v4581 = vmul.f32 %v3311, %v4170
    %v4582 = vmul.f32 %v3315, %v4174
    %v4583 = vmul.f32 %v3319, %v4178
    %v4584 = vmul.f32 %v3323, %v4182
    %v4585 = vmul.f32 %v3327, %v4186
    %v4586 = vmul.f32 %v3331, %v4190
    %v4587 = vmul.f32 %v3335, %v4194
    %v4588 = vmul.f32 %v3339, %v4198
    %v4589 = vmul.f32 %v3343, %v4202
    %v4590 = vmul.f32 %v3347, %v4206
    %4607 = vrot.lane.b32.xlu0 %v4575, 120
    %v4608 = vpop.permute.xlu0 %4607
    %4609 = vrot.lane.b32.xlu0 %v4576, 120
    %v4610 = vpop.permute.xlu0 %4609
    %4611 = vrot.lane.b32.xlu0 %v4577, 120
    %v4612 = vpop.permute.xlu0 %4611
    %4613 = vrot.lane.b32.xlu0 %v4578, 120
    %v4614 = vpop.permute.xlu0 %4613
    %4615 = vrot.lane.b32.xlu0 %v4579, 120
    %v4616 = vpop.permute.xlu0 %4615
    %4617 = vrot.lane.b32.xlu0 %v4580, 120
    %v4618 = vpop.permute.xlu0 %4617
    %4619 = vrot.lane.b32.xlu0 %v4581, 120
    %v4620 = vpop.permute.xlu0 %4619
    %4621 = vrot.lane.b32.xlu0 %v4582, 120
    %v4622 = vpop.permute.xlu0 %4621
    %4623 = vrot.lane.b32.xlu0 %v4583, 120
    %v4624 = vpop.permute.xlu0 %4623
    %4625 = vrot.lane.b32.xlu0 %v4584, 120
    %v4626 = vpop.permute.xlu0 %4625
    %4627 = vrot.lane.b32.xlu0 %v4585, 120
    %v4628 = vpop.permute.xlu0 %4627
    %4629 = vrot.lane.b32.xlu0 %v4586, 120
    %v4630 = vpop.permute.xlu0 %4629
    %4631 = vrot.lane.b32.xlu0 %v4587, 120
    %v4632 = vpop.permute.xlu0 %4631
    %4633 = vrot.lane.b32.xlu0 %v4588, 120
    %v4634 = vpop.permute.xlu0 %4633
    %4635 = vrot.lane.b32.xlu0 %v4589, 120
    %v4636 = vpop.permute.xlu0 %4635
    %4637 = vrot.lane.b32.xlu0 %v4590, 120
    %v4638 = vpop.permute.xlu0 %4637
    %v4655 = vmul.f32 %v4559, %v4608
    %v4656 = vmul.f32 %v4560, %v4610
    %v4657 = vmul.f32 %v4561, %v4612
    %v4658 = vmul.f32 %v4562, %v4614
    %v4659 = vmul.f32 %v4563, %v4616
    %v4660 = vmul.f32 %v4564, %v4618
    %v4661 = vmul.f32 %v4565, %v4620
    %v4662 = vmul.f32 %v4566, %v4622
    %v4663 = vmul.f32 %v4567, %v4624
    %v4664 = vmul.f32 %v4568, %v4626
    %v4665 = vmul.f32 %v4569, %v4628
    %v4666 = vmul.f32 %v4570, %v4630
    %v4667 = vmul.f32 %v4571, %v4632
    %v4668 = vmul.f32 %v4572, %v4634
    %v4669 = vmul.f32 %v4573, %v4636
    %v4670 = vmul.f32 %v4574, %v4638
    %v4671 = vsel %vm157, %v4655, 0.0
    %4672 = vadd.xlane.f32.xlu0 %v4671
    %v4673 = vpop.xlane.xlu0 %4672
    %v4674 = vsel %vm157, %v4656, 0.0
    %4675 = vadd.xlane.f32.xlu0 %v4674
    %v4676 = vpop.xlane.xlu0 %4675
    %v4677 = vsel %vm157, %v4657, 0.0
    %4678 = vadd.xlane.f32.xlu0 %v4677
    %v4679 = vpop.xlane.xlu0 %4678
    %v4680 = vsel %vm157, %v4658, 0.0
    %4681 = vadd.xlane.f32.xlu0 %v4680
    %v4682 = vpop.xlane.xlu0 %4681
    %v4683 = vsel %vm157, %v4659, 0.0
    %4684 = vadd.xlane.f32.xlu0 %v4683
    %v4685 = vpop.xlane.xlu0 %4684
    %v4686 = vsel %vm157, %v4660, 0.0
    %4687 = vadd.xlane.f32.xlu0 %v4686
    %v4688 = vpop.xlane.xlu0 %4687
    %v4689 = vsel %vm157, %v4661, 0.0
    %4690 = vadd.xlane.f32.xlu0 %v4689
    %v4691 = vpop.xlane.xlu0 %4690
    %v4692 = vsel %vm157, %v4662, 0.0
    %4693 = vadd.xlane.f32.xlu0 %v4692
    %v4694 = vpop.xlane.xlu0 %4693
    %v4695 = vsel %vm157, %v4663, 0.0
    %4696 = vadd.xlane.f32.xlu0 %v4695
    %v4697 = vpop.xlane.xlu0 %4696
    %v4698 = vsel %vm157, %v4664, 0.0
    %4699 = vadd.xlane.f32.xlu0 %v4698
    %v4700 = vpop.xlane.xlu0 %4699
    %v4701 = vsel %vm157, %v4665, 0.0
    %4702 = vadd.xlane.f32.xlu0 %v4701
    %v4703 = vpop.xlane.xlu0 %4702
    %v4704 = vsel %vm157, %v4666, 0.0
    %4705 = vadd.xlane.f32.xlu0 %v4704
    %v4706 = vpop.xlane.xlu0 %4705
    %v4707 = vsel %vm157, %v4667, 0.0
    %4708 = vadd.xlane.f32.xlu0 %v4707
    %v4709 = vpop.xlane.xlu0 %4708
    %v4710 = vsel %vm157, %v4668, 0.0
    %4711 = vadd.xlane.f32.xlu0 %v4710
    %v4712 = vpop.xlane.xlu0 %4711
    %v4713 = vsel %vm157, %v4669, 0.0
    %4714 = vadd.xlane.f32.xlu0 %v4713
    %v4715 = vpop.xlane.xlu0 %4714
    %v4716 = vsel %vm157, %v4670, 0.0
    %4717 = vadd.xlane.f32.xlu0 %v4716
    %v4718 = vpop.xlane.xlu0 %4717
    %v4719 = vadd.f32 %v4673, 1e-06
    %v4720 = vadd.f32 %v4676, 1e-06
    %v4721 = vadd.f32 %v4679, 1e-06
    %v4722 = vadd.f32 %v4682, 1e-06
    %v4723 = vadd.f32 %v4685, 1e-06
    %v4724 = vadd.f32 %v4688, 1e-06
    %v4725 = vadd.f32 %v4691, 1e-06
    %v4726 = vadd.f32 %v4694, 1e-06
    %v4727 = vadd.f32 %v4697, 1e-06
    %v4728 = vadd.f32 %v4700, 1e-06
    %v4729 = vadd.f32 %v4703, 1e-06
    %v4730 = vadd.f32 %v4706, 1e-06
    %v4731 = vadd.f32 %v4709, 1e-06
    %v4732 = vadd.f32 %v4712, 1e-06
    %v4733 = vadd.f32 %v4715, 1e-06
    %v4734 = vadd.f32 %v4718, 1e-06
    %v4735 = vrcp.pop %v4719
    %v4736 = vrcp.pop %v4720
    %v4737 = vrcp.pop %v4721
    %v4738 = vrcp.pop %v4722
    %v4739 = vrcp.pop %v4723
    %v4740 = vrcp.pop %v4724
    %v4741 = vrcp.pop %v4725
    %v4742 = vrcp.pop %v4726
    %v4743 = vrcp.pop %v4727
    %v4744 = vrcp.pop %v4728
    %v4745 = vrcp.pop %v4729
    %v4746 = vrcp.pop %v4730
    %v4747 = vrcp.pop %v4731
    %v4748 = vrcp.pop %v4732
    %v4749 = vrcp.pop %v4733
    %v4750 = vrcp.pop %v4734
    %v4751 = vmul.f32 %v4655, %v4735
    %v4752 = vmul.f32 %v4656, %v4736
    %v4753 = vmul.f32 %v4657, %v4737
    %v4754 = vmul.f32 %v4658, %v4738
    %v4755 = vmul.f32 %v4659, %v4739
    %v4756 = vmul.f32 %v4660, %v4740
    %v4757 = vmul.f32 %v4661, %v4741
    %v4758 = vmul.f32 %v4662, %v4742
    %v4759 = vmul.f32 %v4663, %v4743
    %v4760 = vmul.f32 %v4664, %v4744
    %v4761 = vmul.f32 %v4665, %v4745
    %v4762 = vmul.f32 %v4666, %v4746
    %v4763 = vmul.f32 %v4667, %v4747
    %v4764 = vmul.f32 %v4668, %v4748
    %v4765 = vmul.f32 %v4669, %v4749
    %v4766 = vmul.f32 %v4670, %v4750
    %v4767 = vld [vmem:[%s6] sm:$0xf]
    %v4768 = vld [vmem:[%s6 + $0x4] sm:$0xf]
    %v4769 = vld [vmem:[%s6 + $0x8] sm:$0xf]
    %v4770 = vld [vmem:[%s6 + $0xc] sm:$0xf]
    %v4771 = vld [vmem:[%s6 + $0x10] sm:$0xf]
    %v4772 = vld [vmem:[%s6 + $0x14] sm:$0xf]
    %v4773 = vld [vmem:[%s6 + $0x18] sm:$0xf]
    %v4774 = vld [vmem:[%s6 + $0x1c] sm:$0xf]
    %v4775 = vld [vmem:[%s6 + $0x20] sm:$0xf]
    %v4776 = vld [vmem:[%s6 + $0x24] sm:$0xf]
    %v4777 = vld [vmem:[%s6 + $0x28] sm:$0xf]
    %v4778 = vld [vmem:[%s6 + $0x2c] sm:$0xf]
    %v4779 = vld [vmem:[%s6 + $0x30] sm:$0xf]
    %v4780 = vld [vmem:[%s6 + $0x34] sm:$0xf]
    %v4781 = vld [vmem:[%s6 + $0x38] sm:$0xf]
    %v4782 = vld [vmem:[%s6 + $0x3c] sm:$0xf]
    %v4783 = vld [vmem:[%s6 + $0x40] sm:$0xf]
    %v4784 = vld [vmem:[%s6 + $0x44] sm:$0xf]
    %v4785 = vld [vmem:[%s6 + $0x48] sm:$0xf]
    %v4786 = vld [vmem:[%s6 + $0x4c] sm:$0xf]
    %v4787 = vld [vmem:[%s7] sm:$0xf]
    %v4788 = vld [vmem:[%s7 + $0x4] sm:$0xf]
    %v4789 = vld [vmem:[%s7 + $0x8] sm:$0xf]
    %v4790 = vld [vmem:[%s7 + $0xc] sm:$0xf]
    %v4791 = vld [vmem:[%s7 + $0x10] sm:$0xf]
    %v4792 = vld [vmem:[%s7 + $0x14] sm:$0xf]
    %v4793 = vld [vmem:[%s7 + $0x18] sm:$0xf]
    %v4794 = vld [vmem:[%s7 + $0x1c] sm:$0xf]
    %v4795 = vld [vmem:[%s7 + $0x20] sm:$0xf]
    %v4796 = vld [vmem:[%s7 + $0x24] sm:$0xf]
    %v4797 = vld [vmem:[%s7 + $0x28] sm:$0xf]
    %v4798 = vld [vmem:[%s7 + $0x2c] sm:$0xf]
    %v4799 = vld [vmem:[%s7 + $0x30] sm:$0xf]
    %v4800 = vld [vmem:[%s7 + $0x34] sm:$0xf]
    %v4801 = vld [vmem:[%s7 + $0x38] sm:$0xf]
    %v4802 = vld [vmem:[%s7 + $0x3c] sm:$0xf]
    %v4803 = vld [vmem:[%s7 + $0x40] sm:$0xf]
    %v4804 = vld [vmem:[%s7 + $0x44] sm:$0xf]
    %v4805 = vld [vmem:[%s7 + $0x48] sm:$0xf]
    %v4806 = vld [vmem:[%s7 + $0x4c] sm:$0xf]
    %v4808 = vsel %vm157, %v4751, 0
    %4810 = vmatprep.subr.mxu0 0.0
    %4811 = vmatpush1.msra.mxu0 0.0
    %4812 = vmatprep.subr.mxu0 0.0
    %4813 = vmatpush1.msra.mxu0 0.0
    %4814 = vmatprep.subr.mxu0 0.0
    %4815 = vmatpush1.msra.mxu0 0.0
    %4816 = vmatprep.subr.mxu0 0.0
    %4817 = vmatpush1.msra.mxu0 0.0
    %4818 = vmatprep.subr.mxu0 0.0
    %4819 = vmatpush1.msra.mxu0 0.0
    %4820 = vmatprep.subr.mxu0 0.0
    %4821 = vmatpush1.msra.mxu0 0.0
    %4822 = vmatprep.subr.mxu0 0.0
    %4823 = vmatpush1.msra.mxu0 0.0
    %4824 = vmatprep.subr.mxu0 0.0
    %4825 = vmatpush1.msra.mxu0 0.0
    %4826 = vmatprep.subr.mxu0 0.0
    %4827 = vmatpush1.msra.mxu0 0.0
    %4828 = vmatprep.subr.mxu0 0.0
    %4829 = vmatpush1.msra.mxu0 0.0
    %4830 = vmatprep.subr.mxu0 0.0
    %4831 = vmatpush1.msra.mxu0 0.0
    %4832 = vmatprep.subr.mxu0 0.0
    %4833 = vmatpush1.msra.mxu0 0.0
    %4834 = vmatprep.subr.mxu0 0.0
    %4835 = vmatpush1.msra.mxu0 0.0
    %4836 = vmatprep.subr.mxu0 0.0
    %4837 = vmatpush1.msra.mxu0 0.0
    %4838 = vmatprep.subr.mxu0 0.0
    %4839 = vmatpush1.msra.mxu0 0.0
    %4840 = vmatprep.subr.mxu0 0.0
    %4841 = vmatpush1.msra.mxu0 0.0
    %4842 = vmatprep.subr.mxu0 0.0
    %4843 = vmatpush1.msra.mxu0 0.0
    %4844 = vmatprep.subr.mxu0 0.0
    %4845 = vmatpush1.msra.mxu0 0.0
    %4846 = vmatprep.subr.mxu0 0.0
    %4847 = vmatpush1.msra.mxu0 0.0
    %4848 = vmatprep.subr.mxu0 0.0
    %4849 = vmatpush1.msra.mxu0 0.0
    %4850 = vmatprep.subr.mxu0 0.0
    %4851 = vmatpush1.msra.mxu0 0.0
    %4852 = vmatprep.subr.mxu0 0.0
    %4853 = vmatpush1.msra.mxu0 0.0
    %4854 = vmatprep.subr.mxu0 0.0
    %4855 = vmatpush1.msra.mxu0 0.0
    %4856 = vmatprep.subr.mxu0 0.0
    %4857 = vmatpush1.msra.mxu0 0.0
    %4858 = vmatprep.subr.mxu0 0.0
    %4859 = vmatpush1.msra.mxu0 0.0
    %4860 = vmatprep.subr.mxu0 0.0
    %4861 = vmatpush1.msra.mxu0 0.0
    %4862 = vmatprep.subr.mxu0 0.0
    %4863 = vmatpush1.msra.mxu0 0.0
    %4864 = vmatprep.subr.mxu0 0.0
    %4865 = vmatpush1.msra.mxu0 0.0
    %4866 = vmatprep.subr.mxu0 0.0
    %4867 = vmatpush1.msra.mxu0 0.0
    %4868 = vmatprep.subr.mxu0 0.0
    %4869 = vmatpush1.msra.mxu0 0.0
    %4870 = vmatprep.subr.mxu0 0.0
    %4871 = vmatpush1.msra.mxu0 0.0
    %4872 = vmatprep.subr.mxu0 0.0
    %4873 = vmatpush1.msra.mxu0 0.0
    %4874 = vmatprep.mubr.f32.mxu0 0.0
    %4875 = vmatmul.mubr.f32.gmra.mrb[0].mxu0 %v4808
    %v4876 = vpop.f32.mrb[0].mxu0
    %v4877 = vadd.f32 0.0, %v4876
    %v4878 = vpop.f32.mrb[0].mxu0
    %4879 = vdwg.mxu0
    %v4881 = vsel %vm157, %v4759, 0
    %4883 = vmatprep.subr.mxu0 0.0
    %4884 = vmatpush1.msra.mxu0 0.0
    %4885 = vmatprep.subr.mxu0 0.0
    %4886 = vmatpush1.msra.mxu0 0.0
    %4887 = vmatprep.subr.mxu0 0.0
    %4888 = vmatpush1.msra.mxu0 0.0
    %4889 = vmatprep.subr.mxu0 0.0
    %4890 = vmatpush1.msra.mxu0 0.0
    %4891 = vmatprep.subr.mxu0 0.0
    %4892 = vmatpush1.msra.mxu0 0.0
    %4893 = vmatprep.subr.mxu0 0.0
    %4894 = vmatpush1.msra.mxu0 0.0
    %4895 = vmatprep.subr.mxu0 0.0
    %4896 = vmatpush1.msra.mxu0 0.0
    %4897 = vmatprep.subr.mxu0 0.0
    %4898 = vmatpush1.msra.mxu0 0.0
    %4899 = vmatprep.subr.mxu0 0.0
    %4900 = vmatpush1.msra.mxu0 0.0
    %4901 = vmatprep.subr.mxu0 0.0
    %4902 = vmatpush1.msra.mxu0 0.0
    %4903 = vmatprep.subr.mxu0 0.0
    %4904 = vmatpush1.msra.mxu0 0.0
    %4905 = vmatprep.subr.mxu0 0.0
    %4906 = vmatpush1.msra.mxu0 0.0
    %4907 = vmatprep.subr.mxu0 0.0
    %4908 = vmatpush1.msra.mxu0 0.0
    %4909 = vmatprep.subr.mxu0 0.0
    %4910 = vmatpush1.msra.mxu0 0.0
    %4911 = vmatprep.subr.mxu0 0.0
    %4912 = vmatpush1.msra.mxu0 0.0
    %4913 = vmatprep.subr.mxu0 0.0
    %4914 = vmatpush1.msra.mxu0 0.0
    %4915 = vmatprep.subr.mxu0 0.0
    %4916 = vmatpush1.msra.mxu0 0.0
    %4917 = vmatprep.subr.mxu0 0.0
    %4918 = vmatpush1.msra.mxu0 0.0
    %4919 = vmatprep.subr.mxu0 0.0
    %4920 = vmatpush1.msra.mxu0 0.0
    %4921 = vmatprep.subr.mxu0 0.0
    %4922 = vmatpush1.msra.mxu0 0.0
    %4923 = vmatprep.subr.mxu0 0.0
    %4924 = vmatpush1.msra.mxu0 0.0
    %4925 = vmatprep.subr.mxu0 0.0
    %4926 = vmatpush1.msra.mxu0 0.0
    %4927 = vmatprep.subr.mxu0 0.0
    %4928 = vmatpush1.msra.mxu0 0.0
    %4929 = vmatprep.subr.mxu0 0.0
    %4930 = vmatpush1.msra.mxu0 0.0
    %4931 = vmatprep.subr.mxu0 0.0
    %4932 = vmatpush1.msra.mxu0 0.0
    %4933 = vmatprep.subr.mxu0 0.0
    %4934 = vmatpush1.msra.mxu0 0.0
    %4935 = vmatprep.subr.mxu0 0.0
    %4936 = vmatpush1.msra.mxu0 0.0
    %4937 = vmatprep.subr.mxu0 0.0
    %4938 = vmatpush1.msra.mxu0 0.0
    %4939 = vmatprep.subr.mxu0 0.0
    %4940 = vmatpush1.msra.mxu0 0.0
    %4941 = vmatprep.subr.mxu0 0.0
    %4942 = vmatpush1.msra.mxu0 0.0
    %4943 = vmatprep.subr.mxu0 0.0
    %4944 = vmatpush1.msra.mxu0 0.0
    %4945 = vmatprep.subr.mxu0 0.0
    %4946 = vmatpush1.msra.mxu0 0.0
    %4947 = vmatprep.mubr.f32.mxu0 0.0
    %4948 = vmatmul.mubr.f32.gmra.mrb[0].mxu0 %v4881
    %v4949 = vpop.f32.mrb[0].mxu0
    %v4950 = vadd.f32 0.0, %v4949
    %v4951 = vpop.f32.mrb[0].mxu0
    %4952 = vdwg.mxu0
    %v4953 = vmul.f32 %v4877, %v3367
    %v4954 = vmul.f32 %v4950, %v3372
    %v4955 = vmul.f32 %v4877, %v3392
    %v4956 = vmul.f32 %v4950, %v3396
    %v4957 = vmul.f32 %v4877, %v3416
    %v4958 = vmul.f32 %v4950, %v3420
    %v4959 = vmul.f32 %v4877, %v3440
    %v4960 = vmul.f32 %v4950, %v3444
    %v4961 = vmul.f32 %v4877, %v3464
    %v4962 = vmul.f32 %v4950, %v3468
    %4965 = vrot.lane.b32.xlu0 %v4955, 32
    %v4966 = vpop.permute.xlu0 %4965
    %4967 = vrot.lane.b32.xlu0 %v4956, 32
    %v4968 = vpop.permute.xlu0 %4967
    %4973 = vrot.lane.b32.xlu0 %v4957, 64
    %v4974 = vpop.permute.xlu0 %4973
    %4975 = vrot.lane.b32.xlu0 %v4958, 64
    %v4976 = vpop.permute.xlu0 %4975
    %4981 = vrot.lane.b32.xlu0 %v4959, 96
    %v4982 = vpop.permute.xlu0 %4981
    %4983 = vrot.lane.b32.xlu0 %v4960, 96
    %v4984 = vpop.permute.xlu0 %4983
    %v4987 = vsel %vm3684, %v4953, %v4966
    %v4988 = vsel %vm3684, %v4954, %v4968
    %v4989 = vsel %vm56, %v4987, %v4974
    %v4990 = vsel %vm56, %v4988, %v4976
    %v4991 = vsel %vm3717, %v4989, %v4982
    %v4992 = vsel %vm3717, %v4990, %v4984
    %v4993 = vpack.c.bf16 %v4992, %v4991
    %v4994 = vpack.c.bf16 %v4962, %v4961
    %v5015 = vunpack.c.l.b16 %v4767
    %v5016 = vunpack.c.l.b16 %v4768
    %v5017 = vunpack.c.l.b16 %v4769
    %v5018 = vunpack.c.l.b16 %v4770
    %v5019 = vunpack.c.l.b16 %v4771
    %v5020 = vunpack.c.l.b16 %v4772
    %v5021 = vunpack.c.l.b16 %v4773
    %v5022 = vunpack.c.l.b16 %v4774
    %v5023 = vunpack.c.l.b16 %v4775
    %v5024 = vunpack.c.l.b16 %v4776
    %v5025 = vunpack.c.l.b16 %v4777
    %v5026 = vunpack.c.l.b16 %v4778
    %v5027 = vunpack.c.l.b16 %v4779
    %v5028 = vunpack.c.l.b16 %v4780
    %v5029 = vunpack.c.l.b16 %v4781
    %v5030 = vunpack.c.l.b16 %v4782
    %v5031 = vunpack.c.l.b16 %v4783
    %v5032 = vunpack.c.l.b16 %v4784
    %v5033 = vunpack.c.l.b16 %v4785
    %v5034 = vunpack.c.l.b16 %v4786
    %v5035 = vpack.c.b16 %v5016, %v5015
    %v5036 = vpack.c.b16 %v5018, %v5017
    %v5037 = vpack.c.b16 %v5020, %v5019
    %v5038 = vpack.c.b16 %v5022, %v5021
    %v5039 = vpack.c.b16 %v5024, %v5023
    %v5040 = vpack.c.b16 %v5026, %v5025
    %v5041 = vpack.c.b16 %v5028, %v5027
    %v5042 = vpack.c.b16 %v5030, %v5029
    %v5043 = vpack.c.b16 %v5032, %v5031
    %v5044 = vpack.c.b16 %v5034, %v5033
    %v5056 = vsel %vm3684, %v4994, 0
    %5058 = vmatprep.subr.bf16.mxu0 0
    %5059 = vmatpush1.bf16.msra.mxu0 %v5035
    %5060 = vmatprep.subr.bf16.mxu0 0
    %5061 = vmatpush1.bf16.msra.mxu0 %v5036
    %5062 = vmatprep.subr.bf16.mxu0 0
    %5063 = vmatpush1.bf16.msra.mxu0 %v5037
    %5064 = vmatprep.subr.bf16.mxu0 0
    %5065 = vmatpush1.bf16.msra.mxu0 %v5038
    %5066 = vmatprep.subr.bf16.mxu0 0
    %5067 = vmatpush1.bf16.msra.mxu0 %v5039
    %5068 = vmatprep.subr.bf16.mxu0 0
    %5069 = vmatpush1.bf16.msra.mxu0 %v5040
    %5070 = vmatprep.subr.bf16.mxu0 0
    %5071 = vmatpush1.bf16.msra.mxu0 %v5041
    %5072 = vmatprep.subr.bf16.mxu0 0
    %5073 = vmatpush1.bf16.msra.mxu0 %v5042
    %5074 = vmatprep.subr.bf16.mxu0 0
    %5075 = vmatpush1.bf16.msra.mxu0 %v5043
    %5076 = vmatprep.subr.bf16.mxu0 0
    %5077 = vmatpush1.bf16.msra.mxu0 %v5044
    %5078 = vmatprep.subr.bf16.mxu0 0
    %5079 = vmatpush1.bf16.msra.mxu0 0
    %5080 = vmatprep.subr.bf16.mxu0 0
    %5081 = vmatpush1.bf16.msra.mxu0 0
    %5082 = vmatprep.subr.bf16.mxu0 0
    %5083 = vmatpush1.bf16.msra.mxu0 0
    %5084 = vmatprep.subr.bf16.mxu0 0
    %5085 = vmatpush1.bf16.msra.mxu0 0
    %5086 = vmatprep.subr.bf16.mxu0 0
    %5087 = vmatpush1.bf16.msra.mxu0 0
    %5088 = vmatprep.subr.bf16.mxu0 0
    %5089 = vmatpush1.bf16.msra.mxu0 0
    %5090 = vmatprep.mubr.bf16.mxu0 %v5056
    %5091 = vmatmul.mubr.bf16.gmra.mrb[0].mxu0 %v4993
    %v5092 = vpop.f32.mrb[0].mxu0
    %v5093 = vadd.f32 0.0, %v5092
    %v5094 = vpop.f32.mrb[0].mxu0
    %v5095 = vpop.f32.mrb[0].mxu0
    %v5096 = vadd.f32 0.0, %v5095
    %v5097 = vpop.f32.mrb[0].mxu0
    %5098 = vdwg.mxu0
    %v5099 = vadd.f32 %v3917, %v5093
    %v5100 = vadd.f32 %v3949, %v5096
    %v5101 = vmul.f32 %v5099, 0.5
    %v5102 = vmul.f32 %v5100, 0.5
    %v5103 = vtanh.pop %v5101
    %v5104 = vtanh.pop %v5102
    %v5105 = vadd.f32 %v5103, 1.0
    %v5106 = vadd.f32 %v5104, 1.0
    %v5107 = vmul.f32 %v5105, 0.5
    %v5108 = vmul.f32 %v5106, 0.5
    %v5109 = vmul.f32 %v5107, %v4877
    %v5110 = vmul.f32 %v5108, %v4950
    %v5111 = vmul.f32 %v5109, %v3367
    %v5112 = vmul.f32 %v5110, %v3372
    %v5113 = vmul.f32 %v5109, %v3392
    %v5114 = vmul.f32 %v5110, %v3396
    %v5115 = vmul.f32 %v5109, %v3416
    %v5116 = vmul.f32 %v5110, %v3420
    %v5117 = vmul.f32 %v5109, %v3440
    %v5118 = vmul.f32 %v5110, %v3444
    %v5119 = vmul.f32 %v5109, %v3464
    %v5120 = vmul.f32 %v5110, %v3468
    %5123 = vrot.lane.b32.xlu0 %v5113, 32
    %v5124 = vpop.permute.xlu0 %5123
    %5125 = vrot.lane.b32.xlu0 %v5114, 32
    %v5126 = vpop.permute.xlu0 %5125
    %5131 = vrot.lane.b32.xlu0 %v5115, 64
    %v5132 = vpop.permute.xlu0 %5131
    %5133 = vrot.lane.b32.xlu0 %v5116, 64
    %v5134 = vpop.permute.xlu0 %5133
    %5139 = vrot.lane.b32.xlu0 %v5117, 96
    %v5140 = vpop.permute.xlu0 %5139
    %5141 = vrot.lane.b32.xlu0 %v5118, 96
    %v5142 = vpop.permute.xlu0 %5141
    %v5145 = vsel %vm3684, %v5111, %v5124
    %v5146 = vsel %vm3684, %v5112, %v5126
    %v5147 = vsel %vm56, %v5145, %v5132
    %v5148 = vsel %vm56, %v5146, %v5134
    %v5149 = vsel %vm3717, %v5147, %v5140
    %v5150 = vsel %vm3717, %v5148, %v5142
    %v5151 = vpack.c.bf16 %v5150, %v5149
    %v5152 = vpack.c.bf16 %v5120, %v5119
    %v5173 = vunpack.c.l.b16 %v4787
    %v5174 = vunpack.c.l.b16 %v4788
    %v5175 = vunpack.c.l.b16 %v4789
    %v5176 = vunpack.c.l.b16 %v4790
    %v5177 = vunpack.c.l.b16 %v4791
    %v5178 = vunpack.c.l.b16 %v4792
    %v5179 = vunpack.c.l.b16 %v4793
    %v5180 = vunpack.c.l.b16 %v4794
    %v5181 = vunpack.c.l.b16 %v4795
    %v5182 = vunpack.c.l.b16 %v4796
    %v5183 = vunpack.c.l.b16 %v4797
    %v5184 = vunpack.c.l.b16 %v4798
    %v5185 = vunpack.c.l.b16 %v4799
    %v5186 = vunpack.c.l.b16 %v4800
    %v5187 = vunpack.c.l.b16 %v4801
    %v5188 = vunpack.c.l.b16 %v4802
    %v5189 = vunpack.c.l.b16 %v4803
    %v5190 = vunpack.c.l.b16 %v4804
    %v5191 = vunpack.c.l.b16 %v4805
    %v5192 = vunpack.c.l.b16 %v4806
    %v5193 = vpack.c.b16 %v5174, %v5173
    %v5194 = vpack.c.b16 %v5176, %v5175
    %v5195 = vpack.c.b16 %v5178, %v5177
    %v5196 = vpack.c.b16 %v5180, %v5179
    %v5197 = vpack.c.b16 %v5182, %v5181
    %v5198 = vpack.c.b16 %v5184, %v5183
    %v5199 = vpack.c.b16 %v5186, %v5185
    %v5200 = vpack.c.b16 %v5188, %v5187
    %v5201 = vpack.c.b16 %v5190, %v5189
    %v5202 = vpack.c.b16 %v5192, %v5191
    %v5214 = vsel %vm3684, %v5152, 0
    %5216 = vmatprep.subr.bf16.mxu0 0
    %5217 = vmatpush1.bf16.msra.mxu0 %v5193
    %5218 = vmatprep.subr.bf16.mxu0 0
    %5219 = vmatpush1.bf16.msra.mxu0 %v5194
    %5220 = vmatprep.subr.bf16.mxu0 0
    %5221 = vmatpush1.bf16.msra.mxu0 %v5195
    %5222 = vmatprep.subr.bf16.mxu0 0
    %5223 = vmatpush1.bf16.msra.mxu0 %v5196
    %5224 = vmatprep.subr.bf16.mxu0 0
    %5225 = vmatpush1.bf16.msra.mxu0 %v5197
    %5226 = vmatprep.subr.bf16.mxu0 0
    %5227 = vmatpush1.bf16.msra.mxu0 %v5198
    %5228 = vmatprep.subr.bf16.mxu0 0
    %5229 = vmatpush1.bf16.msra.mxu0 %v5199
    %5230 = vmatprep.subr.bf16.mxu0 0
    %5231 = vmatpush1.bf16.msra.mxu0 %v5200
    %5232 = vmatprep.subr.bf16.mxu0 0
    %5233 = vmatpush1.bf16.msra.mxu0 %v5201
    %5234 = vmatprep.subr.bf16.mxu0 0
    %5235 = vmatpush1.bf16.msra.mxu0 %v5202
    %5236 = vmatprep.subr.bf16.mxu0 0
    %5237 = vmatpush1.bf16.msra.mxu0 0
    %5238 = vmatprep.subr.bf16.mxu0 0
    %5239 = vmatpush1.bf16.msra.mxu0 0
    %5240 = vmatprep.subr.bf16.mxu0 0
    %5241 = vmatpush1.bf16.msra.mxu0 0
    %5242 = vmatprep.subr.bf16.mxu0 0
    %5243 = vmatpush1.bf16.msra.mxu0 0
    %5244 = vmatprep.subr.bf16.mxu0 0
    %5245 = vmatpush1.bf16.msra.mxu0 0
    %5246 = vmatprep.subr.bf16.mxu0 0
    %5247 = vmatpush1.bf16.msra.mxu0 0
    %5248 = vmatprep.mubr.bf16.mxu0 %v5214
    %5249 = vmatmul.mubr.bf16.gmra.mrb[0].mxu0 %v5151
    %v5250 = vpop.f32.mrb[0].mxu0
    %v5251 = vadd.f32 0.0, %v5250
    %v5252 = vpop.f32.mrb[0].mxu0
    %v5253 = vpop.f32.mrb[0].mxu0
    %v5254 = vadd.f32 0.0, %v5253
    %v5255 = vpop.f32.mrb[0].mxu0
    %5256 = vdwg.mxu0
    %5259 = vrot.lane.b32.xlu0 %v5251, 64
    %v5260 = vpop.permute.xlu0 %5259
    %5261 = vrot.lane.b32.xlu0 %v5254, 64
    %v5262 = vpop.permute.xlu0 %5261
    %v5265 = vadd.f32 %v3917, %v5260
    %v5266 = vadd.f32 %v3949, %v5262
    %v5267 = vtanh.pop %v5265
    %v5268 = vtanh.pop %v5266
    %v5269 = vsub.f32 1.0, %v5107
    %v5270 = vsub.f32 1.0, %v5108
    %5273 = vrot.lane.b32.xlu0 %v5267, 96
    %v5274 = vpop.permute.xlu0 %5273
    %5275 = vrot.lane.b32.xlu0 %v5268, 96
    %v5276 = vpop.permute.xlu0 %5275
    %v5279 = vmul.f32 %v5269, %v5274
    %v5280 = vmul.f32 %v5270, %v5276
    %v5281 = vmul.f32 %v5107, 0.0
    %v5282 = vmul.f32 %v5108, 0.0
    %v5283 = vadd.f32 %v5279, %v5281
    %v5284 = vadd.f32 %v5280, %v5282
    %v5285 = vmul.f32 %v3287, %v5283
    %v5286 = vmul.f32 %v3319, %v5284
    %v5287 = vsub.f32 1.0, %v3287
    %v5288 = vsub.f32 1.0, %v3319
    %v5289 = vmul.f32 %v5287, 0.0
    %v5290 = vmul.f32 %v5288, 0.0
    %v5291 = vadd.f32 %v5285, %v5289
    %v5292 = vadd.f32 %v5286, %v5290
    %5294 = vrot.lane.b32.xlu0 %v5291, 96
    %v5295 = vpop.permute.xlu0 %5294
    %v5298 = vsel %vm157, %v4752, 0
    %5300 = vmatprep.subr.mxu0 0.0
    %5301 = vmatpush1.msra.mxu0 %v5295
    %5302 = vmatprep.subr.mxu0 0.0
    %5303 = vmatpush1.msra.mxu0 0.0
    %5304 = vmatprep.subr.mxu0 0.0
    %5305 = vmatpush1.msra.mxu0 0.0
    %5306 = vmatprep.subr.mxu0 0.0
    %5307 = vmatpush1.msra.mxu0 0.0
    %5308 = vmatprep.subr.mxu0 0.0
    %5309 = vmatpush1.msra.mxu0 0.0
    %5310 = vmatprep.subr.mxu0 0.0
    %5311 = vmatpush1.msra.mxu0 0.0
    %5312 = vmatprep.subr.mxu0 0.0
    %5313 = vmatpush1.msra.mxu0 0.0
    %5314 = vmatprep.subr.mxu0 0.0
    %5315 = vmatpush1.msra.mxu0 0.0
    %5316 = vmatprep.subr.mxu0 0.0
    %5317 = vmatpush1.msra.mxu0 0.0
    %5318 = vmatprep.subr.mxu0 0.0
    %5319 = vmatpush1.msra.mxu0 0.0
    %5320 = vmatprep.subr.mxu0 0.0
    %5321 = vmatpush1.msra.mxu0 0.0
    %5322 = vmatprep.subr.mxu0 0.0
    %5323 = vmatpush1.msra.mxu0 0.0
    %5324 = vmatprep.subr.mxu0 0.0
    %5325 = vmatpush1.msra.mxu0 0.0
    %5326 = vmatprep.subr.mxu0 0.0
    %5327 = vmatpush1.msra.mxu0 0.0
    %5328 = vmatprep.subr.mxu0 0.0
    %5329 = vmatpush1.msra.mxu0 0.0
    %5330 = vmatprep.subr.mxu0 0.0
    %5331 = vmatpush1.msra.mxu0 0.0
    %5332 = vmatprep.subr.mxu0 0.0
    %5333 = vmatpush1.msra.mxu0 0.0
    %5334 = vmatprep.subr.mxu0 0.0
    %5335 = vmatpush1.msra.mxu0 0.0
    %5336 = vmatprep.subr.mxu0 0.0
    %5337 = vmatpush1.msra.mxu0 0.0
    %5338 = vmatprep.subr.mxu0 0.0
    %5339 = vmatpush1.msra.mxu0 0.0
    %5340 = vmatprep.subr.mxu0 0.0
    %5341 = vmatpush1.msra.mxu0 0.0
    %5342 = vmatprep.subr.mxu0 0.0
    %5343 = vmatpush1.msra.mxu0 0.0
    %5344 = vmatprep.subr.mxu0 0.0
    %5345 = vmatpush1.msra.mxu0 0.0
    %5346 = vmatprep.subr.mxu0 0.0
    %5347 = vmatpush1.msra.mxu0 0.0
    %5348 = vmatprep.subr.mxu0 0.0
    %5349 = vmatpush1.msra.mxu0 0.0
    %5350 = vmatprep.subr.mxu0 0.0
    %5351 = vmatpush1.msra.mxu0 0.0
    %5352 = vmatprep.subr.mxu0 0.0
    %5353 = vmatpush1.msra.mxu0 0.0
    %5354 = vmatprep.subr.mxu0 0.0
    %5355 = vmatpush1.msra.mxu0 0.0
    %5356 = vmatprep.subr.mxu0 0.0
    %5357 = vmatpush1.msra.mxu0 0.0
    %5358 = vmatprep.subr.mxu0 0.0
    %5359 = vmatpush1.msra.mxu0 0.0
    %5360 = vmatprep.subr.mxu0 0.0
    %5361 = vmatpush1.msra.mxu0 0.0
    %5362 = vmatprep.subr.mxu0 0.0
    %5363 = vmatpush1.msra.mxu0 0.0
    %5364 = vmatprep.mubr.f32.mxu0 0.0
    %5365 = vmatmul.mubr.f32.gmra.mrb[0].mxu0 %v5298
    %v5366 = vpop.f32.mrb[0].mxu0
    %v5367 = vadd.f32 0.0, %v5366
    %v5368 = vpop.f32.mrb[0].mxu0
    %5369 = vdwg.mxu0
    %5371 = vrot.lane.b32.xlu0 %v5292, 96
    %v5372 = vpop.permute.xlu0 %5371
    %v5375 = vsel %vm157, %v4760, 0
    %5377 = vmatprep.subr.mxu0 0.0
    %5378 = vmatpush1.msra.mxu0 %v5372
    %5379 = vmatprep.subr.mxu0 0.0
    %5380 = vmatpush1.msra.mxu0 0.0
    %5381 = vmatprep.subr.mxu0 0.0
    %5382 = vmatpush1.msra.mxu0 0.0
    %5383 = vmatprep.subr.mxu0 0.0
    %5384 = vmatpush1.msra.mxu0 0.0
    %5385 = vmatprep.subr.mxu0 0.0
    %5386 = vmatpush1.msra.mxu0 0.0
    %5387 = vmatprep.subr.mxu0 0.0
    %5388 = vmatpush1.msra.mxu0 0.0
    %5389 = vmatprep.subr.mxu0 0.0
    %5390 = vmatpush1.msra.mxu0 0.0
    %5391 = vmatprep.subr.mxu0 0.0
    %5392 = vmatpush1.msra.mxu0 0.0
    %5393 = vmatprep.subr.mxu0 0.0
    %5394 = vmatpush1.msra.mxu0 0.0
    %5395 = vmatprep.subr.mxu0 0.0
    %5396 = vmatpush1.msra.mxu0 0.0
    %5397 = vmatprep.subr.mxu0 0.0
    %5398 = vmatpush1.msra.mxu0 0.0
    %5399 = vmatprep.subr.mxu0 0.0
    %5400 = vmatpush1.msra.mxu0 0.0
    %5401 = vmatprep.subr.mxu0 0.0
    %5402 = vmatpush1.msra.mxu0 0.0
    %5403 = vmatprep.subr.mxu0 0.0
    %5404 = vmatpush1.msra.mxu0 0.0
    %5405 = vmatprep.subr.mxu0 0.0
    %5406 = vmatpush1.msra.mxu0 0.0
    %5407 = vmatprep.subr.mxu0 0.0
    %5408 = vmatpush1.msra.mxu0 0.0
    %5409 = vmatprep.subr.mxu0 0.0
    %5410 = vmatpush1.msra.mxu0 0.0
    %5411 = vmatprep.subr.mxu0 0.0
    %5412 = vmatpush1.msra.mxu0 0.0
    %5413 = vmatprep.subr.mxu0 0.0
    %5414 = vmatpush1.msra.mxu0 0.0
    %5415 = vmatprep.subr.mxu0 0.0
    %5416 = vmatpush1.msra.mxu0 0.0
    %5417 = vmatprep.subr.mxu0 0.0
    %5418 = vmatpush1.msra.mxu0 0.0
    %5419 = vmatprep.subr.mxu0 0.0
    %5420 = vmatpush1.msra.mxu0 0.0
    %5421 = vmatprep.subr.mxu0 0.0
    %5422 = vmatpush1.msra.mxu0 0.0
    %5423 = vmatprep.subr.mxu0 0.0
    %5424 = vmatpush1.msra.mxu0 0.0
    %5425 = vmatprep.subr.mxu0 0.0
    %5426 = vmatpush1.msra.mxu0 0.0
    %5427 = vmatprep.subr.mxu0 0.0
    %5428 = vmatpush1.msra.mxu0 0.0
    %5429 = vmatprep.subr.mxu0 0.0
    %5430 = vmatpush1.msra.mxu0 0.0
    %5431 = vmatprep.subr.mxu0 0.0
    %5432 = vmatpush1.msra.mxu0 0.0
    %5433 = vmatprep.subr.mxu0 0.0
    %5434 = vmatpush1.msra.mxu0 0.0
    %5435 = vmatprep.subr.mxu0 0.0
    %5436 = vmatpush1.msra.mxu0 0.0
    %5437 = vmatprep.subr.mxu0 0.0
    %5438 = vmatpush1.msra.mxu0 0.0
    %5439 = vmatprep.subr.mxu0 0.0
    %5440 = vmatpush1.msra.mxu0 0.0
    %5441 = vmatprep.mubr.f32.mxu0 0.0
    %5442 = vmatmul.mubr.f32.gmra.mrb[0].mxu0 %v5375
    %v5443 = vpop.f32.mrb[0].mxu0
    %v5444 = vadd.f32 0.0, %v5443
    %v5445 = vpop.f32.mrb[0].mxu0
    %5446 = vdwg.mxu0
    %v5447 = vmul.f32 %v5367, %v3367
    %v5448 = vmul.f32 %v5444, %v3372
    %v5449 = vmul.f32 %v5367, %v3392
    %v5450 = vmul.f32 %v5444, %v3396
    %v5451 = vmul.f32 %v5367, %v3416
    %v5452 = vmul.f32 %v5444, %v3420
    %v5453 = vmul.f32 %v5367, %v3440
    %v5454 = vmul.f32 %v5444, %v3444
    %v5455 = vmul.f32 %v5367, %v3464
    %v5456 = vmul.f32 %v5444, %v3468
    %5459 = vrot.lane.b32.xlu0 %v5449, 32
    %v5460 = vpop.permute.xlu0 %5459
    %5461 = vrot.lane.b32.xlu0 %v5450, 32
    %v5462 = vpop.permute.xlu0 %5461
    %5467 = vrot.lane.b32.xlu0 %v5451, 64
    %v5468 = vpop.permute.xlu0 %5467
    %5469 = vrot.lane.b32.xlu0 %v5452, 64
    %v5470 = vpop.permute.xlu0 %5469
    %5475 = vrot.lane.b32.xlu0 %v5453, 96
    %v5476 = vpop.permute.xlu0 %5475
    %5477 = vrot.lane.b32.xlu0 %v5454, 96
    %v5478 = vpop.permute.xlu0 %5477
    %v5481 = vsel %vm3684, %v5447, %v5460
    %v5482 = vsel %vm3684, %v5448, %v5462
    %v5483 = vsel %vm56, %v5481, %v5468
    %v5484 = vsel %vm56, %v5482, %v5470
    %v5485 = vsel %vm3717, %v5483, %v5476
    %v5486 = vsel %vm3717, %v5484, %v5478
    %v5487 = vpack.c.bf16 %v5486, %v5485
    %v5488 = vpack.c.bf16 %v5456, %v5455
    %v5490 = vsel %vm3684, %v5488, 0
    %5492 = vmatprep.subr.bf16.mxu0 0
    %5493 = vmatpush1.bf16.msra.mxu0 %v5035
    %5494 = vmatprep.subr.bf16.mxu0 0
    %5495 = vmatpush1.bf16.msra.mxu0 %v5036
    %5496 = vmatprep.subr.bf16.mxu0 0
    %5497 = vmatpush1.bf16.msra.mxu0 %v5037
    %5498 = vmatprep.subr.bf16.mxu0 0
    %5499 = vmatpush1.bf16.msra.mxu0 %v5038
    %5500 = vmatprep.subr.bf16.mxu0 0
    %5501 = vmatpush1.bf16.msra.mxu0 %v5039
    %5502 = vmatprep.subr.bf16.mxu0 0
    %5503 = vmatpush1.bf16.msra.mxu0 %v5040
    %5504 = vmatprep.subr.bf16.mxu0 0
    %5505 = vmatpush1.bf16.msra.mxu0 %v5041
    %5506 = vmatprep.subr.bf16.mxu0 0
    %5507 = vmatpush1.bf16.msra.mxu0 %v5042
    %5508 = vmatprep.subr.bf16.mxu0 0
    %5509 = vmatpush1.bf16.msra.mxu0 %v5043
    %5510 = vmatprep.subr.bf16.mxu0 0
    %5511 = vmatpush1.bf16.msra.mxu0 %v5044
    %5512 = vmatprep.subr.bf16.mxu0 0
    %5513 = vmatpush1.bf16.msra.mxu0 0
    %5514 = vmatprep.subr.bf16.mxu0 0
    %5515 = vmatpush1.bf16.msra.mxu0 0
    %5516 = vmatprep.subr.bf16.mxu0 0
    %5517 = vmatpush1.bf16.msra.mxu0 0
    %5518 = vmatprep.subr.bf16.mxu0 0
    %5519 = vmatpush1.bf16.msra.mxu0 0
    %5520 = vmatprep.subr.bf16.mxu0 0
    %5521 = vmatpush1.bf16.msra.mxu0 0
    %5522 = vmatprep.subr.bf16.mxu0 0
    %5523 = vmatpush1.bf16.msra.mxu0 0
    %5524 = vmatprep.mubr.bf16.mxu0 %v5490
    %5525 = vmatmul.mubr.bf16.gmra.mrb[0].mxu0 %v5487
    %v5526 = vpop.f32.mrb[0].mxu0
    %v5527 = vadd.f32 0.0, %v5526
    %v5528 = vpop.f32.mrb[0].mxu0
    %v5529 = vpop.f32.mrb[0].mxu0
    %v5530 = vadd.f32 0.0, %v5529
    %v5531 = vpop.f32.mrb[0].mxu0
    %5532 = vdwg.mxu0
    %v5533 = vadd.f32 %v3920, %v5527
    %v5534 = vadd.f32 %v3952, %v5530
    %v5535 = vmul.f32 %v5533, 0.5
    %v5536 = vmul.f32 %v5534, 0.5
    %v5537 = vtanh.pop %v5535
    %v5538 = vtanh.pop %v5536
    %v5539 = vadd.f32 %v5537, 1.0
    %v5540 = vadd.f32 %v5538, 1.0
    %v5541 = vmul.f32 %v5539, 0.5
    %v5542 = vmul.f32 %v5540, 0.5
    %v5543 = vmul.f32 %v5541, %v5367
    %v5544 = vmul.f32 %v5542, %v5444
    %v5545 = vmul.f32 %v5543, %v3367
    %v5546 = vmul.f32 %v5544, %v3372
    %v5547 = vmul.f32 %v5543, %v3392
    %v5548 = vmul.f32 %v5544, %v3396
    %v5549 = vmul.f32 %v5543, %v3416
    %v5550 = vmul.f32 %v5544, %v3420
    %v5551 = vmul.f32 %v5543, %v3440
    %v5552 = vmul.f32 %v5544, %v3444
    %v5553 = vmul.f32 %v5543, %v3464
    %v5554 = vmul.f32 %v5544, %v3468
    %5557 = vrot.lane.b32.xlu0 %v5547, 32
    %v5558 = vpop.permute.xlu0 %5557
    %5559 = vrot.lane.b32.xlu0 %v5548, 32
    %v5560 = vpop.permute.xlu0 %5559
    %5565 = vrot.lane.b32.xlu0 %v5549, 64
    %v5566 = vpop.permute.xlu0 %5565
    %5567 = vrot.lane.b32.xlu0 %v5550, 64
    %v5568 = vpop.permute.xlu0 %5567
    %5573 = vrot.lane.b32.xlu0 %v5551, 96
    %v5574 = vpop.permute.xlu0 %5573
    %5575 = vrot.lane.b32.xlu0 %v5552, 96
    %v5576 = vpop.permute.xlu0 %5575
    %v5579 = vsel %vm3684, %v5545, %v5558
    %v5580 = vsel %vm3684, %v5546, %v5560
    %v5581 = vsel %vm56, %v5579, %v5566
    %v5582 = vsel %vm56, %v5580, %v5568
    %v5583 = vsel %vm3717, %v5581, %v5574
    %v5584 = vsel %vm3717, %v5582, %v5576
    %v5585 = vpack.c.bf16 %v5584, %v5583
    %v5586 = vpack.c.bf16 %v5554, %v5553
    %v5588 = vsel %vm3684, %v5586, 0
    %5590 = vmatprep.subr.bf16.mxu0 0
    %5591 = vmatpush1.bf16.msra.mxu0 %v5193
    %5592 = vmatprep.subr.bf16.mxu0 0
    %5593 = vmatpush1.bf16.msra.mxu0 %v5194
    %5594 = vmatprep.subr.bf16.mxu0 0
    %5595 = vmatpush1.bf16.msra.mxu0 %v5195
    %5596 = vmatprep.subr.bf16.mxu0 0
    %5597 = vmatpush1.bf16.msra.mxu0 %v5196
    %5598 = vmatprep.subr.bf16.mxu0 0
    %5599 = vmatpush1.bf16.msra.mxu0 %v5197
    %5600 = vmatprep.subr.bf16.mxu0 0
    %5601 = vmatpush1.bf16.msra.mxu0 %v5198
    %5602 = vmatprep.subr.bf16.mxu0 0
    %5603 = vmatpush1.bf16.msra.mxu0 %v5199
    %5604 = vmatprep.subr.bf16.mxu0 0
    %5605 = vmatpush1.bf16.msra.mxu0 %v5200
    %5606 = vmatprep.subr.bf16.mxu0 0
    %5607 = vmatpush1.bf16.msra.mxu0 %v5201
    %5608 = vmatprep.subr.bf16.mxu0 0
    %5609 = vmatpush1.bf16.msra.mxu0 %v5202
    %5610 = vmatprep.subr.bf16.mxu0 0
    %5611 = vmatpush1.bf16.msra.mxu0 0
    %5612 = vmatprep.subr.bf16.mxu0 0
    %5613 = vmatpush1.bf16.msra.mxu0 0
    %5614 = vmatprep.subr.bf16.mxu0 0
    %5615 = vmatpush1.bf16.msra.mxu0 0
    %5616 = vmatprep.subr.bf16.mxu0 0
    %5617 = vmatpush1.bf16.msra.mxu0 0
    %5618 = vmatprep.subr.bf16.mxu0 0
    %5619 = vmatpush1.bf16.msra.mxu0 0
    %5620 = vmatprep.subr.bf16.mxu0 0
    %5621 = vmatpush1.bf16.msra.mxu0 0
    %5622 = vmatprep.mubr.bf16.mxu0 %v5588
    %5623 = vmatmul.mubr.bf16.gmra.mrb[0].mxu0 %v5585
    %v5624 = vpop.f32.mrb[0].mxu0
    %v5625 = vadd.f32 0.0, %v5624
    %v5626 = vpop.f32.mrb[0].mxu0
    %v5627 = vpop.f32.mrb[0].mxu0
    %v5628 = vadd.f32 0.0, %v5627
    %v5629 = vpop.f32.mrb[0].mxu0
    %5630 = vdwg.mxu0
    %5633 = vrot.lane.b32.xlu0 %v5625, 64
    %v5634 = vpop.permute.xlu0 %5633
    %5635 = vrot.lane.b32.xlu0 %v5628, 64
    %v5636 = vpop.permute.xlu0 %5635
    %v5639 = vadd.f32 %v3920, %v5634
    %v5640 = vadd.f32 %v3952, %v5636
    %v5641 = vtanh.pop %v5639
    %v5642 = vtanh.pop %v5640
    %v5643 = vsub.f32 1.0, %v5541
    %v5644 = vsub.f32 1.0, %v5542
    %5647 = vrot.lane.b32.xlu0 %v5641, 96
    %v5648 = vpop.permute.xlu0 %5647
    %5649 = vrot.lane.b32.xlu0 %v5642, 96
    %v5650 = vpop.permute.xlu0 %5649
    %v5653 = vmul.f32 %v5643, %v5648
    %v5654 = vmul.f32 %v5644, %v5650
    %v5655 = vmul.f32 %v5541, %v5291
    %v5656 = vmul.f32 %v5542, %v5292
    %v5657 = vadd.f32 %v5653, %v5655
    %v5658 = vadd.f32 %v5654, %v5656
    %v5659 = vmul.f32 %v3291, %v5657
    %v5660 = vmul.f32 %v3323, %v5658
    %v5661 = vsub.f32 1.0, %v3291
    %v5662 = vsub.f32 1.0, %v3323
    %v5663 = vmul.f32 %v5661, %v5291
    %v5664 = vmul.f32 %v5662, %v5292
    %v5665 = vadd.f32 %v5659, %v5663
    %v5666 = vadd.f32 %v5660, %v5664
    %5668 = vrot.lane.b32.xlu0 %v5665, 96
    %v5669 = vpop.permute.xlu0 %5668
    %v5672 = vsel %vm157, %v4753, 0
    %5674 = vmatprep.subr.mxu0 0.0
    %5675 = vmatpush1.msra.mxu0 %v5669
    %5676 = vmatprep.subr.mxu0 0.0
    %5677 = vmatpush1.msra.mxu0 0.0
    %5678 = vmatprep.subr.mxu0 0.0
    %5679 = vmatpush1.msra.mxu0 0.0
    %5680 = vmatprep.subr.mxu0 0.0
    %5681 = vmatpush1.msra.mxu0 0.0
    %5682 = vmatprep.subr.mxu0 0.0
    %5683 = vmatpush1.msra.mxu0 0.0
    %5684 = vmatprep.subr.mxu0 0.0
    %5685 = vmatpush1.msra.mxu0 0.0
    %5686 = vmatprep.subr.mxu0 0.0
    %5687 = vmatpush1.msra.mxu0 0.0
    %5688 = vmatprep.subr.mxu0 0.0
    %5689 = vmatpush1.msra.mxu0 0.0
    %5690 = vmatprep.subr.mxu0 0.0
    %5691 = vmatpush1.msra.mxu0 0.0
    %5692 = vmatprep.subr.mxu0 0.0
    %5693 = vmatpush1.msra.mxu0 0.0
    %5694 = vmatprep.subr.mxu0 0.0
    %5695 = vmatpush1.msra.mxu0 0.0
    %5696 = vmatprep.subr.mxu0 0.0
    %5697 = vmatpush1.msra.mxu0 0.0
    %5698 = vmatprep.subr.mxu0 0.0
    %5699 = vmatpush1.msra.mxu0 0.0
    %5700 = vmatprep.subr.mxu0 0.0
    %5701 = vmatpush1.msra.mxu0 0.0
    %5702 = vmatprep.subr.mxu0 0.0
    %5703 = vmatpush1.msra.mxu0 0.0
    %5704 = vmatprep.subr.mxu0 0.0
    %5705 = vmatpush1.msra.mxu0 0.0
    %5706 = vmatprep.subr.mxu0 0.0
    %5707 = vmatpush1.msra.mxu0 0.0
    %5708 = vmatprep.subr.mxu0 0.0
    %5709 = vmatpush1.msra.mxu0 0.0
    %5710 = vmatprep.subr.mxu0 0.0
    %5711 = vmatpush1.msra.mxu0 0.0
    %5712 = vmatprep.subr.mxu0 0.0
    %5713 = vmatpush1.msra.mxu0 0.0
    %5714 = vmatprep.subr.mxu0 0.0
    %5715 = vmatpush1.msra.mxu0 0.0
    %5716 = vmatprep.subr.mxu0 0.0
    %5717 = vmatpush1.msra.mxu0 0.0
    %5718 = vmatprep.subr.mxu0 0.0
    %5719 = vmatpush1.msra.mxu0 0.0
    %5720 = vmatprep.subr.mxu0 0.0
    %5721 = vmatpush1.msra.mxu0 0.0
    %5722 = vmatprep.subr.mxu0 0.0
    %5723 = vmatpush1.msra.mxu0 0.0
    %5724 = vmatprep.subr.mxu0 0.0
    %5725 = vmatpush1.msra.mxu0 0.0
    %5726 = vmatprep.subr.mxu0 0.0
    %5727 = vmatpush1.msra.mxu0 0.0
    %5728 = vmatprep.subr.mxu0 0.0
    %5729 = vmatpush1.msra.mxu0 0.0
    %5730 = vmatprep.subr.mxu0 0.0
    %5731 = vmatpush1.msra.mxu0 0.0
    %5732 = vmatprep.subr.mxu0 0.0
    %5733 = vmatpush1.msra.mxu0 0.0
    %5734 = vmatprep.subr.mxu0 0.0
    %5735 = vmatpush1.msra.mxu0 0.0
    %5736 = vmatprep.subr.mxu0 0.0
    %5737 = vmatpush1.msra.mxu0 0.0
    %5738 = vmatprep.mubr.f32.mxu0 0.0
    %5739 = vmatmul.mubr.f32.gmra.mrb[0].mxu0 %v5672
    %v5740 = vpop.f32.mrb[0].mxu0
    %v5741 = vadd.f32 0.0, %v5740
    %v5742 = vpop.f32.mrb[0].mxu0
    %5743 = vdwg.mxu0
    %5745 = vrot.lane.b32.xlu0 %v5666, 96
    %v5746 = vpop.permute.xlu0 %5745
    %v5749 = vsel %vm157, %v4761, 0
    %5751 = vmatprep.subr.mxu0 0.0
    %5752 = vmatpush1.msra.mxu0 %v5746
    %5753 = vmatprep.subr.mxu0 0.0
    %5754 = vmatpush1.msra.mxu0 0.0
    %5755 = vmatprep.subr.mxu0 0.0
    %5756 = vmatpush1.msra.mxu0 0.0
    %5757 = vmatprep.subr.mxu0 0.0
    %5758 = vmatpush1.msra.mxu0 0.0
    %5759 = vmatprep.subr.mxu0 0.0
    %5760 = vmatpush1.msra.mxu0 0.0
    %5761 = vmatprep.subr.mxu0 0.0
    %5762 = vmatpush1.msra.mxu0 0.0
    %5763 = vmatprep.subr.mxu0 0.0
    %5764 = vmatpush1.msra.mxu0 0.0
    %5765 = vmatprep.subr.mxu0 0.0
    %5766 = vmatpush1.msra.mxu0 0.0
    %5767 = vmatprep.subr.mxu0 0.0
    %5768 = vmatpush1.msra.mxu0 0.0
    %5769 = vmatprep.subr.mxu0 0.0
    %5770 = vmatpush1.msra.mxu0 0.0
    %5771 = vmatprep.subr.mxu0 0.0
    %5772 = vmatpush1.msra.mxu0 0.0
    %5773 = vmatprep.subr.mxu0 0.0
    %5774 = vmatpush1.msra.mxu0 0.0
    %5775 = vmatprep.subr.mxu0 0.0
    %5776 = vmatpush1.msra.mxu0 0.0
    %5777 = vmatprep.subr.mxu0 0.0
    %5778 = vmatpush1.msra.mxu0 0.0
    %5779 = vmatprep.subr.mxu0 0.0
    %5780 = vmatpush1.msra.mxu0 0.0
    %5781 = vmatprep.subr.mxu0 0.0
    %5782 = vmatpush1.msra.mxu0 0.0
    %5783 = vmatprep.subr.mxu0 0.0
    %5784 = vmatpush1.msra.mxu0 0.0
    %5785 = vmatprep.subr.mxu0 0.0
    %5786 = vmatpush1.msra.mxu0 0.0
    %5787 = vmatprep.subr.mxu0 0.0
    %5788 = vmatpush1.msra.mxu0 0.0
    %5789 = vmatprep.subr.mxu0 0.0
    %5790 = vmatpush1.msra.mxu0 0.0
    %5791 = vmatprep.subr.mxu0 0.0
    %5792 = vmatpush1.msra.mxu0 0.0
    %5793 = vmatprep.subr.mxu0 0.0
    %5794 = vmatpush1.msra.mxu0 0.0
    %5795 = vmatprep.subr.mxu0 0.0
    %5796 = vmatpush1.msra.mxu0 0.0
    %5797 = vmatprep.subr.mxu0 0.0
    %5798 = vmatpush1.msra.mxu0 0.0
    %5799 = vmatprep.subr.mxu0 0.0
    %5800 = vmatpush1.msra.mxu0 0.0
    %5801 = vmatprep.subr.mxu0 0.0
    %5802 = vmatpush1.msra.mxu0 0.0
    %5803 = vmatprep.subr.mxu0 0.0
    %5804 = vmatpush1.msra.mxu0 0.0
    %5805 = vmatprep.subr.mxu0 0.0
    %5806 = vmatpush1.msra.mxu0 0.0
    %5807 = vmatprep.subr.mxu0 0.0
    %5808 = vmatpush1.msra.mxu0 0.0
    %5809 = vmatprep.subr.mxu0 0.0
    %5810 = vmatpush1.msra.mxu0 0.0
    %5811 = vmatprep.subr.mxu0 0.0
    %5812 = vmatpush1.msra.mxu0 0.0
    %5813 = vmatprep.subr.mxu0 0.0
    %5814 = vmatpush1.msra.mxu0 0.0
    %5815 = vmatprep.mubr.f32.mxu0 0.0
    %5816 = vmatmul.mubr.f32.gmra.mrb[0].mxu0 %v5749
    %v5817 = vpop.f32.mrb[0].mxu0
    %v5818 = vadd.f32 0.0, %v5817
    %v5819 = vpop.f32.mrb[0].mxu0
    %5820 = vdwg.mxu0
    %v5821 = vmul.f32 %v5741, %v3367
    %v5822 = vmul.f32 %v5818, %v3372
    %v5823 = vmul.f32 %v5741, %v3392
    %v5824 = vmul.f32 %v5818, %v3396
    %v5825 = vmul.f32 %v5741, %v3416
    %v5826 = vmul.f32 %v5818, %v3420
    %v5827 = vmul.f32 %v5741, %v3440
    %v5828 = vmul.f32 %v5818, %v3444
    %v5829 = vmul.f32 %v5741, %v3464
    %v5830 = vmul.f32 %v5818, %v3468
    %5833 = vrot.lane.b32.xlu0 %v5823, 32
    %v5834 = vpop.permute.xlu0 %5833
    %5835 = vrot.lane.b32.xlu0 %v5824, 32
    %v5836 = vpop.permute.xlu0 %5835
    %5841 = vrot.lane.b32.xlu0 %v5825, 64
    %v5842 = vpop.permute.xlu0 %5841
    %5843 = vrot.lane.b32.xlu0 %v5826, 64
    %v5844 = vpop.permute.xlu0 %5843
    %5849 = vrot.lane.b32.xlu0 %v5827, 96
    %v5850 = vpop.permute.xlu0 %5849
    %5851 = vrot.lane.b32.xlu0 %v5828, 96
    %v5852 = vpop.permute.xlu0 %5851
    %v5855 = vsel %vm3684, %v5821, %v5834
    %v5856 = vsel %vm3684, %v5822, %v5836
    %v5857 = vsel %vm56, %v5855, %v5842
    %v5858 = vsel %vm56, %v5856, %v5844
    %v5859 = vsel %vm3717, %v5857, %v5850
    %v5860 = vsel %vm3717, %v5858, %v5852
    %v5861 = vpack.c.bf16 %v5860, %v5859
    %v5862 = vpack.c.bf16 %v5830, %v5829
    %v5864 = vsel %vm3684, %v5862, 0
    %5866 = vmatprep.subr.bf16.mxu0 0
    %5867 = vmatpush1.bf16.msra.mxu0 %v5035
    %5868 = vmatprep.subr.bf16.mxu0 0
    %5869 = vmatpush1.bf16.msra.mxu0 %v5036
    %5870 = vmatprep.subr.bf16.mxu0 0
    %5871 = vmatpush1.bf16.msra.mxu0 %v5037
    %5872 = vmatprep.subr.bf16.mxu0 0
    %5873 = vmatpush1.bf16.msra.mxu0 %v5038
    %5874 = vmatprep.subr.bf16.mxu0 0
    %5875 = vmatpush1.bf16.msra.mxu0 %v5039
    %5876 = vmatprep.subr.bf16.mxu0 0
    %5877 = vmatpush1.bf16.msra.mxu0 %v5040
    %5878 = vmatprep.subr.bf16.mxu0 0
    %5879 = vmatpush1.bf16.msra.mxu0 %v5041
    %5880 = vmatprep.subr.bf16.mxu0 0
    %5881 = vmatpush1.bf16.msra.mxu0 %v5042
    %5882 = vmatprep.subr.bf16.mxu0 0
    %5883 = vmatpush1.bf16.msra.mxu0 %v5043
    %5884 = vmatprep.subr.bf16.mxu0 0
    %5885 = vmatpush1.bf16.msra.mxu0 %v5044
    %5886 = vmatprep.subr.bf16.mxu0 0
    %5887 = vmatpush1.bf16.msra.mxu0 0
    %5888 = vmatprep.subr.bf16.mxu0 0
    %5889 = vmatpush1.bf16.msra.mxu0 0
    %5890 = vmatprep.subr.bf16.mxu0 0
    %5891 = vmatpush1.bf16.msra.mxu0 0
    %5892 = vmatprep.subr.bf16.mxu0 0
    %5893 = vmatpush1.bf16.msra.mxu0 0
    %5894 = vmatprep.subr.bf16.mxu0 0
    %5895 = vmatpush1.bf16.msra.mxu0 0
    %5896 = vmatprep.subr.bf16.mxu0 0
    %5897 = vmatpush1.bf16.msra.mxu0 0
    %5898 = vmatprep.mubr.bf16.mxu0 %v5864
    %5899 = vmatmul.mubr.bf16.gmra.mrb[0].mxu0 %v5861
    %v5900 = vpop.f32.mrb[0].mxu0
    %v5901 = vadd.f32 0.0, %v5900
    %v5902 = vpop.f32.mrb[0].mxu0
    %v5903 = vpop.f32.mrb[0].mxu0
    %v5904 = vadd.f32 0.0, %v5903
    %v5905 = vpop.f32.mrb[0].mxu0
    %5906 = vdwg.mxu0
    %v5907 = vadd.f32 %v3925, %v5901
    %v5908 = vadd.f32 %v3957, %v5904
    %v5909 = vmul.f32 %v5907, 0.5
    %v5910 = vmul.f32 %v5908, 0.5
    %v5911 = vtanh.pop %v5909
    %v5912 = vtanh.pop %v5910
    %v5913 = vadd.f32 %v5911, 1.0
    %v5914 = vadd.f32 %v5912, 1.0
    %v5915 = vmul.f32 %v5913, 0.5
    %v5916 = vmul.f32 %v5914, 0.5
    %v5917 = vmul.f32 %v5915, %v5741
    %v5918 = vmul.f32 %v5916, %v5818
    %v5919 = vmul.f32 %v5917, %v3367
    %v5920 = vmul.f32 %v5918, %v3372
    %v5921 = vmul.f32 %v5917, %v3392
    %v5922 = vmul.f32 %v5918, %v3396
    %v5923 = vmul.f32 %v5917, %v3416
    %v5924 = vmul.f32 %v5918, %v3420
    %v5925 = vmul.f32 %v5917, %v3440
    %v5926 = vmul.f32 %v5918, %v3444
    %v5927 = vmul.f32 %v5917, %v3464
    %v5928 = vmul.f32 %v5918, %v3468
    %5931 = vrot.lane.b32.xlu0 %v5921, 32
    %v5932 = vpop.permute.xlu0 %5931
    %5933 = vrot.lane.b32.xlu0 %v5922, 32
    %v5934 = vpop.permute.xlu0 %5933
    %5939 = vrot.lane.b32.xlu0 %v5923, 64
    %v5940 = vpop.permute.xlu0 %5939
    %5941 = vrot.lane.b32.xlu0 %v5924, 64
    %v5942 = vpop.permute.xlu0 %5941
    %5947 = vrot.lane.b32.xlu0 %v5925, 96
    %v5948 = vpop.permute.xlu0 %5947
    %5949 = vrot.lane.b32.xlu0 %v5926, 96
    %v5950 = vpop.permute.xlu0 %5949
    %v5953 = vsel %vm3684, %v5919, %v5932
    %v5954 = vsel %vm3684, %v5920, %v5934
    %v5955 = vsel %vm56, %v5953, %v5940
    %v5956 = vsel %vm56, %v5954, %v5942
    %v5957 = vsel %vm3717, %v5955, %v5948
    %v5958 = vsel %vm3717, %v5956, %v5950
    %v5959 = vpack.c.bf16 %v5958, %v5957
    %v5960 = vpack.c.bf16 %v5928, %v5927
    %v5962 = vsel %vm3684, %v5960, 0
    %5964 = vmatprep.subr.bf16.mxu0 0
    %5965 = vmatpush1.bf16.msra.mxu0 %v5193
    %5966 = vmatprep.subr.bf16.mxu0 0
    %5967 = vmatpush1.bf16.msra.mxu0 %v5194
    %5968 = vmatprep.subr.bf16.mxu0 0
    %5969 = vmatpush1.bf16.msra.mxu0 %v5195
    %5970 = vmatprep.subr.bf16.mxu0 0
    %5971 = vmatpush1.bf16.msra.mxu0 %v5196
    %5972 = vmatprep.subr.bf16.mxu0 0
    %5973 = vmatpush1.bf16.msra.mxu0 %v5197
    %5974 = vmatprep.subr.bf16.mxu0 0
    %5975 = vmatpush1.bf16.msra.mxu0 %v5198
    %5976 = vmatprep.subr.bf16.mxu0 0
    %5977 = vmatpush1.bf16.msra.mxu0 %v5199
    %5978 = vmatprep.subr.bf16.mxu0 0
    %5979 = vmatpush1.bf16.msra.mxu0 %v5200
    %5980 = vmatprep.subr.bf16.mxu0 0
    %5981 = vmatpush1.bf16.msra.mxu0 %v5201
    %5982 = vmatprep.subr.bf16.mxu0 0
    %5983 = vmatpush1.bf16.msra.mxu0 %v5202
    %5984 = vmatprep.subr.bf16.mxu0 0
    %5985 = vmatpush1.bf16.msra.mxu0 0
    %5986 = vmatprep.subr.bf16.mxu0 0
    %5987 = vmatpush1.bf16.msra.mxu0 0
    %5988 = vmatprep.subr.bf16.mxu0 0
    %5989 = vmatpush1.bf16.msra.mxu0 0
    %5990 = vmatprep.subr.bf16.mxu0 0
    %5991 = vmatpush1.bf16.msra.mxu0 0
    %5992 = vmatprep.subr.bf16.mxu0 0
    %5993 = vmatpush1.bf16.msra.mxu0 0
    %5994 = vmatprep.subr.bf16.mxu0 0
    %5995 = vmatpush1.bf16.msra.mxu0 0
    %5996 = vmatprep.mubr.bf16.mxu0 %v5962
    %5997 = vmatmul.mubr.bf16.gmra.mrb[0].mxu0 %v5959
    %v5998 = vpop.f32.mrb[0].mxu0
    %v5999 = vadd.f32 0.0, %v5998
    %v6000 = vpop.f32.mrb[0].mxu0
    %v6001 = vpop.f32.mrb[0].mxu0
    %v6002 = vadd.f32 0.0, %v6001
    %v6003 = vpop.f32.mrb[0].mxu0
    %6004 = vdwg.mxu0
    %6007 = vrot.lane.b32.xlu0 %v5999, 64
    %v6008 = vpop.permute.xlu0 %6007
    %6009 = vrot.lane.b32.xlu0 %v6002, 64
    %v6010 = vpop.permute.xlu0 %6009
    %v6013 = vadd.f32 %v3925, %v6008
    %v6014 = vadd.f32 %v3957, %v6010
    %v6015 = vtanh.pop %v6013
    %v6016 = vtanh.pop %v6014
    %v6017 = vsub.f32 1.0, %v5915
    %v6018 = vsub.f32 1.0, %v5916
    %6021 = vrot.lane.b32.xlu0 %v6015, 96
    %v6022 = vpop.permute.xlu0 %6021
    %6023 = vrot.lane.b32.xlu0 %v6016, 96
    %v6024 = vpop.permute.xlu0 %6023
    %v6027 = vmul.f32 %v6017, %v6022
    %v6028 = vmul.f32 %v6018, %v6024
    %v6029 = vmul.f32 %v5915, %v5665
    %v6030 = vmul.f32 %v5916, %v5666
    %v6031 = vadd.f32 %v6027, %v6029
    %v6032 = vadd.f32 %v6028, %v6030
    %v6033 = vmul.f32 %v3295, %v6031
    %v6034 = vmul.f32 %v3327, %v6032
    %v6035 = vsub.f32 1.0, %v3295
    %v6036 = vsub.f32 1.0, %v3327
    %v6037 = vmul.f32 %v6035, %v5665
    %v6038 = vmul.f32 %v6036, %v5666
    %v6039 = vadd.f32 %v6033, %v6037
    %v6040 = vadd.f32 %v6034, %v6038
    %6042 = vrot.lane.b32.xlu0 %v6039, 96
    %v6043 = vpop.permute.xlu0 %6042
    %v6046 = vsel %vm157, %v4754, 0
    %6048 = vmatprep.subr.mxu0 0.0
    %6049 = vmatpush1.msra.mxu0 %v6043
    %6050 = vmatprep.subr.mxu0 0.0
    %6051 = vmatpush1.msra.mxu0 0.0
    %6052 = vmatprep.subr.mxu0 0.0
    %6053 = vmatpush1.msra.mxu0 0.0
    %6054 = vmatprep.subr.mxu0 0.0
    %6055 = vmatpush1.msra.mxu0 0.0
    %6056 = vmatprep.subr.mxu0 0.0
    %6057 = vmatpush1.msra.mxu0 0.0
    %6058 = vmatprep.subr.mxu0 0.0
    %6059 = vmatpush1.msra.mxu0 0.0
    %6060 = vmatprep.subr.mxu0 0.0
    %6061 = vmatpush1.msra.mxu0 0.0
    %6062 = vmatprep.subr.mxu0 0.0
    %6063 = vmatpush1.msra.mxu0 0.0
    %6064 = vmatprep.subr.mxu0 0.0
    %6065 = vmatpush1.msra.mxu0 0.0
    %6066 = vmatprep.subr.mxu0 0.0
    %6067 = vmatpush1.msra.mxu0 0.0
    %6068 = vmatprep.subr.mxu0 0.0
    %6069 = vmatpush1.msra.mxu0 0.0
    %6070 = vmatprep.subr.mxu0 0.0
    %6071 = vmatpush1.msra.mxu0 0.0
    %6072 = vmatprep.subr.mxu0 0.0
    %6073 = vmatpush1.msra.mxu0 0.0
    %6074 = vmatprep.subr.mxu0 0.0
    %6075 = vmatpush1.msra.mxu0 0.0
    %6076 = vmatprep.subr.mxu0 0.0
    %6077 = vmatpush1.msra.mxu0 0.0
    %6078 = vmatprep.subr.mxu0 0.0
    %6079 = vmatpush1.msra.mxu0 0.0
    %6080 = vmatprep.subr.mxu0 0.0
    %6081 = vmatpush1.msra.mxu0 0.0
    %6082 = vmatprep.subr.mxu0 0.0
    %6083 = vmatpush1.msra.mxu0 0.0
    %6084 = vmatprep.subr.mxu0 0.0
    %6085 = vmatpush1.msra.mxu0 0.0
    %6086 = vmatprep.subr.mxu0 0.0
    %6087 = vmatpush1.msra.mxu0 0.0
    %6088 = vmatprep.subr.mxu0 0.0
    %6089 = vmatpush1.msra.mxu0 0.0
    %6090 = vmatprep.subr.mxu0 0.0
    %6091 = vmatpush1.msra.mxu0 0.0
    %6092 = vmatprep.subr.mxu0 0.0
    %6093 = vmatpush1.msra.mxu0 0.0
    %6094 = vmatprep.subr.mxu0 0.0
    %6095 = vmatpush1.msra.mxu0 0.0
    %6096 = vmatprep.subr.mxu0 0.0
    %6097 = vmatpush1.msra.mxu0 0.0
    %6098 = vmatprep.subr.mxu0 0.0
    %6099 = vmatpush1.msra.mxu0 0.0
    %6100 = vmatprep.subr.mxu0 0.0
    %6101 = vmatpush1.msra.mxu0 0.0
    %6102 = vmatprep.subr.mxu0 0.0
    %6103 = vmatpush1.msra.mxu0 0.0
    %6104 = vmatprep.subr.mxu0 0.0
    %6105 = vmatpush1.msra.mxu0 0.0
    %6106 = vmatprep.subr.mxu0 0.0
    %6107 = vmatpush1.msra.mxu0 0.0
    %6108 = vmatprep.subr.mxu0 0.0
    %6109 = vmatpush1.msra.mxu0 0.0
    %6110 = vmatprep.subr.mxu0 0.0
    %6111 = vmatpush1.msra.mxu0 0.0
    %6112 = vmatprep.mubr.f32.mxu0 0.0
    %6113 = vmatmul.mubr.f32.gmra.mrb[0].mxu0 %v6046
    %v6114 = vpop.f32.mrb[0].mxu0
    %v6115 = vadd.f32 0.0, %v6114
    %v6116 = vpop.f32.mrb[0].mxu0
    %6117 = vdwg.mxu0
    %6119 = vrot.lane.b32.xlu0 %v6040, 96
    %v6120 = vpop.permute.xlu0 %6119
    %v6123 = vsel %vm157, %v4762, 0
    %6125 = vmatprep.subr.mxu0 0.0
    %6126 = vmatpush1.msra.mxu0 %v6120
    %6127 = vmatprep.subr.mxu0 0.0
    %6128 = vmatpush1.msra.mxu0 0.0
    %6129 = vmatprep.subr.mxu0 0.0
    %6130 = vmatpush1.msra.mxu0 0.0
    %6131 = vmatprep.subr.mxu0 0.0
    %6132 = vmatpush1.msra.mxu0 0.0
    %6133 = vmatprep.subr.mxu0 0.0
    %6134 = vmatpush1.msra.mxu0 0.0
    %6135 = vmatprep.subr.mxu0 0.0
    %6136 = vmatpush1.msra.mxu0 0.0
    %6137 = vmatprep.subr.mxu0 0.0
    %6138 = vmatpush1.msra.mxu0 0.0
    %6139 = vmatprep.subr.mxu0 0.0
    %6140 = vmatpush1.msra.mxu0 0.0
    %6141 = vmatprep.subr.mxu0 0.0
    %6142 = vmatpush1.msra.mxu0 0.0
    %6143 = vmatprep.subr.mxu0 0.0
    %6144 = vmatpush1.msra.mxu0 0.0
    %6145 = vmatprep.subr.mxu0 0.0
    %6146 = vmatpush1.msra.mxu0 0.0
    %6147 = vmatprep.subr.mxu0 0.0
    %6148 = vmatpush1.msra.mxu0 0.0
    %6149 = vmatprep.subr.mxu0 0.0
    %6150 = vmatpush1.msra.mxu0 0.0
    %6151 = vmatprep.subr.mxu0 0.0
    %6152 = vmatpush1.msra.mxu0 0.0
    %6153 = vmatprep.subr.mxu0 0.0
    %6154 = vmatpush1.msra.mxu0 0.0
    %6155 = vmatprep.subr.mxu0 0.0
    %6156 = vmatpush1.msra.mxu0 0.0
    %6157 = vmatprep.subr.mxu0 0.0
    %6158 = vmatpush1.msra.mxu0 0.0
    %6159 = vmatprep.subr.mxu0 0.0
    %6160 = vmatpush1.msra.mxu0 0.0
    %6161 = vmatprep.subr.mxu0 0.0
    %6162 = vmatpush1.msra.mxu0 0.0
    %6163 = vmatprep.subr.mxu0 0.0
    %6164 = vmatpush1.msra.mxu0 0.0
    %6165 = vmatprep.subr.mxu0 0.0
    %6166 = vmatpush1.msra.mxu0 0.0
    %6167 = vmatprep.subr.mxu0 0.0
    %6168 = vmatpush1.msra.mxu0 0.0
    %6169 = vmatprep.subr.mxu0 0.0
    %6170 = vmatpush1.msra.mxu0 0.0
    %6171 = vmatprep.subr.mxu0 0.0
    %6172 = vmatpush1.msra.mxu0 0.0
    %6173 = vmatprep.subr.mxu0 0.0
    %6174 = vmatpush1.msra.mxu0 0.0
    %6175 = vmatprep.subr.mxu0 0.0
    %6176 = vmatpush1.msra.mxu0 0.0
    %6177 = vmatprep.subr.mxu0 0.0
    %6178 = vmatpush1.msra.mxu0 0.0
    %6179 = vmatprep.subr.mxu0 0.0
    %6180 = vmatpush1.msra.mxu0 0.0
    %6181 = vmatprep.subr.mxu0 0.0
    %6182 = vmatpush1.msra.mxu0 0.0
    %6183 = vmatprep.subr.mxu0 0.0
    %6184 = vmatpush1.msra.mxu0 0.0
    %6185 = vmatprep.subr.mxu0 0.0
    %6186 = vmatpush1.msra.mxu0 0.0
    %6187 = vmatprep.subr.mxu0 0.0
    %6188 = vmatpush1.msra.mxu0 0.0
    %6189 = vmatprep.mubr.f32.mxu0 0.0
    %6190 = vmatmul.mubr.f32.gmra.mrb[0].mxu0 %v6123
    %v6191 = vpop.f32.mrb[0].mxu0
    %v6192 = vadd.f32 0.0, %v6191
    %v6193 = vpop.f32.mrb[0].mxu0
    %6194 = vdwg.mxu0
    %v6195 = vmul.f32 %v6115, %v3367
    %v6196 = vmul.f32 %v6192, %v3372
    %v6197 = vmul.f32 %v6115, %v3392
    %v6198 = vmul.f32 %v6192, %v3396
    %v6199 = vmul.f32 %v6115, %v3416
    %v6200 = vmul.f32 %v6192, %v3420
    %v6201 = vmul.f32 %v6115, %v3440
    %v6202 = vmul.f32 %v6192, %v3444
    %v6203 = vmul.f32 %v6115, %v3464
    %v6204 = vmul.f32 %v6192, %v3468
    %6207 = vrot.lane.b32.xlu0 %v6197, 32
    %v6208 = vpop.permute.xlu0 %6207
    %6209 = vrot.lane.b32.xlu0 %v6198, 32
    %v6210 = vpop.permute.xlu0 %6209
    %6215 = vrot.lane.b32.xlu0 %v6199, 64
    %v6216 = vpop.permute.xlu0 %6215
    %6217 = vrot.lane.b32.xlu0 %v6200, 64
    %v6218 = vpop.permute.xlu0 %6217
    %6223 = vrot.lane.b32.xlu0 %v6201, 96
    %v6224 = vpop.permute.xlu0 %6223
    %6225 = vrot.lane.b32.xlu0 %v6202, 96
    %v6226 = vpop.permute.xlu0 %6225
    %v6229 = vsel %vm3684, %v6195, %v6208
    %v6230 = vsel %vm3684, %v6196, %v6210
    %v6231 = vsel %vm56, %v6229, %v6216
    %v6232 = vsel %vm56, %v6230, %v6218
    %v6233 = vsel %vm3717, %v6231, %v6224
    %v6234 = vsel %vm3717, %v6232, %v6226
    %v6235 = vpack.c.bf16 %v6234, %v6233
    %v6236 = vpack.c.bf16 %v6204, %v6203
    %v6238 = vsel %vm3684, %v6236, 0
    %6240 = vmatprep.subr.bf16.mxu0 0
    %6241 = vmatpush1.bf16.msra.mxu0 %v5035
    %6242 = vmatprep.subr.bf16.mxu0 0
    %6243 = vmatpush1.bf16.msra.mxu0 %v5036
    %6244 = vmatprep.subr.bf16.mxu0 0
    %6245 = vmatpush1.bf16.msra.mxu0 %v5037
    %6246 = vmatprep.subr.bf16.mxu0 0
    %6247 = vmatpush1.bf16.msra.mxu0 %v5038
    %6248 = vmatprep.subr.bf16.mxu0 0
    %6249 = vmatpush1.bf16.msra.mxu0 %v5039
    %6250 = vmatprep.subr.bf16.mxu0 0
    %6251 = vmatpush1.bf16.msra.mxu0 %v5040
    %6252 = vmatprep.subr.bf16.mxu0 0
    %6253 = vmatpush1.bf16.msra.mxu0 %v5041
    %6254 = vmatprep.subr.bf16.mxu0 0
    %6255 = vmatpush1.bf16.msra.mxu0 %v5042
    %6256 = vmatprep.subr.bf16.mxu0 0
    %6257 = vmatpush1.bf16.msra.mxu0 %v5043
    %6258 = vmatprep.subr.bf16.mxu0 0
    %6259 = vmatpush1.bf16.msra.mxu0 %v5044
    %6260 = vmatprep.subr.bf16.mxu0 0
    %6261 = vmatpush1.bf16.msra.mxu0 0
    %6262 = vmatprep.subr.bf16.mxu0 0
    %6263 = vmatpush1.bf16.msra.mxu0 0
    %6264 = vmatprep.subr.bf16.mxu0 0
    %6265 = vmatpush1.bf16.msra.mxu0 0
    %6266 = vmatprep.subr.bf16.mxu0 0
    %6267 = vmatpush1.bf16.msra.mxu0 0
    %6268 = vmatprep.subr.bf16.mxu0 0
    %6269 = vmatpush1.bf16.msra.mxu0 0
    %6270 = vmatprep.subr.bf16.mxu0 0
    %6271 = vmatpush1.bf16.msra.mxu0 0
    %6272 = vmatprep.mubr.bf16.mxu0 %v6238
    %6273 = vmatmul.mubr.bf16.gmra.mrb[0].mxu0 %v6235
    %v6274 = vpop.f32.mrb[0].mxu0
    %v6275 = vadd.f32 0.0, %v6274
    %v6276 = vpop.f32.mrb[0].mxu0
    %v6277 = vpop.f32.mrb[0].mxu0
    %v6278 = vadd.f32 0.0, %v6277
    %v6279 = vpop.f32.mrb[0].mxu0
    %6280 = vdwg.mxu0
    %v6281 = vadd.f32 %v3928, %v6275
    %v6282 = vadd.f32 %v3960, %v6278
    %v6283 = vmul.f32 %v6281, 0.5
    %v6284 = vmul.f32 %v6282, 0.5
    %v6285 = vtanh.pop %v6283
    %v6286 = vtanh.pop %v6284
    %v6287 = vadd.f32 %v6285, 1.0
    %v6288 = vadd.f32 %v6286, 1.0
    %v6289 = vmul.f32 %v6287, 0.5
    %v6290 = vmul.f32 %v6288, 0.5
    %v6291 = vmul.f32 %v6289, %v6115
    %v6292 = vmul.f32 %v6290, %v6192
    %v6293 = vmul.f32 %v6291, %v3367
    %v6294 = vmul.f32 %v6292, %v3372
    %v6295 = vmul.f32 %v6291, %v3392
    %v6296 = vmul.f32 %v6292, %v3396
    %v6297 = vmul.f32 %v6291, %v3416
    %v6298 = vmul.f32 %v6292, %v3420
    %v6299 = vmul.f32 %v6291, %v3440
    %v6300 = vmul.f32 %v6292, %v3444
    %v6301 = vmul.f32 %v6291, %v3464
    %v6302 = vmul.f32 %v6292, %v3468
    %6305 = vrot.lane.b32.xlu0 %v6295, 32
    %v6306 = vpop.permute.xlu0 %6305
    %6307 = vrot.lane.b32.xlu0 %v6296, 32
    %v6308 = vpop.permute.xlu0 %6307
    %6313 = vrot.lane.b32.xlu0 %v6297, 64
    %v6314 = vpop.permute.xlu0 %6313
    %6315 = vrot.lane.b32.xlu0 %v6298, 64
    %v6316 = vpop.permute.xlu0 %6315
    %6321 = vrot.lane.b32.xlu0 %v6299, 96
    %v6322 = vpop.permute.xlu0 %6321
    %6323 = vrot.lane.b32.xlu0 %v6300, 96
    %v6324 = vpop.permute.xlu0 %6323
    %v6327 = vsel %vm3684, %v6293, %v6306
    %v6328 = vsel %vm3684, %v6294, %v6308
    %v6329 = vsel %vm56, %v6327, %v6314
    %v6330 = vsel %vm56, %v6328, %v6316
    %v6331 = vsel %vm3717, %v6329, %v6322
    %v6332 = vsel %vm3717, %v6330, %v6324
    %v6333 = vpack.c.bf16 %v6332, %v6331
    %v6334 = vpack.c.bf16 %v6302, %v6301
    %v6336 = vsel %vm3684, %v6334, 0
    %6338 = vmatprep.subr.bf16.mxu0 0
    %6339 = vmatpush1.bf16.msra.mxu0 %v5193
    %6340 = vmatprep.subr.bf16.mxu0 0
    %6341 = vmatpush1.bf16.msra.mxu0 %v5194
    %6342 = vmatprep.subr.bf16.mxu0 0
    %6343 = vmatpush1.bf16.msra.mxu0 %v5195
    %6344 = vmatprep.subr.bf16.mxu0 0
    %6345 = vmatpush1.bf16.msra.mxu0 %v5196
    %6346 = vmatprep.subr.bf16.mxu0 0
    %6347 = vmatpush1.bf16.msra.mxu0 %v5197
    %6348 = vmatprep.subr.bf16.mxu0 0
    %6349 = vmatpush1.bf16.msra.mxu0 %v5198
    %6350 = vmatprep.subr.bf16.mxu0 0
    %6351 = vmatpush1.bf16.msra.mxu0 %v5199
    %6352 = vmatprep.subr.bf16.mxu0 0
    %6353 = vmatpush1.bf16.msra.mxu0 %v5200
    %6354 = vmatprep.subr.bf16.mxu0 0
    %6355 = vmatpush1.bf16.msra.mxu0 %v5201
    %6356 = vmatprep.subr.bf16.mxu0 0
    %6357 = vmatpush1.bf16.msra.mxu0 %v5202
    %6358 = vmatprep.subr.bf16.mxu0 0
    %6359 = vmatpush1.bf16.msra.mxu0 0
    %6360 = vmatprep.subr.bf16.mxu0 0
    %6361 = vmatpush1.bf16.msra.mxu0 0
    %6362 = vmatprep.subr.bf16.mxu0 0
    %6363 = vmatpush1.bf16.msra.mxu0 0
    %6364 = vmatprep.subr.bf16.mxu0 0
    %6365 = vmatpush1.bf16.msra.mxu0 0
    %6366 = vmatprep.subr.bf16.mxu0 0
    %6367 = vmatpush1.bf16.msra.mxu0 0
    %6368 = vmatprep.subr.bf16.mxu0 0
    %6369 = vmatpush1.bf16.msra.mxu0 0
    %6370 = vmatprep.mubr.bf16.mxu0 %v6336
    %6371 = vmatmul.mubr.bf16.gmra.mrb[0].mxu0 %v6333
    %v6372 = vpop.f32.mrb[0].mxu0
    %v6373 = vadd.f32 0.0, %v6372
    %v6374 = vpop.f32.mrb[0].mxu0
    %v6375 = vpop.f32.mrb[0].mxu0
    %v6376 = vadd.f32 0.0, %v6375
    %v6377 = vpop.f32.mrb[0].mxu0
    %6378 = vdwg.mxu0
    %6381 = vrot.lane.b32.xlu0 %v6373, 64
    %v6382 = vpop.permute.xlu0 %6381
    %6383 = vrot.lane.b32.xlu0 %v6376, 64
    %v6384 = vpop.permute.xlu0 %6383
    %v6387 = vadd.f32 %v3928, %v6382
    %v6388 = vadd.f32 %v3960, %v6384
    %v6389 = vtanh.pop %v6387
    %v6390 = vtanh.pop %v6388
    %v6391 = vsub.f32 1.0, %v6289
    %v6392 = vsub.f32 1.0, %v6290
    %6395 = vrot.lane.b32.xlu0 %v6389, 96
    %v6396 = vpop.permute.xlu0 %6395
    %6397 = vrot.lane.b32.xlu0 %v6390, 96
    %v6398 = vpop.permute.xlu0 %6397
    %v6401 = vmul.f32 %v6391, %v6396
    %v6402 = vmul.f32 %v6392, %v6398
    %v6403 = vmul.f32 %v6289, %v6039
    %v6404 = vmul.f32 %v6290, %v6040
    %v6405 = vadd.f32 %v6401, %v6403
    %v6406 = vadd.f32 %v6402, %v6404
    %v6407 = vmul.f32 %v3299, %v6405
    %v6408 = vmul.f32 %v3331, %v6406
    %v6409 = vsub.f32 1.0, %v3299
    %v6410 = vsub.f32 1.0, %v3331
    %v6411 = vmul.f32 %v6409, %v6039
    %v6412 = vmul.f32 %v6410, %v6040
    %v6413 = vadd.f32 %v6407, %v6411
    %v6414 = vadd.f32 %v6408, %v6412
    %6416 = vrot.lane.b32.xlu0 %v6413, 96
    %v6417 = vpop.permute.xlu0 %6416
    %v6420 = vsel %vm157, %v4755, 0
    %6422 = vmatprep.subr.mxu0 0.0
    %6423 = vmatpush1.msra.mxu0 %v6417
    %6424 = vmatprep.subr.mxu0 0.0
    %6425 = vmatpush1.msra.mxu0 0.0
    %6426 = vmatprep.subr.mxu0 0.0
    %6427 = vmatpush1.msra.mxu0 0.0
    %6428 = vmatprep.subr.mxu0 0.0
    %6429 = vmatpush1.msra.mxu0 0.0
    %6430 = vmatprep.subr.mxu0 0.0
    %6431 = vmatpush1.msra.mxu0 0.0
    %6432 = vmatprep.subr.mxu0 0.0
    %6433 = vmatpush1.msra.mxu0 0.0
    %6434 = vmatprep.subr.mxu0 0.0
    %6435 = vmatpush1.msra.mxu0 0.0
    %6436 = vmatprep.subr.mxu0 0.0
    %6437 = vmatpush1.msra.mxu0 0.0
    %6438 = vmatprep.subr.mxu0 0.0
    %6439 = vmatpush1.msra.mxu0 0.0
    %6440 = vmatprep.subr.mxu0 0.0
    %6441 = vmatpush1.msra.mxu0 0.0
    %6442 = vmatprep.subr.mxu0 0.0
    %6443 = vmatpush1.msra.mxu0 0.0
    %6444 = vmatprep.subr.mxu0 0.0
    %6445 = vmatpush1.msra.mxu0 0.0
    %6446 = vmatprep.subr.mxu0 0.0
    %6447 = vmatpush1.msra.mxu0 0.0
    %6448 = vmatprep.subr.mxu0 0.0
    %6449 = vmatpush1.msra.mxu0 0.0
    %6450 = vmatprep.subr.mxu0 0.0
    %6451 = vmatpush1.msra.mxu0 0.0
    %6452 = vmatprep.subr.mxu0 0.0
    %6453 = vmatpush1.msra.mxu0 0.0
    %6454 = vmatprep.subr.mxu0 0.0
    %6455 = vmatpush1.msra.mxu0 0.0
    %6456 = vmatprep.subr.mxu0 0.0
    %6457 = vmatpush1.msra.mxu0 0.0
    %6458 = vmatprep.subr.mxu0 0.0
    %6459 = vmatpush1.msra.mxu0 0.0
    %6460 = vmatprep.subr.mxu0 0.0
    %6461 = vmatpush1.msra.mxu0 0.0
    %6462 = vmatprep.subr.mxu0 0.0
    %6463 = vmatpush1.msra.mxu0 0.0
    %6464 = vmatprep.subr.mxu0 0.0
    %6465 = vmatpush1.msra.mxu0 0.0
    %6466 = vmatprep.subr.mxu0 0.0
    %6467 = vmatpush1.msra.mxu0 0.0
    %6468 = vmatprep.subr.mxu0 0.0
    %6469 = vmatpush1.msra.mxu0 0.0
    %6470 = vmatprep.subr.mxu0 0.0
    %6471 = vmatpush1.msra.mxu0 0.0
    %6472 = vmatprep.subr.mxu0 0.0
    %6473 = vmatpush1.msra.mxu0 0.0
    %6474 = vmatprep.subr.mxu0 0.0
    %6475 = vmatpush1.msra.mxu0 0.0
    %6476 = vmatprep.subr.mxu0 0.0
    %6477 = vmatpush1.msra.mxu0 0.0
    %6478 = vmatprep.subr.mxu0 0.0
    %6479 = vmatpush1.msra.mxu0 0.0
    %6480 = vmatprep.subr.mxu0 0.0
    %6481 = vmatpush1.msra.mxu0 0.0
    %6482 = vmatprep.subr.mxu0 0.0
    %6483 = vmatpush1.msra.mxu0 0.0
    %6484 = vmatprep.subr.mxu0 0.0
    %6485 = vmatpush1.msra.mxu0 0.0
    %6486 = vmatprep.mubr.f32.mxu0 0.0
    %6487 = vmatmul.mubr.f32.gmra.mrb[0].mxu0 %v6420
    %v6488 = vpop.f32.mrb[0].mxu0
    %v6489 = vadd.f32 0.0, %v6488
    %v6490 = vpop.f32.mrb[0].mxu0
    %6491 = vdwg.mxu0
    %6493 = vrot.lane.b32.xlu0 %v6414, 96
    %v6494 = vpop.permute.xlu0 %6493
    %v6497 = vsel %vm157, %v4763, 0
    %6499 = vmatprep.subr.mxu0 0.0
    %6500 = vmatpush1.msra.mxu0 %v6494
    %6501 = vmatprep.subr.mxu0 0.0
    %6502 = vmatpush1.msra.mxu0 0.0
    %6503 = vmatprep.subr.mxu0 0.0
    %6504 = vmatpush1.msra.mxu0 0.0
    %6505 = vmatprep.subr.mxu0 0.0
    %6506 = vmatpush1.msra.mxu0 0.0
    %6507 = vmatprep.subr.mxu0 0.0
    %6508 = vmatpush1.msra.mxu0 0.0
    %6509 = vmatprep.subr.mxu0 0.0
    %6510 = vmatpush1.msra.mxu0 0.0
    %6511 = vmatprep.subr.mxu0 0.0
    %6512 = vmatpush1.msra.mxu0 0.0
    %6513 = vmatprep.subr.mxu0 0.0
    %6514 = vmatpush1.msra.mxu0 0.0
    %6515 = vmatprep.subr.mxu0 0.0
    %6516 = vmatpush1.msra.mxu0 0.0
    %6517 = vmatprep.subr.mxu0 0.0
    %6518 = vmatpush1.msra.mxu0 0.0
    %6519 = vmatprep.subr.mxu0 0.0
    %6520 = vmatpush1.msra.mxu0 0.0
    %6521 = vmatprep.subr.mxu0 0.0
    %6522 = vmatpush1.msra.mxu0 0.0
    %6523 = vmatprep.subr.mxu0 0.0
    %6524 = vmatpush1.msra.mxu0 0.0
    %6525 = vmatprep.subr.mxu0 0.0
    %6526 = vmatpush1.msra.mxu0 0.0
    %6527 = vmatprep.subr.mxu0 0.0
    %6528 = vmatpush1.msra.mxu0 0.0
    %6529 = vmatprep.subr.mxu0 0.0
    %6530 = vmatpush1.msra.mxu0 0.0
    %6531 = vmatprep.subr.mxu0 0.0
    %6532 = vmatpush1.msra.mxu0 0.0
    %6533 = vmatprep.subr.mxu0 0.0
    %6534 = vmatpush1.msra.mxu0 0.0
    %6535 = vmatprep.subr.mxu0 0.0
    %6536 = vmatpush1.msra.mxu0 0.0
    %6537 = vmatprep.subr.mxu0 0.0
    %6538 = vmatpush1.msra.mxu0 0.0
    %6539 = vmatprep.subr.mxu0 0.0
    %6540 = vmatpush1.msra.mxu0 0.0
    %6541 = vmatprep.subr.mxu0 0.0
    %6542 = vmatpush1.msra.mxu0 0.0
    %6543 = vmatprep.subr.mxu0 0.0
    %6544 = vmatpush1.msra.mxu0 0.0
    %6545 = vmatprep.subr.mxu0 0.0
    %6546 = vmatpush1.msra.mxu0 0.0
    %6547 = vmatprep.subr.mxu0 0.0
    %6548 = vmatpush1.msra.mxu0 0.0
    %6549 = vmatprep.subr.mxu0 0.0
    %6550 = vmatpush1.msra.mxu0 0.0
    %6551 = vmatprep.subr.mxu0 0.0
    %6552 = vmatpush1.msra.mxu0 0.0
    %6553 = vmatprep.subr.mxu0 0.0
    %6554 = vmatpush1.msra.mxu0 0.0
    %6555 = vmatprep.subr.mxu0 0.0
    %6556 = vmatpush1.msra.mxu0 0.0
    %6557 = vmatprep.subr.mxu0 0.0
    %6558 = vmatpush1.msra.mxu0 0.0
    %6559 = vmatprep.subr.mxu0 0.0
    %6560 = vmatpush1.msra.mxu0 0.0
    %6561 = vmatprep.subr.mxu0 0.0
    %6562 = vmatpush1.msra.mxu0 0.0
    %6563 = vmatprep.mubr.f32.mxu0 0.0
    %6564 = vmatmul.mubr.f32.gmra.mrb[0].mxu0 %v6497
    %v6565 = vpop.f32.mrb[0].mxu0
    %v6566 = vadd.f32 0.0, %v6565
    %v6567 = vpop.f32.mrb[0].mxu0
    %6568 = vdwg.mxu0
    %v6569 = vmul.f32 %v6489, %v3367
    %v6570 = vmul.f32 %v6566, %v3372
    %v6571 = vmul.f32 %v6489, %v3392
    %v6572 = vmul.f32 %v6566, %v3396
    %v6573 = vmul.f32 %v6489, %v3416
    %v6574 = vmul.f32 %v6566, %v3420
    %v6575 = vmul.f32 %v6489, %v3440
    %v6576 = vmul.f32 %v6566, %v3444
    %v6577 = vmul.f32 %v6489, %v3464
    %v6578 = vmul.f32 %v6566, %v3468
    %6581 = vrot.lane.b32.xlu0 %v6571, 32
    %v6582 = vpop.permute.xlu0 %6581
    %6583 = vrot.lane.b32.xlu0 %v6572, 32
    %v6584 = vpop.permute.xlu0 %6583
    %6589 = vrot.lane.b32.xlu0 %v6573, 64
    %v6590 = vpop.permute.xlu0 %6589
    %6591 = vrot.lane.b32.xlu0 %v6574, 64
    %v6592 = vpop.permute.xlu0 %6591
    %6597 = vrot.lane.b32.xlu0 %v6575, 96
    %v6598 = vpop.permute.xlu0 %6597
    %6599 = vrot.lane.b32.xlu0 %v6576, 96
    %v6600 = vpop.permute.xlu0 %6599
    %v6603 = vsel %vm3684, %v6569, %v6582
    %v6604 = vsel %vm3684, %v6570, %v6584
    %v6605 = vsel %vm56, %v6603, %v6590
    %v6606 = vsel %vm56, %v6604, %v6592
    %v6607 = vsel %vm3717, %v6605, %v6598
    %v6608 = vsel %vm3717, %v6606, %v6600
    %v6609 = vpack.c.bf16 %v6608, %v6607
    %v6610 = vpack.c.bf16 %v6578, %v6577
    %v6612 = vsel %vm3684, %v6610, 0
    %6614 = vmatprep.subr.bf16.mxu0 0
    %6615 = vmatpush1.bf16.msra.mxu0 %v5035
    %6616 = vmatprep.subr.bf16.mxu0 0
    %6617 = vmatpush1.bf16.msra.mxu0 %v5036
    %6618 = vmatprep.subr.bf16.mxu0 0
    %6619 = vmatpush1.bf16.msra.mxu0 %v5037
    %6620 = vmatprep.subr.bf16.mxu0 0
    %6621 = vmatpush1.bf16.msra.mxu0 %v5038
    %6622 = vmatprep.subr.bf16.mxu0 0
    %6623 = vmatpush1.bf16.msra.mxu0 %v5039
    %6624 = vmatprep.subr.bf16.mxu0 0
    %6625 = vmatpush1.bf16.msra.mxu0 %v5040
    %6626 = vmatprep.subr.bf16.mxu0 0
    %6627 = vmatpush1.bf16.msra.mxu0 %v5041
    %6628 = vmatprep.subr.bf16.mxu0 0
    %6629 = vmatpush1.bf16.msra.mxu0 %v5042
    %6630 = vmatprep.subr.bf16.mxu0 0
    %6631 = vmatpush1.bf16.msra.mxu0 %v5043
    %6632 = vmatprep.subr.bf16.mxu0 0
    %6633 = vmatpush1.bf16.msra.mxu0 %v5044
    %6634 = vmatprep.subr.bf16.mxu0 0
    %6635 = vmatpush1.bf16.msra.mxu0 0
    %6636 = vmatprep.subr.bf16.mxu0 0
    %6637 = vmatpush1.bf16.msra.mxu0 0
    %6638 = vmatprep.subr.bf16.mxu0 0
    %6639 = vmatpush1.bf16.msra.mxu0 0
    %6640 = vmatprep.subr.bf16.mxu0 0
    %6641 = vmatpush1.bf16.msra.mxu0 0
    %6642 = vmatprep.subr.bf16.mxu0 0
    %6643 = vmatpush1.bf16.msra.mxu0 0
    %6644 = vmatprep.subr.bf16.mxu0 0
    %6645 = vmatpush1.bf16.msra.mxu0 0
    %6646 = vmatprep.mubr.bf16.mxu0 %v6612
    %6647 = vmatmul.mubr.bf16.gmra.mrb[0].mxu0 %v6609
    %v6648 = vpop.f32.mrb[0].mxu0
    %v6649 = vadd.f32 0.0, %v6648
    %v6650 = vpop.f32.mrb[0].mxu0
    %v6651 = vpop.f32.mrb[0].mxu0
    %v6652 = vadd.f32 0.0, %v6651
    %v6653 = vpop.f32.mrb[0].mxu0
    %6654 = vdwg.mxu0
    %v6655 = vadd.f32 %v3933, %v6649
    %v6656 = vadd.f32 %v3965, %v6652
    %v6657 = vmul.f32 %v6655, 0.5
    %v6658 = vmul.f32 %v6656, 0.5
    %v6659 = vtanh.pop %v6657
    %v6660 = vtanh.pop %v6658
    %v6661 = vadd.f32 %v6659, 1.0
    %v6662 = vadd.f32 %v6660, 1.0
    %v6663 = vmul.f32 %v6661, 0.5
    %v6664 = vmul.f32 %v6662, 0.5
    %v6665 = vmul.f32 %v6663, %v6489
    %v6666 = vmul.f32 %v6664, %v6566
    %v6667 = vmul.f32 %v6665, %v3367
    %v6668 = vmul.f32 %v6666, %v3372
    %v6669 = vmul.f32 %v6665, %v3392
    %v6670 = vmul.f32 %v6666, %v3396
    %v6671 = vmul.f32 %v6665, %v3416
    %v6672 = vmul.f32 %v6666, %v3420
    %v6673 = vmul.f32 %v6665, %v3440
    %v6674 = vmul.f32 %v6666, %v3444
    %v6675 = vmul.f32 %v6665, %v3464
    %v6676 = vmul.f32 %v6666, %v3468
    %6679 = vrot.lane.b32.xlu0 %v6669, 32
    %v6680 = vpop.permute.xlu0 %6679
    %6681 = vrot.lane.b32.xlu0 %v6670, 32
    %v6682 = vpop.permute.xlu0 %6681
    %6687 = vrot.lane.b32.xlu0 %v6671, 64
    %v6688 = vpop.permute.xlu0 %6687
    %6689 = vrot.lane.b32.xlu0 %v6672, 64
    %v6690 = vpop.permute.xlu0 %6689
    %6695 = vrot.lane.b32.xlu0 %v6673, 96
    %v6696 = vpop.permute.xlu0 %6695
    %6697 = vrot.lane.b32.xlu0 %v6674, 96
    %v6698 = vpop.permute.xlu0 %6697
    %v6701 = vsel %vm3684, %v6667, %v6680
    %v6702 = vsel %vm3684, %v6668, %v6682
    %v6703 = vsel %vm56, %v6701, %v6688
    %v6704 = vsel %vm56, %v6702, %v6690
    %v6705 = vsel %vm3717, %v6703, %v6696
    %v6706 = vsel %vm3717, %v6704, %v6698
    %v6707 = vpack.c.bf16 %v6706, %v6705
    %v6708 = vpack.c.bf16 %v6676, %v6675
    %v6710 = vsel %vm3684, %v6708, 0
    %6712 = vmatprep.subr.bf16.mxu0 0
    %6713 = vmatpush1.bf16.msra.mxu0 %v5193
    %6714 = vmatprep.subr.bf16.mxu0 0
    %6715 = vmatpush1.bf16.msra.mxu0 %v5194
    %6716 = vmatprep.subr.bf16.mxu0 0
    %6717 = vmatpush1.bf16.msra.mxu0 %v5195
    %6718 = vmatprep.subr.bf16.mxu0 0
    %6719 = vmatpush1.bf16.msra.mxu0 %v5196
    %6720 = vmatprep.subr.bf16.mxu0 0
    %6721 = vmatpush1.bf16.msra.mxu0 %v5197
    %6722 = vmatprep.subr.bf16.mxu0 0
    %6723 = vmatpush1.bf16.msra.mxu0 %v5198
    %6724 = vmatprep.subr.bf16.mxu0 0
    %6725 = vmatpush1.bf16.msra.mxu0 %v5199
    %6726 = vmatprep.subr.bf16.mxu0 0
    %6727 = vmatpush1.bf16.msra.mxu0 %v5200
    %6728 = vmatprep.subr.bf16.mxu0 0
    %6729 = vmatpush1.bf16.msra.mxu0 %v5201
    %6730 = vmatprep.subr.bf16.mxu0 0
    %6731 = vmatpush1.bf16.msra.mxu0 %v5202
    %6732 = vmatprep.subr.bf16.mxu0 0
    %6733 = vmatpush1.bf16.msra.mxu0 0
    %6734 = vmatprep.subr.bf16.mxu0 0
    %6735 = vmatpush1.bf16.msra.mxu0 0
    %6736 = vmatprep.subr.bf16.mxu0 0
    %6737 = vmatpush1.bf16.msra.mxu0 0
    %6738 = vmatprep.subr.bf16.mxu0 0
    %6739 = vmatpush1.bf16.msra.mxu0 0
    %6740 = vmatprep.subr.bf16.mxu0 0
    %6741 = vmatpush1.bf16.msra.mxu0 0
    %6742 = vmatprep.subr.bf16.mxu0 0
    %6743 = vmatpush1.bf16.msra.mxu0 0
    %6744 = vmatprep.mubr.bf16.mxu0 %v6710
    %6745 = vmatmul.mubr.bf16.gmra.mrb[0].mxu0 %v6707
    %v6746 = vpop.f32.mrb[0].mxu0
    %v6747 = vadd.f32 0.0, %v6746
    %v6748 = vpop.f32.mrb[0].mxu0
    %v6749 = vpop.f32.mrb[0].mxu0
    %v6750 = vadd.f32 0.0, %v6749
    %v6751 = vpop.f32.mrb[0].mxu0
    %6752 = vdwg.mxu0
    %6755 = vrot.lane.b32.xlu0 %v6747, 64
    %v6756 = vpop.permute.xlu0 %6755
    %6757 = vrot.lane.b32.xlu0 %v6750, 64
    %v6758 = vpop.permute.xlu0 %6757
    %v6761 = vadd.f32 %v3933, %v6756
    %v6762 = vadd.f32 %v3965, %v6758
    %v6763 = vtanh.pop %v6761
    %v6764 = vtanh.pop %v6762
    %v6765 = vsub.f32 1.0, %v6663
    %v6766 = vsub.f32 1.0, %v6664
    %6769 = vrot.lane.b32.xlu0 %v6763, 96
    %v6770 = vpop.permute.xlu0 %6769
    %6771 = vrot.lane.b32.xlu0 %v6764, 96
    %v6772 = vpop.permute.xlu0 %6771
    %v6775 = vmul.f32 %v6765, %v6770
    %v6776 = vmul.f32 %v6766, %v6772
    %v6777 = vmul.f32 %v6663, %v6413
    %v6778 = vmul.f32 %v6664, %v6414
    %v6779 = vadd.f32 %v6775, %v6777
    %v6780 = vadd.f32 %v6776, %v6778
    %v6781 = vmul.f32 %v3303, %v6779
    %v6782 = vmul.f32 %v3335, %v6780
    %v6783 = vsub.f32 1.0, %v3303
    %v6784 = vsub.f32 1.0, %v3335
    %v6785 = vmul.f32 %v6783, %v6413
    %v6786 = vmul.f32 %v6784, %v6414
    %v6787 = vadd.f32 %v6781, %v6785
    %v6788 = vadd.f32 %v6782, %v6786
    %6790 = vrot.lane.b32.xlu0 %v6787, 96
    %v6791 = vpop.permute.xlu0 %6790
    %v6794 = vsel %vm157, %v4756, 0
    %6796 = vmatprep.subr.mxu0 0.0
    %6797 = vmatpush1.msra.mxu0 %v6791
    %6798 = vmatprep.subr.mxu0 0.0
    %6799 = vmatpush1.msra.mxu0 0.0
    %6800 = vmatprep.subr.mxu0 0.0
    %6801 = vmatpush1.msra.mxu0 0.0
    %6802 = vmatprep.subr.mxu0 0.0
    %6803 = vmatpush1.msra.mxu0 0.0
    %6804 = vmatprep.subr.mxu0 0.0
    %6805 = vmatpush1.msra.mxu0 0.0
    %6806 = vmatprep.subr.mxu0 0.0
    %6807 = vmatpush1.msra.mxu0 0.0
    %6808 = vmatprep.subr.mxu0 0.0
    %6809 = vmatpush1.msra.mxu0 0.0
    %6810 = vmatprep.subr.mxu0 0.0
    %6811 = vmatpush1.msra.mxu0 0.0
    %6812 = vmatprep.subr.mxu0 0.0
    %6813 = vmatpush1.msra.mxu0 0.0
    %6814 = vmatprep.subr.mxu0 0.0
    %6815 = vmatpush1.msra.mxu0 0.0
    %6816 = vmatprep.subr.mxu0 0.0
    %6817 = vmatpush1.msra.mxu0 0.0
    %6818 = vmatprep.subr.mxu0 0.0
    %6819 = vmatpush1.msra.mxu0 0.0
    %6820 = vmatprep.subr.mxu0 0.0
    %6821 = vmatpush1.msra.mxu0 0.0
    %6822 = vmatprep.subr.mxu0 0.0
    %6823 = vmatpush1.msra.mxu0 0.0
    %6824 = vmatprep.subr.mxu0 0.0
    %6825 = vmatpush1.msra.mxu0 0.0
    %6826 = vmatprep.subr.mxu0 0.0
    %6827 = vmatpush1.msra.mxu0 0.0
    %6828 = vmatprep.subr.mxu0 0.0
    %6829 = vmatpush1.msra.mxu0 0.0
    %6830 = vmatprep.subr.mxu0 0.0
    %6831 = vmatpush1.msra.mxu0 0.0
    %6832 = vmatprep.subr.mxu0 0.0
    %6833 = vmatpush1.msra.mxu0 0.0
    %6834 = vmatprep.subr.mxu0 0.0
    %6835 = vmatpush1.msra.mxu0 0.0
    %6836 = vmatprep.subr.mxu0 0.0
    %6837 = vmatpush1.msra.mxu0 0.0
    %6838 = vmatprep.subr.mxu0 0.0
    %6839 = vmatpush1.msra.mxu0 0.0
    %6840 = vmatprep.subr.mxu0 0.0
    %6841 = vmatpush1.msra.mxu0 0.0
    %6842 = vmatprep.subr.mxu0 0.0
    %6843 = vmatpush1.msra.mxu0 0.0
    %6844 = vmatprep.subr.mxu0 0.0
    %6845 = vmatpush1.msra.mxu0 0.0
    %6846 = vmatprep.subr.mxu0 0.0
    %6847 = vmatpush1.msra.mxu0 0.0
    %6848 = vmatprep.subr.mxu0 0.0
    %6849 = vmatpush1.msra.mxu0 0.0
    %6850 = vmatprep.subr.mxu0 0.0
    %6851 = vmatpush1.msra.mxu0 0.0
    %6852 = vmatprep.subr.mxu0 0.0
    %6853 = vmatpush1.msra.mxu0 0.0
    %6854 = vmatprep.subr.mxu0 0.0
    %6855 = vmatpush1.msra.mxu0 0.0
    %6856 = vmatprep.subr.mxu0 0.0
    %6857 = vmatpush1.msra.mxu0 0.0
    %6858 = vmatprep.subr.mxu0 0.0
    %6859 = vmatpush1.msra.mxu0 0.0
    %6860 = vmatprep.mubr.f32.mxu0 0.0
    %6861 = vmatmul.mubr.f32.gmra.mrb[0].mxu0 %v6794
    %v6862 = vpop.f32.mrb[0].mxu0
    %v6863 = vadd.f32 0.0, %v6862
    %v6864 = vpop.f32.mrb[0].mxu0
    %6865 = vdwg.mxu0
    %6867 = vrot.lane.b32.xlu0 %v6788, 96
    %v6868 = vpop.permute.xlu0 %6867
    %v6871 = vsel %vm157, %v4764, 0
    %6873 = vmatprep.subr.mxu0 0.0
    %6874 = vmatpush1.msra.mxu0 %v6868
    %6875 = vmatprep.subr.mxu0 0.0
    %6876 = vmatpush1.msra.mxu0 0.0
    %6877 = vmatprep.subr.mxu0 0.0
    %6878 = vmatpush1.msra.mxu0 0.0
    %6879 = vmatprep.subr.mxu0 0.0
    %6880 = vmatpush1.msra.mxu0 0.0
    %6881 = vmatprep.subr.mxu0 0.0
    %6882 = vmatpush1.msra.mxu0 0.0
    %6883 = vmatprep.subr.mxu0 0.0
    %6884 = vmatpush1.msra.mxu0 0.0
    %6885 = vmatprep.subr.mxu0 0.0
    %6886 = vmatpush1.msra.mxu0 0.0
    %6887 = vmatprep.subr.mxu0 0.0
    %6888 = vmatpush1.msra.mxu0 0.0
    %6889 = vmatprep.subr.mxu0 0.0
    %6890 = vmatpush1.msra.mxu0 0.0
    %6891 = vmatprep.subr.mxu0 0.0
    %6892 = vmatpush1.msra.mxu0 0.0
    %6893 = vmatprep.subr.mxu0 0.0
    %6894 = vmatpush1.msra.mxu0 0.0
    %6895 = vmatprep.subr.mxu0 0.0
    %6896 = vmatpush1.msra.mxu0 0.0
    %6897 = vmatprep.subr.mxu0 0.0
    %6898 = vmatpush1.msra.mxu0 0.0
    %6899 = vmatprep.subr.mxu0 0.0
    %6900 = vmatpush1.msra.mxu0 0.0
    %6901 = vmatprep.subr.mxu0 0.0
    %6902 = vmatpush1.msra.mxu0 0.0
    %6903 = vmatprep.subr.mxu0 0.0
    %6904 = vmatpush1.msra.mxu0 0.0
    %6905 = vmatprep.subr.mxu0 0.0
    %6906 = vmatpush1.msra.mxu0 0.0
    %6907 = vmatprep.subr.mxu0 0.0
    %6908 = vmatpush1.msra.mxu0 0.0
    %6909 = vmatprep.subr.mxu0 0.0
    %6910 = vmatpush1.msra.mxu0 0.0
    %6911 = vmatprep.subr.mxu0 0.0
    %6912 = vmatpush1.msra.mxu0 0.0
    %6913 = vmatprep.subr.mxu0 0.0
    %6914 = vmatpush1.msra.mxu0 0.0
    %6915 = vmatprep.subr.mxu0 0.0
    %6916 = vmatpush1.msra.mxu0 0.0
    %6917 = vmatprep.subr.mxu0 0.0
    %6918 = vmatpush1.msra.mxu0 0.0
    %6919 = vmatprep.subr.mxu0 0.0
    %6920 = vmatpush1.msra.mxu0 0.0
    %6921 = vmatprep.subr.mxu0 0.0
    %6922 = vmatpush1.msra.mxu0 0.0
    %6923 = vmatprep.subr.mxu0 0.0
    %6924 = vmatpush1.msra.mxu0 0.0
    %6925 = vmatprep.subr.mxu0 0.0
    %6926 = vmatpush1.msra.mxu0 0.0
    %6927 = vmatprep.subr.mxu0 0.0
    %6928 = vmatpush1.msra.mxu0 0.0
    %6929 = vmatprep.subr.mxu0 0.0
    %6930 = vmatpush1.msra.mxu0 0.0
    %6931 = vmatprep.subr.mxu0 0.0
    %6932 = vmatpush1.msra.mxu0 0.0
    %6933 = vmatprep.subr.mxu0 0.0
    %6934 = vmatpush1.msra.mxu0 0.0
    %6935 = vmatprep.subr.mxu0 0.0
    %6936 = vmatpush1.msra.mxu0 0.0
    %6937 = vmatprep.mubr.f32.mxu0 0.0
    %6938 = vmatmul.mubr.f32.gmra.mrb[0].mxu0 %v6871
    %v6939 = vpop.f32.mrb[0].mxu0
    %v6940 = vadd.f32 0.0, %v6939
    %v6941 = vpop.f32.mrb[0].mxu0
    %6942 = vdwg.mxu0
    %v6943 = vmul.f32 %v6863, %v3367
    %v6944 = vmul.f32 %v6940, %v3372
    %v6945 = vmul.f32 %v6863, %v3392
    %v6946 = vmul.f32 %v6940, %v3396
    %v6947 = vmul.f32 %v6863, %v3416
    %v6948 = vmul.f32 %v6940, %v3420
    %v6949 = vmul.f32 %v6863, %v3440
    %v6950 = vmul.f32 %v6940, %v3444
    %v6951 = vmul.f32 %v6863, %v3464
    %v6952 = vmul.f32 %v6940, %v3468
    %6955 = vrot.lane.b32.xlu0 %v6945, 32
    %v6956 = vpop.permute.xlu0 %6955
    %6957 = vrot.lane.b32.xlu0 %v6946, 32
    %v6958 = vpop.permute.xlu0 %6957
    %6963 = vrot.lane.b32.xlu0 %v6947, 64
    %v6964 = vpop.permute.xlu0 %6963
    %6965 = vrot.lane.b32.xlu0 %v6948, 64
    %v6966 = vpop.permute.xlu0 %6965
    %6971 = vrot.lane.b32.xlu0 %v6949, 96
    %v6972 = vpop.permute.xlu0 %6971
    %6973 = vrot.lane.b32.xlu0 %v6950, 96
    %v6974 = vpop.permute.xlu0 %6973
    %v6977 = vsel %vm3684, %v6943, %v6956
    %v6978 = vsel %vm3684, %v6944, %v6958
    %v6979 = vsel %vm56, %v6977, %v6964
    %v6980 = vsel %vm56, %v6978, %v6966
    %v6981 = vsel %vm3717, %v6979, %v6972
    %v6982 = vsel %vm3717, %v6980, %v6974
    %v6983 = vpack.c.bf16 %v6982, %v6981
    %v6984 = vpack.c.bf16 %v6952, %v6951
    %v6986 = vsel %vm3684, %v6984, 0
    %6988 = vmatprep.subr.bf16.mxu0 0
    %6989 = vmatpush1.bf16.msra.mxu0 %v5035
    %6990 = vmatprep.subr.bf16.mxu0 0
    %6991 = vmatpush1.bf16.msra.mxu0 %v5036
    %6992 = vmatprep.subr.bf16.mxu0 0
    %6993 = vmatpush1.bf16.msra.mxu0 %v5037
    %6994 = vmatprep.subr.bf16.mxu0 0
    %6995 = vmatpush1.bf16.msra.mxu0 %v5038
    %6996 = vmatprep.subr.bf16.mxu0 0
    %6997 = vmatpush1.bf16.msra.mxu0 %v5039
    %6998 = vmatprep.subr.bf16.mxu0 0
    %6999 = vmatpush1.bf16.msra.mxu0 %v5040
    %7000 = vmatprep.subr.bf16.mxu0 0
    %7001 = vmatpush1.bf16.msra.mxu0 %v5041
    %7002 = vmatprep.subr.bf16.mxu0 0
    %7003 = vmatpush1.bf16.msra.mxu0 %v5042
    %7004 = vmatprep.subr.bf16.mxu0 0
    %7005 = vmatpush1.bf16.msra.mxu0 %v5043
    %7006 = vmatprep.subr.bf16.mxu0 0
    %7007 = vmatpush1.bf16.msra.mxu0 %v5044
    %7008 = vmatprep.subr.bf16.mxu0 0
    %7009 = vmatpush1.bf16.msra.mxu0 0
    %7010 = vmatprep.subr.bf16.mxu0 0
    %7011 = vmatpush1.bf16.msra.mxu0 0
    %7012 = vmatprep.subr.bf16.mxu0 0
    %7013 = vmatpush1.bf16.msra.mxu0 0
    %7014 = vmatprep.subr.bf16.mxu0 0
    %7015 = vmatpush1.bf16.msra.mxu0 0
    %7016 = vmatprep.subr.bf16.mxu0 0
    %7017 = vmatpush1.bf16.msra.mxu0 0
    %7018 = vmatprep.subr.bf16.mxu0 0
    %7019 = vmatpush1.bf16.msra.mxu0 0
    %7020 = vmatprep.mubr.bf16.mxu0 %v6986
    %7021 = vmatmul.mubr.bf16.gmra.mrb[0].mxu0 %v6983
    %v7022 = vpop.f32.mrb[0].mxu0
    %v7023 = vadd.f32 0.0, %v7022
    %v7024 = vpop.f32.mrb[0].mxu0
    %v7025 = vpop.f32.mrb[0].mxu0
    %v7026 = vadd.f32 0.0, %v7025
    %v7027 = vpop.f32.mrb[0].mxu0
    %7028 = vdwg.mxu0
    %v7029 = vadd.f32 %v3936, %v7023
    %v7030 = vadd.f32 %v3968, %v7026
    %v7031 = vmul.f32 %v7029, 0.5
    %v7032 = vmul.f32 %v7030, 0.5
    %v7033 = vtanh.pop %v7031
    %v7034 = vtanh.pop %v7032
    %v7035 = vadd.f32 %v7033, 1.0
    %v7036 = vadd.f32 %v7034, 1.0
    %v7037 = vmul.f32 %v7035, 0.5
    %v7038 = vmul.f32 %v7036, 0.5
    %v7039 = vmul.f32 %v7037, %v6863
    %v7040 = vmul.f32 %v7038, %v6940
    %v7041 = vmul.f32 %v7039, %v3367
    %v7042 = vmul.f32 %v7040, %v3372
    %v7043 = vmul.f32 %v7039, %v3392
    %v7044 = vmul.f32 %v7040, %v3396
    %v7045 = vmul.f32 %v7039, %v3416
    %v7046 = vmul.f32 %v7040, %v3420
    %v7047 = vmul.f32 %v7039, %v3440
    %v7048 = vmul.f32 %v7040, %v3444
    %v7049 = vmul.f32 %v7039, %v3464
    %v7050 = vmul.f32 %v7040, %v3468
    %7053 = vrot.lane.b32.xlu0 %v7043, 32
    %v7054 = vpop.permute.xlu0 %7053
    %7055 = vrot.lane.b32.xlu0 %v7044, 32
    %v7056 = vpop.permute.xlu0 %7055
    %7061 = vrot.lane.b32.xlu0 %v7045, 64
    %v7062 = vpop.permute.xlu0 %7061
    %7063 = vrot.lane.b32.xlu0 %v7046, 64
    %v7064 = vpop.permute.xlu0 %7063
    %7069 = vrot.lane.b32.xlu0 %v7047, 96
    %v7070 = vpop.permute.xlu0 %7069
    %7071 = vrot.lane.b32.xlu0 %v7048, 96
    %v7072 = vpop.permute.xlu0 %7071
    %v7075 = vsel %vm3684, %v7041, %v7054
    %v7076 = vsel %vm3684, %v7042, %v7056
    %v7077 = vsel %vm56, %v7075, %v7062
    %v7078 = vsel %vm56, %v7076, %v7064
    %v7079 = vsel %vm3717, %v7077, %v7070
    %v7080 = vsel %vm3717, %v7078, %v7072
    %v7081 = vpack.c.bf16 %v7080, %v7079
    %v7082 = vpack.c.bf16 %v7050, %v7049
    %v7084 = vsel %vm3684, %v7082, 0
    %7086 = vmatprep.subr.bf16.mxu0 0
    %7087 = vmatpush1.bf16.msra.mxu0 %v5193
    %7088 = vmatprep.subr.bf16.mxu0 0
    %7089 = vmatpush1.bf16.msra.mxu0 %v5194
    %7090 = vmatprep.subr.bf16.mxu0 0
    %7091 = vmatpush1.bf16.msra.mxu0 %v5195
    %7092 = vmatprep.subr.bf16.mxu0 0
    %7093 = vmatpush1.bf16.msra.mxu0 %v5196
    %7094 = vmatprep.subr.bf16.mxu0 0
    %7095 = vmatpush1.bf16.msra.mxu0 %v5197
    %7096 = vmatprep.subr.bf16.mxu0 0
    %7097 = vmatpush1.bf16.msra.mxu0 %v5198
    %7098 = vmatprep.subr.bf16.mxu0 0
    %7099 = vmatpush1.bf16.msra.mxu0 %v5199
    %7100 = vmatprep.subr.bf16.mxu0 0
    %7101 = vmatpush1.bf16.msra.mxu0 %v5200
    %7102 = vmatprep.subr.bf16.mxu0 0
    %7103 = vmatpush1.bf16.msra.mxu0 %v5201
    %7104 = vmatprep.subr.bf16.mxu0 0
    %7105 = vmatpush1.bf16.msra.mxu0 %v5202
    %7106 = vmatprep.subr.bf16.mxu0 0
    %7107 = vmatpush1.bf16.msra.mxu0 0
    %7108 = vmatprep.subr.bf16.mxu0 0
    %7109 = vmatpush1.bf16.msra.mxu0 0
    %7110 = vmatprep.subr.bf16.mxu0 0
    %7111 = vmatpush1.bf16.msra.mxu0 0
    %7112 = vmatprep.subr.bf16.mxu0 0
    %7113 = vmatpush1.bf16.msra.mxu0 0
    %7114 = vmatprep.subr.bf16.mxu0 0
    %7115 = vmatpush1.bf16.msra.mxu0 0
    %7116 = vmatprep.subr.bf16.mxu0 0
    %7117 = vmatpush1.bf16.msra.mxu0 0
    %7118 = vmatprep.mubr.bf16.mxu0 %v7084
    %7119 = vmatmul.mubr.bf16.gmra.mrb[0].mxu0 %v7081
    %v7120 = vpop.f32.mrb[0].mxu0
    %v7121 = vadd.f32 0.0, %v7120
    %v7122 = vpop.f32.mrb[0].mxu0
    %v7123 = vpop.f32.mrb[0].mxu0
    %v7124 = vadd.f32 0.0, %v7123
    %v7125 = vpop.f32.mrb[0].mxu0
    %7126 = vdwg.mxu0
    %7129 = vrot.lane.b32.xlu0 %v7121, 64
    %v7130 = vpop.permute.xlu0 %7129
    %7131 = vrot.lane.b32.xlu0 %v7124, 64
    %v7132 = vpop.permute.xlu0 %7131
    %v7135 = vadd.f32 %v3936, %v7130
    %v7136 = vadd.f32 %v3968, %v7132
    %v7137 = vtanh.pop %v7135
    %v7138 = vtanh.pop %v7136
    %v7139 = vsub.f32 1.0, %v7037
    %v7140 = vsub.f32 1.0, %v7038
    %7143 = vrot.lane.b32.xlu0 %v7137, 96
    %v7144 = vpop.permute.xlu0 %7143
    %7145 = vrot.lane.b32.xlu0 %v7138, 96
    %v7146 = vpop.permute.xlu0 %7145
    %v7149 = vmul.f32 %v7139, %v7144
    %v7150 = vmul.f32 %v7140, %v7146
    %v7151 = vmul.f32 %v7037, %v6787
    %v7152 = vmul.f32 %v7038, %v6788
    %v7153 = vadd.f32 %v7149, %v7151
    %v7154 = vadd.f32 %v7150, %v7152
    %v7155 = vmul.f32 %v3307, %v7153
    %v7156 = vmul.f32 %v3339, %v7154
    %v7157 = vsub.f32 1.0, %v3307
    %v7158 = vsub.f32 1.0, %v3339
    %v7159 = vmul.f32 %v7157, %v6787
    %v7160 = vmul.f32 %v7158, %v6788
    %v7161 = vadd.f32 %v7155, %v7159
    %v7162 = vadd.f32 %v7156, %v7160
    %7164 = vrot.lane.b32.xlu0 %v7161, 96
    %v7165 = vpop.permute.xlu0 %7164
    %v7168 = vsel %vm157, %v4757, 0
    %7170 = vmatprep.subr.mxu0 0.0
    %7171 = vmatpush1.msra.mxu0 %v7165
    %7172 = vmatprep.subr.mxu0 0.0
    %7173 = vmatpush1.msra.mxu0 0.0
    %7174 = vmatprep.subr.mxu0 0.0
    %7175 = vmatpush1.msra.mxu0 0.0
    %7176 = vmatprep.subr.mxu0 0.0
    %7177 = vmatpush1.msra.mxu0 0.0
    %7178 = vmatprep.subr.mxu0 0.0
    %7179 = vmatpush1.msra.mxu0 0.0
    %7180 = vmatprep.subr.mxu0 0.0
    %7181 = vmatpush1.msra.mxu0 0.0
    %7182 = vmatprep.subr.mxu0 0.0
    %7183 = vmatpush1.msra.mxu0 0.0
    %7184 = vmatprep.subr.mxu0 0.0
    %7185 = vmatpush1.msra.mxu0 0.0
    %7186 = vmatprep.subr.mxu0 0.0
    %7187 = vmatpush1.msra.mxu0 0.0
    %7188 = vmatprep.subr.mxu0 0.0
    %7189 = vmatpush1.msra.mxu0 0.0
    %7190 = vmatprep.subr.mxu0 0.0
    %7191 = vmatpush1.msra.mxu0 0.0
    %7192 = vmatprep.subr.mxu0 0.0
    %7193 = vmatpush1.msra.mxu0 0.0
    %7194 = vmatprep.subr.mxu0 0.0
    %7195 = vmatpush1.msra.mxu0 0.0
    %7196 = vmatprep.subr.mxu0 0.0
    %7197 = vmatpush1.msra.mxu0 0.0
    %7198 = vmatprep.subr.mxu0 0.0
    %7199 = vmatpush1.msra.mxu0 0.0
    %7200 = vmatprep.subr.mxu0 0.0
    %7201 = vmatpush1.msra.mxu0 0.0
    %7202 = vmatprep.subr.mxu0 0.0
    %7203 = vmatpush1.msra.mxu0 0.0
    %7204 = vmatprep.subr.mxu0 0.0
    %7205 = vmatpush1.msra.mxu0 0.0
    %7206 = vmatprep.subr.mxu0 0.0
    %7207 = vmatpush1.msra.mxu0 0.0
    %7208 = vmatprep.subr.mxu0 0.0
    %7209 = vmatpush1.msra.mxu0 0.0
    %7210 = vmatprep.subr.mxu0 0.0
    %7211 = vmatpush1.msra.mxu0 0.0
    %7212 = vmatprep.subr.mxu0 0.0
    %7213 = vmatpush1.msra.mxu0 0.0
    %7214 = vmatprep.subr.mxu0 0.0
    %7215 = vmatpush1.msra.mxu0 0.0
    %7216 = vmatprep.subr.mxu0 0.0
    %7217 = vmatpush1.msra.mxu0 0.0
    %7218 = vmatprep.subr.mxu0 0.0
    %7219 = vmatpush1.msra.mxu0 0.0
    %7220 = vmatprep.subr.mxu0 0.0
    %7221 = vmatpush1.msra.mxu0 0.0
    %7222 = vmatprep.subr.mxu0 0.0
    %7223 = vmatpush1.msra.mxu0 0.0
    %7224 = vmatprep.subr.mxu0 0.0
    %7225 = vmatpush1.msra.mxu0 0.0
    %7226 = vmatprep.subr.mxu0 0.0
    %7227 = vmatpush1.msra.mxu0 0.0
    %7228 = vmatprep.subr.mxu0 0.0
    %7229 = vmatpush1.msra.mxu0 0.0
    %7230 = vmatprep.subr.mxu0 0.0
    %7231 = vmatpush1.msra.mxu0 0.0
    %7232 = vmatprep.subr.mxu0 0.0
    %7233 = vmatpush1.msra.mxu0 0.0
    %7234 = vmatprep.mubr.f32.mxu0 0.0
    %7235 = vmatmul.mubr.f32.gmra.mrb[0].mxu0 %v7168
    %v7236 = vpop.f32.mrb[0].mxu0
    %v7237 = vadd.f32 0.0, %v7236
    %v7238 = vpop.f32.mrb[0].mxu0
    %7239 = vdwg.mxu0
    %7241 = vrot.lane.b32.xlu0 %v7162, 96
    %v7242 = vpop.permute.xlu0 %7241
    %v7245 = vsel %vm157, %v4765, 0
    %7247 = vmatprep.subr.mxu0 0.0
    %7248 = vmatpush1.msra.mxu0 %v7242
    %7249 = vmatprep.subr.mxu0 0.0
    %7250 = vmatpush1.msra.mxu0 0.0
    %7251 = vmatprep.subr.mxu0 0.0
    %7252 = vmatpush1.msra.mxu0 0.0
    %7253 = vmatprep.subr.mxu0 0.0
    %7254 = vmatpush1.msra.mxu0 0.0
    %7255 = vmatprep.subr.mxu0 0.0
    %7256 = vmatpush1.msra.mxu0 0.0
    %7257 = vmatprep.subr.mxu0 0.0
    %7258 = vmatpush1.msra.mxu0 0.0
    %7259 = vmatprep.subr.mxu0 0.0
    %7260 = vmatpush1.msra.mxu0 0.0
    %7261 = vmatprep.subr.mxu0 0.0
    %7262 = vmatpush1.msra.mxu0 0.0
    %7263 = vmatprep.subr.mxu0 0.0
    %7264 = vmatpush1.msra.mxu0 0.0
    %7265 = vmatprep.subr.mxu0 0.0
    %7266 = vmatpush1.msra.mxu0 0.0
    %7267 = vmatprep.subr.mxu0 0.0
    %7268 = vmatpush1.msra.mxu0 0.0
    %7269 = vmatprep.subr.mxu0 0.0
    %7270 = vmatpush1.msra.mxu0 0.0
    %7271 = vmatprep.subr.mxu0 0.0
    %7272 = vmatpush1.msra.mxu0 0.0
    %7273 = vmatprep.subr.mxu0 0.0
    %7274 = vmatpush1.msra.mxu0 0.0
    %7275 = vmatprep.subr.mxu0 0.0
    %7276 = vmatpush1.msra.mxu0 0.0
    %7277 = vmatprep.subr.mxu0 0.0
    %7278 = vmatpush1.msra.mxu0 0.0
    %7279 = vmatprep.subr.mxu0 0.0
    %7280 = vmatpush1.msra.mxu0 0.0
    %7281 = vmatprep.subr.mxu0 0.0
    %7282 = vmatpush1.msra.mxu0 0.0
    %7283 = vmatprep.subr.mxu0 0.0
    %7284 = vmatpush1.msra.mxu0 0.0
    %7285 = vmatprep.subr.mxu0 0.0
    %7286 = vmatpush1.msra.mxu0 0.0
    %7287 = vmatprep.subr.mxu0 0.0
    %7288 = vmatpush1.msra.mxu0 0.0
    %7289 = vmatprep.subr.mxu0 0.0
    %7290 = vmatpush1.msra.mxu0 0.0
    %7291 = vmatprep.subr.mxu0 0.0
    %7292 = vmatpush1.msra.mxu0 0.0
    %7293 = vmatprep.subr.mxu0 0.0
    %7294 = vmatpush1.msra.mxu0 0.0
    %7295 = vmatprep.subr.mxu0 0.0
    %7296 = vmatpush1.msra.mxu0 0.0
    %7297 = vmatprep.subr.mxu0 0.0
    %7298 = vmatpush1.msra.mxu0 0.0
    %7299 = vmatprep.subr.mxu0 0.0
    %7300 = vmatpush1.msra.mxu0 0.0
    %7301 = vmatprep.subr.mxu0 0.0
    %7302 = vmatpush1.msra.mxu0 0.0
    %7303 = vmatprep.subr.mxu0 0.0
    %7304 = vmatpush1.msra.mxu0 0.0
    %7305 = vmatprep.subr.mxu0 0.0
    %7306 = vmatpush1.msra.mxu0 0.0
    %7307 = vmatprep.subr.mxu0 0.0
    %7308 = vmatpush1.msra.mxu0 0.0
    %7309 = vmatprep.subr.mxu0 0.0
    %7310 = vmatpush1.msra.mxu0 0.0
    %7311 = vmatprep.mubr.f32.mxu0 0.0
    %7312 = vmatmul.mubr.f32.gmra.mrb[0].mxu0 %v7245
    %v7313 = vpop.f32.mrb[0].mxu0
    %v7314 = vadd.f32 0.0, %v7313
    %v7315 = vpop.f32.mrb[0].mxu0
    %7316 = vdwg.mxu0
    %v7317 = vmul.f32 %v7237, %v3367
    %v7318 = vmul.f32 %v7314, %v3372
    %v7319 = vmul.f32 %v7237, %v3392
    %v7320 = vmul.f32 %v7314, %v3396
    %v7321 = vmul.f32 %v7237, %v3416
    %v7322 = vmul.f32 %v7314, %v3420
    %v7323 = vmul.f32 %v7237, %v3440
    %v7324 = vmul.f32 %v7314, %v3444
    %v7325 = vmul.f32 %v7237, %v3464
    %v7326 = vmul.f32 %v7314, %v3468
    %7329 = vrot.lane.b32.xlu0 %v7319, 32
    %v7330 = vpop.permute.xlu0 %7329
    %7331 = vrot.lane.b32.xlu0 %v7320, 32
    %v7332 = vpop.permute.xlu0 %7331
    %7337 = vrot.lane.b32.xlu0 %v7321, 64
    %v7338 = vpop.permute.xlu0 %7337
    %7339 = vrot.lane.b32.xlu0 %v7322, 64
    %v7340 = vpop.permute.xlu0 %7339
    %7345 = vrot.lane.b32.xlu0 %v7323, 96
    %v7346 = vpop.permute.xlu0 %7345
    %7347 = vrot.lane.b32.xlu0 %v7324, 96
    %v7348 = vpop.permute.xlu0 %7347
    %v7351 = vsel %vm3684, %v7317, %v7330
    %v7352 = vsel %vm3684, %v7318, %v7332
    %v7353 = vsel %vm56, %v7351, %v7338
    %v7354 = vsel %vm56, %v7352, %v7340
    %v7355 = vsel %vm3717, %v7353, %v7346
    %v7356 = vsel %vm3717, %v7354, %v7348
    %v7357 = vpack.c.bf16 %v7356, %v7355
    %v7358 = vpack.c.bf16 %v7326, %v7325
    %v7360 = vsel %vm3684, %v7358, 0
    %7362 = vmatprep.subr.bf16.mxu0 0
    %7363 = vmatpush1.bf16.msra.mxu0 %v5035
    %7364 = vmatprep.subr.bf16.mxu0 0
    %7365 = vmatpush1.bf16.msra.mxu0 %v5036
    %7366 = vmatprep.subr.bf16.mxu0 0
    %7367 = vmatpush1.bf16.msra.mxu0 %v5037
    %7368 = vmatprep.subr.bf16.mxu0 0
    %7369 = vmatpush1.bf16.msra.mxu0 %v5038
    %7370 = vmatprep.subr.bf16.mxu0 0
    %7371 = vmatpush1.bf16.msra.mxu0 %v5039
    %7372 = vmatprep.subr.bf16.mxu0 0
    %7373 = vmatpush1.bf16.msra.mxu0 %v5040
    %7374 = vmatprep.subr.bf16.mxu0 0
    %7375 = vmatpush1.bf16.msra.mxu0 %v5041
    %7376 = vmatprep.subr.bf16.mxu0 0
    %7377 = vmatpush1.bf16.msra.mxu0 %v5042
    %7378 = vmatprep.subr.bf16.mxu0 0
    %7379 = vmatpush1.bf16.msra.mxu0 %v5043
    %7380 = vmatprep.subr.bf16.mxu0 0
    %7381 = vmatpush1.bf16.msra.mxu0 %v5044
    %7382 = vmatprep.subr.bf16.mxu0 0
    %7383 = vmatpush1.bf16.msra.mxu0 0
    %7384 = vmatprep.subr.bf16.mxu0 0
    %7385 = vmatpush1.bf16.msra.mxu0 0
    %7386 = vmatprep.subr.bf16.mxu0 0
    %7387 = vmatpush1.bf16.msra.mxu0 0
    %7388 = vmatprep.subr.bf16.mxu0 0
    %7389 = vmatpush1.bf16.msra.mxu0 0
    %7390 = vmatprep.subr.bf16.mxu0 0
    %7391 = vmatpush1.bf16.msra.mxu0 0
    %7392 = vmatprep.subr.bf16.mxu0 0
    %7393 = vmatpush1.bf16.msra.mxu0 0
    %7394 = vmatprep.mubr.bf16.mxu0 %v7360
    %7395 = vmatmul.mubr.bf16.gmra.mrb[0].mxu0 %v7357
    %v7396 = vpop.f32.mrb[0].mxu0
    %v7397 = vadd.f32 0.0, %v7396
    %v7398 = vpop.f32.mrb[0].mxu0
    %v7399 = vpop.f32.mrb[0].mxu0
    %v7400 = vadd.f32 0.0, %v7399
    %v7401 = vpop.f32.mrb[0].mxu0
    %7402 = vdwg.mxu0
    %v7403 = vadd.f32 %v3941, %v7397
    %v7404 = vadd.f32 %v3973, %v7400
    %v7405 = vmul.f32 %v7403, 0.5
    %v7406 = vmul.f32 %v7404, 0.5
    %v7407 = vtanh.pop %v7405
    %v7408 = vtanh.pop %v7406
    %v7409 = vadd.f32 %v7407, 1.0
    %v7410 = vadd.f32 %v7408, 1.0
    %v7411 = vmul.f32 %v7409, 0.5
    %v7412 = vmul.f32 %v7410, 0.5
    %v7413 = vmul.f32 %v7411, %v7237
    %v7414 = vmul.f32 %v7412, %v7314
    %v7415 = vmul.f32 %v7413, %v3367
    %v7416 = vmul.f32 %v7414, %v3372
    %v7417 = vmul.f32 %v7413, %v3392
    %v7418 = vmul.f32 %v7414, %v3396
    %v7419 = vmul.f32 %v7413, %v3416
    %v7420 = vmul.f32 %v7414, %v3420
    %v7421 = vmul.f32 %v7413, %v3440
    %v7422 = vmul.f32 %v7414, %v3444
    %v7423 = vmul.f32 %v7413, %v3464
    %v7424 = vmul.f32 %v7414, %v3468
    %7427 = vrot.lane.b32.xlu0 %v7417, 32
    %v7428 = vpop.permute.xlu0 %7427
    %7429 = vrot.lane.b32.xlu0 %v7418, 32
    %v7430 = vpop.permute.xlu0 %7429
    %7435 = vrot.lane.b32.xlu0 %v7419, 64
    %v7436 = vpop.permute.xlu0 %7435
    %7437 = vrot.lane.b32.xlu0 %v7420, 64
    %v7438 = vpop.permute.xlu0 %7437
    %7443 = vrot.lane.b32.xlu0 %v7421, 96
    %v7444 = vpop.permute.xlu0 %7443
    %7445 = vrot.lane.b32.xlu0 %v7422, 96
    %v7446 = vpop.permute.xlu0 %7445
    %v7449 = vsel %vm3684, %v7415, %v7428
    %v7450 = vsel %vm3684, %v7416, %v7430
    %v7451 = vsel %vm56, %v7449, %v7436
    %v7452 = vsel %vm56, %v7450, %v7438
    %v7453 = vsel %vm3717, %v7451, %v7444
    %v7454 = vsel %vm3717, %v7452, %v7446
    %v7455 = vpack.c.bf16 %v7454, %v7453
    %v7456 = vpack.c.bf16 %v7424, %v7423
    %v7458 = vsel %vm3684, %v7456, 0
    %7460 = vmatprep.subr.bf16.mxu0 0
    %7461 = vmatpush1.bf16.msra.mxu0 %v5193
    %7462 = vmatprep.subr.bf16.mxu0 0
    %7463 = vmatpush1.bf16.msra.mxu0 %v5194
    %7464 = vmatprep.subr.bf16.mxu0 0
    %7465 = vmatpush1.bf16.msra.mxu0 %v5195
    %7466 = vmatprep.subr.bf16.mxu0 0
    %7467 = vmatpush1.bf16.msra.mxu0 %v5196
    %7468 = vmatprep.subr.bf16.mxu0 0
    %7469 = vmatpush1.bf16.msra.mxu0 %v5197
    %7470 = vmatprep.subr.bf16.mxu0 0
    %7471 = vmatpush1.bf16.msra.mxu0 %v5198
    %7472 = vmatprep.subr.bf16.mxu0 0
    %7473 = vmatpush1.bf16.msra.mxu0 %v5199
    %7474 = vmatprep.subr.bf16.mxu0 0
    %7475 = vmatpush1.bf16.msra.mxu0 %v5200
    %7476 = vmatprep.subr.bf16.mxu0 0
    %7477 = vmatpush1.bf16.msra.mxu0 %v5201
    %7478 = vmatprep.subr.bf16.mxu0 0
    %7479 = vmatpush1.bf16.msra.mxu0 %v5202
    %7480 = vmatprep.subr.bf16.mxu0 0
    %7481 = vmatpush1.bf16.msra.mxu0 0
    %7482 = vmatprep.subr.bf16.mxu0 0
    %7483 = vmatpush1.bf16.msra.mxu0 0
    %7484 = vmatprep.subr.bf16.mxu0 0
    %7485 = vmatpush1.bf16.msra.mxu0 0
    %7486 = vmatprep.subr.bf16.mxu0 0
    %7487 = vmatpush1.bf16.msra.mxu0 0
    %7488 = vmatprep.subr.bf16.mxu0 0
    %7489 = vmatpush1.bf16.msra.mxu0 0
    %7490 = vmatprep.subr.bf16.mxu0 0
    %7491 = vmatpush1.bf16.msra.mxu0 0
    %7492 = vmatprep.mubr.bf16.mxu0 %v7458
    %7493 = vmatmul.mubr.bf16.gmra.mrb[0].mxu0 %v7455
    %v7494 = vpop.f32.mrb[0].mxu0
    %v7495 = vadd.f32 0.0, %v7494
    %v7496 = vpop.f32.mrb[0].mxu0
    %v7497 = vpop.f32.mrb[0].mxu0
    %v7498 = vadd.f32 0.0, %v7497
    %v7499 = vpop.f32.mrb[0].mxu0
    %7500 = vdwg.mxu0
    %7503 = vrot.lane.b32.xlu0 %v7495, 64
    %v7504 = vpop.permute.xlu0 %7503
    %7505 = vrot.lane.b32.xlu0 %v7498, 64
    %v7506 = vpop.permute.xlu0 %7505
    %v7509 = vadd.f32 %v3941, %v7504
    %v7510 = vadd.f32 %v3973, %v7506
    %v7511 = vtanh.pop %v7509
    %v7512 = vtanh.pop %v7510
    %v7513 = vsub.f32 1.0, %v7411
    %v7514 = vsub.f32 1.0, %v7412
    %7517 = vrot.lane.b32.xlu0 %v7511, 96
    %v7518 = vpop.permute.xlu0 %7517
    %7519 = vrot.lane.b32.xlu0 %v7512, 96
    %v7520 = vpop.permute.xlu0 %7519
    %v7523 = vmul.f32 %v7513, %v7518
    %v7524 = vmul.f32 %v7514, %v7520
    %v7525 = vmul.f32 %v7411, %v7161
    %v7526 = vmul.f32 %v7412, %v7162
    %v7527 = vadd.f32 %v7523, %v7525
    %v7528 = vadd.f32 %v7524, %v7526
    %v7529 = vmul.f32 %v3311, %v7527
    %v7530 = vmul.f32 %v3343, %v7528
    %v7531 = vsub.f32 1.0, %v3311
    %v7532 = vsub.f32 1.0, %v3343
    %v7533 = vmul.f32 %v7531, %v7161
    %v7534 = vmul.f32 %v7532, %v7162
    %v7535 = vadd.f32 %v7529, %v7533
    %v7536 = vadd.f32 %v7530, %v7534
    %7538 = vrot.lane.b32.xlu0 %v7535, 96
    %v7539 = vpop.permute.xlu0 %7538
    %v7542 = vsel %vm157, %v4758, 0
    %7544 = vmatprep.subr.mxu0 0.0
    %7545 = vmatpush1.msra.mxu0 %v7539
    %7546 = vmatprep.subr.mxu0 0.0
    %7547 = vmatpush1.msra.mxu0 0.0
    %7548 = vmatprep.subr.mxu0 0.0
    %7549 = vmatpush1.msra.mxu0 0.0
    %7550 = vmatprep.subr.mxu0 0.0
    %7551 = vmatpush1.msra.mxu0 0.0
    %7552 = vmatprep.subr.mxu0 0.0
    %7553 = vmatpush1.msra.mxu0 0.0
    %7554 = vmatprep.subr.mxu0 0.0
    %7555 = vmatpush1.msra.mxu0 0.0
    %7556 = vmatprep.subr.mxu0 0.0
    %7557 = vmatpush1.msra.mxu0 0.0
    %7558 = vmatprep.subr.mxu0 0.0
    %7559 = vmatpush1.msra.mxu0 0.0
    %7560 = vmatprep.subr.mxu0 0.0
    %7561 = vmatpush1.msra.mxu0 0.0
    %7562 = vmatprep.subr.mxu0 0.0
    %7563 = vmatpush1.msra.mxu0 0.0
    %7564 = vmatprep.subr.mxu0 0.0
    %7565 = vmatpush1.msra.mxu0 0.0
    %7566 = vmatprep.subr.mxu0 0.0
    %7567 = vmatpush1.msra.mxu0 0.0
    %7568 = vmatprep.subr.mxu0 0.0
    %7569 = vmatpush1.msra.mxu0 0.0
    %7570 = vmatprep.subr.mxu0 0.0
    %7571 = vmatpush1.msra.mxu0 0.0
    %7572 = vmatprep.subr.mxu0 0.0
    %7573 = vmatpush1.msra.mxu0 0.0
    %7574 = vmatprep.subr.mxu0 0.0
    %7575 = vmatpush1.msra.mxu0 0.0
    %7576 = vmatprep.subr.mxu0 0.0
    %7577 = vmatpush1.msra.mxu0 0.0
    %7578 = vmatprep.subr.mxu0 0.0
    %7579 = vmatpush1.msra.mxu0 0.0
    %7580 = vmatprep.subr.mxu0 0.0
    %7581 = vmatpush1.msra.mxu0 0.0
    %7582 = vmatprep.subr.mxu0 0.0
    %7583 = vmatpush1.msra.mxu0 0.0
    %7584 = vmatprep.subr.mxu0 0.0
    %7585 = vmatpush1.msra.mxu0 0.0
    %7586 = vmatprep.subr.mxu0 0.0
    %7587 = vmatpush1.msra.mxu0 0.0
    %7588 = vmatprep.subr.mxu0 0.0
    %7589 = vmatpush1.msra.mxu0 0.0
    %7590 = vmatprep.subr.mxu0 0.0
    %7591 = vmatpush1.msra.mxu0 0.0
    %7592 = vmatprep.subr.mxu0 0.0
    %7593 = vmatpush1.msra.mxu0 0.0
    %7594 = vmatprep.subr.mxu0 0.0
    %7595 = vmatpush1.msra.mxu0 0.0
    %7596 = vmatprep.subr.mxu0 0.0
    %7597 = vmatpush1.msra.mxu0 0.0
    %7598 = vmatprep.subr.mxu0 0.0
    %7599 = vmatpush1.msra.mxu0 0.0
    %7600 = vmatprep.subr.mxu0 0.0
    %7601 = vmatpush1.msra.mxu0 0.0
    %7602 = vmatprep.subr.mxu0 0.0
    %7603 = vmatpush1.msra.mxu0 0.0
    %7604 = vmatprep.subr.mxu0 0.0
    %7605 = vmatpush1.msra.mxu0 0.0
    %7606 = vmatprep.subr.mxu0 0.0
    %7607 = vmatpush1.msra.mxu0 0.0
    %7608 = vmatprep.mubr.f32.mxu0 0.0
    %7609 = vmatmul.mubr.f32.gmra.mrb[0].mxu0 %v7542
    %v7610 = vpop.f32.mrb[0].mxu0
    %v7611 = vadd.f32 0.0, %v7610
    %v7612 = vpop.f32.mrb[0].mxu0
    %7613 = vdwg.mxu0
    %7615 = vrot.lane.b32.xlu0 %v7536, 96
    %v7616 = vpop.permute.xlu0 %7615
    %v7619 = vsel %vm157, %v4766, 0
    %7621 = vmatprep.subr.mxu0 0.0
    %7622 = vmatpush1.msra.mxu0 %v7616
    %7623 = vmatprep.subr.mxu0 0.0
    %7624 = vmatpush1.msra.mxu0 0.0
    %7625 = vmatprep.subr.mxu0 0.0
    %7626 = vmatpush1.msra.mxu0 0.0
    %7627 = vmatprep.subr.mxu0 0.0
    %7628 = vmatpush1.msra.mxu0 0.0
    %7629 = vmatprep.subr.mxu0 0.0
    %7630 = vmatpush1.msra.mxu0 0.0
    %7631 = vmatprep.subr.mxu0 0.0
    %7632 = vmatpush1.msra.mxu0 0.0
    %7633 = vmatprep.subr.mxu0 0.0
    %7634 = vmatpush1.msra.mxu0 0.0
    %7635 = vmatprep.subr.mxu0 0.0
    %7636 = vmatpush1.msra.mxu0 0.0
    %7637 = vmatprep.subr.mxu0 0.0
    %7638 = vmatpush1.msra.mxu0 0.0
    %7639 = vmatprep.subr.mxu0 0.0
    %7640 = vmatpush1.msra.mxu0 0.0
    %7641 = vmatprep.subr.mxu0 0.0
    %7642 = vmatpush1.msra.mxu0 0.0
    %7643 = vmatprep.subr.mxu0 0.0
    %7644 = vmatpush1.msra.mxu0 0.0
    %7645 = vmatprep.subr.mxu0 0.0
    %7646 = vmatpush1.msra.mxu0 0.0
    %7647 = vmatprep.subr.mxu0 0.0
    %7648 = vmatpush1.msra.mxu0 0.0
    %7649 = vmatprep.subr.mxu0 0.0
    %7650 = vmatpush1.msra.mxu0 0.0
    %7651 = vmatprep.subr.mxu0 0.0
    %7652 = vmatpush1.msra.mxu0 0.0
    %7653 = vmatprep.subr.mxu0 0.0
    %7654 = vmatpush1.msra.mxu0 0.0
    %7655 = vmatprep.subr.mxu0 0.0
    %7656 = vmatpush1.msra.mxu0 0.0
    %7657 = vmatprep.subr.mxu0 0.0
    %7658 = vmatpush1.msra.mxu0 0.0
    %7659 = vmatprep.subr.mxu0 0.0
    %7660 = vmatpush1.msra.mxu0 0.0
    %7661 = vmatprep.subr.mxu0 0.0
    %7662 = vmatpush1.msra.mxu0 0.0
    %7663 = vmatprep.subr.mxu0 0.0
    %7664 = vmatpush1.msra.mxu0 0.0
    %7665 = vmatprep.subr.mxu0 0.0
    %7666 = vmatpush1.msra.mxu0 0.0
    %7667 = vmatprep.subr.mxu0 0.0
    %7668 = vmatpush1.msra.mxu0 0.0
    %7669 = vmatprep.subr.mxu0 0.0
    %7670 = vmatpush1.msra.mxu0 0.0
    %7671 = vmatprep.subr.mxu0 0.0
    %7672 = vmatpush1.msra.mxu0 0.0
    %7673 = vmatprep.subr.mxu0 0.0
    %7674 = vmatpush1.msra.mxu0 0.0
    %7675 = vmatprep.subr.mxu0 0.0
    %7676 = vmatpush1.msra.mxu0 0.0
    %7677 = vmatprep.subr.mxu0 0.0
    %7678 = vmatpush1.msra.mxu0 0.0
    %7679 = vmatprep.subr.mxu0 0.0
    %7680 = vmatpush1.msra.mxu0 0.0
    %7681 = vmatprep.subr.mxu0 0.0
    %7682 = vmatpush1.msra.mxu0 0.0
    %7683 = vmatprep.subr.mxu0 0.0
    %7684 = vmatpush1.msra.mxu0 0.0
    %7685 = vmatprep.mubr.f32.mxu0 0.0
    %7686 = vmatmul.mubr.f32.gmra.mrb[0].mxu0 %v7619
    %v7687 = vpop.f32.mrb[0].mxu0
    %v7688 = vadd.f32 0.0, %v7687
    %v7689 = vpop.f32.mrb[0].mxu0
    %7690 = vdwg.mxu0
    %v7691 = vmul.f32 %v7611, %v3367
    %v7692 = vmul.f32 %v7688, %v3372
    %v7693 = vmul.f32 %v7611, %v3392
    %v7694 = vmul.f32 %v7688, %v3396
    %v7695 = vmul.f32 %v7611, %v3416
    %v7696 = vmul.f32 %v7688, %v3420
    %v7697 = vmul.f32 %v7611, %v3440
    %v7698 = vmul.f32 %v7688, %v3444
    %v7699 = vmul.f32 %v7611, %v3464
    %v7700 = vmul.f32 %v7688, %v3468
    %7703 = vrot.lane.b32.xlu0 %v7693, 32
    %v7704 = vpop.permute.xlu0 %7703
    %7705 = vrot.lane.b32.xlu0 %v7694, 32
    %v7706 = vpop.permute.xlu0 %7705
    %7711 = vrot.lane.b32.xlu0 %v7695, 64
    %v7712 = vpop.permute.xlu0 %7711
    %7713 = vrot.lane.b32.xlu0 %v7696, 64
    %v7714 = vpop.permute.xlu0 %7713
    %7719 = vrot.lane.b32.xlu0 %v7697, 96
    %v7720 = vpop.permute.xlu0 %7719
    %7721 = vrot.lane.b32.xlu0 %v7698, 96
    %v7722 = vpop.permute.xlu0 %7721
    %v7725 = vsel %vm3684, %v7691, %v7704
    %v7726 = vsel %vm3684, %v7692, %v7706
    %v7727 = vsel %vm56, %v7725, %v7712
    %v7728 = vsel %vm56, %v7726, %v7714
    %v7729 = vsel %vm3717, %v7727, %v7720
    %v7730 = vsel %vm3717, %v7728, %v7722
    %v7731 = vpack.c.bf16 %v7730, %v7729
    %v7732 = vpack.c.bf16 %v7700, %v7699
    %v7734 = vsel %vm3684, %v7732, 0
    %7736 = vmatprep.subr.bf16.mxu0 0
    %7737 = vmatpush1.bf16.msra.mxu0 %v5035
    %7738 = vmatprep.subr.bf16.mxu0 0
    %7739 = vmatpush1.bf16.msra.mxu0 %v5036
    %7740 = vmatprep.subr.bf16.mxu0 0
    %7741 = vmatpush1.bf16.msra.mxu0 %v5037
    %7742 = vmatprep.subr.bf16.mxu0 0
    %7743 = vmatpush1.bf16.msra.mxu0 %v5038
    %7744 = vmatprep.subr.bf16.mxu0 0
    %7745 = vmatpush1.bf16.msra.mxu0 %v5039
    %7746 = vmatprep.subr.bf16.mxu0 0
    %7747 = vmatpush1.bf16.msra.mxu0 %v5040
    %7748 = vmatprep.subr.bf16.mxu0 0
    %7749 = vmatpush1.bf16.msra.mxu0 %v5041
    %7750 = vmatprep.subr.bf16.mxu0 0
    %7751 = vmatpush1.bf16.msra.mxu0 %v5042
    %7752 = vmatprep.subr.bf16.mxu0 0
    %7753 = vmatpush1.bf16.msra.mxu0 %v5043
    %7754 = vmatprep.subr.bf16.mxu0 0
    %7755 = vmatpush1.bf16.msra.mxu0 %v5044
    %7756 = vmatprep.subr.bf16.mxu0 0
    %7757 = vmatpush1.bf16.msra.mxu0 0
    %7758 = vmatprep.subr.bf16.mxu0 0
    %7759 = vmatpush1.bf16.msra.mxu0 0
    %7760 = vmatprep.subr.bf16.mxu0 0
    %7761 = vmatpush1.bf16.msra.mxu0 0
    %7762 = vmatprep.subr.bf16.mxu0 0
    %7763 = vmatpush1.bf16.msra.mxu0 0
    %7764 = vmatprep.subr.bf16.mxu0 0
    %7765 = vmatpush1.bf16.msra.mxu0 0
    %7766 = vmatprep.subr.bf16.mxu0 0
    %7767 = vmatpush1.bf16.msra.mxu0 0
    %7768 = vmatprep.mubr.bf16.mxu0 %v7734
    %7769 = vmatmul.mubr.bf16.gmra.mrb[0].mxu0 %v7731
    %v7770 = vpop.f32.mrb[0].mxu0
    %v7771 = vadd.f32 0.0, %v7770
    %v7772 = vpop.f32.mrb[0].mxu0
    %v7773 = vpop.f32.mrb[0].mxu0
    %v7774 = vadd.f32 0.0, %v7773
    %v7775 = vpop.f32.mrb[0].mxu0
    %7776 = vdwg.mxu0
    %v7777 = vadd.f32 %v3944, %v7771
    %v7778 = vadd.f32 %v3976, %v7774
    %v7779 = vmul.f32 %v7777, 0.5
    %v7780 = vmul.f32 %v7778, 0.5
    %v7781 = vtanh.pop %v7779
    %v7782 = vtanh.pop %v7780
    %v7783 = vadd.f32 %v7781, 1.0
    %v7784 = vadd.f32 %v7782, 1.0
    %v7785 = vmul.f32 %v7783, 0.5
    %v7786 = vmul.f32 %v7784, 0.5
    %v7787 = vmul.f32 %v7785, %v7611
    %v7788 = vmul.f32 %v7786, %v7688
    %v7789 = vmul.f32 %v7787, %v3367
    %v7790 = vmul.f32 %v7788, %v3372
    %v7791 = vmul.f32 %v7787, %v3392
    %v7792 = vmul.f32 %v7788, %v3396
    %v7793 = vmul.f32 %v7787, %v3416
    %v7794 = vmul.f32 %v7788, %v3420
    %v7795 = vmul.f32 %v7787, %v3440
    %v7796 = vmul.f32 %v7788, %v3444
    %v7797 = vmul.f32 %v7787, %v3464
    %v7798 = vmul.f32 %v7788, %v3468
    %7801 = vrot.lane.b32.xlu0 %v7791, 32
    %v7802 = vpop.permute.xlu0 %7801
    %7803 = vrot.lane.b32.xlu0 %v7792, 32
    %v7804 = vpop.permute.xlu0 %7803
    %7809 = vrot.lane.b32.xlu0 %v7793, 64
    %v7810 = vpop.permute.xlu0 %7809
    %7811 = vrot.lane.b32.xlu0 %v7794, 64
    %v7812 = vpop.permute.xlu0 %7811
    %7817 = vrot.lane.b32.xlu0 %v7795, 96
    %v7818 = vpop.permute.xlu0 %7817
    %7819 = vrot.lane.b32.xlu0 %v7796, 96
    %v7820 = vpop.permute.xlu0 %7819
    %v7823 = vsel %vm3684, %v7789, %v7802
    %v7824 = vsel %vm3684, %v7790, %v7804
    %v7825 = vsel %vm56, %v7823, %v7810
    %v7826 = vsel %vm56, %v7824, %v7812
    %v7827 = vsel %vm3717, %v7825, %v7818
    %v7828 = vsel %vm3717, %v7826, %v7820
    %v7829 = vpack.c.bf16 %v7828, %v7827
    %v7830 = vpack.c.bf16 %v7798, %v7797
    %v7832 = vsel %vm3684, %v7830, 0
    %7834 = vmatprep.subr.bf16.mxu0 0
    %7835 = vmatpush1.bf16.msra.mxu0 %v5193
    %7836 = vmatprep.subr.bf16.mxu0 0
    %7837 = vmatpush1.bf16.msra.mxu0 %v5194
    %7838 = vmatprep.subr.bf16.mxu0 0
    %7839 = vmatpush1.bf16.msra.mxu0 %v5195
    %7840 = vmatprep.subr.bf16.mxu0 0
    %7841 = vmatpush1.bf16.msra.mxu0 %v5196
    %7842 = vmatprep.subr.bf16.mxu0 0
    %7843 = vmatpush1.bf16.msra.mxu0 %v5197
    %7844 = vmatprep.subr.bf16.mxu0 0
    %7845 = vmatpush1.bf16.msra.mxu0 %v5198
    %7846 = vmatprep.subr.bf16.mxu0 0
    %7847 = vmatpush1.bf16.msra.mxu0 %v5199
    %7848 = vmatprep.subr.bf16.mxu0 0
    %7849 = vmatpush1.bf16.msra.mxu0 %v5200
    %7850 = vmatprep.subr.bf16.mxu0 0
    %7851 = vmatpush1.bf16.msra.mxu0 %v5201
    %7852 = vmatprep.subr.bf16.mxu0 0
    %7853 = vmatpush1.bf16.msra.mxu0 %v5202
    %7854 = vmatprep.subr.bf16.mxu0 0
    %7855 = vmatpush1.bf16.msra.mxu0 0
    %7856 = vmatprep.subr.bf16.mxu0 0
    %7857 = vmatpush1.bf16.msra.mxu0 0
    %7858 = vmatprep.subr.bf16.mxu0 0
    %7859 = vmatpush1.bf16.msra.mxu0 0
    %7860 = vmatprep.subr.bf16.mxu0 0
    %7861 = vmatpush1.bf16.msra.mxu0 0
    %7862 = vmatprep.subr.bf16.mxu0 0
    %7863 = vmatpush1.bf16.msra.mxu0 0
    %7864 = vmatprep.subr.bf16.mxu0 0
    %7865 = vmatpush1.bf16.msra.mxu0 0
    %7866 = vmatprep.mubr.bf16.mxu0 %v7832
    %7867 = vmatmul.mubr.bf16.gmra.mrb[0].mxu0 %v7829
    %v7868 = vpop.f32.mrb[0].mxu0
    %v7869 = vadd.f32 0.0, %v7868
    %v7870 = vpop.f32.mrb[0].mxu0
    %v7871 = vpop.f32.mrb[0].mxu0
    %v7872 = vadd.f32 0.0, %v7871
    %v7873 = vpop.f32.mrb[0].mxu0
    %7874 = vdwg.mxu0
    %7877 = vrot.lane.b32.xlu0 %v7869, 64
    %v7878 = vpop.permute.xlu0 %7877
    %7879 = vrot.lane.b32.xlu0 %v7872, 64
    %v7880 = vpop.permute.xlu0 %7879
    %v7883 = vadd.f32 %v3944, %v7878
    %v7884 = vadd.f32 %v3976, %v7880
    %v7885 = vtanh.pop %v7883
    %v7886 = vtanh.pop %v7884
    %v7887 = vsub.f32 1.0, %v7785
    %v7888 = vsub.f32 1.0, %v7786
    %7891 = vrot.lane.b32.xlu0 %v7885, 96
    %v7892 = vpop.permute.xlu0 %7891
    %7893 = vrot.lane.b32.xlu0 %v7886, 96
    %v7894 = vpop.permute.xlu0 %7893
    %v7897 = vmul.f32 %v7887, %v7892
    %v7898 = vmul.f32 %v7888, %v7894
    %v7899 = vmul.f32 %v7785, %v7535
    %v7900 = vmul.f32 %v7786, %v7536
    %v7901 = vadd.f32 %v7897, %v7899
    %v7902 = vadd.f32 %v7898, %v7900
    %v7903 = vmul.f32 %v3315, %v7901
    %v7904 = vmul.f32 %v3347, %v7902
    %v7905 = vsub.f32 1.0, %v3315
    %v7906 = vsub.f32 1.0, %v3347
    %v7907 = vmul.f32 %v7905, %v7535
    %v7908 = vmul.f32 %v7906, %v7536
    %v7909 = vadd.f32 %v7903, %v7907
    %v7910 = vadd.f32 %v7904, %v7908
    %7913 = vrot.lane.b32.xlu0 %v7909, 96
    %v7914 = vpop.permute.xlu0 %7913
    %7915 = vrot.lane.b32.xlu0 %v7910, 96
    %v7916 = vpop.permute.xlu0 %7915
    %v7919 = vsel %vm3684, %v7914, 0.0
    %7920 = vadd.xlane.f32.xlu0 %v7919
    %v7921 = vpop.xlane.xlu0 %7920
    %v7922 = vsel %vm3684, %v7916, 0.0
    %7923 = vadd.xlane.f32.xlu0 %v7922
    %v7924 = vpop.xlane.xlu0 %7923
    %v7925 = vld [vmem:[%s1] sm:$0x1]
    %v7926 = vld [vmem:[%s1 + $0x1] sm:$0x1]
    %v7927 = vlaneseq
    %v7928 = vshrl.u32 %v7927, 7
    %v7929 = vsub.s32 5, %v7928
    %v7930 = vrot.slane %v33, %v7929
    %v7933 = vcombine.low %v7925, %v7926
    %v7935 = vunpack.c.l.s4 1966171168
    %v7936 = vunpack.c.0.s8 %v7935
    %v7937 = vlaneseq
    %v7938 = vshrl.u32 %v7937, 7
    %v7939 = vsub.s32 %v7936, %v7938
    %v7940 = vrot.slane %v7933, %v7939
    %v7942 = vunpack.c.l.s4 1966171168
    %v7943 = vunpack.c.0.s8 %v7942
    %v7944 = vlaneseq
    %v7945 = vshrl.u32 %v7944, 7
    %v7946 = vsub.s32 %v7943, %v7945
    %v7947 = vrot.slane %v7940, %v7946
    %v7949 = vrot.slane %v36, 2
    %vm7950 = vcmask 31744
    %v7951 = vsel %vm7950, %v7947, 0
    %vm7953 = vcmask 1043456
    %v7954 = vsel %vm7953, %v7949, 0
    %7956 = vmatprep.subr.mxu0 0.0
    %7957 = vmatpush1.msra.mxu0 %v7954
    %7958 = vmatprep.subr.mxu0 0.0
    %7959 = vmatpush1.msra.mxu0 0.0
    %7960 = vmatprep.subr.mxu0 0.0
    %7961 = vmatpush1.msra.mxu0 0.0
    %7962 = vmatprep.subr.mxu0 0.0
    %7963 = vmatpush1.msra.mxu0 0.0
    %7964 = vmatprep.subr.mxu0 0.0
    %7965 = vmatpush1.msra.mxu0 0.0
    %7966 = vmatprep.subr.mxu0 0.0
    %7967 = vmatpush1.msra.mxu0 0.0
    %7968 = vmatprep.subr.mxu0 0.0
    %7969 = vmatpush1.msra.mxu0 0.0
    %7970 = vmatprep.subr.mxu0 0.0
    %7971 = vmatpush1.msra.mxu0 0.0
    %7972 = vmatprep.subr.mxu0 0.0
    %7973 = vmatpush1.msra.mxu0 0.0
    %7974 = vmatprep.subr.mxu0 0.0
    %7975 = vmatpush1.msra.mxu0 0.0
    %7976 = vmatprep.subr.mxu0 0.0
    %7977 = vmatpush1.msra.mxu0 0.0
    %7978 = vmatprep.subr.mxu0 0.0
    %7979 = vmatpush1.msra.mxu0 0.0
    %7980 = vmatprep.subr.mxu0 0.0
    %7981 = vmatpush1.msra.mxu0 0.0
    %7982 = vmatprep.subr.mxu0 0.0
    %7983 = vmatpush1.msra.mxu0 0.0
    %7984 = vmatprep.subr.mxu0 0.0
    %7985 = vmatpush1.msra.mxu0 0.0
    %7986 = vmatprep.subr.mxu0 0.0
    %7987 = vmatpush1.msra.mxu0 0.0
    %7988 = vmatprep.subr.mxu0 0.0
    %7989 = vmatpush1.msra.mxu0 0.0
    %7990 = vmatprep.subr.mxu0 0.0
    %7991 = vmatpush1.msra.mxu0 0.0
    %7992 = vmatprep.subr.mxu0 0.0
    %7993 = vmatpush1.msra.mxu0 0.0
    %7994 = vmatprep.subr.mxu0 0.0
    %7995 = vmatpush1.msra.mxu0 0.0
    %7996 = vmatprep.subr.mxu0 0.0
    %7997 = vmatpush1.msra.mxu0 0.0
    %7998 = vmatprep.subr.mxu0 0.0
    %7999 = vmatpush1.msra.mxu0 0.0
    %8000 = vmatprep.subr.mxu0 0.0
    %8001 = vmatpush1.msra.mxu0 0.0
    %8002 = vmatprep.subr.mxu0 0.0
    %8003 = vmatpush1.msra.mxu0 0.0
    %8004 = vmatprep.subr.mxu0 0.0
    %8005 = vmatpush1.msra.mxu0 0.0
    %8006 = vmatprep.subr.mxu0 0.0
    %8007 = vmatpush1.msra.mxu0 0.0
    %8008 = vmatprep.subr.mxu0 0.0
    %8009 = vmatpush1.msra.mxu0 0.0
    %8010 = vmatprep.subr.mxu0 0.0
    %8011 = vmatpush1.msra.mxu0 0.0
    %8012 = vmatprep.subr.mxu0 0.0
    %8013 = vmatpush1.msra.mxu0 0.0
    %8014 = vmatprep.subr.mxu0 0.0
    %8015 = vmatpush1.msra.mxu0 0.0
    %8016 = vmatprep.subr.mxu0 0.0
    %8017 = vmatpush1.msra.mxu0 0.0
    %8018 = vmatprep.subr.mxu0 0.0
    %8019 = vmatpush1.msra.mxu0 0.0
    %8020 = vmatprep.mubr.f32.mxu0 0.0
    %8021 = vmatmul.mubr.f32.gmra.mrb[0].mxu0 %v7951
    %v8022 = vpop.f32.mrb[0].mxu0
    %v8023 = vadd.f32 %v7930, %v8022
    %v8024 = vpop.f32.mrb[0].mxu0
    %8025 = vdwg.mxu0
    %v8028 = vlaneseq
    %v8029 = vand.u32 %v8028, 127
    %v8030 = vlaneseq
    %v8031 = vshrl.u32 %v8030, 7
    %v8032 = vsub.s32 %v8029, %v8031
    %v8033 = vrot.slane %v7921, %v8032
    %v8034 = vlaneseq
    %v8035 = vshrl.u32 %v8034, 7
    %v8036 = vsub.s32 %v8029, %v8035
    %v8037 = vrot.slane %v7924, %v8036
    %v8038 = vsel %vm3000, %v8037, %v8033
    %8041 = vrot.lane.b32.xlu0 %v8023, 8
    %v8042 = vpop.permute.xlu0 %8041
    %v8044 = vsel %vm157, %v8038, %v8042
    %v8045 = vlaneseq
    %v8046 = vshrl.u32 %v8045, 7
    %v8047 = vsub.s32 6, %v8046
    %v8048 = vrot.slane %v33, %v8047
    %v8054 = vrot.slane %v36, 6
    %v8055 = vrot.slane %v37, 6
    %v8056 = vsel %vm3875, %v8054, %v8055
    %v8057 = vrot.slane %v38, 6
    %v8058 = vsel %vm3875, %v8055, %v8057
    %v8059 = vrot.slane %v39, 6
    %v8060 = vsel %vm3875, %v8057, %v8059
    %v8061 = vrot.slane %v40, 6
    %v8062 = vsel %vm3875, %v8059, %v8061
    %v8063 = vrot.slane %v41, 6
    %v8064 = vsel %vm3875, %v8061, %v8063
    %vm8070 = vcmask 326656
    %v8072 = vsel %vm8070, %v8044, 0
    %8074 = vmatprep.subr.mxu0 0.0
    %8075 = vmatpush1.msra.mxu0 %v8056
    %8076 = vmatprep.subr.mxu0 0.0
    %8077 = vmatpush1.msra.mxu0 %v8058
    %8078 = vmatprep.subr.mxu0 0.0
    %8079 = vmatpush1.msra.mxu0 %v8060
    %8080 = vmatprep.subr.mxu0 0.0
    %8081 = vmatpush1.msra.mxu0 %v8062
    %8082 = vmatprep.subr.mxu0 0.0
    %8083 = vmatpush1.msra.mxu0 %v8064
    %8084 = vmatprep.subr.mxu0 0.0
    %8085 = vmatpush1.msra.mxu0 0.0
    %8086 = vmatprep.subr.mxu0 0.0
    %8087 = vmatpush1.msra.mxu0 0.0
    %8088 = vmatprep.subr.mxu0 0.0
    %8089 = vmatpush1.msra.mxu0 0.0
    %8090 = vmatprep.subr.mxu0 0.0
    %8091 = vmatpush1.msra.mxu0 0.0
    %8092 = vmatprep.subr.mxu0 0.0
    %8093 = vmatpush1.msra.mxu0 0.0
    %8094 = vmatprep.subr.mxu0 0.0
    %8095 = vmatpush1.msra.mxu0 0.0
    %8096 = vmatprep.subr.mxu0 0.0
    %8097 = vmatpush1.msra.mxu0 0.0
    %8098 = vmatprep.subr.mxu0 0.0
    %8099 = vmatpush1.msra.mxu0 0.0
    %8100 = vmatprep.subr.mxu0 0.0
    %8101 = vmatpush1.msra.mxu0 0.0
    %8102 = vmatprep.subr.mxu0 0.0
    %8103 = vmatpush1.msra.mxu0 0.0
    %8104 = vmatprep.subr.mxu0 0.0
    %8105 = vmatpush1.msra.mxu0 0.0
    %8106 = vmatprep.subr.mxu0 0.0
    %8107 = vmatpush1.msra.mxu0 0.0
    %8108 = vmatprep.subr.mxu0 0.0
    %8109 = vmatpush1.msra.mxu0 0.0
    %8110 = vmatprep.subr.mxu0 0.0
    %8111 = vmatpush1.msra.mxu0 0.0
    %8112 = vmatprep.subr.mxu0 0.0
    %8113 = vmatpush1.msra.mxu0 0.0
    %8114 = vmatprep.subr.mxu0 0.0
    %8115 = vmatpush1.msra.mxu0 0.0
    %8116 = vmatprep.subr.mxu0 0.0
    %8117 = vmatpush1.msra.mxu0 0.0
    %8118 = vmatprep.subr.mxu0 0.0
    %8119 = vmatpush1.msra.mxu0 0.0
    %8120 = vmatprep.subr.mxu0 0.0
    %8121 = vmatpush1.msra.mxu0 0.0
    %8122 = vmatprep.subr.mxu0 0.0
    %8123 = vmatpush1.msra.mxu0 0.0
    %8124 = vmatprep.subr.mxu0 0.0
    %8125 = vmatpush1.msra.mxu0 0.0
    %8126 = vmatprep.subr.mxu0 0.0
    %8127 = vmatpush1.msra.mxu0 0.0
    %8128 = vmatprep.subr.mxu0 0.0
    %8129 = vmatpush1.msra.mxu0 0.0
    %8130 = vmatprep.subr.mxu0 0.0
    %8131 = vmatpush1.msra.mxu0 0.0
    %8132 = vmatprep.subr.mxu0 0.0
    %8133 = vmatpush1.msra.mxu0 0.0
    %8134 = vmatprep.subr.mxu0 0.0
    %8135 = vmatpush1.msra.mxu0 0.0
    %8136 = vmatprep.subr.mxu0 0.0
    %8137 = vmatpush1.msra.mxu0 0.0
    %8138 = vmatprep.mubr.f32.mxu0 0.0
    %8139 = vmatmul.mubr.f32.gmra.mrb[0].mxu0 %v8072
    %v8140 = vpop.f32.mrb[0].mxu0
    %v8141 = vadd.f32 %v8048, %v8140
    %v8142 = vpop.f32.mrb[0].mxu0
    %8143 = vdwg.mxu0
    %v8144 = vmax.f32 %v8141, 0.0
    %v8145 = vlaneseq
    %v8146 = vshrl.u32 %v8145, 7
    %v8147 = vsub.s32 7, %v8146
    %v8148 = vrot.slane %v33, %v8147
    %v8153 = vrot.slane %v42, 6
    %v8154 = vsel %vm3875, %v8063, %v8153
    %v8155 = vrot.slane %v43, 6
    %v8156 = vsel %vm3875, %v8153, %v8155
    %v8157 = vrot.slane %v44, 6
    %v8158 = vsel %vm3875, %v8155, %v8157
    %v8159 = vrot.slane %v45, 6
    %v8160 = vsel %vm3875, %v8157, %v8159
    %v8166 = vsel %vm3684, %v8144, 0
    %8168 = vmatprep.subr.mxu0 0.0
    %8169 = vmatpush1.msra.mxu0 %v8154
    %8170 = vmatprep.subr.mxu0 0.0
    %8171 = vmatpush1.msra.mxu0 %v8156
    %8172 = vmatprep.subr.mxu0 0.0
    %8173 = vmatpush1.msra.mxu0 %v8158
    %8174 = vmatprep.subr.mxu0 0.0
    %8175 = vmatpush1.msra.mxu0 %v8160
    %8176 = vmatprep.subr.mxu0 0.0
    %8177 = vmatpush1.msra.mxu0 0.0
    %8178 = vmatprep.subr.mxu0 0.0
    %8179 = vmatpush1.msra.mxu0 0.0
    %8180 = vmatprep.subr.mxu0 0.0
    %8181 = vmatpush1.msra.mxu0 0.0
    %8182 = vmatprep.subr.mxu0 0.0
    %8183 = vmatpush1.msra.mxu0 0.0
    %8184 = vmatprep.subr.mxu0 0.0
    %8185 = vmatpush1.msra.mxu0 0.0
    %8186 = vmatprep.subr.mxu0 0.0
    %8187 = vmatpush1.msra.mxu0 0.0
    %8188 = vmatprep.subr.mxu0 0.0
    %8189 = vmatpush1.msra.mxu0 0.0
    %8190 = vmatprep.subr.mxu0 0.0
    %8191 = vmatpush1.msra.mxu0 0.0
    %8192 = vmatprep.subr.mxu0 0.0
    %8193 = vmatpush1.msra.mxu0 0.0
    %8194 = vmatprep.subr.mxu0 0.0
    %8195 = vmatpush1.msra.mxu0 0.0
    %8196 = vmatprep.subr.mxu0 0.0
    %8197 = vmatpush1.msra.mxu0 0.0
    %8198 = vmatprep.subr.mxu0 0.0
    %8199 = vmatpush1.msra.mxu0 0.0
    %8200 = vmatprep.subr.mxu0 0.0
    %8201 = vmatpush1.msra.mxu0 0.0
    %8202 = vmatprep.subr.mxu0 0.0
    %8203 = vmatpush1.msra.mxu0 0.0
    %8204 = vmatprep.subr.mxu0 0.0
    %8205 = vmatpush1.msra.mxu0 0.0
    %8206 = vmatprep.subr.mxu0 0.0
    %8207 = vmatpush1.msra.mxu0 0.0
    %8208 = vmatprep.subr.mxu0 0.0
    %8209 = vmatpush1.msra.mxu0 0.0
    %8210 = vmatprep.subr.mxu0 0.0
    %8211 = vmatpush1.msra.mxu0 0.0
    %8212 = vmatprep.subr.mxu0 0.0
    %8213 = vmatpush1.msra.mxu0 0.0
    %8214 = vmatprep.subr.mxu0 0.0
    %8215 = vmatpush1.msra.mxu0 0.0
    %8216 = vmatprep.subr.mxu0 0.0
    %8217 = vmatpush1.msra.mxu0 0.0
    %8218 = vmatprep.subr.mxu0 0.0
    %8219 = vmatpush1.msra.mxu0 0.0
    %8220 = vmatprep.subr.mxu0 0.0
    %8221 = vmatpush1.msra.mxu0 0.0
    %8222 = vmatprep.subr.mxu0 0.0
    %8223 = vmatpush1.msra.mxu0 0.0
    %8224 = vmatprep.subr.mxu0 0.0
    %8225 = vmatpush1.msra.mxu0 0.0
    %8226 = vmatprep.subr.mxu0 0.0
    %8227 = vmatpush1.msra.mxu0 0.0
    %8228 = vmatprep.subr.mxu0 0.0
    %8229 = vmatpush1.msra.mxu0 0.0
    %8230 = vmatprep.subr.mxu0 0.0
    %8231 = vmatpush1.msra.mxu0 0.0
    %8232 = vmatprep.mubr.f32.mxu0 0.0
    %8233 = vmatmul.mubr.f32.gmra.mrb[0].mxu0 %v8166
    %v8234 = vpop.f32.mrb[0].mxu0
    %v8235 = vadd.f32 %v8148, %v8234
    %v8236 = vpop.f32.mrb[0].mxu0
    %8237 = vdwg.mxu0
    %v8238 = vadd.s32 %v8029, 4294967294
    %v8239 = vlaneseq
    %v8240 = vshrl.u32 %v8239, 7
    %v8241 = vsub.s32 %v8238, %v8240
    %v8242 = vrot.slane %v7921, %v8241
    %v8243 = vlaneseq
    %v8244 = vshrl.u32 %v8243, 7
    %v8245 = vsub.s32 %v8238, %v8244
    %v8246 = vrot.slane %v7924, %v8245
    %v8247 = vsel %vm3000, %v8246, %v8242
    %8249 = vrot.lane.b32.xlu0 %v8023, 10
    %v8250 = vpop.permute.xlu0 %8249
    %vm8252 = vcmask 15360
    %v8253 = vsel %vm8252, %v8235, %v8247
    %vm8254 = vcmask 80896
    %v8255 = vsel %vm8254, %v8253, %v8250
    %vm8256 = vcmask 343040
    %v8257 = vsel %vm8256, %v8255, 0.0
    %v8260 = vunpack.c.l.s4 1966171168
    %v8261 = vunpack.c.0.s8 %v8260
    %v8262 = vlaneseq
    %v8263 = vshrl.u32 %v8262, 7
    %v8264 = vsub.s32 %v8261, %v8263
    %v8265 = vrot.slane %v8257, %v8264
    %v8266 = vcombine.high %v8265, %v8265
    %v8268 = vunpack.c.l.s4 1966171168
    %v8269 = vunpack.c.0.s8 %v8268
    %v8270 = vlaneseq
    %v8271 = vshrl.u32 %v8270, 7
    %v8272 = vsub.s32 %v8269, %v8271
    %v8273 = vrot.slane %v8265, %v8272
    %v8275 = vunpack.c.l.s4 1966171168
    %v8276 = vunpack.c.0.s8 %v8275
    %v8277 = vlaneseq
    %v8278 = vshrl.u32 %v8277, 7
    %v8279 = vsub.s32 %v8276, %v8278
    %v8280 = vrot.slane %v8266, %v8279
    %8283 = vst [vmem:[#allocation2] sm:$0x1] %v8273
    %8284 = vst [vmem:[#allocation2 + $0x1] sm:$0x1] %v8280
    // Predicated region
    $region34: #{tpu_custom_call.1} parent=1 // pred_check
      _
    $region35: #{tpu_custom_call.1} parent=1 // pred_check_branch
      %8286 = sbr.rel (0) target = $region37
    $region36: #{tpu_custom_call.1} parent=1 // pred_region
      %s8288 = ssub.s32 32, 32
      %8289 = vsyncadd [#allocation3], %s8288
      %s8290 = sshll.u32 [#allocation2], 4
      %s8291 = int_to_ptr.vmem [resolvable:$true] %s8290
      %8296 = dma.vmem_to_hbm [thread:$0]  %s8291, 32, %s8, [#allocation3], 16, 16, 1
    $region37: #{tpu_custom_call.1} parent=1 // pred_fallthru
      _
    // Predicated region
    $region38: #{tpu_custom_call.1} parent=1 // pred_check
      _
    $region39: #{tpu_custom_call.1} parent=1 // pred_check_branch
      %8298 = sbr.rel (0) target = $region41
    $region40: #{tpu_custom_call.1} parent=1 // pred_region
      %8299 = dma.done [#allocation3], 32
    $region41: #{tpu_custom_call.1} parent=1 // pred_fallthru
      _
    %8300 = vsyncpa [#allocation3], 1

</llo_original>
